<compile_context>
chip_gen: v7x
topology: tpu7x:2x2x1
jax: 0.10.0
libtpu: 0.0.40
codegen_flags: <defaults>
</compile_context>

<pallas_src>
import functools
import math

import jax
import jax.numpy as jnp
from jax.experimental import pallas as pl
from jax.experimental.pallas import tpu as pltpu


WEIGHT_ORDER = (
    "wqkv1", "bqkv1", "wo1", "bo1",
    "wq2", "bq2", "wkv2", "bkv2", "wo2", "bo2",
    "w1", "b1", "w2", "b2",
    "gamma", "beta",
)


# ----------------------------------------------------------------------------
# Fused decoder-stack kernel.  grid = (row_blocks, n_layers); for a fixed row
# block the layer axis iterates innermost and the output block (constant block
# index across layers) carries the activations in VMEM.
# ----------------------------------------------------------------------------
def _decoder_stack_kernel(*refs, Bb, S, Se, D, n_heads, d_k,
                          compute_dtype, has_dec_mask, has_enc_mask):
    idx = 0
    x_ref = refs[idx]; idx += 1
    enc_ref = refs[idx]; idx += 1
    dmask_ref = emask_ref = None
    if has_dec_mask:
        dmask_ref = refs[idx]; idx += 1
    if has_enc_mask:
        emask_ref = refs[idx]; idx += 1
    (wqkv1_ref, bqkv1_ref, wo1_ref, bo1_ref,
     wq2_ref, bq2_ref, wkv2_ref, bkv2_ref, wo2_ref, bo2_ref,
     w1_ref, b1_ref, w2_ref, b2_ref,
     gamma_ref, beta_ref) = refs[idx:idx + 16]
    idx += 16
    o_ref = refs[idx]; idx += 1              # resident activation + final output
    sbias_ref = refs[idx]; idx += 1          # additive self-attn mask bias (f32)
    cbias_ref = refs[idx] if has_enc_mask else None

    layer = pl.program_id(1)
    dh = n_heads * d_k
    BS = Bb * S

    # Layer 0: seed the resident activation and build the additive mask bias
    # ONCE (it is reused by every layer; JAX does not CSE broadcast_in_dim).
    @pl.when(layer == 0)
    def _init():
        o_ref[...] = x_ref[...]
        row = jax.lax.broadcasted_iota(jnp.int32, (S, S), 0)
        col = jax.lax.broadcasted_iota(jnp.int32, (S, S), 1)
        keep = jnp.broadcast_to((row >= col)[None, :, :], (Bb, S, S))
        if has_dec_mask:
            keep = jnp.logical_and(keep, dmask_ref[...] > 0)
        sbias_ref[...] = jnp.where(keep, 0.0, -1e9)
        if has_enc_mask:
            cbias_ref[...] = jnp.where(emask_ref[...] > 0, 0.0, -1e9)

    x = o_ref[...].reshape(BS, D)                     # (B*S, D) f32, resident
    enc = enc_ref[...].reshape(Bb * Se, D)            # (B*Se, D) bf16 (no cast)

    gamma = gamma_ref[0]                              # (1, D) f32
    beta = beta_ref[0]                                # (1, D) f32

    def layer_norm(v):                                # f32 math, eps = 1e-5
        mu = jnp.mean(v, axis=-1, keepdims=True)
        var = jnp.mean((v - mu) ** 2, axis=-1, keepdims=True)
        return (v - mu) * jax.lax.rsqrt(var + 1e-5) * gamma + beta

    def mm(a, w, b=None):                             # bf16 matmul, f32 accum
        out = jnp.dot(a.astype(w.dtype), w, preferred_element_type=jnp.float32)
        if b is not None:
            out = out + b
        return out

    def attend(q3, k3, v3, wo, bo, bias):
        """q3:(Bb,Sq,dh) (already 1/sqrt(d_k)-scaled), k3/v3:(Bb,Skv,dh).
        Per-head scores/softmax/context (static head loop, 128-aligned lane
        slices), then ONE fused (B*Sq, dh) @ (dh, D) output projection."""
        Sq = q3.shape[1]
        ctx_heads = []
        for h in range(n_heads):
            sl = slice(h * d_k, (h + 1) * d_k)
            qh = q3[:, :, sl].astype(compute_dtype)
            kh = k3[:, :, sl].astype(compute_dtype)
            vh = v3[:, :, sl].astype(compute_dtype)
            s = jnp.einsum("bqd,bkd->bqk", qh, kh,          # no explicit k.T
                           preferred_element_type=jnp.float32)
            if bias is not None:
                s = s + bias                                 # additive mask
            s = s - jnp.max(s, axis=-1, keepdims=True)
            p = jnp.exp(s)
            p = p * pl.reciprocal(jnp.sum(p, axis=-1, keepdims=True),
                                  approx=True)
            ctx_heads.append(jnp.einsum("bqk,bkd->bqd", p.astype(compute_dtype),
                                        vh, preferred_element_type=jnp.float32))
        ctx = ctx_heads[0] if n_heads == 1 else jnp.concatenate(ctx_heads, axis=-1)
        return mm(ctx.reshape(Bb * Sq, dh), wo, bo)          # single K=dh pass

    sbias = sbias_ref[...]
    cbias = cbias_ref[...] if has_enc_mask else None

    # ---- masked self-attention + residual + LayerNorm ----
    qkv = mm(x, wqkv1_ref[0], bqkv1_ref[0])                  # (B*S, 3*dh)
    q3 = qkv[:, 0 * dh:1 * dh].reshape(Bb, S, dh)            # pre-scaled Q
    k3 = qkv[:, 1 * dh:2 * dh].reshape(Bb, S, dh)
    v3 = qkv[:, 2 * dh:3 * dh].reshape(Bb, S, dh)
    sa = attend(q3, k3, v3, wo1_ref[0], bo1_ref[0], sbias)
    x1 = layer_norm(sa + x)

    # ---- cross-attention + residual + LayerNorm ----
    q = mm(x1, wq2_ref[0], bq2_ref[0])                       # (B*S, dh), pre-scaled
    kv = mm(enc, wkv2_ref[0], bkv2_ref[0])                   # (B*Se, 2*dh)
    q3c = q.reshape(Bb, S, dh)
    k3c = kv[:, 0 * dh:1 * dh].reshape(Bb, Se, dh)
    v3c = kv[:, 1 * dh:2 * dh].reshape(Bb, Se, dh)
    ca = attend(q3c, k3c, v3c, wo2_ref[0], bo2_ref[0], cbias)
    x2 = layer_norm(ca + x1)

    # ---- feed-forward + residual + LayerNorm ----
    h1 = jnp.maximum(mm(x2, w1_ref[0], b1_ref[0]), 0.0)      # (B*S, d_ff)
    ff = mm(h1, w2_ref[0], b2_ref[0])                        # (B*S, D)
    x3 = layer_norm(ff + x2)

    # The output block index is constant across the layer axis, so this store
    # stays in VMEM (activation carry) and is written back to HBM only once.
    o_ref[...] = x3.reshape(Bb, S, D).astype(o_ref.dtype)


# ----------------------------------------------------------------------------
# Parameter packing: fuse Q/K/V (and K/V) weights, fold 1/sqrt(d_k) into the
# Q weights/biases, stack across layers, cast matmul weights to bf16.
# ----------------------------------------------------------------------------
def _pack_params(params, d_k, compute_dtype=jnp.bfloat16):
    scale = 1.0 / math.sqrt(d_k)

    def stack(fn, dtype):
        return jnp.stack([fn(p) for p in params]).astype(dtype)

    return dict(
        wqkv1=stack(lambda p: jnp.concatenate(
            [p["wq1"] * scale, p["wk1"], p["wv1"]], axis=1), compute_dtype),
        bqkv1=stack(lambda p: jnp.concatenate(
            [p["bq1"] * scale, p["bk1"], p["bv1"]], axis=1), jnp.float32),
        wo1=stack(lambda p: p["wo1"], compute_dtype),
        bo1=stack(lambda p: p["bo1"], jnp.float32),
        wq2=stack(lambda p: p["wq2"] * scale, compute_dtype),
        bq2=stack(lambda p: p["bq2"] * scale, jnp.float32),
        wkv2=stack(lambda p: jnp.concatenate([p["wk2"], p["wv2"]], axis=1), compute_dtype),
        bkv2=stack(lambda p: jnp.concatenate([p["bk2"], p["bv2"]], axis=1), jnp.float32),
        wo2=stack(lambda p: p["wo2"], compute_dtype),
        bo2=stack(lambda p: p["bo2"], jnp.float32),
        w1=stack(lambda p: p["w1"], compute_dtype),
        b1=stack(lambda p: p["b1"], jnp.float32),
        w2=stack(lambda p: p["w2"], compute_dtype),
        b2=stack(lambda p: p["b2"], jnp.float32),
        gamma=stack(lambda p: p["gamma"], jnp.float32),
        beta=stack(lambda p: p["beta"], jnp.float32),
    )


def decoder_forward(x, enc, params, *, n_heads, d_k,
                    decoder_padding_mask=None, encoder_padding_mask=None,
                    compute_dtype=jnp.bfloat16, batch_block=None):
    """Mirrors Decoder.forward for the full layer stack in ONE pallas_call.

    batch_block: rows-per-grid-step along batch; default = full batch.  On v7x
    set batch_block = B // 2 so the 'parallel' row axis splits across both
    TensorCores (each keeps its own resident activation block)."""
    B, S, D = x.shape
    Se = enc.shape[1]
    L = len(params)
    d_ff = params[0]["w1"].shape[1]
    dh = n_heads * d_k

    Bb = B if batch_block is None else batch_block
    assert B % Bb == 0
    R = B // Bb

    packed = _pack_params(params, d_k, compute_dtype)
    weights = [packed[name] for name in WEIGHT_ORDER]

    has_dec_mask = decoder_padding_mask is not None
    has_enc_mask = encoder_padding_mask is not None

    def row_spec(shape):
        # Block index follows the (outer, parallel) row axis; constant across
        # the layer axis -> fetched once per row block, resident in VMEM.
        return pl.BlockSpec(shape, lambda r, l: (r,) + (0,) * (len(shape) - 1))

    def layer_spec(stacked):
        blk = (1,) + stacked.shape[1:]
        return pl.BlockSpec(blk, lambda r, l: (l,) + (0,) * (len(blk) - 1))

    inputs = [x.astype(jnp.float32), enc.astype(compute_dtype)]   # enc in bf16
    in_specs = [row_spec((Bb, S, D)), row_spec((Bb, Se, D))]
    if has_dec_mask:
        inputs.append((decoder_padding_mask > 0.5).astype(jnp.int8))
        in_specs.append(row_spec((Bb, S, S)))
    if has_enc_mask:
        inputs.append((encoder_padding_mask > 0.5).astype(jnp.int8))
        in_specs.append(row_spec((Bb, S, Se)))
    inputs += weights
    in_specs += [layer_spec(w) for w in weights]

    scratch_shapes = [pltpu.VMEM((Bb, S, S), jnp.float32)]        # self mask bias
    if has_enc_mask:
        scratch_shapes.append(pltpu.VMEM((Bb, S, Se), jnp.float32))

    kernel = functools.partial(
        _decoder_stack_kernel, Bb=Bb, S=S, Se=Se, D=D,
        n_heads=n_heads, d_k=d_k, compute_dtype=compute_dtype,
        has_dec_mask=has_dec_mask, has_enc_mask=has_enc_mask)

    flops_layer = (
        2 * B * S * D * (3 * dh)             # fused self QKV projection
        + 4 * B * n_heads * S * S * d_k      # self scores + context
        + 2 * B * S * dh * D                 # self output projection
        + 2 * B * S * D * dh                 # cross Q projection
        + 2 * B * Se * D * (2 * dh)          # fused cross KV projection
        + 4 * B * n_heads * S * Se * d_k     # cross scores + context
        + 2 * B * S * dh * D                 # cross output projection
        + 4 * B * S * D * d_ff               # FFN (two matmuls)
    )
    cost = pl.CostEstimate(
        flops=int(L * flops_layer),
        transcendentals=int(L * B * n_heads * S * (S + Se)),
        bytes_accessed=int(sum(int(a.nbytes) for a in inputs) + B * S * D * 4))

    return pl.pallas_call(
        kernel,
        out_shape=jax.ShapeDtypeStruct((B, S, D), jnp.float32),
        grid=(R, L),
        in_specs=in_specs,
        # Constant block index across the layer axis: the output block is the
        # resident activation; HBM writeback happens once per row block.
        out_specs=pl.BlockSpec((Bb, S, D), lambda r, l: (r, 0, 0)),
        scratch_shapes=scratch_shapes,
        compiler_params=pltpu.CompilerParams(
            # Row blocks are independent ("parallel", split across TCs on v7x);
            # the layer axis carries state (resident output block) -> sequential.
            dimension_semantics=("parallel", "arbitrary"),
            vmem_limit_bytes=48 * 1024 * 1024),
        cost_estimate=cost,
    )(*inputs)


# ----------------------------------------------------------------------------
# Pure-JAX f32 reference (mirrors the PyTorch module), for a sanity check.
# ----------------------------------------------------------------------------
def decoder_reference(x, enc, params, *, n_heads, d_k,
                      decoder_padding_mask=None, encoder_padding_mask=None):
    B, S, D = x.shape
    causal = jnp.broadcast_to(jnp.tril(jnp.ones((S, S), jnp.float32))[None], (B, S, S))
    if decoder_padding_mask is not None:
        causal = causal * decoder_padding_mask

    def mha(q_in, kv_in, mask, wq, bq, wk, bk, wv, bv, wo, bo):
        heads = []
        for h in range(n_heads):
            sl = slice(h * d_k, (h + 1) * d_k)
            q = q_in @ wq[:, sl] + bq[0, sl]
            k = kv_in @ wk[:, sl] + bk[0, sl]
            v = kv_in @ wv[:, sl] + bv[0, sl]
            s = jnp.einsum("bqd,bkd->bqk", q, k) / math.sqrt(d_k)
            if mask is not None:
                s = jnp.where(mask > 0.5, s, -1e9)
            p = jax.nn.softmax(s, axis=-1)
            heads.append(jnp.einsum("bqk,bkd->bqd", p, v))
        return jnp.concatenate(heads, axis=-1) @ wo + bo[0]

    def ln(v, g, b):
        mu = jnp.mean(v, axis=-1, keepdims=True)
        var = jnp.mean((v - mu) ** 2, axis=-1, keepdims=True)
        return (v - mu) / jnp.sqrt(var + 1e-5) * g[0] + b[0]

    out = x
    for p in params:
        sa = mha(out, out, causal, p["wq1"], p["bq1"], p["wk1"], p["bk1"],
                 p["wv1"], p["bv1"], p["wo1"], p["bo1"])
        out = ln(sa + out, p["gamma"], p["beta"])
        ca = mha(out, enc, encoder_padding_mask, p["wq2"], p["bq2"], p["wk2"],
                 p["bk2"], p["wv2"], p["bv2"], p["wo2"], p["bo2"])
        out = ln(ca + out, p["gamma"], p["beta"])
        h = jax.nn.relu(out @ p["w1"] + p["b1"][0])
        out = ln(h @ p["w2"] + p["b2"][0] + out, p["gamma"], p["beta"])
    return out


# ----------------------------------------------------------------------------
# Deterministic synthetic parameter init (PyTorch-style separate Q/K/V mats).
# ----------------------------------------------------------------------------
def init_decoder_params(key, *, dim_embedding, d_k, n_heads, d_ff, n_layers):
    dh = d_k * n_heads

    def lin(k, din, dout):
        kw, kb = jax.random.split(k)
        w = jax.random.normal(kw, (din, dout), jnp.float32) * (1.0 / math.sqrt(din))
        b = jax.random.normal(kb, (1, dout), jnp.float32) * 0.01
        return w, b

    params = []
    for lk in jax.random.split(key, n_layers):
        ks = jax.random.split(lk, 11)
        p = {}
        p["wq1"], p["bq1"] = lin(ks[0], dim_embedding, dh)
        p["wk1"], p["bk1"] = lin(ks[1], dim_embedding, dh)
        p["wv1"], p["bv1"] = lin(ks[2], dim_embedding, dh)
        p["wo1"], p["bo1"] = lin(ks[3], dh, dim_embedding)
        p["wq2"], p["bq2"] = lin(ks[4], dim_embedding, dh)
        p["wk2"], p["bk2"] = lin(ks[5], dim_embedding, dh)
        p["wv2"], p["bv2"] = lin(ks[6], dim_embedding, dh)
        p["wo2"], p["bo2"] = lin(ks[7], dh, dim_embedding)
        p["w1"], p["b1"] = lin(ks[8], dim_embedding, d_ff)
        p["w2"], p["b2"] = lin(ks[9], d_ff, dim_embedding)
        p["gamma"] = 1.0 + 0.1 * jax.random.normal(ks[10], (1, dim_embedding), jnp.float32)
        p["beta"] = jnp.zeros((1, dim_embedding), jnp.float32)
        params.append(p)
    return params


if __name__ == "__main__":
    # Shapes chosen to keep the MXU fed: M = B*S = 256 rows per grid step,
    # 128-lane score tiles, d_k = 128 so head slices are 128-lane aligned.
    B, S, Se = 2, 128, 128
    D, DK, H, DFF, N = 128, 128, 2, 256, 2

    key = jax.random.PRNGKey(0)
    kx, kenc, kp = jax.random.split(key, 3)
    x = jax.random.normal(kx, (B, S, D), jnp.float32)
    enc = jax.random.normal(kenc, (B, Se, D), jnp.float32)

    params = init_decoder_params(
        kp, dim_embedding=D, d_k=DK, n_heads=H, d_ff=DFF, n_layers=N)

    out = decoder_forward(x, enc, params, n_heads=H, d_k=DK)
    out = jax.block_until_ready(out)

    assert out.shape == (B, S, D) and out.dtype == jnp.float32
    assert bool(jnp.all(jnp.isfinite(out)))

    # Tolerance budget: bf16 weight/activation quantization inside the
    # f32-accumulated matmuls (rel ~0.4% per operand, O(1) activations across
    # 2 layers / ~7 matmuls each) plus the approximate softmax reciprocal.
    ref = decoder_reference(x, enc, params, n_heads=H, d_k=DK)
    max_err = float(jnp.max(jnp.abs(out - ref)))
    assert max_err < 0.5, f"max abs error vs f32 reference too large: {max_err}"

    print("KERNEL_OK")
</pallas_src>

<mosaic_0001>
module attributes {stable_mosaic.version = 11 : i64} {
  func.func @_decoder_stack_kernel(%arg0: i32, %arg1: i32, %arg2: memref<2x128x128xf32, #tpu.memory_space<vmem>>, %arg3: memref<2x128x128xbf16, #tpu.memory_space<vmem>>, %arg4: memref<1x128x768xbf16, #tpu.memory_space<vmem>>, %arg5: memref<1x1x768xf32, #tpu.memory_space<vmem>>, %arg6: memref<1x256x128xbf16, #tpu.memory_space<vmem>>, %arg7: memref<1x1x128xf32, #tpu.memory_space<vmem>>, %arg8: memref<1x128x256xbf16, #tpu.memory_space<vmem>>, %arg9: memref<1x1x256xf32, #tpu.memory_space<vmem>>, %arg10: memref<1x128x512xbf16, #tpu.memory_space<vmem>>, %arg11: memref<1x1x512xf32, #tpu.memory_space<vmem>>, %arg12: memref<1x256x128xbf16, #tpu.memory_space<vmem>>, %arg13: memref<1x1x128xf32, #tpu.memory_space<vmem>>, %arg14: memref<1x128x256xbf16, #tpu.memory_space<vmem>>, %arg15: memref<1x1x256xf32, #tpu.memory_space<vmem>>, %arg16: memref<1x256x128xbf16, #tpu.memory_space<vmem>>, %arg17: memref<1x1x128xf32, #tpu.memory_space<vmem>>, %arg18: memref<1x1x128xf32, #tpu.memory_space<vmem>>, %arg19: memref<1x1x128xf32, #tpu.memory_space<vmem>>, %arg20: memref<2x128x128xf32, #tpu.memory_space<vmem>>, %arg21: memref<2x128x128xf32, #tpu.memory_space<vmem>>) attributes {dimension_semantics = [#tpu.dimension_semantics<parallel>, #tpu.dimension_semantics<arbitrary>], iteration_bounds = array<i64: 1, 2>, scalar_prefetch = 0 : i64, scratch_operands = 1 : i64, tpu.core_type = #tpu.core_type<tc>, window_params = [{transform_indices = @transform_0, window_bounds = array<i64: 2, 128, 128>}, {transform_indices = @transform_1, window_bounds = array<i64: 2, 128, 128>}, {transform_indices = @transform_2, window_bounds = array<i64: 1, 128, 768>}, {transform_indices = @transform_3, window_bounds = array<i64: 1, 1, 768>}, {transform_indices = @transform_4, window_bounds = array<i64: 1, 256, 128>}, {transform_indices = @transform_5, window_bounds = array<i64: 1, 1, 128>}, {transform_indices = @transform_6, window_bounds = array<i64: 1, 128, 256>}, {transform_indices = @transform_7, window_bounds = array<i64: 1, 1, 256>}, {transform_indices = @transform_8, window_bounds = array<i64: 1, 128, 512>}, {transform_indices = @transform_9, window_bounds = array<i64: 1, 1, 512>}, {transform_indices = @transform_10, window_bounds = array<i64: 1, 256, 128>}, {transform_indices = @transform_11, window_bounds = array<i64: 1, 1, 128>}, {transform_indices = @transform_12, window_bounds = array<i64: 1, 128, 256>}, {transform_indices = @transform_13, window_bounds = array<i64: 1, 1, 256>}, {transform_indices = @transform_14, window_bounds = array<i64: 1, 256, 128>}, {transform_indices = @transform_15, window_bounds = array<i64: 1, 1, 128>}, {transform_indices = @transform_16, window_bounds = array<i64: 1, 1, 128>}, {transform_indices = @transform_17, window_bounds = array<i64: 1, 1, 128>}, {transform_indices = @transform_18, window_bounds = array<i64: 2, 128, 128>}]} {
    %c0_i32 = arith.constant 0 : i32
    %0 = arith.cmpi eq, %arg1, %c0_i32 : i32
    %1 = arith.extui %0 : i1 to i32
    %c0_i32_0 = arith.constant 0 : i32
    %2 = arith.cmpi ne, %1, %c0_i32_0 : i32
    scf.if %2 {
      %c0_98 = arith.constant 0 : index
      %c0_99 = arith.constant 0 : index
      %c0_100 = arith.constant 0 : index
      %233 = vector.load %arg2[%c0_98, %c0_99, %c0_100] : memref<2x128x128xf32, #tpu.memory_space<vmem>>, vector<2x128x128xf32>
      %c0_101 = arith.constant 0 : index
      %c0_102 = arith.constant 0 : index
      %c0_103 = arith.constant 0 : index
      %234 = vector.load %arg20[%c0_101, %c0_102, %c0_103] : memref<2x128x128xf32, #tpu.memory_space<vmem>>, vector<2x128x128xf32>
      tpu.vector_store %arg20[%c0_101, %c0_102, %c0_103], %233 {strides = array<i32>} : memref<2x128x128xf32, #tpu.memory_space<vmem>>, vector<2x128x128xf32>,
      %235 = tpu.iota {dimensions = array<i32: 0>} : vector<128x128xi32>
      %236 = tpu.iota {dimensions = array<i32: 1>} : vector<128x128xi32>
      %237 = arith.cmpi sge, %235, %236 : vector<128x128xi32>
      %238 = vector.shape_cast %237 : vector<128x128xi1> to vector<1x128x128xi1>
      %239 = vector.shape_cast %238 : vector<1x128x128xi1> to vector<1x128x128xi1>
      %240 = vector.broadcast %239 : vector<1x128x128xi1> to vector<2x128x128xi1>
      %cst_104 = arith.constant 0.000000e+00 : f32
      %cst_105 = arith.constant -1.000000e+09 : f32
      %241 = vector.broadcast %cst_104 : f32 to vector<2x128x128xf32>
      %242 = vector.broadcast %cst_105 : f32 to vector<2x128x128xf32>
      %243 = arith.select %240, %241, %242 : vector<2x128x128xi1>, vector<2x128x128xf32>
      %c0_106 = arith.constant 0 : index
      %c0_107 = arith.constant 0 : index
      %c0_108 = arith.constant 0 : index
      %244 = vector.load %arg21[%c0_106, %c0_107, %c0_108] : memref<2x128x128xf32, #tpu.memory_space<vmem>>, vector<2x128x128xf32>
      tpu.vector_store %arg21[%c0_106, %c0_107, %c0_108], %243 {strides = array<i32>} : memref<2x128x128xf32, #tpu.memory_space<vmem>>, vector<2x128x128xf32>,
    } else {
    }
    %c0 = arith.constant 0 : index
    %c0_1 = arith.constant 0 : index
    %c0_2 = arith.constant 0 : index
    %3 = vector.load %arg20[%c0, %c0_1, %c0_2] : memref<2x128x128xf32, #tpu.memory_space<vmem>>, vector<2x128x128xf32>
    %4 = vector.shape_cast %3 : vector<2x128x128xf32> to vector<256x128xf32>
    %c0_3 = arith.constant 0 : index
    %c0_4 = arith.constant 0 : index
    %c0_5 = arith.constant 0 : index
    %5 = vector.load %arg3[%c0_3, %c0_4, %c0_5] : memref<2x128x128xbf16, #tpu.memory_space<vmem>>, vector<2x128x128xbf16>
    %6 = vector.shape_cast %5 : vector<2x128x128xbf16> to vector<256x128xbf16>
    %c0_6 = arith.constant 0 : index
    %c0_7 = arith.constant 0 : index
    %c0_8 = arith.constant 0 : index
    %7 = vector.load %arg18[%c0_6, %c0_7, %c0_8] : memref<1x1x128xf32, #tpu.memory_space<vmem>>, vector<1x1x128xf32>
    %8 = vector.shape_cast %7 : vector<1x1x128xf32> to vector<1x128xf32>
    %c0_9 = arith.constant 0 : index
    %c0_10 = arith.constant 0 : index
    %c0_11 = arith.constant 0 : index
    %9 = vector.load %arg19[%c0_9, %c0_10, %c0_11] : memref<1x1x128xf32, #tpu.memory_space<vmem>>, vector<1x1x128xf32>
    %10 = vector.shape_cast %9 : vector<1x1x128xf32> to vector<1x128xf32>
    %c0_12 = arith.constant 0 : index
    %c0_13 = arith.constant 0 : index
    %c0_14 = arith.constant 0 : index
    %11 = vector.load %arg21[%c0_12, %c0_13, %c0_14] : memref<2x128x128xf32, #tpu.memory_space<vmem>>, vector<2x128x128xf32>
    %c0_15 = arith.constant 0 : index
    %c0_16 = arith.constant 0 : index
    %c0_17 = arith.constant 0 : index
    %12 = vector.load %arg4[%c0_15, %c0_16, %c0_17] : memref<1x128x768xbf16, #tpu.memory_space<vmem>>, vector<1x128x768xbf16>
    %13 = vector.shape_cast %12 : vector<1x128x768xbf16> to vector<128x768xbf16>
    %c0_18 = arith.constant 0 : index
    %c0_19 = arith.constant 0 : index
    %c0_20 = arith.constant 0 : index
    %14 = vector.load %arg5[%c0_18, %c0_19, %c0_20] : memref<1x1x768xf32, #tpu.memory_space<vmem>>, vector<1x1x768xf32>
    %15 = vector.shape_cast %14 : vector<1x1x768xf32> to vector<1x768xf32>
    %16 = arith.truncf %4 : vector<256x128xf32> to vector<256x128xbf16>
    %cst = arith.constant dense<0.000000e+00> : vector<256x768xf32>
    %17 = tpu.matmul %16, %13, %cst {dimension_numbers = #tpu.dot_dimension_numbers<[1], [0], [0], [1], [0, 0, 1, 1], [], []>} : vector<256x128xbf16>, vector<128x768xbf16>, vector<256x768xf32> -> vector<256x768xf32>
    %18 = vector.broadcast %15 : vector<1x768xf32> to vector<256x768xf32>
    %19 = arith.addf %17, %18 : vector<256x768xf32>
    %20 = vector.extract_strided_slice %19 {offsets = [0, 0], sizes = [256, 256], strides = [1, 1]} : vector<256x768xf32> to vector<256x256xf32>
    %21 = vector.shape_cast %20 : vector<256x256xf32> to vector<2x128x256xf32>
    %22 = vector.extract_strided_slice %19 {offsets = [0, 256], sizes = [256, 256], strides = [1, 1]} : vector<256x768xf32> to vector<256x256xf32>
    %23 = vector.shape_cast %22 : vector<256x256xf32> to vector<2x128x256xf32>
    %24 = vector.extract_strided_slice %19 {offsets = [0, 512], sizes = [256, 256], strides = [1, 1]} : vector<256x768xf32> to vector<256x256xf32>
    %25 = vector.shape_cast %24 : vector<256x256xf32> to vector<2x128x256xf32>
    %c0_21 = arith.constant 0 : index
    %c0_22 = arith.constant 0 : index
    %c0_23 = arith.constant 0 : index
    %26 = vector.load %arg6[%c0_21, %c0_22, %c0_23] : memref<1x256x128xbf16, #tpu.memory_space<vmem>>, vector<1x256x128xbf16>
    %27 = vector.shape_cast %26 : vector<1x256x128xbf16> to vector<256x128xbf16>
    %c0_24 = arith.constant 0 : index
    %c0_25 = arith.constant 0 : index
    %c0_26 = arith.constant 0 : index
    %28 = vector.load %arg7[%c0_24, %c0_25, %c0_26] : memref<1x1x128xf32, #tpu.memory_space<vmem>>, vector<1x1x128xf32>
    %29 = vector.shape_cast %28 : vector<1x1x128xf32> to vector<1x128xf32>
    %30 = vector.extract_strided_slice %21 {offsets = [0, 0, 0], sizes = [2, 128, 128], strides = [1, 1, 1]} : vector<2x128x256xf32> to vector<2x128x128xf32>
    %31 = arith.truncf %30 : vector<2x128x128xf32> to vector<2x128x128xbf16>
    %32 = vector.extract_strided_slice %23 {offsets = [0, 0, 0], sizes = [2, 128, 128], strides = [1, 1, 1]} : vector<2x128x256xf32> to vector<2x128x128xf32>
    %33 = arith.truncf %32 : vector<2x128x128xf32> to vector<2x128x128xbf16>
    %34 = vector.extract_strided_slice %25 {offsets = [0, 0, 0], sizes = [2, 128, 128], strides = [1, 1, 1]} : vector<2x128x256xf32> to vector<2x128x128xf32>
    %35 = arith.truncf %34 : vector<2x128x128xf32> to vector<2x128x128xbf16>
    "tpu.trace_start"() <{level = 10 : i32, message = "bqd,bkd->bqk"}> : () -> ()
    %cst_27 = arith.constant dense<0.000000e+00> : vector<2x128x128xf32>
    %36 = tpu.matmul %31, %33, %cst_27 {dimension_numbers = #tpu.dot_dimension_numbers<[2], [2], [1], [1], [0, 0, 0, 1, 1, 1], [0], [0]>} : vector<2x128x128xbf16>, vector<2x128x128xbf16>, vector<2x128x128xf32> -> vector<2x128x128xf32>
    "tpu.trace_stop"() : () -> ()
    %37 = arith.addf %36, %11 : vector<2x128x128xf32>
    %cst_28 = arith.constant dense<0xFF800000> : vector<2x128xf32>
    %38 = vector.multi_reduction <maximumf>, %37, %cst_28 [2] : vector<2x128x128xf32> to vector<2x128xf32>
    %39 = vector.shape_cast %38 : vector<2x128xf32> to vector<2x128x1xf32>
    %40 = vector.broadcast %39 : vector<2x128x1xf32> to vector<2x128x128xf32>
    %41 = arith.subf %37, %40 : vector<2x128x128xf32>
    %42 = math.exp %41 : vector<2x128x128xf32>
    %cst_29 = arith.constant dense<0.000000e+00> : vector<2x128xf32>
    %43 = vector.multi_reduction <add>, %42, %cst_29 [2] : vector<2x128x128xf32> to vector<2x128xf32>
    %44 = vector.shape_cast %43 : vector<2x128xf32> to vector<2x128x1xf32>
    %45 = tpu.reciprocal %44 {approx = true} : vector<2x128x1xf32> -> vector<2x128x1xf32>
    %46 = vector.broadcast %45 : vector<2x128x1xf32> to vector<2x128x128xf32>
    %47 = arith.mulf %42, %46 : vector<2x128x128xf32>
    %48 = arith.truncf %47 : vector<2x128x128xf32> to vector<2x128x128xbf16>
    "tpu.trace_start"() <{level = 10 : i32, message = "bqk,bkd->bqd"}> : () -> ()
    %cst_30 = arith.constant dense<0.000000e+00> : vector<2x128x128xf32>
    %49 = tpu.matmul %48, %35, %cst_30 {dimension_numbers = #tpu.dot_dimension_numbers<[2], [1], [1], [2], [0, 0, 0, 1, 1, 2], [0], [0]>} : vector<2x128x128xbf16>, vector<2x128x128xbf16>, vector<2x128x128xf32> -> vector<2x128x128xf32>
    "tpu.trace_stop"() : () -> ()
    %50 = vector.extract_strided_slice %21 {offsets = [0, 0, 128], sizes = [2, 128, 128], strides = [1, 1, 1]} : vector<2x128x256xf32> to vector<2x128x128xf32>
    %51 = arith.truncf %50 : vector<2x128x128xf32> to vector<2x128x128xbf16>
    %52 = vector.extract_strided_slice %23 {offsets = [0, 0, 128], sizes = [2, 128, 128], strides = [1, 1, 1]} : vector<2x128x256xf32> to vector<2x128x128xf32>
    %53 = arith.truncf %52 : vector<2x128x128xf32> to vector<2x128x128xbf16>
    %54 = vector.extract_strided_slice %25 {offsets = [0, 0, 128], sizes = [2, 128, 128], strides = [1, 1, 1]} : vector<2x128x256xf32> to vector<2x128x128xf32>
    %55 = arith.truncf %54 : vector<2x128x128xf32> to vector<2x128x128xbf16>
    "tpu.trace_start"() <{level = 10 : i32, message = "bqd,bkd->bqk"}> : () -> ()
    %cst_31 = arith.constant dense<0.000000e+00> : vector<2x128x128xf32>
    %56 = tpu.matmul %51, %53, %cst_31 {dimension_numbers = #tpu.dot_dimension_numbers<[2], [2], [1], [1], [0, 0, 0, 1, 1, 1], [0], [0]>} : vector<2x128x128xbf16>, vector<2x128x128xbf16>, vector<2x128x128xf32> -> vector<2x128x128xf32>
    "tpu.trace_stop"() : () -> ()
    %57 = arith.addf %56, %11 : vector<2x128x128xf32>
    %cst_32 = arith.constant dense<0xFF800000> : vector<2x128xf32>
    %58 = vector.multi_reduction <maximumf>, %57, %cst_32 [2] : vector<2x128x128xf32> to vector<2x128xf32>
    %59 = vector.shape_cast %58 : vector<2x128xf32> to vector<2x128x1xf32>
    %60 = vector.broadcast %59 : vector<2x128x1xf32> to vector<2x128x128xf32>
    %61 = arith.subf %57, %60 : vector<2x128x128xf32>
    %62 = math.exp %61 : vector<2x128x128xf32>
    %cst_33 = arith.constant dense<0.000000e+00> : vector<2x128xf32>
    %63 = vector.multi_reduction <add>, %62, %cst_33 [2] : vector<2x128x128xf32> to vector<2x128xf32>
    %64 = vector.shape_cast %63 : vector<2x128xf32> to vector<2x128x1xf32>
    %65 = tpu.reciprocal %64 {approx = true} : vector<2x128x1xf32> -> vector<2x128x1xf32>
    %66 = vector.broadcast %65 : vector<2x128x1xf32> to vector<2x128x128xf32>
    %67 = arith.mulf %62, %66 : vector<2x128x128xf32>
    %68 = arith.truncf %67 : vector<2x128x128xf32> to vector<2x128x128xbf16>
    "tpu.trace_start"() <{level = 10 : i32, message = "bqk,bkd->bqd"}> : () -> ()
    %cst_34 = arith.constant dense<0.000000e+00> : vector<2x128x128xf32>
    %69 = tpu.matmul %68, %55, %cst_34 {dimension_numbers = #tpu.dot_dimension_numbers<[2], [1], [1], [2], [0, 0, 0, 1, 1, 2], [0], [0]>} : vector<2x128x128xbf16>, vector<2x128x128xbf16>, vector<2x128x128xf32> -> vector<2x128x128xf32>
    "tpu.trace_stop"() : () -> ()
    %70 = tpu.concatenate %49, %69 in 2 : vector<2x128x128xf32>, vector<2x128x128xf32> -> vector<2x128x256xf32>
    %71 = vector.shape_cast %70 : vector<2x128x256xf32> to vector<256x256xf32>
    %72 = arith.truncf %71 : vector<256x256xf32> to vector<256x256xbf16>
    %cst_35 = arith.constant dense<0.000000e+00> : vector<256x128xf32>
    %73 = tpu.matmul %72, %27, %cst_35 {dimension_numbers = #tpu.dot_dimension_numbers<[1], [0], [0], [1], [0, 0, 1, 1], [], []>} : vector<256x256xbf16>, vector<256x128xbf16>, vector<256x128xf32> -> vector<256x128xf32>
    %74 = vector.broadcast %29 : vector<1x128xf32> to vector<256x128xf32>
    %75 = arith.addf %73, %74 : vector<256x128xf32>
    %76 = arith.addf %75, %4 : vector<256x128xf32>
    %cst_36 = arith.constant dense<0.000000e+00> : vector<256xf32>
    %77 = vector.multi_reduction <add>, %76, %cst_36 [1] : vector<256x128xf32> to vector<256xf32>
    %78 = vector.shape_cast %77 : vector<256xf32> to vector<256x1xf32>
    %cst_37 = arith.constant 1.280000e+02 : f32
    %79 = vector.broadcast %cst_37 : f32 to vector<256x1xf32>
    %80 = arith.divf %78, %79 : vector<256x1xf32>
    %81 = vector.broadcast %80 : vector<256x1xf32> to vector<256x128xf32>
    %82 = arith.subf %76, %81 : vector<256x128xf32>
    %83 = arith.mulf %82, %82 : vector<256x128xf32>
    %cst_38 = arith.constant dense<0.000000e+00> : vector<256xf32>
    %84 = vector.multi_reduction <add>, %83, %cst_38 [1] : vector<256x128xf32> to vector<256xf32>
    %85 = vector.shape_cast %84 : vector<256xf32> to vector<256x1xf32>
    %cst_39 = arith.constant 1.280000e+02 : f32
    %86 = vector.broadcast %cst_39 : f32 to vector<256x1xf32>
    %87 = arith.divf %85, %86 : vector<256x1xf32>
    %88 = vector.broadcast %80 : vector<256x1xf32> to vector<256x128xf32>
    %89 = arith.subf %76, %88 : vector<256x128xf32>
    %cst_40 = arith.constant 9.99999974E-6 : f32
    %90 = vector.broadcast %cst_40 : f32 to vector<256x1xf32>
    %91 = arith.addf %87, %90 : vector<256x1xf32>
    %92 = math.rsqrt %91 : vector<256x1xf32>
    %93 = vector.broadcast %92 : vector<256x1xf32> to vector<256x128xf32>
    %94 = arith.mulf %89, %93 : vector<256x128xf32>
    %95 = vector.broadcast %8 : vector<1x128xf32> to vector<256x128xf32>
    %96 = arith.mulf %94, %95 : vector<256x128xf32>
    %97 = vector.broadcast %10 : vector<1x128xf32> to vector<256x128xf32>
    %98 = arith.addf %96, %97 : vector<256x128xf32>
    %c0_41 = arith.constant 0 : index
    %c0_42 = arith.constant 0 : index
    %c0_43 = arith.constant 0 : index
    %99 = vector.load %arg8[%c0_41, %c0_42, %c0_43] : memref<1x128x256xbf16, #tpu.memory_space<vmem>>, vector<1x128x256xbf16>
    %100 = vector.shape_cast %99 : vector<1x128x256xbf16> to vector<128x256xbf16>
    %c0_44 = arith.constant 0 : index
    %c0_45 = arith.constant 0 : index
    %c0_46 = arith.constant 0 : index
    %101 = vector.load %arg9[%c0_44, %c0_45, %c0_46] : memref<1x1x256xf32, #tpu.memory_space<vmem>>, vector<1x1x256xf32>
    %102 = vector.shape_cast %101 : vector<1x1x256xf32> to vector<1x256xf32>
    %103 = arith.truncf %98 : vector<256x128xf32> to vector<256x128xbf16>
    %cst_47 = arith.constant dense<0.000000e+00> : vector<256x256xf32>
    %104 = tpu.matmul %103, %100, %cst_47 {dimension_numbers = #tpu.dot_dimension_numbers<[1], [0], [0], [1], [0, 0, 1, 1], [], []>} : vector<256x128xbf16>, vector<128x256xbf16>, vector<256x256xf32> -> vector<256x256xf32>
    %105 = vector.broadcast %102 : vector<1x256xf32> to vector<256x256xf32>
    %106 = arith.addf %104, %105 : vector<256x256xf32>
    %c0_48 = arith.constant 0 : index
    %c0_49 = arith.constant 0 : index
    %c0_50 = arith.constant 0 : index
    %107 = vector.load %arg10[%c0_48, %c0_49, %c0_50] : memref<1x128x512xbf16, #tpu.memory_space<vmem>>, vector<1x128x512xbf16>
    %108 = vector.shape_cast %107 : vector<1x128x512xbf16> to vector<128x512xbf16>
    %c0_51 = arith.constant 0 : index
    %c0_52 = arith.constant 0 : index
    %c0_53 = arith.constant 0 : index
    %109 = vector.load %arg11[%c0_51, %c0_52, %c0_53] : memref<1x1x512xf32, #tpu.memory_space<vmem>>, vector<1x1x512xf32>
    %110 = vector.shape_cast %109 : vector<1x1x512xf32> to vector<1x512xf32>
    %cst_54 = arith.constant dense<0.000000e+00> : vector<256x512xf32>
    %111 = tpu.matmul %6, %108, %cst_54 {dimension_numbers = #tpu.dot_dimension_numbers<[1], [0], [0], [1], [0, 0, 1, 1], [], []>} : vector<256x128xbf16>, vector<128x512xbf16>, vector<256x512xf32> -> vector<256x512xf32>
    %112 = vector.broadcast %110 : vector<1x512xf32> to vector<256x512xf32>
    %113 = arith.addf %111, %112 : vector<256x512xf32>
    %114 = vector.shape_cast %106 : vector<256x256xf32> to vector<2x128x256xf32>
    %115 = vector.extract_strided_slice %113 {offsets = [0, 0], sizes = [256, 256], strides = [1, 1]} : vector<256x512xf32> to vector<256x256xf32>
    %116 = vector.shape_cast %115 : vector<256x256xf32> to vector<2x128x256xf32>
    %117 = vector.extract_strided_slice %113 {offsets = [0, 256], sizes = [256, 256], strides = [1, 1]} : vector<256x512xf32> to vector<256x256xf32>
    %118 = vector.shape_cast %117 : vector<256x256xf32> to vector<2x128x256xf32>
    %c0_55 = arith.constant 0 : index
    %c0_56 = arith.constant 0 : index
    %c0_57 = arith.constant 0 : index
    %119 = vector.load %arg12[%c0_55, %c0_56, %c0_57] : memref<1x256x128xbf16, #tpu.memory_space<vmem>>, vector<1x256x128xbf16>
    %120 = vector.shape_cast %119 : vector<1x256x128xbf16> to vector<256x128xbf16>
    %c0_58 = arith.constant 0 : index
    %c0_59 = arith.constant 0 : index
    %c0_60 = arith.constant 0 : index
    %121 = vector.load %arg13[%c0_58, %c0_59, %c0_60] : memref<1x1x128xf32, #tpu.memory_space<vmem>>, vector<1x1x128xf32>
    %122 = vector.shape_cast %121 : vector<1x1x128xf32> to vector<1x128xf32>
    %123 = vector.extract_strided_slice %114 {offsets = [0, 0, 0], sizes = [2, 128, 128], strides = [1, 1, 1]} : vector<2x128x256xf32> to vector<2x128x128xf32>
    %124 = arith.truncf %123 : vector<2x128x128xf32> to vector<2x128x128xbf16>
    %125 = vector.extract_strided_slice %116 {offsets = [0, 0, 0], sizes = [2, 128, 128], strides = [1, 1, 1]} : vector<2x128x256xf32> to vector<2x128x128xf32>
    %126 = arith.truncf %125 : vector<2x128x128xf32> to vector<2x128x128xbf16>
    %127 = vector.extract_strided_slice %118 {offsets = [0, 0, 0], sizes = [2, 128, 128], strides = [1, 1, 1]} : vector<2x128x256xf32> to vector<2x128x128xf32>
    %128 = arith.truncf %127 : vector<2x128x128xf32> to vector<2x128x128xbf16>
    "tpu.trace_start"() <{level = 10 : i32, message = "bqd,bkd->bqk"}> : () -> ()
    %cst_61 = arith.constant dense<0.000000e+00> : vector<2x128x128xf32>
    %129 = tpu.matmul %124, %126, %cst_61 {dimension_numbers = #tpu.dot_dimension_numbers<[2], [2], [1], [1], [0, 0, 0, 1, 1, 1], [0], [0]>} : vector<2x128x128xbf16>, vector<2x128x128xbf16>, vector<2x128x128xf32> -> vector<2x128x128xf32>
    "tpu.trace_stop"() : () -> ()
    %cst_62 = arith.constant dense<0xFF800000> : vector<2x128xf32>
    %130 = vector.multi_reduction <maximumf>, %129, %cst_62 [2] : vector<2x128x128xf32> to vector<2x128xf32>
    %131 = vector.shape_cast %130 : vector<2x128xf32> to vector<2x128x1xf32>
    %132 = vector.broadcast %131 : vector<2x128x1xf32> to vector<2x128x128xf32>
    %133 = arith.subf %129, %132 : vector<2x128x128xf32>
    %134 = math.exp %133 : vector<2x128x128xf32>
    %cst_63 = arith.constant dense<0.000000e+00> : vector<2x128xf32>
    %135 = vector.multi_reduction <add>, %134, %cst_63 [2] : vector<2x128x128xf32> to vector<2x128xf32>
    %136 = vector.shape_cast %135 : vector<2x128xf32> to vector<2x128x1xf32>
    %137 = tpu.reciprocal %136 {approx = true} : vector<2x128x1xf32> -> vector<2x128x1xf32>
    %138 = vector.broadcast %137 : vector<2x128x1xf32> to vector<2x128x128xf32>
    %139 = arith.mulf %134, %138 : vector<2x128x128xf32>
    %140 = arith.truncf %139 : vector<2x128x128xf32> to vector<2x128x128xbf16>
    "tpu.trace_start"() <{level = 10 : i32, message = "bqk,bkd->bqd"}> : () -> ()
    %cst_64 = arith.constant dense<0.000000e+00> : vector<2x128x128xf32>
    %141 = tpu.matmul %140, %128, %cst_64 {dimension_numbers = #tpu.dot_dimension_numbers<[2], [1], [1], [2], [0, 0, 0, 1, 1, 2], [0], [0]>} : vector<2x128x128xbf16>, vector<2x128x128xbf16>, vector<2x128x128xf32> -> vector<2x128x128xf32>
    "tpu.trace_stop"() : () -> ()
    %142 = vector.extract_strided_slice %114 {offsets = [0, 0, 128], sizes = [2, 128, 128], strides = [1, 1, 1]} : vector<2x128x256xf32> to vector<2x128x128xf32>
    %143 = arith.truncf %142 : vector<2x128x128xf32> to vector<2x128x128xbf16>
    %144 = vector.extract_strided_slice %116 {offsets = [0, 0, 128], sizes = [2, 128, 128], strides = [1, 1, 1]} : vector<2x128x256xf32> to vector<2x128x128xf32>
    %145 = arith.truncf %144 : vector<2x128x128xf32> to vector<2x128x128xbf16>
    %146 = vector.extract_strided_slice %118 {offsets = [0, 0, 128], sizes = [2, 128, 128], strides = [1, 1, 1]} : vector<2x128x256xf32> to vector<2x128x128xf32>
    %147 = arith.truncf %146 : vector<2x128x128xf32> to vector<2x128x128xbf16>
    "tpu.trace_start"() <{level = 10 : i32, message = "bqd,bkd->bqk"}> : () -> ()
    %cst_65 = arith.constant dense<0.000000e+00> : vector<2x128x128xf32>
    %148 = tpu.matmul %143, %145, %cst_65 {dimension_numbers = #tpu.dot_dimension_numbers<[2], [2], [1], [1], [0, 0, 0, 1, 1, 1], [0], [0]>} : vector<2x128x128xbf16>, vector<2x128x128xbf16>, vector<2x128x128xf32> -> vector<2x128x128xf32>
    "tpu.trace_stop"() : () -> ()
    %cst_66 = arith.constant dense<0xFF800000> : vector<2x128xf32>
    %149 = vector.multi_reduction <maximumf>, %148, %cst_66 [2] : vector<2x128x128xf32> to vector<2x128xf32>
    %150 = vector.shape_cast %149 : vector<2x128xf32> to vector<2x128x1xf32>
    %151 = vector.broadcast %150 : vector<2x128x1xf32> to vector<2x128x128xf32>
    %152 = arith.subf %148, %151 : vector<2x128x128xf32>
    %153 = math.exp %152 : vector<2x128x128xf32>
    %cst_67 = arith.constant dense<0.000000e+00> : vector<2x128xf32>
    %154 = vector.multi_reduction <add>, %153, %cst_67 [2] : vector<2x128x128xf32> to vector<2x128xf32>
    %155 = vector.shape_cast %154 : vector<2x128xf32> to vector<2x128x1xf32>
    %156 = tpu.reciprocal %155 {approx = true} : vector<2x128x1xf32> -> vector<2x128x1xf32>
    %157 = vector.broadcast %156 : vector<2x128x1xf32> to vector<2x128x128xf32>
    %158 = arith.mulf %153, %157 : vector<2x128x128xf32>
    %159 = arith.truncf %158 : vector<2x128x128xf32> to vector<2x128x128xbf16>
    "tpu.trace_start"() <{level = 10 : i32, message = "bqk,bkd->bqd"}> : () -> ()
    %cst_68 = arith.constant dense<0.000000e+00> : vector<2x128x128xf32>
    %160 = tpu.matmul %159, %147, %cst_68 {dimension_numbers = #tpu.dot_dimension_numbers<[2], [1], [1], [2], [0, 0, 0, 1, 1, 2], [0], [0]>} : vector<2x128x128xbf16>, vector<2x128x128xbf16>, vector<2x128x128xf32> -> vector<2x128x128xf32>
    "tpu.trace_stop"() : () -> ()
    %161 = tpu.concatenate %141, %160 in 2 : vector<2x128x128xf32>, vector<2x128x128xf32> -> vector<2x128x256xf32>
    %162 = vector.shape_cast %161 : vector<2x128x256xf32> to vector<256x256xf32>
    %163 = arith.truncf %162 : vector<256x256xf32> to vector<256x256xbf16>
    %cst_69 = arith.constant dense<0.000000e+00> : vector<256x128xf32>
    %164 = tpu.matmul %163, %120, %cst_69 {dimension_numbers = #tpu.dot_dimension_numbers<[1], [0], [0], [1], [0, 0, 1, 1], [], []>} : vector<256x256xbf16>, vector<256x128xbf16>, vector<256x128xf32> -> vector<256x128xf32>
    %165 = vector.broadcast %122 : vector<1x128xf32> to vector<256x128xf32>
    %166 = arith.addf %164, %165 : vector<256x128xf32>
    %167 = arith.addf %166, %98 : vector<256x128xf32>
    %cst_70 = arith.constant dense<0.000000e+00> : vector<256xf32>
    %168 = vector.multi_reduction <add>, %167, %cst_70 [1] : vector<256x128xf32> to vector<256xf32>
    %169 = vector.shape_cast %168 : vector<256xf32> to vector<256x1xf32>
    %cst_71 = arith.constant 1.280000e+02 : f32
    %170 = vector.broadcast %cst_71 : f32 to vector<256x1xf32>
    %171 = arith.divf %169, %170 : vector<256x1xf32>
    %172 = vector.broadcast %171 : vector<256x1xf32> to vector<256x128xf32>
    %173 = arith.subf %167, %172 : vector<256x128xf32>
    %174 = arith.mulf %173, %173 : vector<256x128xf32>
    %cst_72 = arith.constant dense<0.000000e+00> : vector<256xf32>
    %175 = vector.multi_reduction <add>, %174, %cst_72 [1] : vector<256x128xf32> to vector<256xf32>
    %176 = vector.shape_cast %175 : vector<256xf32> to vector<256x1xf32>
    %cst_73 = arith.constant 1.280000e+02 : f32
    %177 = vector.broadcast %cst_73 : f32 to vector<256x1xf32>
    %178 = arith.divf %176, %177 : vector<256x1xf32>
    %179 = vector.broadcast %171 : vector<256x1xf32> to vector<256x128xf32>
    %180 = arith.subf %167, %179 : vector<256x128xf32>
    %cst_74 = arith.constant 9.99999974E-6 : f32
    %181 = vector.broadcast %cst_74 : f32 to vector<256x1xf32>
    %182 = arith.addf %178, %181 : vector<256x1xf32>
    %183 = math.rsqrt %182 : vector<256x1xf32>
    %184 = vector.broadcast %183 : vector<256x1xf32> to vector<256x128xf32>
    %185 = arith.mulf %180, %184 : vector<256x128xf32>
    %186 = vector.broadcast %8 : vector<1x128xf32> to vector<256x128xf32>
    %187 = arith.mulf %185, %186 : vector<256x128xf32>
    %188 = vector.broadcast %10 : vector<1x128xf32> to vector<256x128xf32>
    %189 = arith.addf %187, %188 : vector<256x128xf32>
    %c0_75 = arith.constant 0 : index
    %c0_76 = arith.constant 0 : index
    %c0_77 = arith.constant 0 : index
    %190 = vector.load %arg14[%c0_75, %c0_76, %c0_77] : memref<1x128x256xbf16, #tpu.memory_space<vmem>>, vector<1x128x256xbf16>
    %191 = vector.shape_cast %190 : vector<1x128x256xbf16> to vector<128x256xbf16>
    %c0_78 = arith.constant 0 : index
    %c0_79 = arith.constant 0 : index
    %c0_80 = arith.constant 0 : index
    %192 = vector.load %arg15[%c0_78, %c0_79, %c0_80] : memref<1x1x256xf32, #tpu.memory_space<vmem>>, vector<1x1x256xf32>
    %193 = vector.shape_cast %192 : vector<1x1x256xf32> to vector<1x256xf32>
    %194 = arith.truncf %189 : vector<256x128xf32> to vector<256x128xbf16>
    %cst_81 = arith.constant dense<0.000000e+00> : vector<256x256xf32>
    %195 = tpu.matmul %194, %191, %cst_81 {dimension_numbers = #tpu.dot_dimension_numbers<[1], [0], [0], [1], [0, 0, 1, 1], [], []>} : vector<256x128xbf16>, vector<128x256xbf16>, vector<256x256xf32> -> vector<256x256xf32>
    %196 = vector.broadcast %193 : vector<1x256xf32> to vector<256x256xf32>
    %197 = arith.addf %195, %196 : vector<256x256xf32>
    %cst_82 = arith.constant 0.000000e+00 : f32
    %198 = vector.broadcast %cst_82 : f32 to vector<256x256xf32>
    %199 = arith.maximumf %197, %198 : vector<256x256xf32>
    %c0_83 = arith.constant 0 : index
    %c0_84 = arith.constant 0 : index
    %c0_85 = arith.constant 0 : index
    %200 = vector.load %arg16[%c0_83, %c0_84, %c0_85] : memref<1x256x128xbf16, #tpu.memory_space<vmem>>, vector<1x256x128xbf16>
    %201 = vector.shape_cast %200 : vector<1x256x128xbf16> to vector<256x128xbf16>
    %c0_86 = arith.constant 0 : index
    %c0_87 = arith.constant 0 : index
    %c0_88 = arith.constant 0 : index
    %202 = vector.load %arg17[%c0_86, %c0_87, %c0_88] : memref<1x1x128xf32, #tpu.memory_space<vmem>>, vector<1x1x128xf32>
    %203 = vector.shape_cast %202 : vector<1x1x128xf32> to vector<1x128xf32>
    %204 = arith.truncf %199 : vector<256x256xf32> to vector<256x256xbf16>
    %cst_89 = arith.constant dense<0.000000e+00> : vector<256x128xf32>
    %205 = tpu.matmul %204, %201, %cst_89 {dimension_numbers = #tpu.dot_dimension_numbers<[1], [0], [0], [1], [0, 0, 1, 1], [], []>} : vector<256x256xbf16>, vector<256x128xbf16>, vector<256x128xf32> -> vector<256x128xf32>
    %206 = vector.broadcast %203 : vector<1x128xf32> to vector<256x128xf32>
    %207 = arith.addf %205, %206 : vector<256x128xf32>
    %208 = arith.addf %207, %189 : vector<256x128xf32>
    %cst_90 = arith.constant dense<0.000000e+00> : vector<256xf32>
    %209 = vector.multi_reduction <add>, %208, %cst_90 [1] : vector<256x128xf32> to vector<256xf32>
    %210 = vector.shape_cast %209 : vector<256xf32> to vector<256x1xf32>
    %cst_91 = arith.constant 1.280000e+02 : f32
    %211 = vector.broadcast %cst_91 : f32 to vector<256x1xf32>
    %212 = arith.divf %210, %211 : vector<256x1xf32>
    %213 = vector.broadcast %212 : vector<256x1xf32> to vector<256x128xf32>
    %214 = arith.subf %208, %213 : vector<256x128xf32>
    %215 = arith.mulf %214, %214 : vector<256x128xf32>
    %cst_92 = arith.constant dense<0.000000e+00> : vector<256xf32>
    %216 = vector.multi_reduction <add>, %215, %cst_92 [1] : vector<256x128xf32> to vector<256xf32>
    %217 = vector.shape_cast %216 : vector<256xf32> to vector<256x1xf32>
    %cst_93 = arith.constant 1.280000e+02 : f32
    %218 = vector.broadcast %cst_93 : f32 to vector<256x1xf32>
    %219 = arith.divf %217, %218 : vector<256x1xf32>
    %220 = vector.broadcast %212 : vector<256x1xf32> to vector<256x128xf32>
    %221 = arith.subf %208, %220 : vector<256x128xf32>
    %cst_94 = arith.constant 9.99999974E-6 : f32
    %222 = vector.broadcast %cst_94 : f32 to vector<256x1xf32>
    %223 = arith.addf %219, %222 : vector<256x1xf32>
    %224 = math.rsqrt %223 : vector<256x1xf32>
    %225 = vector.broadcast %224 : vector<256x1xf32> to vector<256x128xf32>
    %226 = arith.mulf %221, %225 : vector<256x128xf32>
    %227 = vector.broadcast %8 : vector<1x128xf32> to vector<256x128xf32>
    %228 = arith.mulf %226, %227 : vector<256x128xf32>
    %229 = vector.broadcast %10 : vector<1x128xf32> to vector<256x128xf32>
    %230 = arith.addf %228, %229 : vector<256x128xf32>
    %231 = vector.shape_cast %230 : vector<256x128xf32> to vector<2x128x128xf32>
    %c0_95 = arith.constant 0 : index
    %c0_96 = arith.constant 0 : index
    %c0_97 = arith.constant 0 : index
    %232 = vector.load %arg20[%c0_95, %c0_96, %c0_97] : memref<2x128x128xf32, #tpu.memory_space<vmem>>, vector<2x128x128xf32>
    tpu.vector_store %arg20[%c0_95, %c0_96, %c0_97], %231 {strides = array<i32>} : memref<2x128x128xf32, #tpu.memory_space<vmem>>, vector<2x128x128xf32>,
    return
  }
  func.func @transform_0(%arg0: i32, %arg1: i32) -> (i32, i32, i32) {
    %c0_i32 = arith.constant 0 : i32
    %c0_i32_0 = arith.constant 0 : i32
    %c0_i32_1 = arith.constant 0 : i32
    return %arg0, %c0_i32, %c0_i32_0 : i32, i32, i32
  }
  func.func @transform_1(%arg0: i32, %arg1: i32) -> (i32, i32, i32) {
    %c0_i32 = arith.constant 0 : i32
    %c0_i32_0 = arith.constant 0 : i32
    %c0_i32_1 = arith.constant 0 : i32
    return %arg0, %c0_i32, %c0_i32_0 : i32, i32, i32
  }
  func.func @transform_2(%arg0: i32, %arg1: i32) -> (i32, i32, i32) {
    %c0_i32 = arith.constant 0 : i32
    %c0_i32_0 = arith.constant 0 : i32
    %c0_i32_1 = arith.constant 0 : i32
    return %arg1, %c0_i32, %c0_i32_0 : i32, i32, i32
  }
  func.func @transform_3(%arg0: i32, %arg1: i32) -> (i32, i32, i32) {
    %c0_i32 = arith.constant 0 : i32
    %c0_i32_0 = arith.constant 0 : i32
    %c0_i32_1 = arith.constant 0 : i32
    return %arg1, %c0_i32, %c0_i32_0 : i32, i32, i32
  }
  func.func @transform_4(%arg0: i32, %arg1: i32) -> (i32, i32, i32) {
    %c0_i32 = arith.constant 0 : i32
    %c0_i32_0 = arith.constant 0 : i32
    %c0_i32_1 = arith.constant 0 : i32
    return %arg1, %c0_i32, %c0_i32_0 : i32, i32, i32
  }
  func.func @transform_5(%arg0: i32, %arg1: i32) -> (i32, i32, i32) {
    %c0_i32 = arith.constant 0 : i32
    %c0_i32_0 = arith.constant 0 : i32
    %c0_i32_1 = arith.constant 0 : i32
    return %arg1, %c0_i32, %c0_i32_0 : i32, i32, i32
  }
  func.func @transform_6(%arg0: i32, %arg1: i32) -> (i32, i32, i32) {
    %c0_i32 = arith.constant 0 : i32
    %c0_i32_0 = arith.constant 0 : i32
    %c0_i32_1 = arith.constant 0 : i32
    return %arg1, %c0_i32, %c0_i32_0 : i32, i32, i32
  }
  func.func @transform_7(%arg0: i32, %arg1: i32) -> (i32, i32, i32) {
    %c0_i32 = arith.constant 0 : i32
    %c0_i32_0 = arith.constant 0 : i32
    %c0_i32_1 = arith.constant 0 : i32
    return %arg1, %c0_i32, %c0_i32_0 : i32, i32, i32
  }
  func.func @transform_8(%arg0: i32, %arg1: i32) -> (i32, i32, i32) {
    %c0_i32 = arith.constant 0 : i32
    %c0_i32_0 = arith.constant 0 : i32
    %c0_i32_1 = arith.constant 0 : i32
    return %arg1, %c0_i32, %c0_i32_0 : i32, i32, i32
  }
  func.func @transform_9(%arg0: i32, %arg1: i32) -> (i32, i32, i32) {
    %c0_i32 = arith.constant 0 : i32
    %c0_i32_0 = arith.constant 0 : i32
    %c0_i32_1 = arith.constant 0 : i32
    return %arg1, %c0_i32, %c0_i32_0 : i32, i32, i32
  }
  func.func @transform_10(%arg0: i32, %arg1: i32) -> (i32, i32, i32) {
    %c0_i32 = arith.constant 0 : i32
    %c0_i32_0 = arith.constant 0 : i32
    %c0_i32_1 = arith.constant 0 : i32
    return %arg1, %c0_i32, %c0_i32_0 : i32, i32, i32
  }
  func.func @transform_11(%arg0: i32, %arg1: i32) -> (i32, i32, i32) {
    %c0_i32 = arith.constant 0 : i32
    %c0_i32_0 = arith.constant 0 : i32
    %c0_i32_1 = arith.constant 0 : i32
    return %arg1, %c0_i32, %c0_i32_0 : i32, i32, i32
  }
  func.func @transform_12(%arg0: i32, %arg1: i32) -> (i32, i32, i32) {
    %c0_i32 = arith.constant 0 : i32
    %c0_i32_0 = arith.constant 0 : i32
    %c0_i32_1 = arith.constant 0 : i32
    return %arg1, %c0_i32, %c0_i32_0 : i32, i32, i32
  }
  func.func @transform_13(%arg0: i32, %arg1: i32) -> (i32, i32, i32) {
    %c0_i32 = arith.constant 0 : i32
    %c0_i32_0 = arith.constant 0 : i32
    %c0_i32_1 = arith.constant 0 : i32
    return %arg1, %c0_i32, %c0_i32_0 : i32, i32, i32
  }
  func.func @transform_14(%arg0: i32, %arg1: i32) -> (i32, i32, i32) {
    %c0_i32 = arith.constant 0 : i32
    %c0_i32_0 = arith.constant 0 : i32
    %c0_i32_1 = arith.constant 0 : i32
    return %arg1, %c0_i32, %c0_i32_0 : i32, i32, i32
  }
  func.func @transform_15(%arg0: i32, %arg1: i32) -> (i32, i32, i32) {
    %c0_i32 = arith.constant 0 : i32
    %c0_i32_0 = arith.constant 0 : i32
    %c0_i32_1 = arith.constant 0 : i32
    return %arg1, %c0_i32, %c0_i32_0 : i32, i32, i32
  }
  func.func @transform_16(%arg0: i32, %arg1: i32) -> (i32, i32, i32) {
    %c0_i32 = arith.constant 0 : i32
    %c0_i32_0 = arith.constant 0 : i32
    %c0_i32_1 = arith.constant 0 : i32
    return %arg1, %c0_i32, %c0_i32_0 : i32, i32, i32
  }
  func.func @transform_17(%arg0: i32, %arg1: i32) -> (i32, i32, i32) {
    %c0_i32 = arith.constant 0 : i32
    %c0_i32_0 = arith.constant 0 : i32
    %c0_i32_1 = arith.constant 0 : i32
    return %arg1, %c0_i32, %c0_i32_0 : i32, i32, i32
  }
  func.func @transform_18(%arg0: i32, %arg1: i32) -> (i32, i32, i32) {
    %c0_i32 = arith.constant 0 : i32
    %c0_i32_0 = arith.constant 0 : i32
    %c0_i32_1 = arith.constant 0 : i32
    return %arg0, %c0_i32, %c0_i32_0 : i32, i32, i32
  }
}

</mosaic_0001>

<llo_original>
// kernel: tpu_custom_call.1
$region0: #{tpu_custom_call.1}
  #allocation0 [shape = 'u32[]', space=smem, size = 0x4, offset = 0x4, fixed_abs, tag = 'smem constant byte address 0x4 - core index']
  #allocation1 [shape = 'u32[144,128]{1,0:T(1,128)}', space=vmem, size = 0x12000, scoped, tag = 'internal scratch']
  #allocation2 [shape = 'f32[2,128,128]{2,1,0:T(8,128)}', space=vmem, size = 0x20000, scoped, tag = 'scratch operand']
  %s0 = inlined_call_operand.hbm [shape: f32[2,128,128], index: 0, kind: input, shape index: {}]
  %s1 = inlined_call_operand.hbm [shape: bf16[2,128,128], index: 1, kind: input, shape index: {}]
  %s2 = inlined_call_operand.hbm [shape: bf16[2,128,768], index: 2, kind: input, shape index: {}]
  %s3 = inlined_call_operand.hbm [shape: f32[2,1,768], index: 3, kind: input, shape index: {}]
  %s4 = inlined_call_operand.hbm [shape: bf16[2,256,128], index: 4, kind: input, shape index: {}]
  %s5 = inlined_call_operand.vmem [shape: f32[2,1,128], index: 5, kind: input, shape index: {}]
  %s6 = inlined_call_operand.hbm [shape: bf16[2,128,256], index: 6, kind: input, shape index: {}]
  %s7 = inlined_call_operand.vmem [shape: f32[2,1,256], index: 7, kind: input, shape index: {}]
  %s8 = inlined_call_operand.hbm [shape: bf16[2,128,512], index: 8, kind: input, shape index: {}]
  %s9 = inlined_call_operand.vmem [shape: f32[2,1,512], index: 9, kind: input, shape index: {}]
  %s10 = inlined_call_operand.hbm [shape: bf16[2,256,128], index: 10, kind: input, shape index: {}]
  %s11 = inlined_call_operand.vmem [shape: f32[2,1,128], index: 11, kind: input, shape index: {}]
  %s12 = inlined_call_operand.hbm [shape: bf16[2,128,256], index: 12, kind: input, shape index: {}]
  %s13 = inlined_call_operand.vmem [shape: f32[2,1,256], index: 13, kind: input, shape index: {}]
  %s14 = inlined_call_operand.hbm [shape: bf16[2,256,128], index: 14, kind: input, shape index: {}]
  %s15 = inlined_call_operand.vmem [shape: f32[2,1,128], index: 15, kind: input, shape index: {}]
  %s16 = inlined_call_operand.vmem [shape: f32[2,1,128], index: 16, kind: input, shape index: {}]
  %s17 = inlined_call_operand.vmem [shape: f32[2,1,128], index: 17, kind: input, shape index: {}]
  %s18 = inlined_call_operand.hbm [shape: f32[2,128,128], index: 18, kind: output, shape index: {}]
  %s19 = sld [smem:[#allocation0]]
  $region149: #{tpu_custom_call.1} parent=0
    _
  %s21 = ssub.s32 1, %s19
  %s22 = scalar_select 0, %s21, %s19
  $region1: #{tpu_custom_call.1} parent=0
    #allocation3 [shape = 'u8[131072]{0}', space=vmem, size = 0x20000, scoped, tag = 'input window, operand 0, single buffered']
    #allocation4 [shape = 's32[2]{0}', space=sflag, size = 0x8, scoped, tag = 'scoped memory for tpu_custom_call.1']
    #allocation5 [shape = 's32[2]{0}', space=sflag, size = 0x8, scoped, tag = 'scoped memory for tpu_custom_call.1']
    #allocation6 [shape = 'u8[65536]{0}', space=vmem, size = 0x10000, scoped, tag = 'input window, operand 1, single buffered']
    #allocation7 [shape = 's32[1]{0}', space=sflag, size = 0x4, scoped, tag = 'scoped memory for tpu_custom_call.1']
    #allocation8 [shape = 'u8[393216]{0}', space=vmem, size = 0x60000, scoped, tag = 'input window, operand 2']
    #allocation9 [shape = 'u8[6144]{0}', space=vmem, size = 0x1800, scoped, tag = 'input window, operand 3']
    #allocation10 [shape = 'u8[131072]{0}', space=vmem, size = 0x20000, scoped, tag = 'input window, operand 4']
    #allocation11 [shape = 'u8[131072]{0}', space=vmem, size = 0x20000, scoped, tag = 'input window, operand 6']
    #allocation12 [shape = 'u8[262144]{0}', space=vmem, size = 0x40000, scoped, tag = 'input window, operand 8']
    #allocation13 [shape = 'u8[131072]{0}', space=vmem, size = 0x20000, scoped, tag = 'input window, operand 10']
    #allocation14 [shape = 'u8[131072]{0}', space=vmem, size = 0x20000, scoped, tag = 'input window, operand 12']
    #allocation15 [shape = 'u8[131072]{0}', space=vmem, size = 0x20000, scoped, tag = 'input window, operand 14']
    #allocation16 [shape = 'u8[131072]{0}', space=vmem, size = 0x20000, scoped, tag = 'output window, operand 0, single buffered']
    %23 = vsyncpa [#allocation4], 0
    %24 = vsyncpa [#allocation7], 0
    %25 = vsyncpa [#allocation5], 0
    loop: start=0, step=1, limit=4
    $region2: #{tpu_custom_call.1} parent=1 // loop_pre_header
      _
    $region3: #{tpu_custom_call.1} parent=1 // loop_header
      %s27 = sphi 0, %s31
      %p28 = scmp.ge.s32.totalorder %s27, 4
      %s34 = sphi 0, %s46
      %s35 = sphi 0, %s42
      %s36 = sphi 0, %s34
      %s37 = sphi 0, %s35
      %s38 = sphi 0, %s36
      %s39 = sphi 0, %s37
      %s49 = sphi 0, %s51
      %s52 = sphi 0, %s49
      %s53 = sphi 0, %s52
      %s69 = sphi 0, %s53
      %s75 = sphi 0, %s77
      %s78 = sphi 0, %s75
      %s79 = sphi 0, %s78
      %s95 = sphi 0, %s79
      %s101 = sphi 0, %s103
      %s104 = sphi 0, %s101
      %s105 = sphi 0, %s104
      %s121 = sphi 0, %s105
      %s127 = sphi 0, %s129
      %s130 = sphi 0, %s127
      %s131 = sphi 0, %s130
      %s147 = sphi 0, %s131
      %s153 = sphi 0, %s155
      %s156 = sphi 0, %s153
      %s157 = sphi 0, %s156
      %s173 = sphi 0, %s157
      %s179 = sphi 0, %s181
      %s182 = sphi 0, %s179
      %s183 = sphi 0, %s182
      %s199 = sphi 0, %s183
      %s205 = sphi 0, %s207
      %s208 = sphi 0, %s205
      %s209 = sphi 0, %s208
      %s225 = sphi 0, %s209
      %s231 = sphi 0, %s233
      %s234 = sphi 0, %s231
      %s235 = sphi 0, %s234
      %s251 = sphi 0, %s235
      %s257 = sphi 0, %s259
      %s260 = sphi 0, %s257
      %s261 = sphi 0, %s260
      %s277 = sphi 0, %s261
      %s283 = sphi 0, %s285
      %s286 = sphi 0, %s283
      %s287 = sphi 0, %s286
      %s303 = sphi 0, %s287
      %s309 = sphi 0, %s311
      %s312 = sphi 0, %s309
      %s313 = sphi 0, %s312
      %s329 = sphi 0, %s313
      %s335 = sphi 0, %s337
      %s338 = sphi 0, %s335
      %s339 = sphi 0, %s338
      %s355 = sphi 0, %s339
      %s361 = sphi 0, %s363
      %s364 = sphi 0, %s361
      %s365 = sphi 0, %s364
      %s381 = sphi 0, %s365
      %s387 = sphi 0, %s389
      %s390 = sphi 0, %s387
      %s391 = sphi 0, %s390
      %s407 = sphi 0, %s391
      %s413 = sphi 0, %s415
      %s416 = sphi 0, %s413
      %s417 = sphi 0, %s416
      %s433 = sphi 0, %s417
      %s439 = sphi 0, %s441
      %s442 = sphi 0, %s439
      %s443 = sphi 0, %s442
      %s459 = sphi 0, %s443
      %s465 = sphi 0, %s467
      %s468 = sphi 0, %s465
      %s469 = sphi 0, %s468
      %s485 = sphi 0, %s469
      %s491 = sphi 0, %s493
      %s494 = sphi 0, %s491
      %s495 = sphi 0, %s494
      %s511 = sphi 0, %s495
      %s517 = sphi 0, %s519
      %s520 = sphi 0, %s517
      %s521 = sphi 0, %s520
      %s537 = sphi 0, %s521
    $region4: #{tpu_custom_call.1} parent=1 // loop_header_branch
      %30 = sbr.rel (%p28) target = $region8
    $region5: #{tpu_custom_call.1} parent=1 // loop_body
      %s32 = ssub.s32 %s27, 1
      %s33 = ssub.s32 %s27, 2
      %s40 = sadd.s32 1, %s35
      %p41 = scmp.ge.s32.totalorder %s40, 2
      %s42 = scalar_select %p41, 0, %s40
      %s43 = sadd.s32 1, %s34
      %s44 = scalar_select %p41, %s43, %s34
      %p45 = scmp.ge.s32.totalorder %s44, 1
      %s46 = scalar_select %p45, 0, %s44
      %s47 = ssub.s32 %s34, %s46
      %p48 = scmp.eq.s32.totalorder %s47, 0
      %s50 = sadd.s32 %s49, 1
      %s51 = scalar_select %p48, %s49, %s50
      %p54 = pneg %p48
      %p55 = scmp.eq.s32.totalorder %s27, 1
      %p56 = por %p54, %p55
      %p57 = scmp.ne.s32.totalorder %s49, %s52
      %p58 = scmp.eq.s32.totalorder %s27, 0
      %p59 = por %p57, %p58
      %p60 = scmp.ne.s32.totalorder %s49, %s52
      %p61 = scmp.eq.s32.totalorder %s32, 1
      %p62 = por %p60, %p61
      %p63 = scmp.ne.s32.totalorder %s52, %s53
      %p64 = scmp.eq.s32.totalorder %s32, 0
      %p65 = por %p63, %p64
      %p66 = scmp.ne.s32.totalorder %s52, %s53
      %p67 = scmp.eq.s32.totalorder %s33, 1
      %p68 = por %p66, %p67
      %p70 = scmp.ne.s32.totalorder %s53, %s69
      %p71 = scmp.eq.s32.totalorder %s33, 0
      %p72 = por %p70, %p71
      %s73 = ssub.s32 %s34, %s46
      %p74 = scmp.eq.s32.totalorder %s73, 0
      %s76 = sadd.s32 %s75, 1
      %s77 = scalar_select %p74, %s75, %s76
      %p80 = pneg %p74
      %p81 = scmp.eq.s32.totalorder %s27, 1
      %p82 = por %p80, %p81
      %p83 = scmp.ne.s32.totalorder %s75, %s78
      %p84 = scmp.eq.s32.totalorder %s27, 0
      %p85 = por %p83, %p84
      %p86 = scmp.ne.s32.totalorder %s75, %s78
      %p87 = scmp.eq.s32.totalorder %s32, 1
      %p88 = por %p86, %p87
      %p89 = scmp.ne.s32.totalorder %s78, %s79
      %p90 = scmp.eq.s32.totalorder %s32, 0
      %p91 = por %p89, %p90
      %p92 = scmp.ne.s32.totalorder %s78, %s79
      %p93 = scmp.eq.s32.totalorder %s33, 1
      %p94 = por %p92, %p93
      %p96 = scmp.ne.s32.totalorder %s79, %s95
      %p97 = scmp.eq.s32.totalorder %s33, 0
      %p98 = por %p96, %p97
      %s99 = ssub.s32 %s35, %s42
      %p100 = scmp.eq.s32.totalorder %s99, 0
      %s102 = sadd.s32 %s101, 1
      %s103 = scalar_select %p100, %s101, %s102
      %p106 = pneg %p100
      %p107 = scmp.eq.s32.totalorder %s27, 1
      %p108 = por %p106, %p107
      %p109 = scmp.ne.s32.totalorder %s101, %s104
      %p110 = scmp.eq.s32.totalorder %s27, 0
      %p111 = por %p109, %p110
      %p112 = scmp.ne.s32.totalorder %s101, %s104
      %p113 = scmp.eq.s32.totalorder %s32, 1
      %p114 = por %p112, %p113
      %p115 = scmp.ne.s32.totalorder %s104, %s105
      %p116 = scmp.eq.s32.totalorder %s32, 0
      %p117 = por %p115, %p116
      %p118 = scmp.ne.s32.totalorder %s104, %s105
      %p119 = scmp.eq.s32.totalorder %s33, 1
      %p120 = por %p118, %p119
      %p122 = scmp.ne.s32.totalorder %s105, %s121
      %p123 = scmp.eq.s32.totalorder %s33, 0
      %p124 = por %p122, %p123
      %s125 = ssub.s32 %s35, %s42
      %p126 = scmp.eq.s32.totalorder %s125, 0
      %s128 = sadd.s32 %s127, 1
      %s129 = scalar_select %p126, %s127, %s128
      %p132 = pneg %p126
      %p133 = scmp.eq.s32.totalorder %s27, 1
      %p134 = por %p132, %p133
      %p135 = scmp.ne.s32.totalorder %s127, %s130
      %p136 = scmp.eq.s32.totalorder %s27, 0
      %p137 = por %p135, %p136
      %p138 = scmp.ne.s32.totalorder %s127, %s130
      %p139 = scmp.eq.s32.totalorder %s32, 1
      %p140 = por %p138, %p139
      %p141 = scmp.ne.s32.totalorder %s130, %s131
      %p142 = scmp.eq.s32.totalorder %s32, 0
      %p143 = por %p141, %p142
      %p144 = scmp.ne.s32.totalorder %s130, %s131
      %p145 = scmp.eq.s32.totalorder %s33, 1
      %p146 = por %p144, %p145
      %p148 = scmp.ne.s32.totalorder %s131, %s147
      %p149 = scmp.eq.s32.totalorder %s33, 0
      %p150 = por %p148, %p149
      %s151 = ssub.s32 %s35, %s42
      %p152 = scmp.eq.s32.totalorder %s151, 0
      %s154 = sadd.s32 %s153, 1
      %s155 = scalar_select %p152, %s153, %s154
      %p158 = pneg %p152
      %p159 = scmp.eq.s32.totalorder %s27, 1
      %p160 = por %p158, %p159
      %p161 = scmp.ne.s32.totalorder %s153, %s156
      %p162 = scmp.eq.s32.totalorder %s27, 0
      %p163 = por %p161, %p162
      %p164 = scmp.ne.s32.totalorder %s153, %s156
      %p165 = scmp.eq.s32.totalorder %s32, 1
      %p166 = por %p164, %p165
      %p167 = scmp.ne.s32.totalorder %s156, %s157
      %p168 = scmp.eq.s32.totalorder %s32, 0
      %p169 = por %p167, %p168
      %p170 = scmp.ne.s32.totalorder %s156, %s157
      %p171 = scmp.eq.s32.totalorder %s33, 1
      %p172 = por %p170, %p171
      %p174 = scmp.ne.s32.totalorder %s157, %s173
      %p175 = scmp.eq.s32.totalorder %s33, 0
      %p176 = por %p174, %p175
      %s177 = ssub.s32 %s35, %s42
      %p178 = scmp.eq.s32.totalorder %s177, 0
      %s180 = sadd.s32 %s179, 1
      %s181 = scalar_select %p178, %s179, %s180
      %p184 = pneg %p178
      %p185 = scmp.eq.s32.totalorder %s27, 1
      %p186 = por %p184, %p185
      %p187 = scmp.ne.s32.totalorder %s179, %s182
      %p188 = scmp.eq.s32.totalorder %s27, 0
      %p189 = por %p187, %p188
      %p190 = scmp.ne.s32.totalorder %s179, %s182
      %p191 = scmp.eq.s32.totalorder %s32, 1
      %p192 = por %p190, %p191
      %p193 = scmp.ne.s32.totalorder %s182, %s183
      %p194 = scmp.eq.s32.totalorder %s32, 0
      %p195 = por %p193, %p194
      %p196 = scmp.ne.s32.totalorder %s182, %s183
      %p197 = scmp.eq.s32.totalorder %s33, 1
      %p198 = por %p196, %p197
      %p200 = scmp.ne.s32.totalorder %s183, %s199
      %p201 = scmp.eq.s32.totalorder %s33, 0
      %p202 = por %p200, %p201
      %s203 = ssub.s32 %s35, %s42
      %p204 = scmp.eq.s32.totalorder %s203, 0
      %s206 = sadd.s32 %s205, 1
      %s207 = scalar_select %p204, %s205, %s206
      %p210 = pneg %p204
      %p211 = scmp.eq.s32.totalorder %s27, 1
      %p212 = por %p210, %p211
      %p213 = scmp.ne.s32.totalorder %s205, %s208
      %p214 = scmp.eq.s32.totalorder %s27, 0
      %p215 = por %p213, %p214
      %p216 = scmp.ne.s32.totalorder %s205, %s208
      %p217 = scmp.eq.s32.totalorder %s32, 1
      %p218 = por %p216, %p217
      %p219 = scmp.ne.s32.totalorder %s208, %s209
      %p220 = scmp.eq.s32.totalorder %s32, 0
      %p221 = por %p219, %p220
      %p222 = scmp.ne.s32.totalorder %s208, %s209
      %p223 = scmp.eq.s32.totalorder %s33, 1
      %p224 = por %p222, %p223
      %p226 = scmp.ne.s32.totalorder %s209, %s225
      %p227 = scmp.eq.s32.totalorder %s33, 0
      %p228 = por %p226, %p227
      %s229 = ssub.s32 %s35, %s42
      %p230 = scmp.eq.s32.totalorder %s229, 0
      %s232 = sadd.s32 %s231, 1
      %s233 = scalar_select %p230, %s231, %s232
      %p236 = pneg %p230
      %p237 = scmp.eq.s32.totalorder %s27, 1
      %p238 = por %p236, %p237
      %p239 = scmp.ne.s32.totalorder %s231, %s234
      %p240 = scmp.eq.s32.totalorder %s27, 0
      %p241 = por %p239, %p240
      %p242 = scmp.ne.s32.totalorder %s231, %s234
      %p243 = scmp.eq.s32.totalorder %s32, 1
      %p244 = por %p242, %p243
      %p245 = scmp.ne.s32.totalorder %s234, %s235
      %p246 = scmp.eq.s32.totalorder %s32, 0
      %p247 = por %p245, %p246
      %p248 = scmp.ne.s32.totalorder %s234, %s235
      %p249 = scmp.eq.s32.totalorder %s33, 1
      %p250 = por %p248, %p249
      %p252 = scmp.ne.s32.totalorder %s235, %s251
      %p253 = scmp.eq.s32.totalorder %s33, 0
      %p254 = por %p252, %p253
      %s255 = ssub.s32 %s35, %s42
      %p256 = scmp.eq.s32.totalorder %s255, 0
      %s258 = sadd.s32 %s257, 1
      %s259 = scalar_select %p256, %s257, %s258
      %p262 = pneg %p256
      %p263 = scmp.eq.s32.totalorder %s27, 1
      %p264 = por %p262, %p263
      %p265 = scmp.ne.s32.totalorder %s257, %s260
      %p266 = scmp.eq.s32.totalorder %s27, 0
      %p267 = por %p265, %p266
      %p268 = scmp.ne.s32.totalorder %s257, %s260
      %p269 = scmp.eq.s32.totalorder %s32, 1
      %p270 = por %p268, %p269
      %p271 = scmp.ne.s32.totalorder %s260, %s261
      %p272 = scmp.eq.s32.totalorder %s32, 0
      %p273 = por %p271, %p272
      %p274 = scmp.ne.s32.totalorder %s260, %s261
      %p275 = scmp.eq.s32.totalorder %s33, 1
      %p276 = por %p274, %p275
      %p278 = scmp.ne.s32.totalorder %s261, %s277
      %p279 = scmp.eq.s32.totalorder %s33, 0
      %p280 = por %p278, %p279
      %s281 = ssub.s32 %s35, %s42
      %p282 = scmp.eq.s32.totalorder %s281, 0
      %s284 = sadd.s32 %s283, 1
      %s285 = scalar_select %p282, %s283, %s284
      %p288 = pneg %p282
      %p289 = scmp.eq.s32.totalorder %s27, 1
      %p290 = por %p288, %p289
      %p291 = scmp.ne.s32.totalorder %s283, %s286
      %p292 = scmp.eq.s32.totalorder %s27, 0
      %p293 = por %p291, %p292
      %p294 = scmp.ne.s32.totalorder %s283, %s286
      %p295 = scmp.eq.s32.totalorder %s32, 1
      %p296 = por %p294, %p295
      %p297 = scmp.ne.s32.totalorder %s286, %s287
      %p298 = scmp.eq.s32.totalorder %s32, 0
      %p299 = por %p297, %p298
      %p300 = scmp.ne.s32.totalorder %s286, %s287
      %p301 = scmp.eq.s32.totalorder %s33, 1
      %p302 = por %p300, %p301
      %p304 = scmp.ne.s32.totalorder %s287, %s303
      %p305 = scmp.eq.s32.totalorder %s33, 0
      %p306 = por %p304, %p305
      %s307 = ssub.s32 %s35, %s42
      %p308 = scmp.eq.s32.totalorder %s307, 0
      %s310 = sadd.s32 %s309, 1
      %s311 = scalar_select %p308, %s309, %s310
      %p314 = pneg %p308
      %p315 = scmp.eq.s32.totalorder %s27, 1
      %p316 = por %p314, %p315
      %p317 = scmp.ne.s32.totalorder %s309, %s312
      %p318 = scmp.eq.s32.totalorder %s27, 0
      %p319 = por %p317, %p318
      %p320 = scmp.ne.s32.totalorder %s309, %s312
      %p321 = scmp.eq.s32.totalorder %s32, 1
      %p322 = por %p320, %p321
      %p323 = scmp.ne.s32.totalorder %s312, %s313
      %p324 = scmp.eq.s32.totalorder %s32, 0
      %p325 = por %p323, %p324
      %p326 = scmp.ne.s32.totalorder %s312, %s313
      %p327 = scmp.eq.s32.totalorder %s33, 1
      %p328 = por %p326, %p327
      %p330 = scmp.ne.s32.totalorder %s313, %s329
      %p331 = scmp.eq.s32.totalorder %s33, 0
      %p332 = por %p330, %p331
      %s333 = ssub.s32 %s35, %s42
      %p334 = scmp.eq.s32.totalorder %s333, 0
      %s336 = sadd.s32 %s335, 1
      %s337 = scalar_select %p334, %s335, %s336
      %p340 = pneg %p334
      %p341 = scmp.eq.s32.totalorder %s27, 1
      %p342 = por %p340, %p341
      %p343 = scmp.ne.s32.totalorder %s335, %s338
      %p344 = scmp.eq.s32.totalorder %s27, 0
      %p345 = por %p343, %p344
      %p346 = scmp.ne.s32.totalorder %s335, %s338
      %p347 = scmp.eq.s32.totalorder %s32, 1
      %p348 = por %p346, %p347
      %p349 = scmp.ne.s32.totalorder %s338, %s339
      %p350 = scmp.eq.s32.totalorder %s32, 0
      %p351 = por %p349, %p350
      %p352 = scmp.ne.s32.totalorder %s338, %s339
      %p353 = scmp.eq.s32.totalorder %s33, 1
      %p354 = por %p352, %p353
      %p356 = scmp.ne.s32.totalorder %s339, %s355
      %p357 = scmp.eq.s32.totalorder %s33, 0
      %p358 = por %p356, %p357
      %s359 = ssub.s32 %s35, %s42
      %p360 = scmp.eq.s32.totalorder %s359, 0
      %s362 = sadd.s32 %s361, 1
      %s363 = scalar_select %p360, %s361, %s362
      %p366 = pneg %p360
      %p367 = scmp.eq.s32.totalorder %s27, 1
      %p368 = por %p366, %p367
      %p369 = scmp.ne.s32.totalorder %s361, %s364
      %p370 = scmp.eq.s32.totalorder %s27, 0
      %p371 = por %p369, %p370
      %p372 = scmp.ne.s32.totalorder %s361, %s364
      %p373 = scmp.eq.s32.totalorder %s32, 1
      %p374 = por %p372, %p373
      %p375 = scmp.ne.s32.totalorder %s364, %s365
      %p376 = scmp.eq.s32.totalorder %s32, 0
      %p377 = por %p375, %p376
      %p378 = scmp.ne.s32.totalorder %s364, %s365
      %p379 = scmp.eq.s32.totalorder %s33, 1
      %p380 = por %p378, %p379
      %p382 = scmp.ne.s32.totalorder %s365, %s381
      %p383 = scmp.eq.s32.totalorder %s33, 0
      %p384 = por %p382, %p383
      %s385 = ssub.s32 %s35, %s42
      %p386 = scmp.eq.s32.totalorder %s385, 0
      %s388 = sadd.s32 %s387, 1
      %s389 = scalar_select %p386, %s387, %s388
      %p392 = pneg %p386
      %p393 = scmp.eq.s32.totalorder %s27, 1
      %p394 = por %p392, %p393
      %p395 = scmp.ne.s32.totalorder %s387, %s390
      %p396 = scmp.eq.s32.totalorder %s27, 0
      %p397 = por %p395, %p396
      %p398 = scmp.ne.s32.totalorder %s387, %s390
      %p399 = scmp.eq.s32.totalorder %s32, 1
      %p400 = por %p398, %p399
      %p401 = scmp.ne.s32.totalorder %s390, %s391
      %p402 = scmp.eq.s32.totalorder %s32, 0
      %p403 = por %p401, %p402
      %p404 = scmp.ne.s32.totalorder %s390, %s391
      %p405 = scmp.eq.s32.totalorder %s33, 1
      %p406 = por %p404, %p405
      %p408 = scmp.ne.s32.totalorder %s391, %s407
      %p409 = scmp.eq.s32.totalorder %s33, 0
      %p410 = por %p408, %p409
      %s411 = ssub.s32 %s35, %s42
      %p412 = scmp.eq.s32.totalorder %s411, 0
      %s414 = sadd.s32 %s413, 1
      %s415 = scalar_select %p412, %s413, %s414
      %p418 = pneg %p412
      %p419 = scmp.eq.s32.totalorder %s27, 1
      %p420 = por %p418, %p419
      %p421 = scmp.ne.s32.totalorder %s413, %s416
      %p422 = scmp.eq.s32.totalorder %s27, 0
      %p423 = por %p421, %p422
      %p424 = scmp.ne.s32.totalorder %s413, %s416
      %p425 = scmp.eq.s32.totalorder %s32, 1
      %p426 = por %p424, %p425
      %p427 = scmp.ne.s32.totalorder %s416, %s417
      %p428 = scmp.eq.s32.totalorder %s32, 0
      %p429 = por %p427, %p428
      %p430 = scmp.ne.s32.totalorder %s416, %s417
      %p431 = scmp.eq.s32.totalorder %s33, 1
      %p432 = por %p430, %p431
      %p434 = scmp.ne.s32.totalorder %s417, %s433
      %p435 = scmp.eq.s32.totalorder %s33, 0
      %p436 = por %p434, %p435
      %s437 = ssub.s32 %s35, %s42
      %p438 = scmp.eq.s32.totalorder %s437, 0
      %s440 = sadd.s32 %s439, 1
      %s441 = scalar_select %p438, %s439, %s440
      %p444 = pneg %p438
      %p445 = scmp.eq.s32.totalorder %s27, 1
      %p446 = por %p444, %p445
      %p447 = scmp.ne.s32.totalorder %s439, %s442
      %p448 = scmp.eq.s32.totalorder %s27, 0
      %p449 = por %p447, %p448
      %p450 = scmp.ne.s32.totalorder %s439, %s442
      %p451 = scmp.eq.s32.totalorder %s32, 1
      %p452 = por %p450, %p451
      %p453 = scmp.ne.s32.totalorder %s442, %s443
      %p454 = scmp.eq.s32.totalorder %s32, 0
      %p455 = por %p453, %p454
      %p456 = scmp.ne.s32.totalorder %s442, %s443
      %p457 = scmp.eq.s32.totalorder %s33, 1
      %p458 = por %p456, %p457
      %p460 = scmp.ne.s32.totalorder %s443, %s459
      %p461 = scmp.eq.s32.totalorder %s33, 0
      %p462 = por %p460, %p461
      %s463 = ssub.s32 %s35, %s42
      %p464 = scmp.eq.s32.totalorder %s463, 0
      %s466 = sadd.s32 %s465, 1
      %s467 = scalar_select %p464, %s465, %s466
      %p470 = pneg %p464
      %p471 = scmp.eq.s32.totalorder %s27, 1
      %p472 = por %p470, %p471
      %p473 = scmp.ne.s32.totalorder %s465, %s468
      %p474 = scmp.eq.s32.totalorder %s27, 0
      %p475 = por %p473, %p474
      %p476 = scmp.ne.s32.totalorder %s465, %s468
      %p477 = scmp.eq.s32.totalorder %s32, 1
      %p478 = por %p476, %p477
      %p479 = scmp.ne.s32.totalorder %s468, %s469
      %p480 = scmp.eq.s32.totalorder %s32, 0
      %p481 = por %p479, %p480
      %p482 = scmp.ne.s32.totalorder %s468, %s469
      %p483 = scmp.eq.s32.totalorder %s33, 1
      %p484 = por %p482, %p483
      %p486 = scmp.ne.s32.totalorder %s469, %s485
      %p487 = scmp.eq.s32.totalorder %s33, 0
      %p488 = por %p486, %p487
      %s489 = ssub.s32 %s35, %s42
      %p490 = scmp.eq.s32.totalorder %s489, 0
      %s492 = sadd.s32 %s491, 1
      %s493 = scalar_select %p490, %s491, %s492
      %p496 = pneg %p490
      %p497 = scmp.eq.s32.totalorder %s27, 1
      %p498 = por %p496, %p497
      %p499 = scmp.ne.s32.totalorder %s491, %s494
      %p500 = scmp.eq.s32.totalorder %s27, 0
      %p501 = por %p499, %p500
      %p502 = scmp.ne.s32.totalorder %s491, %s494
      %p503 = scmp.eq.s32.totalorder %s32, 1
      %p504 = por %p502, %p503
      %p505 = scmp.ne.s32.totalorder %s494, %s495
      %p506 = scmp.eq.s32.totalorder %s32, 0
      %p507 = por %p505, %p506
      %p508 = scmp.ne.s32.totalorder %s494, %s495
      %p509 = scmp.eq.s32.totalorder %s33, 1
      %p510 = por %p508, %p509
      %p512 = scmp.ne.s32.totalorder %s495, %s511
      %p513 = scmp.eq.s32.totalorder %s33, 0
      %p514 = por %p512, %p513
      %s515 = ssub.s32 %s34, %s46
      %p516 = scmp.eq.s32.totalorder %s515, 0
      %s518 = sadd.s32 %s517, 1
      %s519 = scalar_select %p516, %s517, %s518
      %p522 = pneg %p516
      %p523 = scmp.eq.s32.totalorder %s27, 1
      %p524 = por %p522, %p523
      %p525 = scmp.ne.s32.totalorder %s517, %s520
      %p526 = scmp.eq.s32.totalorder %s27, 0
      %p527 = por %p525, %p526
      %p528 = scmp.ne.s32.totalorder %s517, %s520
      %p529 = scmp.eq.s32.totalorder %s32, 1
      %p530 = por %p528, %p529
      %p531 = scmp.ne.s32.totalorder %s520, %s521
      %p532 = scmp.eq.s32.totalorder %s32, 0
      %p533 = por %p531, %p532
      %p534 = scmp.ne.s32.totalorder %s520, %s521
      %p535 = scmp.eq.s32.totalorder %s33, 1
      %p536 = por %p534, %p535
      %p538 = scmp.ne.s32.totalorder %s521, %s537
      %p539 = scmp.eq.s32.totalorder %s33, 0
      %p540 = por %p538, %p539
      %p541 = scmp.le.s32.totalorder 1, %s27
      %p542 = scmp.lt.s32.totalorder %s27, 3
      %p543 = pnand %p541, %p542
      %p544 = pneg %p543
      // Predicated region
      $region9: #{tpu_custom_call.1} parent=5 // pred_check
        _
      $region10: #{tpu_custom_call.1} parent=5 // pred_check_branch
        %546 = sbr.rel (%p543) target = $region12
      $region11: #{tpu_custom_call.1} parent=5 // pred_region
        %s547 = ssub.s32 %s27, 1
        // Predicated region
        $region13: #{tpu_custom_call.1} parent=11 // pred_check
          %p548 = pneg %p65
        $region14: #{tpu_custom_call.1} parent=11 // pred_check_branch
          %550 = sbr.rel (%p548) target = $region16
        $region15: #{tpu_custom_call.1} parent=11 // pred_region
          %s551 = smul.u32 2, %s36
          %s553 = ssub.s32 4096, 4096
          %554 = vsyncadd [#allocation4], %s553
          %s555 = smul.addr %s551, 16
          %s556 = smul.addr %s555, 128
          %s557 = scalar_lea.hbm %s0, %s556
          %s558 = sshll.u32 [#allocation3], 4
          %s559 = int_to_ptr.vmem [resolvable:$true] %s558
          %564 = dma.hbm_to_vmem [thread:$0]  %s557, 4096, %s559, [#allocation4], 128, 128, 8
        $region16: #{tpu_custom_call.1} parent=11 // pred_fallthru
          _
        // Predicated region
        $region17: #{tpu_custom_call.1} parent=11 // pred_check
          %p565 = pneg %p91
        $region18: #{tpu_custom_call.1} parent=11 // pred_check_branch
          %567 = sbr.rel (%p565) target = $region20
        $region19: #{tpu_custom_call.1} parent=11 // pred_region
          %s568 = smul.u32 2, %s36
          %s570 = ssub.s32 2048, 2048
          %571 = vsyncadd [#allocation7], %s570
          %s572 = smul.addr %s568, 16
          %s573 = smul.addr %s572, 64
          %s574 = scalar_lea.hbm %s1, %s573
          %s575 = sshll.u32 [#allocation6], 4
          %s576 = int_to_ptr.vmem [resolvable:$true] %s575
          %581 = dma.hbm_to_vmem [thread:$0]  %s574, 2048, %s576, [#allocation7], 64, 64, 4
        $region20: #{tpu_custom_call.1} parent=11 // pred_fallthru
          _
      $region12: #{tpu_custom_call.1} parent=5 // pred_fallthru
        _
      %p582 = scmp.lt.s32.totalorder %s27, 2
      // Predicated region
      $region21: #{tpu_custom_call.1} parent=5 // pred_check
        %p583 = pneg %p582
      $region22: #{tpu_custom_call.1} parent=5 // pred_check_branch
        %585 = sbr.rel (%p583) target = $region24
      $region23: #{tpu_custom_call.1} parent=5 // pred_region
        // Predicated region
        $region25: #{tpu_custom_call.1} parent=23 // pred_check
          %p586 = pneg %p111
        $region26: #{tpu_custom_call.1} parent=23 // pred_check_branch
          %588 = sbr.rel (%p586) target = $region28
        $region27: #{tpu_custom_call.1} parent=23 // pred_region
          %s589 = sand.u32 %s27, 1
          %s590 = scalar_lea.sflag [#allocation4], %s589
          %s591 = sand.u32 %s101, 1
          %s592 = smul.addr %s591, 384
          %s593 = scalar_lea.vmem [#allocation8], %s592
          %s595 = ssub.s32 6144, 6144
          %596 = vsyncadd %s590, %s595
          %s597 = smul.addr %s35, 96
          %s598 = smul.addr %s597, 64
          %s599 = scalar_lea.hbm %s2, %s598
          %s600 = sshll.u32 %s593, 4
          %s601 = int_to_ptr.vmem [resolvable:$true] %s600
          %606 = dma.hbm_to_vmem [thread:$0]  %s599, 6144, %s601, %s590, 384, 384, 24
        $region28: #{tpu_custom_call.1} parent=23 // pred_fallthru
          _
        // Predicated region
        $region29: #{tpu_custom_call.1} parent=23 // pred_check
          %p607 = pneg %p137
        $region30: #{tpu_custom_call.1} parent=23 // pred_check_branch
          %609 = sbr.rel (%p607) target = $region32
        $region31: #{tpu_custom_call.1} parent=23 // pred_region
          %s610 = sand.u32 %s27, 1
          %s611 = scalar_lea.sflag [#allocation4], %s610
          %s612 = sand.u32 %s127, 1
          %s613 = smul.addr %s612, 6
          %s614 = scalar_lea.vmem [#allocation9], %s613
          %s616 = ssub.s32 96, 96
          %617 = vsyncadd %s611, %s616
          %s618 = smul.addr %s35, 6
          %s619 = smul.addr %s618, 16
          %s620 = scalar_lea.hbm %s3, %s619
          %s622 = sshll.u32 %s614, 4
          %s623 = int_to_ptr.vmem [resolvable:$true] %s622
          %625 = dma.hbm_to_vmem [thread:$0]  %s620, 96, %s623, %s611
        $region32: #{tpu_custom_call.1} parent=23 // pred_fallthru
          _
        // Predicated region
        $region33: #{tpu_custom_call.1} parent=23 // pred_check
          %p626 = pneg %p163
        $region34: #{tpu_custom_call.1} parent=23 // pred_check_branch
          %628 = sbr.rel (%p626) target = $region36
        $region35: #{tpu_custom_call.1} parent=23 // pred_region
          %s629 = sand.u32 %s27, 1
          %s630 = scalar_lea.sflag [#allocation4], %s629
          %s631 = sand.u32 %s153, 1
          %s632 = smul.addr %s631, 128
          %s633 = scalar_lea.vmem [#allocation10], %s632
          %s635 = ssub.s32 2048, 2048
          %636 = vsyncadd %s630, %s635
          %s637 = smul.addr %s35, 32
          %s638 = smul.addr %s637, 64
          %s639 = scalar_lea.hbm %s4, %s638
          %s640 = sshll.u32 %s633, 4
          %s641 = int_to_ptr.vmem [resolvable:$true] %s640
          %646 = dma.hbm_to_vmem [thread:$0]  %s639, 2048, %s641, %s630, 64, 64, 4
        $region36: #{tpu_custom_call.1} parent=23 // pred_fallthru
          _
        // Predicated region
        $region37: #{tpu_custom_call.1} parent=23 // pred_check
          %p647 = pneg %p189
        $region38: #{tpu_custom_call.1} parent=23 // pred_check_branch
          %649 = sbr.rel (%p647) target = $region40
        $region39: #{tpu_custom_call.1} parent=23 // pred_region
          %p650 = scmp.lt.s32.totalorder %s35, 1
          %s651 = scalar_select %p650, %s35, 1
          %s652 = scalar_lea.vmem %s5, %s651
        $region40: #{tpu_custom_call.1} parent=23 // pred_fallthru
          _
        // Predicated region
        $region41: #{tpu_custom_call.1} parent=23 // pred_check
          %p653 = pneg %p215
        $region42: #{tpu_custom_call.1} parent=23 // pred_check_branch
          %655 = sbr.rel (%p653) target = $region44
        $region43: #{tpu_custom_call.1} parent=23 // pred_region
          %s656 = sand.u32 %s27, 1
          %s657 = scalar_lea.sflag [#allocation4], %s656
          %s658 = sand.u32 %s205, 1
          %s659 = smul.addr %s658, 128
          %s660 = scalar_lea.vmem [#allocation11], %s659
          %s662 = ssub.s32 2048, 2048
          %663 = vsyncadd %s657, %s662
          %s664 = smul.addr %s35, 32
          %s665 = smul.addr %s664, 64
          %s666 = scalar_lea.hbm %s6, %s665
          %s667 = sshll.u32 %s660, 4
          %s668 = int_to_ptr.vmem [resolvable:$true] %s667
          %673 = dma.hbm_to_vmem [thread:$0]  %s666, 2048, %s668, %s657, 128, 128, 8
        $region44: #{tpu_custom_call.1} parent=23 // pred_fallthru
          _
        // Predicated region
        $region45: #{tpu_custom_call.1} parent=23 // pred_check
          %p674 = pneg %p241
        $region46: #{tpu_custom_call.1} parent=23 // pred_check_branch
          %676 = sbr.rel (%p674) target = $region48
        $region47: #{tpu_custom_call.1} parent=23 // pred_region
          %p677 = scmp.lt.s32.totalorder %s35, 1
          %s678 = scalar_select %p677, %s35, 1
          %s679 = smul.addr %s678, 2
          %s680 = scalar_lea.vmem %s7, %s679
        $region48: #{tpu_custom_call.1} parent=23 // pred_fallthru
          _
        // Predicated region
        $region49: #{tpu_custom_call.1} parent=23 // pred_check
          %p681 = pneg %p267
        $region50: #{tpu_custom_call.1} parent=23 // pred_check_branch
          %683 = sbr.rel (%p681) target = $region52
        $region51: #{tpu_custom_call.1} parent=23 // pred_region
          %s684 = sand.u32 %s27, 1
          %s685 = scalar_lea.sflag [#allocation4], %s684
          %s686 = sand.u32 %s257, 1
          %s687 = smul.addr %s686, 256
          %s688 = scalar_lea.vmem [#allocation12], %s687
          %s690 = ssub.s32 4096, 4096
          %691 = vsyncadd %s685, %s690
          %s692 = smul.addr %s35, 64
          %s693 = smul.addr %s692, 64
          %s694 = scalar_lea.hbm %s8, %s693
          %s695 = sshll.u32 %s688, 4
          %s696 = int_to_ptr.vmem [resolvable:$true] %s695
          %701 = dma.hbm_to_vmem [thread:$0]  %s694, 4096, %s696, %s685, 256, 256, 16
        $region52: #{tpu_custom_call.1} parent=23 // pred_fallthru
          _
        // Predicated region
        $region53: #{tpu_custom_call.1} parent=23 // pred_check
          %p702 = pneg %p293
        $region54: #{tpu_custom_call.1} parent=23 // pred_check_branch
          %704 = sbr.rel (%p702) target = $region56
        $region55: #{tpu_custom_call.1} parent=23 // pred_region
          %p705 = scmp.lt.s32.totalorder %s35, 1
          %s706 = scalar_select %p705, %s35, 1
          %s707 = smul.addr %s706, 4
          %s708 = scalar_lea.vmem %s9, %s707
        $region56: #{tpu_custom_call.1} parent=23 // pred_fallthru
          _
        // Predicated region
        $region57: #{tpu_custom_call.1} parent=23 // pred_check
          %p709 = pneg %p319
        $region58: #{tpu_custom_call.1} parent=23 // pred_check_branch
          %711 = sbr.rel (%p709) target = $region60
        $region59: #{tpu_custom_call.1} parent=23 // pred_region
          %s712 = sand.u32 %s27, 1
          %s713 = scalar_lea.sflag [#allocation4], %s712
          %s714 = sand.u32 %s309, 1
          %s715 = smul.addr %s714, 128
          %s716 = scalar_lea.vmem [#allocation13], %s715
          %s718 = ssub.s32 2048, 2048
          %719 = vsyncadd %s713, %s718
          %s720 = smul.addr %s35, 32
          %s721 = smul.addr %s720, 64
          %s722 = scalar_lea.hbm %s10, %s721
          %s723 = sshll.u32 %s716, 4
          %s724 = int_to_ptr.vmem [resolvable:$true] %s723
          %729 = dma.hbm_to_vmem [thread:$0]  %s722, 2048, %s724, %s713, 64, 64, 4
        $region60: #{tpu_custom_call.1} parent=23 // pred_fallthru
          _
        // Predicated region
        $region61: #{tpu_custom_call.1} parent=23 // pred_check
          %p730 = pneg %p345
        $region62: #{tpu_custom_call.1} parent=23 // pred_check_branch
          %732 = sbr.rel (%p730) target = $region64
        $region63: #{tpu_custom_call.1} parent=23 // pred_region
          %p733 = scmp.lt.s32.totalorder %s35, 1
          %s734 = scalar_select %p733, %s35, 1
          %s735 = scalar_lea.vmem %s11, %s734
        $region64: #{tpu_custom_call.1} parent=23 // pred_fallthru
          _
        // Predicated region
        $region65: #{tpu_custom_call.1} parent=23 // pred_check
          %p736 = pneg %p371
        $region66: #{tpu_custom_call.1} parent=23 // pred_check_branch
          %738 = sbr.rel (%p736) target = $region68
        $region67: #{tpu_custom_call.1} parent=23 // pred_region
          %s739 = sand.u32 %s27, 1
          %s740 = scalar_lea.sflag [#allocation4], %s739
          %s741 = sand.u32 %s361, 1
          %s742 = smul.addr %s741, 128
          %s743 = scalar_lea.vmem [#allocation14], %s742
          %s745 = ssub.s32 2048, 2048
          %746 = vsyncadd %s740, %s745
          %s747 = smul.addr %s35, 32
          %s748 = smul.addr %s747, 64
          %s749 = scalar_lea.hbm %s12, %s748
          %s750 = sshll.u32 %s743, 4
          %s751 = int_to_ptr.vmem [resolvable:$true] %s750
          %756 = dma.hbm_to_vmem [thread:$0]  %s749, 2048, %s751, %s740, 128, 128, 8
        $region68: #{tpu_custom_call.1} parent=23 // pred_fallthru
          _
        // Predicated region
        $region69: #{tpu_custom_call.1} parent=23 // pred_check
          %p757 = pneg %p397
        $region70: #{tpu_custom_call.1} parent=23 // pred_check_branch
          %759 = sbr.rel (%p757) target = $region72
        $region71: #{tpu_custom_call.1} parent=23 // pred_region
          %p760 = scmp.lt.s32.totalorder %s35, 1
          %s761 = scalar_select %p760, %s35, 1
          %s762 = smul.addr %s761, 2
          %s763 = scalar_lea.vmem %s13, %s762
        $region72: #{tpu_custom_call.1} parent=23 // pred_fallthru
          _
        // Predicated region
        $region73: #{tpu_custom_call.1} parent=23 // pred_check
          %p764 = pneg %p423
        $region74: #{tpu_custom_call.1} parent=23 // pred_check_branch
          %766 = sbr.rel (%p764) target = $region76
        $region75: #{tpu_custom_call.1} parent=23 // pred_region
          %s767 = sand.u32 %s27, 1
          %s768 = scalar_lea.sflag [#allocation4], %s767
          %s769 = sand.u32 %s413, 1
          %s770 = smul.addr %s769, 128
          %s771 = scalar_lea.vmem [#allocation15], %s770
          %s773 = ssub.s32 2048, 2048
          %774 = vsyncadd %s768, %s773
          %s775 = smul.addr %s35, 32
          %s776 = smul.addr %s775, 64
          %s777 = scalar_lea.hbm %s14, %s776
          %s778 = sshll.u32 %s771, 4
          %s779 = int_to_ptr.vmem [resolvable:$true] %s778
          %784 = dma.hbm_to_vmem [thread:$0]  %s777, 2048, %s779, %s768, 64, 64, 4
        $region76: #{tpu_custom_call.1} parent=23 // pred_fallthru
          _
        // Predicated region
        $region77: #{tpu_custom_call.1} parent=23 // pred_check
          %p785 = pneg %p449
        $region78: #{tpu_custom_call.1} parent=23 // pred_check_branch
          %787 = sbr.rel (%p785) target = $region80
        $region79: #{tpu_custom_call.1} parent=23 // pred_region
          %p788 = scmp.lt.s32.totalorder %s35, 1
          %s789 = scalar_select %p788, %s35, 1
          %s790 = scalar_lea.vmem %s15, %s789
        $region80: #{tpu_custom_call.1} parent=23 // pred_fallthru
          _
        // Predicated region
        $region81: #{tpu_custom_call.1} parent=23 // pred_check
          %p791 = pneg %p475
        $region82: #{tpu_custom_call.1} parent=23 // pred_check_branch
          %793 = sbr.rel (%p791) target = $region84
        $region83: #{tpu_custom_call.1} parent=23 // pred_region
          %p794 = scmp.lt.s32.totalorder %s35, 1
          %s795 = scalar_select %p794, %s35, 1
          %s796 = scalar_lea.vmem %s16, %s795
        $region84: #{tpu_custom_call.1} parent=23 // pred_fallthru
          _
        // Predicated region
        $region85: #{tpu_custom_call.1} parent=23 // pred_check
          %p797 = pneg %p501
        $region86: #{tpu_custom_call.1} parent=23 // pred_check_branch
          %799 = sbr.rel (%p797) target = $region88
        $region87: #{tpu_custom_call.1} parent=23 // pred_region
          %p800 = scmp.lt.s32.totalorder %s35, 1
          %s801 = scalar_select %p800, %s35, 1
          %s802 = scalar_lea.vmem %s17, %s801
        $region88: #{tpu_custom_call.1} parent=23 // pred_fallthru
          _
      $region24: #{tpu_custom_call.1} parent=5 // pred_fallthru
        _
      %p803 = scmp.le.s32.totalorder 1, %s27
      %p804 = scmp.lt.s32.totalorder %s27, 3
      %p805 = pnand %p803, %p804
      %p806 = pneg %p805
      // Predicated region
      $region89: #{tpu_custom_call.1} parent=5 // pred_check
        _
      $region90: #{tpu_custom_call.1} parent=5 // pred_check_branch
        %808 = sbr.rel (%p805) target = $region92
      $region91: #{tpu_custom_call.1} parent=5 // pred_region
        %s809 = ssub.s32 %s27, 1
        // Predicated region
        $region93: #{tpu_custom_call.1} parent=91 // pred_check
          %p810 = pneg %p65
        $region94: #{tpu_custom_call.1} parent=91 // pred_check_branch
          %812 = sbr.rel (%p810) target = $region96
        $region95: #{tpu_custom_call.1} parent=91 // pred_region
          %813 = dma.done [#allocation4], 4096
        $region96: #{tpu_custom_call.1} parent=91 // pred_fallthru
          _
        // Predicated region
        $region97: #{tpu_custom_call.1} parent=91 // pred_check
          %p814 = pneg %p91
        $region98: #{tpu_custom_call.1} parent=91 // pred_check_branch
          %816 = sbr.rel (%p814) target = $region100
        $region99: #{tpu_custom_call.1} parent=91 // pred_region
          %817 = dma.done [#allocation7], 2048
        $region100: #{tpu_custom_call.1} parent=91 // pred_fallthru
          _
        %s818 = sand.u32 %s32, 1
        %s819 = scalar_lea.sflag [#allocation4], %s818
        %s820 = sand.u32 %s104, 1
        %s821 = smul.addr %s820, 384
        %s822 = scalar_lea.vmem [#allocation8], %s821
        // Predicated region
        $region101: #{tpu_custom_call.1} parent=91 // pred_check
          %p823 = pneg %p117
        $region102: #{tpu_custom_call.1} parent=91 // pred_check_branch
          %825 = sbr.rel (%p823) target = $region104
        $region103: #{tpu_custom_call.1} parent=91 // pred_region
          %826 = dma.done %s819, 6144
        $region104: #{tpu_custom_call.1} parent=91 // pred_fallthru
          _
        %s827 = sand.u32 %s32, 1
        %s828 = scalar_lea.sflag [#allocation4], %s827
        %s829 = sand.u32 %s130, 1
        %s830 = smul.addr %s829, 6
        %s831 = scalar_lea.vmem [#allocation9], %s830
        // Predicated region
        $region105: #{tpu_custom_call.1} parent=91 // pred_check
          %p832 = pneg %p143
        $region106: #{tpu_custom_call.1} parent=91 // pred_check_branch
          %834 = sbr.rel (%p832) target = $region108
        $region107: #{tpu_custom_call.1} parent=91 // pred_region
          %835 = dma.done %s828, 96
        $region108: #{tpu_custom_call.1} parent=91 // pred_fallthru
          _
        %s836 = sand.u32 %s32, 1
        %s837 = scalar_lea.sflag [#allocation4], %s836
        %s838 = sand.u32 %s156, 1
        %s839 = smul.addr %s838, 128
        %s840 = scalar_lea.vmem [#allocation10], %s839
        // Predicated region
        $region109: #{tpu_custom_call.1} parent=91 // pred_check
          %p841 = pneg %p169
        $region110: #{tpu_custom_call.1} parent=91 // pred_check_branch
          %843 = sbr.rel (%p841) target = $region112
        $region111: #{tpu_custom_call.1} parent=91 // pred_region
          %844 = dma.done %s837, 2048
        $region112: #{tpu_custom_call.1} parent=91 // pred_fallthru
          _
        %s845 = sand.u32 %s32, 1
        %s846 = scalar_lea.sflag [#allocation4], %s845
        %s847 = sand.u32 %s208, 1
        %s848 = smul.addr %s847, 128
        %s849 = scalar_lea.vmem [#allocation11], %s848
        // Predicated region
        $region113: #{tpu_custom_call.1} parent=91 // pred_check
          %p850 = pneg %p221
        $region114: #{tpu_custom_call.1} parent=91 // pred_check_branch
          %852 = sbr.rel (%p850) target = $region116
        $region115: #{tpu_custom_call.1} parent=91 // pred_region
          %853 = dma.done %s846, 2048
        $region116: #{tpu_custom_call.1} parent=91 // pred_fallthru
          _
        %s854 = sand.u32 %s32, 1
        %s855 = scalar_lea.sflag [#allocation4], %s854
        %s856 = sand.u32 %s260, 1
        %s857 = smul.addr %s856, 256
        %s858 = scalar_lea.vmem [#allocation12], %s857
        // Predicated region
        $region117: #{tpu_custom_call.1} parent=91 // pred_check
          %p859 = pneg %p273
        $region118: #{tpu_custom_call.1} parent=91 // pred_check_branch
          %861 = sbr.rel (%p859) target = $region120
        $region119: #{tpu_custom_call.1} parent=91 // pred_region
          %862 = dma.done %s855, 4096
        $region120: #{tpu_custom_call.1} parent=91 // pred_fallthru
          _
        %s863 = sand.u32 %s32, 1
        %s864 = scalar_lea.sflag [#allocation4], %s863
        %s865 = sand.u32 %s312, 1
        %s866 = smul.addr %s865, 128
        %s867 = scalar_lea.vmem [#allocation13], %s866
        // Predicated region
        $region121: #{tpu_custom_call.1} parent=91 // pred_check
          %p868 = pneg %p325
        $region122: #{tpu_custom_call.1} parent=91 // pred_check_branch
          %870 = sbr.rel (%p868) target = $region124
        $region123: #{tpu_custom_call.1} parent=91 // pred_region
          %871 = dma.done %s864, 2048
        $region124: #{tpu_custom_call.1} parent=91 // pred_fallthru
          _
        %s872 = sand.u32 %s32, 1
        %s873 = scalar_lea.sflag [#allocation4], %s872
        %s874 = sand.u32 %s364, 1
        %s875 = smul.addr %s874, 128
        %s876 = scalar_lea.vmem [#allocation14], %s875
        // Predicated region
        $region125: #{tpu_custom_call.1} parent=91 // pred_check
          %p877 = pneg %p377
        $region126: #{tpu_custom_call.1} parent=91 // pred_check_branch
          %879 = sbr.rel (%p877) target = $region128
        $region127: #{tpu_custom_call.1} parent=91 // pred_region
          %880 = dma.done %s873, 2048
        $region128: #{tpu_custom_call.1} parent=91 // pred_fallthru
          _
        %s881 = sand.u32 %s32, 1
        %s882 = scalar_lea.sflag [#allocation4], %s881
        %s883 = sand.u32 %s416, 1
        %s884 = smul.addr %s883, 128
        %s885 = scalar_lea.vmem [#allocation15], %s884
        // Predicated region
        $region129: #{tpu_custom_call.1} parent=91 // pred_check
          %p886 = pneg %p429
        $region130: #{tpu_custom_call.1} parent=91 // pred_check_branch
          %888 = sbr.rel (%p886) target = $region132
        $region131: #{tpu_custom_call.1} parent=91 // pred_region
          %889 = dma.done %s882, 2048
        $region132: #{tpu_custom_call.1} parent=91 // pred_fallthru
          _
        %p890 = pneg %p65
        %p891 = pneg %p62
        %p892 = pneg %p91
        %p893 = pneg %p88
        %s894 = sand.u32 %s32, 1
        %s895 = scalar_lea.sflag [#allocation4], %s894
        %s896 = sand.u32 %s104, 1
        %s897 = smul.addr %s896, 384
        %s898 = scalar_lea.vmem [#allocation8], %s897
        %p899 = pneg %p117
        %p900 = pneg %p114
        %s901 = sand.u32 %s32, 1
        %s902 = scalar_lea.sflag [#allocation4], %s901
        %s903 = sand.u32 %s130, 1
        %s904 = smul.addr %s903, 6
        %s905 = scalar_lea.vmem [#allocation9], %s904
        %p906 = pneg %p143
        %p907 = pneg %p140
        %s908 = sand.u32 %s32, 1
        %s909 = scalar_lea.sflag [#allocation4], %s908
        %s910 = sand.u32 %s156, 1
        %s911 = smul.addr %s910, 128
        %s912 = scalar_lea.vmem [#allocation10], %s911
        %p913 = pneg %p169
        %p914 = pneg %p166
        %p915 = scmp.lt.s32.totalorder %s37, 1
        %s916 = scalar_select %p915, %s37, 1
        %s917 = scalar_lea.vmem %s5, %s916
        %p918 = pneg %p195
        %p919 = pneg %p192
        %s920 = sand.u32 %s32, 1
        %s921 = scalar_lea.sflag [#allocation4], %s920
        %s922 = sand.u32 %s208, 1
        %s923 = smul.addr %s922, 128
        %s924 = scalar_lea.vmem [#allocation11], %s923
        %p925 = pneg %p221
        %p926 = pneg %p218
        %p927 = scmp.lt.s32.totalorder %s37, 1
        %s928 = scalar_select %p927, %s37, 1
        %s929 = smul.addr %s928, 2
        %s930 = scalar_lea.vmem %s7, %s929
        %p931 = pneg %p247
        %p932 = pneg %p244
        %s933 = sand.u32 %s32, 1
        %s934 = scalar_lea.sflag [#allocation4], %s933
        %s935 = sand.u32 %s260, 1
        %s936 = smul.addr %s935, 256
        %s937 = scalar_lea.vmem [#allocation12], %s936
        %p938 = pneg %p273
        %p939 = pneg %p270
        %p940 = scmp.lt.s32.totalorder %s37, 1
        %s941 = scalar_select %p940, %s37, 1
        %s942 = smul.addr %s941, 4
        %s943 = scalar_lea.vmem %s9, %s942
        %p944 = pneg %p299
        %p945 = pneg %p296
        %s946 = sand.u32 %s32, 1
        %s947 = scalar_lea.sflag [#allocation4], %s946
        %s948 = sand.u32 %s312, 1
        %s949 = smul.addr %s948, 128
        %s950 = scalar_lea.vmem [#allocation13], %s949
        %p951 = pneg %p325
        %p952 = pneg %p322
        %p953 = scmp.lt.s32.totalorder %s37, 1
        %s954 = scalar_select %p953, %s37, 1
        %s955 = scalar_lea.vmem %s11, %s954
        %p956 = pneg %p351
        %p957 = pneg %p348
        %s958 = sand.u32 %s32, 1
        %s959 = scalar_lea.sflag [#allocation4], %s958
        %s960 = sand.u32 %s364, 1
        %s961 = smul.addr %s960, 128
        %s962 = scalar_lea.vmem [#allocation14], %s961
        %p963 = pneg %p377
        %p964 = pneg %p374
        %p965 = scmp.lt.s32.totalorder %s37, 1
        %s966 = scalar_select %p965, %s37, 1
        %s967 = smul.addr %s966, 2
        %s968 = scalar_lea.vmem %s13, %s967
        %p969 = pneg %p403
        %p970 = pneg %p400
        %s971 = sand.u32 %s32, 1
        %s972 = scalar_lea.sflag [#allocation4], %s971
        %s973 = sand.u32 %s416, 1
        %s974 = smul.addr %s973, 128
        %s975 = scalar_lea.vmem [#allocation15], %s974
        %p976 = pneg %p429
        %p977 = pneg %p426
        %p978 = scmp.lt.s32.totalorder %s37, 1
        %s979 = scalar_select %p978, %s37, 1
        %s980 = scalar_lea.vmem %s15, %s979
        %p981 = pneg %p455
        %p982 = pneg %p452
        %p983 = scmp.lt.s32.totalorder %s37, 1
        %s984 = scalar_select %p983, %s37, 1
        %s985 = scalar_lea.vmem %s16, %s984
        %p986 = pneg %p481
        %p987 = pneg %p478
        %p988 = scmp.lt.s32.totalorder %s37, 1
        %s989 = scalar_select %p988, %s37, 1
        %s990 = scalar_lea.vmem %s17, %s989
        %p991 = pneg %p507
        %p992 = pneg %p504
        %p993 = pneg %p533
        %p994 = pneg %p530
        %s995 = smul.u32 2, %s36
        %s996 = smul.u32 2, %s36
        %p997 = scmp.lt.s32.totalorder %s37, 1
        %s998 = scalar_select %p997, %s37, 1
        %s999 = scalar_lea.vmem %s5, %s998
        %p1000 = scmp.lt.s32.totalorder %s37, 1
        %s1001 = scalar_select %p1000, %s37, 1
        %s1002 = smul.addr %s1001, 2
        %s1003 = scalar_lea.vmem %s7, %s1002
        %p1004 = scmp.lt.s32.totalorder %s37, 1
        %s1005 = scalar_select %p1004, %s37, 1
        %s1006 = smul.addr %s1005, 4
        %s1007 = scalar_lea.vmem %s9, %s1006
        %p1008 = scmp.lt.s32.totalorder %s37, 1
        %s1009 = scalar_select %p1008, %s37, 1
        %s1010 = scalar_lea.vmem %s11, %s1009
        %p1011 = scmp.lt.s32.totalorder %s37, 1
        %s1012 = scalar_select %p1011, %s37, 1
        %s1013 = smul.addr %s1012, 2
        %s1014 = scalar_lea.vmem %s13, %s1013
        %p1015 = scmp.lt.s32.totalorder %s37, 1
        %s1016 = scalar_select %p1015, %s37, 1
        %s1017 = scalar_lea.vmem %s15, %s1016
        %p1018 = scmp.lt.s32.totalorder %s37, 1
        %s1019 = scalar_select %p1018, %s37, 1
        %s1020 = scalar_lea.vmem %s16, %s1019
        %p1021 = scmp.lt.s32.totalorder %s37, 1
        %s1022 = scalar_select %p1021, %s37, 1
        %s1023 = scalar_lea.vmem %s17, %s1022
        %s1024 = smul.u32 2, %s36
        %p1026 = scmp.eq.s32.totalorder %s37, 0
        // Predicated region
        $region133: #{tpu_custom_call.1} parent=91 // pred_check
          %p1027 = pneg %p1026
        $region134: #{tpu_custom_call.1} parent=91 // pred_check_branch
          %1029 = sbr.rel (%p1027) target = $region136
        $region135: #{tpu_custom_call.1} parent=91 // pred_region
          %v1030 = vld [vmem:[#allocation3] sm:$0xff]
          %v1031 = vld [vmem:[#allocation3 + $0x8] sm:$0xff]
          %v1032 = vld [vmem:[#allocation3 + $0x10] sm:$0xff]
          %v1033 = vld [vmem:[#allocation3 + $0x18] sm:$0xff]
          %v1034 = vld [vmem:[#allocation3 + $0x20] sm:$0xff]
          %v1035 = vld [vmem:[#allocation3 + $0x28] sm:$0xff]
          %v1036 = vld [vmem:[#allocation3 + $0x30] sm:$0xff]
          %v1037 = vld [vmem:[#allocation3 + $0x38] sm:$0xff]
          %v1038 = vld [vmem:[#allocation3 + $0x40] sm:$0xff]
          %v1039 = vld [vmem:[#allocation3 + $0x48] sm:$0xff]
          %v1040 = vld [vmem:[#allocation3 + $0x50] sm:$0xff]
          %v1041 = vld [vmem:[#allocation3 + $0x58] sm:$0xff]
          %v1042 = vld [vmem:[#allocation3 + $0x60] sm:$0xff]
          %v1043 = vld [vmem:[#allocation3 + $0x68] sm:$0xff]
          %v1044 = vld [vmem:[#allocation3 + $0x70] sm:$0xff]
          %v1045 = vld [vmem:[#allocation3 + $0x78] sm:$0xff]
          %v1046 = vld [vmem:[#allocation3 + $0x80] sm:$0xff]
          %v1047 = vld [vmem:[#allocation3 + $0x88] sm:$0xff]
          %v1048 = vld [vmem:[#allocation3 + $0x90] sm:$0xff]
          %v1049 = vld [vmem:[#allocation3 + $0x98] sm:$0xff]
          %v1050 = vld [vmem:[#allocation3 + $0xa0] sm:$0xff]
          %v1051 = vld [vmem:[#allocation3 + $0xa8] sm:$0xff]
          %v1052 = vld [vmem:[#allocation3 + $0xb0] sm:$0xff]
          %v1053 = vld [vmem:[#allocation3 + $0xb8] sm:$0xff]
          %v1054 = vld [vmem:[#allocation3 + $0xc0] sm:$0xff]
          %v1055 = vld [vmem:[#allocation3 + $0xc8] sm:$0xff]
          %v1056 = vld [vmem:[#allocation3 + $0xd0] sm:$0xff]
          %v1057 = vld [vmem:[#allocation3 + $0xd8] sm:$0xff]
          %v1058 = vld [vmem:[#allocation3 + $0xe0] sm:$0xff]
          %v1059 = vld [vmem:[#allocation3 + $0xe8] sm:$0xff]
          %v1060 = vld [vmem:[#allocation3 + $0xf0] sm:$0xff]
          %v1061 = vld [vmem:[#allocation3 + $0xf8] sm:$0xff]
          %1062 = vst [vmem:[#allocation16] sm:$0xff] %v1030
          %1063 = vst [vmem:[#allocation16 + $0x8] sm:$0xff] %v1031
          %1064 = vst [vmem:[#allocation16 + $0x10] sm:$0xff] %v1032
          %1065 = vst [vmem:[#allocation16 + $0x18] sm:$0xff] %v1033
          %1066 = vst [vmem:[#allocation16 + $0x20] sm:$0xff] %v1034
          %1067 = vst [vmem:[#allocation16 + $0x28] sm:$0xff] %v1035
          %1068 = vst [vmem:[#allocation16 + $0x30] sm:$0xff] %v1036
          %1069 = vst [vmem:[#allocation16 + $0x38] sm:$0xff] %v1037
          %1070 = vst [vmem:[#allocation16 + $0x40] sm:$0xff] %v1038
          %1071 = vst [vmem:[#allocation16 + $0x48] sm:$0xff] %v1039
          %1072 = vst [vmem:[#allocation16 + $0x50] sm:$0xff] %v1040
          %1073 = vst [vmem:[#allocation16 + $0x58] sm:$0xff] %v1041
          %1074 = vst [vmem:[#allocation16 + $0x60] sm:$0xff] %v1042
          %1075 = vst [vmem:[#allocation16 + $0x68] sm:$0xff] %v1043
          %1076 = vst [vmem:[#allocation16 + $0x70] sm:$0xff] %v1044
          %1077 = vst [vmem:[#allocation16 + $0x78] sm:$0xff] %v1045
          %1078 = vst [vmem:[#allocation16 + $0x80] sm:$0xff] %v1046
          %1079 = vst [vmem:[#allocation16 + $0x88] sm:$0xff] %v1047
          %1080 = vst [vmem:[#allocation16 + $0x90] sm:$0xff] %v1048
          %1081 = vst [vmem:[#allocation16 + $0x98] sm:$0xff] %v1049
          %1082 = vst [vmem:[#allocation16 + $0xa0] sm:$0xff] %v1050
          %1083 = vst [vmem:[#allocation16 + $0xa8] sm:$0xff] %v1051
          %1084 = vst [vmem:[#allocation16 + $0xb0] sm:$0xff] %v1052
          %1085 = vst [vmem:[#allocation16 + $0xb8] sm:$0xff] %v1053
          %1086 = vst [vmem:[#allocation16 + $0xc0] sm:$0xff] %v1054
          %1087 = vst [vmem:[#allocation16 + $0xc8] sm:$0xff] %v1055
          %1088 = vst [vmem:[#allocation16 + $0xd0] sm:$0xff] %v1056
          %1089 = vst [vmem:[#allocation16 + $0xd8] sm:$0xff] %v1057
          %1090 = vst [vmem:[#allocation16 + $0xe0] sm:$0xff] %v1058
          %1091 = vst [vmem:[#allocation16 + $0xe8] sm:$0xff] %v1059
          %1092 = vst [vmem:[#allocation16 + $0xf0] sm:$0xff] %v1060
          %1093 = vst [vmem:[#allocation16 + $0xf8] sm:$0xff] %v1061
          %v1094 = vlaneseq
          %v1095 = vshrl.u32 %v1094, 7
          %v1096 = vadd.s32 %v1095, 8
          %v1097 = vadd.s32 %v1095, 16
          %v1098 = vadd.s32 %v1095, 24
          %v1099 = vadd.s32 %v1095, 32
          %v1100 = vadd.s32 %v1095, 40
          %v1101 = vadd.s32 %v1095, 48
          %v1102 = vadd.s32 %v1095, 56
          %v1103 = vadd.s32 %v1095, 64
          %v1104 = vadd.s32 %v1095, 72
          %v1105 = vadd.s32 %v1095, 80
          %v1106 = vadd.s32 %v1095, 88
          %v1107 = vadd.s32 %v1095, 96
          %v1108 = vadd.s32 %v1095, 104
          %v1109 = vadd.s32 %v1095, 112
          %v1110 = vadd.s32 %v1095, 120
          %v1111 = vlaneseq
          %v1112 = vand.u32 %v1111, 127
          %vm1113 = vcmp.ge.s32.totalorder %v1095, %v1112
          %vm1114 = vcmp.ge.s32.totalorder %v1096, %v1112
          %vm1115 = vcmp.ge.s32.totalorder %v1097, %v1112
          %vm1116 = vcmp.ge.s32.totalorder %v1098, %v1112
          %vm1117 = vcmp.ge.s32.totalorder %v1099, %v1112
          %vm1118 = vcmp.ge.s32.totalorder %v1100, %v1112
          %vm1119 = vcmp.ge.s32.totalorder %v1101, %v1112
          %vm1120 = vcmp.ge.s32.totalorder %v1102, %v1112
          %vm1121 = vcmp.ge.s32.totalorder %v1103, %v1112
          %vm1122 = vcmp.ge.s32.totalorder %v1104, %v1112
          %vm1123 = vcmp.ge.s32.totalorder %v1105, %v1112
          %vm1124 = vcmp.ge.s32.totalorder %v1106, %v1112
          %vm1125 = vcmp.ge.s32.totalorder %v1107, %v1112
          %vm1126 = vcmp.ge.s32.totalorder %v1108, %v1112
          %vm1127 = vcmp.ge.s32.totalorder %v1109, %v1112
          %vm1128 = vcmp.ge.s32.totalorder %v1110, %v1112
          %v1129 = vsel %vm1113, 1, 0
          %v1130 = vsel %vm1114, 1, 0
          %v1131 = vsel %vm1115, 1, 0
          %v1132 = vsel %vm1116, 1, 0
          %v1133 = vsel %vm1117, 1, 0
          %v1134 = vsel %vm1118, 1, 0
          %v1135 = vsel %vm1119, 1, 0
          %v1136 = vsel %vm1120, 1, 0
          %v1137 = vsel %vm1121, 1, 0
          %v1138 = vsel %vm1122, 1, 0
          %v1139 = vsel %vm1123, 1, 0
          %v1140 = vsel %vm1124, 1, 0
          %v1141 = vsel %vm1125, 1, 0
          %v1142 = vsel %vm1126, 1, 0
          %v1143 = vsel %vm1127, 1, 0
          %v1144 = vsel %vm1128, 1, 0
          %vm1145 = vcmp.eq.s32.totalorder %v1129, 1
          %vm1146 = vcmp.eq.s32.totalorder %v1130, 1
          %vm1147 = vcmp.eq.s32.totalorder %v1131, 1
          %vm1148 = vcmp.eq.s32.totalorder %v1132, 1
          %vm1149 = vcmp.eq.s32.totalorder %v1133, 1
          %vm1150 = vcmp.eq.s32.totalorder %v1134, 1
          %vm1151 = vcmp.eq.s32.totalorder %v1135, 1
          %vm1152 = vcmp.eq.s32.totalorder %v1136, 1
          %vm1153 = vcmp.eq.s32.totalorder %v1137, 1
          %vm1154 = vcmp.eq.s32.totalorder %v1138, 1
          %vm1155 = vcmp.eq.s32.totalorder %v1139, 1
          %vm1156 = vcmp.eq.s32.totalorder %v1140, 1
          %vm1157 = vcmp.eq.s32.totalorder %v1141, 1
          %vm1158 = vcmp.eq.s32.totalorder %v1142, 1
          %vm1159 = vcmp.eq.s32.totalorder %v1143, 1
          %vm1160 = vcmp.eq.s32.totalorder %v1144, 1
          %v1161 = vsel %vm1145, 0.0, -1e+09
          %v1162 = vsel %vm1146, 0.0, -1e+09
          %v1163 = vsel %vm1147, 0.0, -1e+09
          %v1164 = vsel %vm1148, 0.0, -1e+09
          %v1165 = vsel %vm1149, 0.0, -1e+09
          %v1166 = vsel %vm1150, 0.0, -1e+09
          %v1167 = vsel %vm1151, 0.0, -1e+09
          %v1168 = vsel %vm1152, 0.0, -1e+09
          %v1169 = vsel %vm1153, 0.0, -1e+09
          %v1170 = vsel %vm1154, 0.0, -1e+09
          %v1171 = vsel %vm1155, 0.0, -1e+09
          %v1172 = vsel %vm1156, 0.0, -1e+09
          %v1173 = vsel %vm1157, 0.0, -1e+09
          %v1174 = vsel %vm1158, 0.0, -1e+09
          %v1175 = vsel %vm1159, 0.0, -1e+09
          %v1176 = vsel %vm1160, 0.0, -1e+09
          %1177 = vst [vmem:[#allocation2] sm:$0xff] %v1161
          %1178 = vst [vmem:[#allocation2 + $0x8] sm:$0xff] %v1162
          %1179 = vst [vmem:[#allocation2 + $0x10] sm:$0xff] %v1163
          %1180 = vst [vmem:[#allocation2 + $0x18] sm:$0xff] %v1164
          %1181 = vst [vmem:[#allocation2 + $0x20] sm:$0xff] %v1165
          %1182 = vst [vmem:[#allocation2 + $0x28] sm:$0xff] %v1166
          %1183 = vst [vmem:[#allocation2 + $0x30] sm:$0xff] %v1167
          %1184 = vst [vmem:[#allocation2 + $0x38] sm:$0xff] %v1168
          %1185 = vst [vmem:[#allocation2 + $0x40] sm:$0xff] %v1169
          %1186 = vst [vmem:[#allocation2 + $0x48] sm:$0xff] %v1170
          %1187 = vst [vmem:[#allocation2 + $0x50] sm:$0xff] %v1171
          %1188 = vst [vmem:[#allocation2 + $0x58] sm:$0xff] %v1172
          %1189 = vst [vmem:[#allocation2 + $0x60] sm:$0xff] %v1173
          %1190 = vst [vmem:[#allocation2 + $0x68] sm:$0xff] %v1174
          %1191 = vst [vmem:[#allocation2 + $0x70] sm:$0xff] %v1175
          %1192 = vst [vmem:[#allocation2 + $0x78] sm:$0xff] %v1176
          %1193 = vst [vmem:[#allocation2 + $0x80] sm:$0xff] %v1161
          %1194 = vst [vmem:[#allocation2 + $0x88] sm:$0xff] %v1162
          %1195 = vst [vmem:[#allocation2 + $0x90] sm:$0xff] %v1163
          %1196 = vst [vmem:[#allocation2 + $0x98] sm:$0xff] %v1164
          %1197 = vst [vmem:[#allocation2 + $0xa0] sm:$0xff] %v1165
          %1198 = vst [vmem:[#allocation2 + $0xa8] sm:$0xff] %v1166
          %1199 = vst [vmem:[#allocation2 + $0xb0] sm:$0xff] %v1167
          %1200 = vst [vmem:[#allocation2 + $0xb8] sm:$0xff] %v1168
          %1201 = vst [vmem:[#allocation2 + $0xc0] sm:$0xff] %v1169
          %1202 = vst [vmem:[#allocation2 + $0xc8] sm:$0xff] %v1170
          %1203 = vst [vmem:[#allocation2 + $0xd0] sm:$0xff] %v1171
          %1204 = vst [vmem:[#allocation2 + $0xd8] sm:$0xff] %v1172
          %1205 = vst [vmem:[#allocation2 + $0xe0] sm:$0xff] %v1173
          %1206 = vst [vmem:[#allocation2 + $0xe8] sm:$0xff] %v1174
          %1207 = vst [vmem:[#allocation2 + $0xf0] sm:$0xff] %v1175
          %1208 = vst [vmem:[#allocation2 + $0xf8] sm:$0xff] %v1176
        $region136: #{tpu_custom_call.1} parent=91 // pred_fallthru
          _
        %v1209 = vld [vmem:[#allocation16] sm:$0xff]
        %v1210 = vld [vmem:[#allocation16 + $0x8] sm:$0xff]
        %v1211 = vld [vmem:[#allocation16 + $0x10] sm:$0xff]
        %v1212 = vld [vmem:[#allocation16 + $0x18] sm:$0xff]
        %v1213 = vld [vmem:[#allocation16 + $0x20] sm:$0xff]
        %v1214 = vld [vmem:[#allocation16 + $0x28] sm:$0xff]
        %v1215 = vld [vmem:[#allocation16 + $0x30] sm:$0xff]
        %v1216 = vld [vmem:[#allocation16 + $0x38] sm:$0xff]
        %v1217 = vld [vmem:[#allocation16 + $0x40] sm:$0xff]
        %v1218 = vld [vmem:[#allocation16 + $0x48] sm:$0xff]
        %v1219 = vld [vmem:[#allocation16 + $0x50] sm:$0xff]
        %v1220 = vld [vmem:[#allocation16 + $0x58] sm:$0xff]
        %v1221 = vld [vmem:[#allocation16 + $0x60] sm:$0xff]
        %v1222 = vld [vmem:[#allocation16 + $0x68] sm:$0xff]
        %v1223 = vld [vmem:[#allocation16 + $0x70] sm:$0xff]
        %v1224 = vld [vmem:[#allocation16 + $0x78] sm:$0xff]
        %v1225 = vld [vmem:[#allocation16 + $0x80] sm:$0xff]
        %v1226 = vld [vmem:[#allocation16 + $0x88] sm:$0xff]
        %v1227 = vld [vmem:[#allocation16 + $0x90] sm:$0xff]
        %v1228 = vld [vmem:[#allocation16 + $0x98] sm:$0xff]
        %v1229 = vld [vmem:[#allocation16 + $0xa0] sm:$0xff]
        %v1230 = vld [vmem:[#allocation16 + $0xa8] sm:$0xff]
        %v1231 = vld [vmem:[#allocation16 + $0xb0] sm:$0xff]
        %v1232 = vld [vmem:[#allocation16 + $0xb8] sm:$0xff]
        %v1233 = vld [vmem:[#allocation16 + $0xc0] sm:$0xff]
        %v1234 = vld [vmem:[#allocation16 + $0xc8] sm:$0xff]
        %v1235 = vld [vmem:[#allocation16 + $0xd0] sm:$0xff]
        %v1236 = vld [vmem:[#allocation16 + $0xd8] sm:$0xff]
        %v1237 = vld [vmem:[#allocation16 + $0xe0] sm:$0xff]
        %v1238 = vld [vmem:[#allocation16 + $0xe8] sm:$0xff]
        %v1239 = vld [vmem:[#allocation16 + $0xf0] sm:$0xff]
        %v1240 = vld [vmem:[#allocation16 + $0xf8] sm:$0xff]
        %v1241 = vld [vmem:[#allocation6] sm:$0xf]
        %v1242 = vld [vmem:[#allocation6 + $0x4] sm:$0xf]
        %v1243 = vld [vmem:[#allocation6 + $0x8] sm:$0xf]
        %v1244 = vld [vmem:[#allocation6 + $0xc] sm:$0xf]
        %v1245 = vld [vmem:[#allocation6 + $0x10] sm:$0xf]
        %v1246 = vld [vmem:[#allocation6 + $0x14] sm:$0xf]
        %v1247 = vld [vmem:[#allocation6 + $0x18] sm:$0xf]
        %v1248 = vld [vmem:[#allocation6 + $0x1c] sm:$0xf]
        %v1249 = vld [vmem:[#allocation6 + $0x20] sm:$0xf]
        %v1250 = vld [vmem:[#allocation6 + $0x24] sm:$0xf]
        %v1251 = vld [vmem:[#allocation6 + $0x28] sm:$0xf]
        %v1252 = vld [vmem:[#allocation6 + $0x2c] sm:$0xf]
        %v1253 = vld [vmem:[#allocation6 + $0x30] sm:$0xf]
        %v1254 = vld [vmem:[#allocation6 + $0x34] sm:$0xf]
        %v1255 = vld [vmem:[#allocation6 + $0x38] sm:$0xf]
        %v1256 = vld [vmem:[#allocation6 + $0x3c] sm:$0xf]
        %v1257 = vld [vmem:[#allocation6 + $0x40] sm:$0xf]
        %v1258 = vld [vmem:[#allocation6 + $0x44] sm:$0xf]
        %v1259 = vld [vmem:[#allocation6 + $0x48] sm:$0xf]
        %v1260 = vld [vmem:[#allocation6 + $0x4c] sm:$0xf]
        %v1261 = vld [vmem:[#allocation6 + $0x50] sm:$0xf]
        %v1262 = vld [vmem:[#allocation6 + $0x54] sm:$0xf]
        %v1263 = vld [vmem:[#allocation6 + $0x58] sm:$0xf]
        %v1264 = vld [vmem:[#allocation6 + $0x5c] sm:$0xf]
        %v1265 = vld [vmem:[#allocation6 + $0x60] sm:$0xf]
        %v1266 = vld [vmem:[#allocation6 + $0x64] sm:$0xf]
        %v1267 = vld [vmem:[#allocation6 + $0x68] sm:$0xf]
        %v1268 = vld [vmem:[#allocation6 + $0x6c] sm:$0xf]
        %v1269 = vld [vmem:[#allocation6 + $0x70] sm:$0xf]
        %v1270 = vld [vmem:[#allocation6 + $0x74] sm:$0xf]
        %v1271 = vld [vmem:[#allocation6 + $0x78] sm:$0xf]
        %v1272 = vld [vmem:[#allocation6 + $0x7c] sm:$0xf]
        %v1273 = vld [vmem:[%s1020] sm:$0x1]
        %v1274 = vld [vmem:[%s1023] sm:$0x1]
        %v1275 = vld [vmem:[#allocation2] sm:$0xff]
        %v1276 = vld [vmem:[#allocation2 + $0x8] sm:$0xff]
        %v1277 = vld [vmem:[#allocation2 + $0x10] sm:$0xff]
        %v1278 = vld [vmem:[#allocation2 + $0x18] sm:$0xff]
        %v1279 = vld [vmem:[#allocation2 + $0x20] sm:$0xff]
        %v1280 = vld [vmem:[#allocation2 + $0x28] sm:$0xff]
        %v1281 = vld [vmem:[#allocation2 + $0x30] sm:$0xff]
        %v1282 = vld [vmem:[#allocation2 + $0x38] sm:$0xff]
        %v1283 = vld [vmem:[#allocation2 + $0x40] sm:$0xff]
        %v1284 = vld [vmem:[#allocation2 + $0x48] sm:$0xff]
        %v1285 = vld [vmem:[#allocation2 + $0x50] sm:$0xff]
        %v1286 = vld [vmem:[#allocation2 + $0x58] sm:$0xff]
        %v1287 = vld [vmem:[#allocation2 + $0x60] sm:$0xff]
        %v1288 = vld [vmem:[#allocation2 + $0x68] sm:$0xff]
        %v1289 = vld [vmem:[#allocation2 + $0x70] sm:$0xff]
        %v1290 = vld [vmem:[#allocation2 + $0x78] sm:$0xff]
        %v1291 = vld [vmem:[#allocation2 + $0x80] sm:$0xff]
        %v1292 = vld [vmem:[#allocation2 + $0x88] sm:$0xff]
        %v1293 = vld [vmem:[#allocation2 + $0x90] sm:$0xff]
        %v1294 = vld [vmem:[#allocation2 + $0x98] sm:$0xff]
        %v1295 = vld [vmem:[#allocation2 + $0xa0] sm:$0xff]
        %v1296 = vld [vmem:[#allocation2 + $0xa8] sm:$0xff]
        %v1297 = vld [vmem:[#allocation2 + $0xb0] sm:$0xff]
        %v1298 = vld [vmem:[#allocation2 + $0xb8] sm:$0xff]
        %v1299 = vld [vmem:[#allocation2 + $0xc0] sm:$0xff]
        %v1300 = vld [vmem:[#allocation2 + $0xc8] sm:$0xff]
        %v1301 = vld [vmem:[#allocation2 + $0xd0] sm:$0xff]
        %v1302 = vld [vmem:[#allocation2 + $0xd8] sm:$0xff]
        %v1303 = vld [vmem:[#allocation2 + $0xe0] sm:$0xff]
        %v1304 = vld [vmem:[#allocation2 + $0xe8] sm:$0xff]
        %v1305 = vld [vmem:[#allocation2 + $0xf0] sm:$0xff]
        %v1306 = vld [vmem:[#allocation2 + $0xf8] sm:$0xff]
        %v1307 = vld [vmem:[%s822] sm:$0xff]
        %v1308 = vld [vmem:[%s822 + $0x8] sm:$0xff]
        %v1309 = vld [vmem:[%s822 + $0x10] sm:$0xff]
        %v1310 = vld [vmem:[%s822 + $0x18] sm:$0xff]
        %v1311 = vld [vmem:[%s822 + $0x20] sm:$0xff]
        %v1312 = vld [vmem:[%s822 + $0x28] sm:$0xff]
        %v1313 = vld [vmem:[%s822 + $0x30] sm:$0xff]
        %v1314 = vld [vmem:[%s822 + $0x38] sm:$0xff]
        %v1315 = vld [vmem:[%s822 + $0x40] sm:$0xff]
        %v1316 = vld [vmem:[%s822 + $0x48] sm:$0xff]
        %v1317 = vld [vmem:[%s822 + $0x50] sm:$0xff]
        %v1318 = vld [vmem:[%s822 + $0x58] sm:$0xff]
        %v1319 = vld [vmem:[%s822 + $0x60] sm:$0xff]
        %v1320 = vld [vmem:[%s822 + $0x68] sm:$0xff]
        %v1321 = vld [vmem:[%s822 + $0x70] sm:$0xff]
        %v1322 = vld [vmem:[%s822 + $0x78] sm:$0xff]
        %v1323 = vld [vmem:[%s822 + $0x80] sm:$0xff]
        %v1324 = vld [vmem:[%s822 + $0x88] sm:$0xff]
        %v1325 = vld [vmem:[%s822 + $0x90] sm:$0xff]
        %v1326 = vld [vmem:[%s822 + $0x98] sm:$0xff]
        %v1327 = vld [vmem:[%s822 + $0xa0] sm:$0xff]
        %v1328 = vld [vmem:[%s822 + $0xa8] sm:$0xff]
        %v1329 = vld [vmem:[%s822 + $0xb0] sm:$0xff]
        %v1330 = vld [vmem:[%s822 + $0xb8] sm:$0xff]
        %v1331 = vld [vmem:[%s822 + $0xc0] sm:$0xff]
        %v1332 = vld [vmem:[%s822 + $0xc8] sm:$0xff]
        %v1333 = vld [vmem:[%s822 + $0xd0] sm:$0xff]
        %v1334 = vld [vmem:[%s822 + $0xd8] sm:$0xff]
        %v1335 = vld [vmem:[%s822 + $0xe0] sm:$0xff]
        %v1336 = vld [vmem:[%s822 + $0xe8] sm:$0xff]
        %v1337 = vld [vmem:[%s822 + $0xf0] sm:$0xff]
        %v1338 = vld [vmem:[%s822 + $0xf8] sm:$0xff]
        %v1339 = vld [vmem:[%s822 + $0x100] sm:$0xff]
        %v1340 = vld [vmem:[%s822 + $0x108] sm:$0xff]
        %v1341 = vld [vmem:[%s822 + $0x110] sm:$0xff]
        %v1342 = vld [vmem:[%s822 + $0x118] sm:$0xff]
        %v1343 = vld [vmem:[%s822 + $0x120] sm:$0xff]
        %v1344 = vld [vmem:[%s822 + $0x128] sm:$0xff]
        %v1345 = vld [vmem:[%s822 + $0x130] sm:$0xff]
        %v1346 = vld [vmem:[%s822 + $0x138] sm:$0xff]
        %v1347 = vld [vmem:[%s822 + $0x140] sm:$0xff]
        %v1348 = vld [vmem:[%s822 + $0x148] sm:$0xff]
        %v1349 = vld [vmem:[%s822 + $0x150] sm:$0xff]
        %v1350 = vld [vmem:[%s822 + $0x158] sm:$0xff]
        %v1351 = vld [vmem:[%s822 + $0x160] sm:$0xff]
        %v1352 = vld [vmem:[%s822 + $0x168] sm:$0xff]
        %v1353 = vld [vmem:[%s822 + $0x170] sm:$0xff]
        %v1354 = vld [vmem:[%s822 + $0x178] sm:$0xff]
        %v1355 = vld [vmem:[%s831] sm:$0x3f]
        %v1356 = vpack.c.bf16 %v1210, %v1209
        %v1357 = vpack.c.bf16 %v1212, %v1211
        %v1358 = vpack.c.bf16 %v1214, %v1213
        %v1359 = vpack.c.bf16 %v1216, %v1215
        %v1360 = vpack.c.bf16 %v1218, %v1217
        %v1361 = vpack.c.bf16 %v1220, %v1219
        %v1362 = vpack.c.bf16 %v1222, %v1221
        %v1363 = vpack.c.bf16 %v1224, %v1223
        %v1364 = vpack.c.bf16 %v1226, %v1225
        %v1365 = vpack.c.bf16 %v1228, %v1227
        %v1366 = vpack.c.bf16 %v1230, %v1229
        %v1367 = vpack.c.bf16 %v1232, %v1231
        %v1368 = vpack.c.bf16 %v1234, %v1233
        %v1369 = vpack.c.bf16 %v1236, %v1235
        %v1370 = vpack.c.bf16 %v1238, %v1237
        %v1371 = vpack.c.bf16 %v1240, %v1239
        %v1373 = vlaneseq
        %v1374 = vshrl.u32 %v1373, 7
        %v1375 = vsub.s32 0, %v1374
        %v1376 = vrot.slane %v1355, %v1375
        %v1377 = vlaneseq
        %v1378 = vshrl.u32 %v1377, 7
        %v1379 = vsub.s32 1, %v1378
        %v1380 = vrot.slane %v1355, %v1379
        %v1381 = vlaneseq
        %v1382 = vshrl.u32 %v1381, 7
        %v1383 = vsub.s32 2, %v1382
        %v1384 = vrot.slane %v1355, %v1383
        %v1385 = vlaneseq
        %v1386 = vshrl.u32 %v1385, 7
        %v1387 = vsub.s32 3, %v1386
        %v1388 = vrot.slane %v1355, %v1387
        %v1389 = vlaneseq
        %v1390 = vshrl.u32 %v1389, 7
        %v1391 = vsub.s32 4, %v1390
        %v1392 = vrot.slane %v1355, %v1391
        %v1393 = vlaneseq
        %v1394 = vshrl.u32 %v1393, 7
        %v1395 = vsub.s32 5, %v1394
        %v1396 = vrot.slane %v1355, %v1395
        %v1451 = vunpack.c.l.b16 %v1307
        %v1452 = vunpack.c.h.b16 %v1307
        %v1453 = vunpack.c.l.b16 %v1308
        %v1454 = vunpack.c.h.b16 %v1308
        %v1455 = vunpack.c.l.b16 %v1309
        %v1456 = vunpack.c.h.b16 %v1309
        %v1457 = vunpack.c.l.b16 %v1310
        %v1458 = vunpack.c.h.b16 %v1310
        %v1459 = vunpack.c.l.b16 %v1311
        %v1460 = vunpack.c.h.b16 %v1311
        %v1461 = vunpack.c.l.b16 %v1312
        %v1462 = vunpack.c.h.b16 %v1312
        %v1463 = vunpack.c.l.b16 %v1313
        %v1464 = vunpack.c.h.b16 %v1313
        %v1465 = vunpack.c.l.b16 %v1314
        %v1466 = vunpack.c.h.b16 %v1314
        %v1467 = vunpack.c.l.b16 %v1315
        %v1468 = vunpack.c.h.b16 %v1315
        %v1469 = vunpack.c.l.b16 %v1316
        %v1470 = vunpack.c.h.b16 %v1316
        %v1471 = vunpack.c.l.b16 %v1317
        %v1472 = vunpack.c.h.b16 %v1317
        %v1473 = vunpack.c.l.b16 %v1318
        %v1474 = vunpack.c.h.b16 %v1318
        %v1475 = vunpack.c.l.b16 %v1319
        %v1476 = vunpack.c.h.b16 %v1319
        %v1477 = vunpack.c.l.b16 %v1320
        %v1478 = vunpack.c.h.b16 %v1320
        %v1479 = vunpack.c.l.b16 %v1321
        %v1480 = vunpack.c.h.b16 %v1321
        %v1481 = vunpack.c.l.b16 %v1322
        %v1482 = vunpack.c.h.b16 %v1322
        %v1483 = vunpack.c.l.b16 %v1323
        %v1484 = vunpack.c.h.b16 %v1323
        %v1485 = vunpack.c.l.b16 %v1324
        %v1486 = vunpack.c.h.b16 %v1324
        %v1487 = vunpack.c.l.b16 %v1325
        %v1488 = vunpack.c.h.b16 %v1325
        %v1489 = vunpack.c.l.b16 %v1326
        %v1490 = vunpack.c.h.b16 %v1326
        %v1491 = vunpack.c.l.b16 %v1327
        %v1492 = vunpack.c.h.b16 %v1327
        %v1493 = vunpack.c.l.b16 %v1328
        %v1494 = vunpack.c.h.b16 %v1328
        %v1495 = vunpack.c.l.b16 %v1329
        %v1496 = vunpack.c.h.b16 %v1329
        %v1497 = vunpack.c.l.b16 %v1330
        %v1498 = vunpack.c.h.b16 %v1330
        %v1499 = vunpack.c.l.b16 %v1331
        %v1500 = vunpack.c.h.b16 %v1331
        %v1501 = vunpack.c.l.b16 %v1332
        %v1502 = vunpack.c.h.b16 %v1332
        %v1503 = vunpack.c.l.b16 %v1333
        %v1504 = vunpack.c.h.b16 %v1333
        %v1505 = vunpack.c.l.b16 %v1334
        %v1506 = vunpack.c.h.b16 %v1334
        %v1507 = vunpack.c.l.b16 %v1335
        %v1508 = vunpack.c.h.b16 %v1335
        %v1509 = vunpack.c.l.b16 %v1336
        %v1510 = vunpack.c.h.b16 %v1336
        %v1511 = vunpack.c.l.b16 %v1337
        %v1512 = vunpack.c.h.b16 %v1337
        %v1513 = vunpack.c.l.b16 %v1338
        %v1514 = vunpack.c.h.b16 %v1338
        %v1515 = vunpack.c.l.b16 %v1339
        %v1516 = vunpack.c.h.b16 %v1339
        %v1517 = vunpack.c.l.b16 %v1340
        %v1518 = vunpack.c.h.b16 %v1340
        %v1519 = vunpack.c.l.b16 %v1341
        %v1520 = vunpack.c.h.b16 %v1341
        %v1521 = vunpack.c.l.b16 %v1342
        %v1522 = vunpack.c.h.b16 %v1342
        %v1523 = vunpack.c.l.b16 %v1343
        %v1524 = vunpack.c.h.b16 %v1343
        %v1525 = vunpack.c.l.b16 %v1344
        %v1526 = vunpack.c.h.b16 %v1344
        %v1527 = vunpack.c.l.b16 %v1345
        %v1528 = vunpack.c.h.b16 %v1345
        %v1529 = vunpack.c.l.b16 %v1346
        %v1530 = vunpack.c.h.b16 %v1346
        %v1531 = vunpack.c.l.b16 %v1347
        %v1532 = vunpack.c.h.b16 %v1347
        %v1533 = vunpack.c.l.b16 %v1348
        %v1534 = vunpack.c.h.b16 %v1348
        %v1535 = vunpack.c.l.b16 %v1349
        %v1536 = vunpack.c.h.b16 %v1349
        %v1537 = vunpack.c.l.b16 %v1350
        %v1538 = vunpack.c.h.b16 %v1350
        %v1539 = vunpack.c.l.b16 %v1351
        %v1540 = vunpack.c.h.b16 %v1351
        %v1541 = vunpack.c.l.b16 %v1352
        %v1542 = vunpack.c.h.b16 %v1352
        %v1543 = vunpack.c.l.b16 %v1353
        %v1544 = vunpack.c.h.b16 %v1353
        %v1545 = vunpack.c.l.b16 %v1354
        %v1546 = vunpack.c.h.b16 %v1354
        %v1547 = vpack.c.b16 %v1457, %v1451
        %v1548 = vpack.c.b16 %v1458, %v1452
        %v1549 = vpack.c.b16 %v1459, %v1453
        %v1550 = vpack.c.b16 %v1460, %v1454
        %v1551 = vpack.c.b16 %v1461, %v1455
        %v1552 = vpack.c.b16 %v1462, %v1456
        %v1553 = vpack.c.b16 %v1469, %v1463
        %v1554 = vpack.c.b16 %v1470, %v1464
        %v1555 = vpack.c.b16 %v1471, %v1465
        %v1556 = vpack.c.b16 %v1472, %v1466
        %v1557 = vpack.c.b16 %v1473, %v1467
        %v1558 = vpack.c.b16 %v1474, %v1468
        %v1559 = vpack.c.b16 %v1481, %v1475
        %v1560 = vpack.c.b16 %v1482, %v1476
        %v1561 = vpack.c.b16 %v1483, %v1477
        %v1562 = vpack.c.b16 %v1484, %v1478
        %v1563 = vpack.c.b16 %v1485, %v1479
        %v1564 = vpack.c.b16 %v1486, %v1480
        %v1565 = vpack.c.b16 %v1493, %v1487
        %v1566 = vpack.c.b16 %v1494, %v1488
        %v1567 = vpack.c.b16 %v1495, %v1489
        %v1568 = vpack.c.b16 %v1496, %v1490
        %v1569 = vpack.c.b16 %v1497, %v1491
        %v1570 = vpack.c.b16 %v1498, %v1492
        %v1571 = vpack.c.b16 %v1505, %v1499
        %v1572 = vpack.c.b16 %v1506, %v1500
        %v1573 = vpack.c.b16 %v1507, %v1501
        %v1574 = vpack.c.b16 %v1508, %v1502
        %v1575 = vpack.c.b16 %v1509, %v1503
        %v1576 = vpack.c.b16 %v1510, %v1504
        %v1577 = vpack.c.b16 %v1517, %v1511
        %v1578 = vpack.c.b16 %v1518, %v1512
        %v1579 = vpack.c.b16 %v1519, %v1513
        %v1580 = vpack.c.b16 %v1520, %v1514
        %v1581 = vpack.c.b16 %v1521, %v1515
        %v1582 = vpack.c.b16 %v1522, %v1516
        %v1583 = vpack.c.b16 %v1529, %v1523
        %v1584 = vpack.c.b16 %v1530, %v1524
        %v1585 = vpack.c.b16 %v1531, %v1525
        %v1586 = vpack.c.b16 %v1532, %v1526
        %v1587 = vpack.c.b16 %v1533, %v1527
        %v1588 = vpack.c.b16 %v1534, %v1528
        %v1589 = vpack.c.b16 %v1541, %v1535
        %v1590 = vpack.c.b16 %v1542, %v1536
        %v1591 = vpack.c.b16 %v1543, %v1537
        %v1592 = vpack.c.b16 %v1544, %v1538
        %v1593 = vpack.c.b16 %v1545, %v1539
        %v1594 = vpack.c.b16 %v1546, %v1540
        %1643 = vmatprep.subr.bf16.mxu0 %v1548
        %1644 = vmatpush1.bf16.msra.mxu0 %v1547
        %1645 = vmatprep.subr.bf16.mxu0 %v1554
        %1646 = vmatpush1.bf16.msra.mxu0 %v1553
        %1647 = vmatprep.subr.bf16.mxu0 %v1560
        %1648 = vmatpush1.bf16.msra.mxu0 %v1559
        %1649 = vmatprep.subr.bf16.mxu0 %v1566
        %1650 = vmatpush1.bf16.msra.mxu0 %v1565
        %1651 = vmatprep.subr.bf16.mxu0 %v1572
        %1652 = vmatpush1.bf16.msra.mxu0 %v1571
        %1653 = vmatprep.subr.bf16.mxu0 %v1578
        %1654 = vmatpush1.bf16.msra.mxu0 %v1577
        %1655 = vmatprep.subr.bf16.mxu0 %v1584
        %1656 = vmatpush1.bf16.msra.mxu0 %v1583
        %1657 = vmatprep.subr.bf16.mxu0 %v1590
        %1658 = vmatpush1.bf16.msra.mxu0 %v1589
        %1659 = vmatprep.subr.bf16.mxu0 0
        %1660 = vmatpush1.bf16.msra.mxu0 0
        %1661 = vmatprep.subr.bf16.mxu0 0
        %1662 = vmatpush1.bf16.msra.mxu0 0
        %1663 = vmatprep.subr.bf16.mxu0 0
        %1664 = vmatpush1.bf16.msra.mxu0 0
        %1665 = vmatprep.subr.bf16.mxu0 0
        %1666 = vmatpush1.bf16.msra.mxu0 0
        %1667 = vmatprep.subr.bf16.mxu0 0
        %1668 = vmatpush1.bf16.msra.mxu0 0
        %1669 = vmatprep.subr.bf16.mxu0 0
        %1670 = vmatpush1.bf16.msra.mxu0 0
        %1671 = vmatprep.subr.bf16.mxu0 0
        %1672 = vmatpush1.bf16.msra.mxu0 0
        %1673 = vmatprep.subr.bf16.mxu0 0
        %1674 = vmatpush1.bf16.msra.mxu0 0
        %1675 = vmatprep.mubr.bf16.mxu0 0
        %1676 = vmatmul.mubr.bf16.gmra.mrb[0].mxu0 %v1356
        %v1677 = vpop.f32.mrb[0].mxu0
        %v1678 = vadd.f32 %v1376, %v1677
        %v1679 = vpop.f32.mrb[0].mxu0
        %v1680 = vadd.f32 %v1380, %v1679
        %v1681 = vpop.f32.mrb[0].mxu0
        %v1682 = vadd.f32 %v1376, %v1681
        %v1683 = vpop.f32.mrb[0].mxu0
        %v1684 = vadd.f32 %v1380, %v1683
        %1685 = vmatprep.mubr.bf16.mxu0 0
        %1686 = vmatmul.mubr.bf16.gmra.mrb[0].mxu0 %v1357
        %v1687 = vpop.f32.mrb[0].mxu0
        %v1688 = vadd.f32 %v1376, %v1687
        %v1689 = vpop.f32.mrb[0].mxu0
        %v1690 = vadd.f32 %v1380, %v1689
        %v1691 = vpop.f32.mrb[0].mxu0
        %v1692 = vadd.f32 %v1376, %v1691
        %v1693 = vpop.f32.mrb[0].mxu0
        %v1694 = vadd.f32 %v1380, %v1693
        %1695 = vmatprep.mubr.bf16.mxu0 0
        %1696 = vmatmul.mubr.bf16.gmra.mrb[0].mxu0 %v1358
        %v1697 = vpop.f32.mrb[0].mxu0
        %v1698 = vadd.f32 %v1376, %v1697
        %v1699 = vpop.f32.mrb[0].mxu0
        %v1700 = vadd.f32 %v1380, %v1699
        %v1701 = vpop.f32.mrb[0].mxu0
        %v1702 = vadd.f32 %v1376, %v1701
        %v1703 = vpop.f32.mrb[0].mxu0
        %v1704 = vadd.f32 %v1380, %v1703
        %1705 = vmatprep.mubr.bf16.mxu0 0
        %1706 = vmatmul.mubr.bf16.gmra.mrb[0].mxu0 %v1359
        %v1707 = vpop.f32.mrb[0].mxu0
        %v1708 = vadd.f32 %v1376, %v1707
        %v1709 = vpop.f32.mrb[0].mxu0
        %v1710 = vadd.f32 %v1380, %v1709
        %v1711 = vpop.f32.mrb[0].mxu0
        %v1712 = vadd.f32 %v1376, %v1711
        %v1713 = vpop.f32.mrb[0].mxu0
        %v1714 = vadd.f32 %v1380, %v1713
        %1715 = vmatprep.mubr.bf16.mxu0 0
        %1716 = vmatmul.mubr.bf16.gmra.mrb[0].mxu0 %v1360
        %v1717 = vpop.f32.mrb[0].mxu0
        %v1718 = vadd.f32 %v1376, %v1717
        %v1719 = vpop.f32.mrb[0].mxu0
        %v1720 = vadd.f32 %v1380, %v1719
        %v1721 = vpop.f32.mrb[0].mxu0
        %v1722 = vadd.f32 %v1376, %v1721
        %v1723 = vpop.f32.mrb[0].mxu0
        %v1724 = vadd.f32 %v1380, %v1723
        %1725 = vmatprep.mubr.bf16.mxu0 0
        %1726 = vmatmul.mubr.bf16.gmra.mrb[0].mxu0 %v1361
        %v1727 = vpop.f32.mrb[0].mxu0
        %v1728 = vadd.f32 %v1376, %v1727
        %v1729 = vpop.f32.mrb[0].mxu0
        %v1730 = vadd.f32 %v1380, %v1729
        %v1731 = vpop.f32.mrb[0].mxu0
        %v1732 = vadd.f32 %v1376, %v1731
        %v1733 = vpop.f32.mrb[0].mxu0
        %v1734 = vadd.f32 %v1380, %v1733
        %1735 = vmatprep.mubr.bf16.mxu0 0
        %1736 = vmatmul.mubr.bf16.gmra.mrb[0].mxu0 %v1362
        %v1737 = vpop.f32.mrb[0].mxu0
        %v1738 = vadd.f32 %v1376, %v1737
        %v1739 = vpop.f32.mrb[0].mxu0
        %v1740 = vadd.f32 %v1380, %v1739
        %v1741 = vpop.f32.mrb[0].mxu0
        %v1742 = vadd.f32 %v1376, %v1741
        %v1743 = vpop.f32.mrb[0].mxu0
        %v1744 = vadd.f32 %v1380, %v1743
        %1745 = vmatprep.mubr.bf16.mxu0 0
        %1746 = vmatmul.mubr.bf16.gmra.mrb[0].mxu0 %v1363
        %v1747 = vpop.f32.mrb[0].mxu0
        %v1748 = vadd.f32 %v1376, %v1747
        %v1749 = vpop.f32.mrb[0].mxu0
        %v1750 = vadd.f32 %v1380, %v1749
        %v1751 = vpop.f32.mrb[0].mxu0
        %v1752 = vadd.f32 %v1376, %v1751
        %v1753 = vpop.f32.mrb[0].mxu0
        %v1754 = vadd.f32 %v1380, %v1753
        %1755 = vmatprep.mubr.bf16.mxu0 0
        %1756 = vmatmul.mubr.bf16.gmra.mrb[0].mxu0 %v1364
        %v1757 = vpop.f32.mrb[0].mxu0
        %v1758 = vadd.f32 %v1376, %v1757
        %v1759 = vpop.f32.mrb[0].mxu0
        %v1760 = vadd.f32 %v1380, %v1759
        %v1761 = vpop.f32.mrb[0].mxu0
        %v1762 = vadd.f32 %v1376, %v1761
        %v1763 = vpop.f32.mrb[0].mxu0
        %v1764 = vadd.f32 %v1380, %v1763
        %1765 = vmatprep.mubr.bf16.mxu0 0
        %1766 = vmatmul.mubr.bf16.gmra.mrb[0].mxu0 %v1365
        %v1767 = vpop.f32.mrb[0].mxu0
        %v1768 = vadd.f32 %v1376, %v1767
        %v1769 = vpop.f32.mrb[0].mxu0
        %v1770 = vadd.f32 %v1380, %v1769
        %v1771 = vpop.f32.mrb[0].mxu0
        %v1772 = vadd.f32 %v1376, %v1771
        %v1773 = vpop.f32.mrb[0].mxu0
        %v1774 = vadd.f32 %v1380, %v1773
        %1775 = vmatprep.mubr.bf16.mxu0 0
        %1776 = vmatmul.mubr.bf16.gmra.mrb[0].mxu0 %v1366
        %v1777 = vpop.f32.mrb[0].mxu0
        %v1778 = vadd.f32 %v1376, %v1777
        %v1779 = vpop.f32.mrb[0].mxu0
        %v1780 = vadd.f32 %v1380, %v1779
        %v1781 = vpop.f32.mrb[0].mxu0
        %v1782 = vadd.f32 %v1376, %v1781
        %v1783 = vpop.f32.mrb[0].mxu0
        %v1784 = vadd.f32 %v1380, %v1783
        %1785 = vmatprep.mubr.bf16.mxu0 0
        %1786 = vmatmul.mubr.bf16.gmra.mrb[0].mxu0 %v1367
        %v1787 = vpop.f32.mrb[0].mxu0
        %v1788 = vadd.f32 %v1376, %v1787
        %v1789 = vpop.f32.mrb[0].mxu0
        %v1790 = vadd.f32 %v1380, %v1789
        %v1791 = vpop.f32.mrb[0].mxu0
        %v1792 = vadd.f32 %v1376, %v1791
        %v1793 = vpop.f32.mrb[0].mxu0
        %v1794 = vadd.f32 %v1380, %v1793
        %1795 = vmatprep.mubr.bf16.mxu0 0
        %1796 = vmatmul.mubr.bf16.gmra.mrb[0].mxu0 %v1368
        %v1797 = vpop.f32.mrb[0].mxu0
        %v1798 = vadd.f32 %v1376, %v1797
        %v1799 = vpop.f32.mrb[0].mxu0
        %v1800 = vadd.f32 %v1380, %v1799
        %v1801 = vpop.f32.mrb[0].mxu0
        %v1802 = vadd.f32 %v1376, %v1801
        %v1803 = vpop.f32.mrb[0].mxu0
        %v1804 = vadd.f32 %v1380, %v1803
        %1805 = vmatprep.mubr.bf16.mxu0 0
        %1806 = vmatmul.mubr.bf16.gmra.mrb[0].mxu0 %v1369
        %v1807 = vpop.f32.mrb[0].mxu0
        %v1808 = vadd.f32 %v1376, %v1807
        %v1809 = vpop.f32.mrb[0].mxu0
        %v1810 = vadd.f32 %v1380, %v1809
        %v1811 = vpop.f32.mrb[0].mxu0
        %v1812 = vadd.f32 %v1376, %v1811
        %v1813 = vpop.f32.mrb[0].mxu0
        %v1814 = vadd.f32 %v1380, %v1813
        %1815 = vmatprep.mubr.bf16.mxu0 0
        %1816 = vmatmul.mubr.bf16.gmra.mrb[0].mxu0 %v1370
        %v1817 = vpop.f32.mrb[0].mxu0
        %v1818 = vadd.f32 %v1376, %v1817
        %v1819 = vpop.f32.mrb[0].mxu0
        %v1820 = vadd.f32 %v1380, %v1819
        %v1821 = vpop.f32.mrb[0].mxu0
        %v1822 = vadd.f32 %v1376, %v1821
        %v1823 = vpop.f32.mrb[0].mxu0
        %v1824 = vadd.f32 %v1380, %v1823
        %1825 = vmatprep.mubr.bf16.mxu0 0
        %1826 = vmatmul.mubr.bf16.gmra.mrb[0].mxu0 %v1371
        %v1827 = vpop.f32.mrb[0].mxu0
        %v1828 = vadd.f32 %v1376, %v1827
        %v1829 = vpop.f32.mrb[0].mxu0
        %v1830 = vadd.f32 %v1380, %v1829
        %v1831 = vpop.f32.mrb[0].mxu0
        %v1832 = vadd.f32 %v1376, %v1831
        %v1833 = vpop.f32.mrb[0].mxu0
        %v1834 = vadd.f32 %v1380, %v1833
        %1835 = vdwg.mxu0
        %1836 = vmatprep.subr.bf16.mxu0 %v1550
        %1837 = vmatpush1.bf16.msra.mxu0 %v1549
        %1838 = vmatprep.subr.bf16.mxu0 %v1556
        %1839 = vmatpush1.bf16.msra.mxu0 %v1555
        %1840 = vmatprep.subr.bf16.mxu0 %v1562
        %1841 = vmatpush1.bf16.msra.mxu0 %v1561
        %1842 = vmatprep.subr.bf16.mxu0 %v1568
        %1843 = vmatpush1.bf16.msra.mxu0 %v1567
        %1844 = vmatprep.subr.bf16.mxu0 %v1574
        %1845 = vmatpush1.bf16.msra.mxu0 %v1573
        %1846 = vmatprep.subr.bf16.mxu0 %v1580
        %1847 = vmatpush1.bf16.msra.mxu0 %v1579
        %1848 = vmatprep.subr.bf16.mxu0 %v1586
        %1849 = vmatpush1.bf16.msra.mxu0 %v1585
        %1850 = vmatprep.subr.bf16.mxu0 %v1592
        %1851 = vmatpush1.bf16.msra.mxu0 %v1591
        %1852 = vmatprep.subr.bf16.mxu0 0
        %1853 = vmatpush1.bf16.msra.mxu0 0
        %1854 = vmatprep.subr.bf16.mxu0 0
        %1855 = vmatpush1.bf16.msra.mxu0 0
        %1856 = vmatprep.subr.bf16.mxu0 0
        %1857 = vmatpush1.bf16.msra.mxu0 0
        %1858 = vmatprep.subr.bf16.mxu0 0
        %1859 = vmatpush1.bf16.msra.mxu0 0
        %1860 = vmatprep.subr.bf16.mxu0 0
        %1861 = vmatpush1.bf16.msra.mxu0 0
        %1862 = vmatprep.subr.bf16.mxu0 0
        %1863 = vmatpush1.bf16.msra.mxu0 0
        %1864 = vmatprep.subr.bf16.mxu0 0
        %1865 = vmatpush1.bf16.msra.mxu0 0
        %1866 = vmatprep.subr.bf16.mxu0 0
        %1867 = vmatpush1.bf16.msra.mxu0 0
        %1868 = vmatprep.mubr.bf16.mxu0 0
        %1869 = vmatmul.mubr.bf16.gmra.mrb[0].mxu0 %v1356
        %v1870 = vpop.f32.mrb[0].mxu0
        %v1871 = vadd.f32 %v1384, %v1870
        %v1872 = vpop.f32.mrb[0].mxu0
        %v1873 = vadd.f32 %v1388, %v1872
        %v1874 = vpop.f32.mrb[0].mxu0
        %v1875 = vadd.f32 %v1384, %v1874
        %v1876 = vpop.f32.mrb[0].mxu0
        %v1877 = vadd.f32 %v1388, %v1876
        %1878 = vmatprep.mubr.bf16.mxu0 0
        %1879 = vmatmul.mubr.bf16.gmra.mrb[0].mxu0 %v1357
        %v1880 = vpop.f32.mrb[0].mxu0
        %v1881 = vadd.f32 %v1384, %v1880
        %v1882 = vpop.f32.mrb[0].mxu0
        %v1883 = vadd.f32 %v1388, %v1882
        %v1884 = vpop.f32.mrb[0].mxu0
        %v1885 = vadd.f32 %v1384, %v1884
        %v1886 = vpop.f32.mrb[0].mxu0
        %v1887 = vadd.f32 %v1388, %v1886
        %1888 = vmatprep.mubr.bf16.mxu0 0
        %1889 = vmatmul.mubr.bf16.gmra.mrb[0].mxu0 %v1358
        %v1890 = vpop.f32.mrb[0].mxu0
        %v1891 = vadd.f32 %v1384, %v1890
        %v1892 = vpop.f32.mrb[0].mxu0
        %v1893 = vadd.f32 %v1388, %v1892
        %v1894 = vpop.f32.mrb[0].mxu0
        %v1895 = vadd.f32 %v1384, %v1894
        %v1896 = vpop.f32.mrb[0].mxu0
        %v1897 = vadd.f32 %v1388, %v1896
        %1898 = vmatprep.mubr.bf16.mxu0 0
        %1899 = vmatmul.mubr.bf16.gmra.mrb[0].mxu0 %v1359
        %v1900 = vpop.f32.mrb[0].mxu0
        %v1901 = vadd.f32 %v1384, %v1900
        %v1902 = vpop.f32.mrb[0].mxu0
        %v1903 = vadd.f32 %v1388, %v1902
        %v1904 = vpop.f32.mrb[0].mxu0
        %v1905 = vadd.f32 %v1384, %v1904
        %v1906 = vpop.f32.mrb[0].mxu0
        %v1907 = vadd.f32 %v1388, %v1906
        %1908 = vmatprep.mubr.bf16.mxu0 0
        %1909 = vmatmul.mubr.bf16.gmra.mrb[0].mxu0 %v1360
        %v1910 = vpop.f32.mrb[0].mxu0
        %v1911 = vadd.f32 %v1384, %v1910
        %v1912 = vpop.f32.mrb[0].mxu0
        %v1913 = vadd.f32 %v1388, %v1912
        %v1914 = vpop.f32.mrb[0].mxu0
        %v1915 = vadd.f32 %v1384, %v1914
        %v1916 = vpop.f32.mrb[0].mxu0
        %v1917 = vadd.f32 %v1388, %v1916
        %1918 = vmatprep.mubr.bf16.mxu0 0
        %1919 = vmatmul.mubr.bf16.gmra.mrb[0].mxu0 %v1361
        %v1920 = vpop.f32.mrb[0].mxu0
        %v1921 = vadd.f32 %v1384, %v1920
        %v1922 = vpop.f32.mrb[0].mxu0
        %v1923 = vadd.f32 %v1388, %v1922
        %v1924 = vpop.f32.mrb[0].mxu0
        %v1925 = vadd.f32 %v1384, %v1924
        %v1926 = vpop.f32.mrb[0].mxu0
        %v1927 = vadd.f32 %v1388, %v1926
        %1928 = vmatprep.mubr.bf16.mxu0 0
        %1929 = vmatmul.mubr.bf16.gmra.mrb[0].mxu0 %v1362
        %v1930 = vpop.f32.mrb[0].mxu0
        %v1931 = vadd.f32 %v1384, %v1930
        %v1932 = vpop.f32.mrb[0].mxu0
        %v1933 = vadd.f32 %v1388, %v1932
        %v1934 = vpop.f32.mrb[0].mxu0
        %v1935 = vadd.f32 %v1384, %v1934
        %v1936 = vpop.f32.mrb[0].mxu0
        %v1937 = vadd.f32 %v1388, %v1936
        %1938 = vmatprep.mubr.bf16.mxu0 0
        %1939 = vmatmul.mubr.bf16.gmra.mrb[0].mxu0 %v1363
        %v1940 = vpop.f32.mrb[0].mxu0
        %v1941 = vadd.f32 %v1384, %v1940
        %v1942 = vpop.f32.mrb[0].mxu0
        %v1943 = vadd.f32 %v1388, %v1942
        %v1944 = vpop.f32.mrb[0].mxu0
        %v1945 = vadd.f32 %v1384, %v1944
        %v1946 = vpop.f32.mrb[0].mxu0
        %v1947 = vadd.f32 %v1388, %v1946
        %1948 = vmatprep.mubr.bf16.mxu0 0
        %1949 = vmatmul.mubr.bf16.gmra.mrb[0].mxu0 %v1364
        %v1950 = vpop.f32.mrb[0].mxu0
        %v1951 = vadd.f32 %v1384, %v1950
        %v1952 = vpop.f32.mrb[0].mxu0
        %v1953 = vadd.f32 %v1388, %v1952
        %v1954 = vpop.f32.mrb[0].mxu0
        %v1955 = vadd.f32 %v1384, %v1954
        %v1956 = vpop.f32.mrb[0].mxu0
        %v1957 = vadd.f32 %v1388, %v1956
        %1958 = vmatprep.mubr.bf16.mxu0 0
        %1959 = vmatmul.mubr.bf16.gmra.mrb[0].mxu0 %v1365
        %v1960 = vpop.f32.mrb[0].mxu0
        %v1961 = vadd.f32 %v1384, %v1960
        %v1962 = vpop.f32.mrb[0].mxu0
        %v1963 = vadd.f32 %v1388, %v1962
        %v1964 = vpop.f32.mrb[0].mxu0
        %v1965 = vadd.f32 %v1384, %v1964
        %v1966 = vpop.f32.mrb[0].mxu0
        %v1967 = vadd.f32 %v1388, %v1966
        %1968 = vmatprep.mubr.bf16.mxu0 0
        %1969 = vmatmul.mubr.bf16.gmra.mrb[0].mxu0 %v1366
        %v1970 = vpop.f32.mrb[0].mxu0
        %v1971 = vadd.f32 %v1384, %v1970
        %v1972 = vpop.f32.mrb[0].mxu0
        %v1973 = vadd.f32 %v1388, %v1972
        %v1974 = vpop.f32.mrb[0].mxu0
        %v1975 = vadd.f32 %v1384, %v1974
        %v1976 = vpop.f32.mrb[0].mxu0
        %v1977 = vadd.f32 %v1388, %v1976
        %1978 = vmatprep.mubr.bf16.mxu0 0
        %1979 = vmatmul.mubr.bf16.gmra.mrb[0].mxu0 %v1367
        %v1980 = vpop.f32.mrb[0].mxu0
        %v1981 = vadd.f32 %v1384, %v1980
        %v1982 = vpop.f32.mrb[0].mxu0
        %v1983 = vadd.f32 %v1388, %v1982
        %v1984 = vpop.f32.mrb[0].mxu0
        %v1985 = vadd.f32 %v1384, %v1984
        %v1986 = vpop.f32.mrb[0].mxu0
        %v1987 = vadd.f32 %v1388, %v1986
        %1988 = vmatprep.mubr.bf16.mxu0 0
        %1989 = vmatmul.mubr.bf16.gmra.mrb[0].mxu0 %v1368
        %v1990 = vpop.f32.mrb[0].mxu0
        %v1991 = vadd.f32 %v1384, %v1990
        %v1992 = vpop.f32.mrb[0].mxu0
        %v1993 = vadd.f32 %v1388, %v1992
        %v1994 = vpop.f32.mrb[0].mxu0
        %v1995 = vadd.f32 %v1384, %v1994
        %v1996 = vpop.f32.mrb[0].mxu0
        %v1997 = vadd.f32 %v1388, %v1996
        %1998 = vmatprep.mubr.bf16.mxu0 0
        %1999 = vmatmul.mubr.bf16.gmra.mrb[0].mxu0 %v1369
        %v2000 = vpop.f32.mrb[0].mxu0
        %v2001 = vadd.f32 %v1384, %v2000
        %v2002 = vpop.f32.mrb[0].mxu0
        %v2003 = vadd.f32 %v1388, %v2002
        %v2004 = vpop.f32.mrb[0].mxu0
        %v2005 = vadd.f32 %v1384, %v2004
        %v2006 = vpop.f32.mrb[0].mxu0
        %v2007 = vadd.f32 %v1388, %v2006
        %2008 = vmatprep.mubr.bf16.mxu0 0
        %2009 = vmatmul.mubr.bf16.gmra.mrb[0].mxu0 %v1370
        %v2010 = vpop.f32.mrb[0].mxu0
        %v2011 = vadd.f32 %v1384, %v2010
        %v2012 = vpop.f32.mrb[0].mxu0
        %v2013 = vadd.f32 %v1388, %v2012
        %v2014 = vpop.f32.mrb[0].mxu0
        %v2015 = vadd.f32 %v1384, %v2014
        %v2016 = vpop.f32.mrb[0].mxu0
        %v2017 = vadd.f32 %v1388, %v2016
        %2018 = vmatprep.mubr.bf16.mxu0 0
        %2019 = vmatmul.mubr.bf16.gmra.mrb[0].mxu0 %v1371
        %v2020 = vpop.f32.mrb[0].mxu0
        %v2021 = vadd.f32 %v1384, %v2020
        %v2022 = vpop.f32.mrb[0].mxu0
        %v2023 = vadd.f32 %v1388, %v2022
        %v2024 = vpop.f32.mrb[0].mxu0
        %v2025 = vadd.f32 %v1384, %v2024
        %v2026 = vpop.f32.mrb[0].mxu0
        %v2027 = vadd.f32 %v1388, %v2026
        %2028 = vdwg.mxu0
        %2029 = vmatprep.subr.bf16.mxu0 %v1552
        %2030 = vmatpush1.bf16.msra.mxu0 %v1551
        %2031 = vmatprep.subr.bf16.mxu0 %v1558
        %2032 = vmatpush1.bf16.msra.mxu0 %v1557
        %2033 = vmatprep.subr.bf16.mxu0 %v1564
        %2034 = vmatpush1.bf16.msra.mxu0 %v1563
        %2035 = vmatprep.subr.bf16.mxu0 %v1570
        %2036 = vmatpush1.bf16.msra.mxu0 %v1569
        %2037 = vmatprep.subr.bf16.mxu0 %v1576
        %2038 = vmatpush1.bf16.msra.mxu0 %v1575
        %2039 = vmatprep.subr.bf16.mxu0 %v1582
        %2040 = vmatpush1.bf16.msra.mxu0 %v1581
        %2041 = vmatprep.subr.bf16.mxu0 %v1588
        %2042 = vmatpush1.bf16.msra.mxu0 %v1587
        %2043 = vmatprep.subr.bf16.mxu0 %v1594
        %2044 = vmatpush1.bf16.msra.mxu0 %v1593
        %2045 = vmatprep.subr.bf16.mxu0 0
        %2046 = vmatpush1.bf16.msra.mxu0 0
        %2047 = vmatprep.subr.bf16.mxu0 0
        %2048 = vmatpush1.bf16.msra.mxu0 0
        %2049 = vmatprep.subr.bf16.mxu0 0
        %2050 = vmatpush1.bf16.msra.mxu0 0
        %2051 = vmatprep.subr.bf16.mxu0 0
        %2052 = vmatpush1.bf16.msra.mxu0 0
        %2053 = vmatprep.subr.bf16.mxu0 0
        %2054 = vmatpush1.bf16.msra.mxu0 0
        %2055 = vmatprep.subr.bf16.mxu0 0
        %2056 = vmatpush1.bf16.msra.mxu0 0
        %2057 = vmatprep.subr.bf16.mxu0 0
        %2058 = vmatpush1.bf16.msra.mxu0 0
        %2059 = vmatprep.subr.bf16.mxu0 0
        %2060 = vmatpush1.bf16.msra.mxu0 0
        %2061 = vmatprep.mubr.bf16.mxu0 0
        %2062 = vmatmul.mubr.bf16.gmra.mrb[0].mxu0 %v1356
        %v2063 = vpop.f32.mrb[0].mxu0
        %v2064 = vadd.f32 %v1392, %v2063
        %v2065 = vpop.f32.mrb[0].mxu0
        %v2066 = vadd.f32 %v1396, %v2065
        %v2067 = vpop.f32.mrb[0].mxu0
        %v2068 = vadd.f32 %v1392, %v2067
        %v2069 = vpop.f32.mrb[0].mxu0
        %v2070 = vadd.f32 %v1396, %v2069
        %2071 = vmatprep.mubr.bf16.mxu0 0
        %2072 = vmatmul.mubr.bf16.gmra.mrb[0].mxu0 %v1357
        %v2073 = vpop.f32.mrb[0].mxu0
        %v2074 = vadd.f32 %v1392, %v2073
        %v2075 = vpop.f32.mrb[0].mxu0
        %v2076 = vadd.f32 %v1396, %v2075
        %v2077 = vpop.f32.mrb[0].mxu0
        %v2078 = vadd.f32 %v1392, %v2077
        %v2079 = vpop.f32.mrb[0].mxu0
        %v2080 = vadd.f32 %v1396, %v2079
        %2081 = vmatprep.mubr.bf16.mxu0 0
        %2082 = vmatmul.mubr.bf16.gmra.mrb[0].mxu0 %v1358
        %v2083 = vpop.f32.mrb[0].mxu0
        %v2084 = vadd.f32 %v1392, %v2083
        %v2085 = vpop.f32.mrb[0].mxu0
        %v2086 = vadd.f32 %v1396, %v2085
        %v2087 = vpop.f32.mrb[0].mxu0
        %v2088 = vadd.f32 %v1392, %v2087
        %v2089 = vpop.f32.mrb[0].mxu0
        %v2090 = vadd.f32 %v1396, %v2089
        %2091 = vmatprep.mubr.bf16.mxu0 0
        %2092 = vmatmul.mubr.bf16.gmra.mrb[0].mxu0 %v1359
        %v2093 = vpop.f32.mrb[0].mxu0
        %v2094 = vadd.f32 %v1392, %v2093
        %v2095 = vpop.f32.mrb[0].mxu0
        %v2096 = vadd.f32 %v1396, %v2095
        %v2097 = vpop.f32.mrb[0].mxu0
        %v2098 = vadd.f32 %v1392, %v2097
        %v2099 = vpop.f32.mrb[0].mxu0
        %v2100 = vadd.f32 %v1396, %v2099
        %2101 = vmatprep.mubr.bf16.mxu0 0
        %2102 = vmatmul.mubr.bf16.gmra.mrb[0].mxu0 %v1360
        %v2103 = vpop.f32.mrb[0].mxu0
        %v2104 = vadd.f32 %v1392, %v2103
        %v2105 = vpop.f32.mrb[0].mxu0
        %v2106 = vadd.f32 %v1396, %v2105
        %v2107 = vpop.f32.mrb[0].mxu0
        %v2108 = vadd.f32 %v1392, %v2107
        %v2109 = vpop.f32.mrb[0].mxu0
        %v2110 = vadd.f32 %v1396, %v2109
        %2111 = vmatprep.mubr.bf16.mxu0 0
        %2112 = vmatmul.mubr.bf16.gmra.mrb[0].mxu0 %v1361
        %v2113 = vpop.f32.mrb[0].mxu0
        %v2114 = vadd.f32 %v1392, %v2113
        %v2115 = vpop.f32.mrb[0].mxu0
        %v2116 = vadd.f32 %v1396, %v2115
        %v2117 = vpop.f32.mrb[0].mxu0
        %v2118 = vadd.f32 %v1392, %v2117
        %v2119 = vpop.f32.mrb[0].mxu0
        %v2120 = vadd.f32 %v1396, %v2119
        %2121 = vmatprep.mubr.bf16.mxu0 0
        %2122 = vmatmul.mubr.bf16.gmra.mrb[0].mxu0 %v1362
        %v2123 = vpop.f32.mrb[0].mxu0
        %v2124 = vadd.f32 %v1392, %v2123
        %v2125 = vpop.f32.mrb[0].mxu0
        %v2126 = vadd.f32 %v1396, %v2125
        %v2127 = vpop.f32.mrb[0].mxu0
        %v2128 = vadd.f32 %v1392, %v2127
        %v2129 = vpop.f32.mrb[0].mxu0
        %v2130 = vadd.f32 %v1396, %v2129
        %2131 = vmatprep.mubr.bf16.mxu0 0
        %2132 = vmatmul.mubr.bf16.gmra.mrb[0].mxu0 %v1363
        %v2133 = vpop.f32.mrb[0].mxu0
        %v2134 = vadd.f32 %v1392, %v2133
        %v2135 = vpop.f32.mrb[0].mxu0
        %v2136 = vadd.f32 %v1396, %v2135
        %v2137 = vpop.f32.mrb[0].mxu0
        %v2138 = vadd.f32 %v1392, %v2137
        %v2139 = vpop.f32.mrb[0].mxu0
        %v2140 = vadd.f32 %v1396, %v2139
        %2141 = vmatprep.mubr.bf16.mxu0 0
        %2142 = vmatmul.mubr.bf16.gmra.mrb[0].mxu0 %v1364
        %v2143 = vpop.f32.mrb[0].mxu0
        %v2144 = vadd.f32 %v1392, %v2143
        %v2145 = vpop.f32.mrb[0].mxu0
        %v2146 = vadd.f32 %v1396, %v2145
        %v2147 = vpop.f32.mrb[0].mxu0
        %v2148 = vadd.f32 %v1392, %v2147
        %v2149 = vpop.f32.mrb[0].mxu0
        %v2150 = vadd.f32 %v1396, %v2149
        %2151 = vmatprep.mubr.bf16.mxu0 0
        %2152 = vmatmul.mubr.bf16.gmra.mrb[0].mxu0 %v1365
        %v2153 = vpop.f32.mrb[0].mxu0
        %v2154 = vadd.f32 %v1392, %v2153
        %v2155 = vpop.f32.mrb[0].mxu0
        %v2156 = vadd.f32 %v1396, %v2155
        %v2157 = vpop.f32.mrb[0].mxu0
        %v2158 = vadd.f32 %v1392, %v2157
        %v2159 = vpop.f32.mrb[0].mxu0
        %v2160 = vadd.f32 %v1396, %v2159
        %2161 = vmatprep.mubr.bf16.mxu0 0
        %2162 = vmatmul.mubr.bf16.gmra.mrb[0].mxu0 %v1366
        %v2163 = vpop.f32.mrb[0].mxu0
        %v2164 = vadd.f32 %v1392, %v2163
        %v2165 = vpop.f32.mrb[0].mxu0
        %v2166 = vadd.f32 %v1396, %v2165
        %v2167 = vpop.f32.mrb[0].mxu0
        %v2168 = vadd.f32 %v1392, %v2167
        %v2169 = vpop.f32.mrb[0].mxu0
        %v2170 = vadd.f32 %v1396, %v2169
        %2171 = vmatprep.mubr.bf16.mxu0 0
        %2172 = vmatmul.mubr.bf16.gmra.mrb[0].mxu0 %v1367
        %v2173 = vpop.f32.mrb[0].mxu0
        %v2174 = vadd.f32 %v1392, %v2173
        %v2175 = vpop.f32.mrb[0].mxu0
        %v2176 = vadd.f32 %v1396, %v2175
        %v2177 = vpop.f32.mrb[0].mxu0
        %v2178 = vadd.f32 %v1392, %v2177
        %v2179 = vpop.f32.mrb[0].mxu0
        %v2180 = vadd.f32 %v1396, %v2179
        %2181 = vmatprep.mubr.bf16.mxu0 0
        %2182 = vmatmul.mubr.bf16.gmra.mrb[0].mxu0 %v1368
        %v2183 = vpop.f32.mrb[0].mxu0
        %v2184 = vadd.f32 %v1392, %v2183
        %v2185 = vpop.f32.mrb[0].mxu0
        %v2186 = vadd.f32 %v1396, %v2185
        %v2187 = vpop.f32.mrb[0].mxu0
        %v2188 = vadd.f32 %v1392, %v2187
        %v2189 = vpop.f32.mrb[0].mxu0
        %v2190 = vadd.f32 %v1396, %v2189
        %2191 = vmatprep.mubr.bf16.mxu0 0
        %2192 = vmatmul.mubr.bf16.gmra.mrb[0].mxu0 %v1369
        %v2193 = vpop.f32.mrb[0].mxu0
        %v2194 = vadd.f32 %v1392, %v2193
        %v2195 = vpop.f32.mrb[0].mxu0
        %v2196 = vadd.f32 %v1396, %v2195
        %v2197 = vpop.f32.mrb[0].mxu0
        %v2198 = vadd.f32 %v1392, %v2197
        %v2199 = vpop.f32.mrb[0].mxu0
        %v2200 = vadd.f32 %v1396, %v2199
        %2201 = vmatprep.mubr.bf16.mxu0 0
        %2202 = vmatmul.mubr.bf16.gmra.mrb[0].mxu0 %v1370
        %v2203 = vpop.f32.mrb[0].mxu0
        %v2204 = vadd.f32 %v1392, %v2203
        %v2205 = vpop.f32.mrb[0].mxu0
        %v2206 = vadd.f32 %v1396, %v2205
        %v2207 = vpop.f32.mrb[0].mxu0
        %v2208 = vadd.f32 %v1392, %v2207
        %v2209 = vpop.f32.mrb[0].mxu0
        %v2210 = vadd.f32 %v1396, %v2209
        %2211 = vmatprep.mubr.bf16.mxu0 0
        %2212 = vmatmul.mubr.bf16.gmra.mrb[0].mxu0 %v1371
        %v2213 = vpop.f32.mrb[0].mxu0
        %v2214 = vadd.f32 %v1392, %v2213
        %v2215 = vpop.f32.mrb[0].mxu0
        %v2216 = vadd.f32 %v1396, %v2215
        %v2217 = vpop.f32.mrb[0].mxu0
        %v2218 = vadd.f32 %v1392, %v2217
        %v2219 = vpop.f32.mrb[0].mxu0
        %v2220 = vadd.f32 %v1396, %v2219
        %2221 = vdwg.mxu0
        %v2222 = vld [vmem:[%s840] sm:$0xf]
        %v2223 = vld [vmem:[%s840 + $0x4] sm:$0xf]
        %v2224 = vld [vmem:[%s840 + $0x8] sm:$0xf]
        %v2225 = vld [vmem:[%s840 + $0xc] sm:$0xf]
        %v2226 = vld [vmem:[%s840 + $0x10] sm:$0xf]
        %v2227 = vld [vmem:[%s840 + $0x14] sm:$0xf]
        %v2228 = vld [vmem:[%s840 + $0x18] sm:$0xf]
        %v2229 = vld [vmem:[%s840 + $0x1c] sm:$0xf]
        %v2230 = vld [vmem:[%s840 + $0x20] sm:$0xf]
        %v2231 = vld [vmem:[%s840 + $0x24] sm:$0xf]
        %v2232 = vld [vmem:[%s840 + $0x28] sm:$0xf]
        %v2233 = vld [vmem:[%s840 + $0x2c] sm:$0xf]
        %v2234 = vld [vmem:[%s840 + $0x30] sm:$0xf]
        %v2235 = vld [vmem:[%s840 + $0x34] sm:$0xf]
        %v2236 = vld [vmem:[%s840 + $0x38] sm:$0xf]
        %v2237 = vld [vmem:[%s840 + $0x3c] sm:$0xf]
        %v2238 = vld [vmem:[%s840 + $0x40] sm:$0xf]
        %v2239 = vld [vmem:[%s840 + $0x44] sm:$0xf]
        %v2240 = vld [vmem:[%s840 + $0x48] sm:$0xf]
        %v2241 = vld [vmem:[%s840 + $0x4c] sm:$0xf]
        %v2242 = vld [vmem:[%s840 + $0x50] sm:$0xf]
        %v2243 = vld [vmem:[%s840 + $0x54] sm:$0xf]
        %v2244 = vld [vmem:[%s840 + $0x58] sm:$0xf]
        %v2245 = vld [vmem:[%s840 + $0x5c] sm:$0xf]
        %v2246 = vld [vmem:[%s840 + $0x60] sm:$0xf]
        %v2247 = vld [vmem:[%s840 + $0x64] sm:$0xf]
        %v2248 = vld [vmem:[%s840 + $0x68] sm:$0xf]
        %v2249 = vld [vmem:[%s840 + $0x6c] sm:$0xf]
        %v2250 = vld [vmem:[%s840 + $0x70] sm:$0xf]
        %v2251 = vld [vmem:[%s840 + $0x74] sm:$0xf]
        %v2252 = vld [vmem:[%s840 + $0x78] sm:$0xf]
        %v2253 = vld [vmem:[%s840 + $0x7c] sm:$0xf]
        %v2254 = vld [vmem:[%s999] sm:$0x1]
        %v2255 = vpack.c.bf16 %v1682, %v1678
        %v2256 = vpack.c.bf16 %v1692, %v1688
        %v2257 = vpack.c.bf16 %v1702, %v1698
        %v2258 = vpack.c.bf16 %v1712, %v1708
        %v2259 = vpack.c.bf16 %v1722, %v1718
        %v2260 = vpack.c.bf16 %v1732, %v1728
        %v2261 = vpack.c.bf16 %v1742, %v1738
        %v2262 = vpack.c.bf16 %v1752, %v1748
        %v2263 = vpack.c.bf16 %v1762, %v1758
        %v2264 = vpack.c.bf16 %v1772, %v1768
        %v2265 = vpack.c.bf16 %v1782, %v1778
        %v2266 = vpack.c.bf16 %v1792, %v1788
        %v2267 = vpack.c.bf16 %v1802, %v1798
        %v2268 = vpack.c.bf16 %v1812, %v1808
        %v2269 = vpack.c.bf16 %v1822, %v1818
        %v2270 = vpack.c.bf16 %v1832, %v1828
        %v2271 = vpack.c.bf16 %v1875, %v1871
        %v2272 = vpack.c.bf16 %v1885, %v1881
        %v2273 = vpack.c.bf16 %v1895, %v1891
        %v2274 = vpack.c.bf16 %v1905, %v1901
        %v2275 = vpack.c.bf16 %v1915, %v1911
        %v2276 = vpack.c.bf16 %v1925, %v1921
        %v2277 = vpack.c.bf16 %v1935, %v1931
        %v2278 = vpack.c.bf16 %v1945, %v1941
        %v2279 = vpack.c.bf16 %v1955, %v1951
        %v2280 = vpack.c.bf16 %v1965, %v1961
        %v2281 = vpack.c.bf16 %v1975, %v1971
        %v2282 = vpack.c.bf16 %v1985, %v1981
        %v2283 = vpack.c.bf16 %v1995, %v1991
        %v2284 = vpack.c.bf16 %v2005, %v2001
        %v2285 = vpack.c.bf16 %v2015, %v2011
        %v2286 = vpack.c.bf16 %v2025, %v2021
        %v2287 = vpack.c.bf16 %v2068, %v2064
        %v2288 = vpack.c.bf16 %v2078, %v2074
        %v2289 = vpack.c.bf16 %v2088, %v2084
        %v2290 = vpack.c.bf16 %v2098, %v2094
        %v2291 = vpack.c.bf16 %v2108, %v2104
        %v2292 = vpack.c.bf16 %v2118, %v2114
        %v2293 = vpack.c.bf16 %v2128, %v2124
        %v2294 = vpack.c.bf16 %v2138, %v2134
        %v2295 = vpack.c.bf16 %v2148, %v2144
        %v2296 = vpack.c.bf16 %v2158, %v2154
        %v2297 = vpack.c.bf16 %v2168, %v2164
        %v2298 = vpack.c.bf16 %v2178, %v2174
        %v2299 = vpack.c.bf16 %v2188, %v2184
        %v2300 = vpack.c.bf16 %v2198, %v2194
        %v2301 = vpack.c.bf16 %v2208, %v2204
        %v2302 = vpack.c.bf16 %v2218, %v2214
        %2303 = vmatprep.subr.bf16.mxu0 0
        %2304 = vmatpush1.bf16.xpose.msra.mxu0 %v2271
        %2305 = vmatprep.subr.bf16.mxu0 0
        %2306 = vmatpush1.bf16.xpose.msra.mxu0 %v2272
        %2307 = vmatprep.subr.bf16.mxu0 0
        %2308 = vmatpush1.bf16.xpose.msra.mxu0 %v2273
        %2309 = vmatprep.subr.bf16.mxu0 0
        %2310 = vmatpush1.bf16.xpose.msra.mxu0 %v2274
        %2311 = vmatprep.subr.bf16.mxu0 0
        %2312 = vmatpush1.bf16.xpose.msra.mxu0 %v2275
        %2313 = vmatprep.subr.bf16.mxu0 0
        %2314 = vmatpush1.bf16.xpose.msra.mxu0 %v2276
        %2315 = vmatprep.subr.bf16.mxu0 0
        %2316 = vmatpush1.bf16.xpose.msra.mxu0 %v2277
        %2317 = vmatprep.subr.bf16.mxu0 0
        %2318 = vmatpush1.bf16.xpose.msra.mxu0 %v2278
        %2319 = vmatprep.subr.bf16.mxu0 0
        %2320 = vmatpush1.bf16.xpose.msra.mxu0 0
        %2321 = vmatprep.subr.bf16.mxu0 0
        %2322 = vmatpush1.bf16.xpose.msra.mxu0 0
        %2323 = vmatprep.subr.bf16.mxu0 0
        %2324 = vmatpush1.bf16.xpose.msra.mxu0 0
        %2325 = vmatprep.subr.bf16.mxu0 0
        %2326 = vmatpush1.bf16.xpose.msra.mxu0 0
        %2327 = vmatprep.subr.bf16.mxu0 0
        %2328 = vmatpush1.bf16.xpose.msra.mxu0 0
        %2329 = vmatprep.subr.bf16.mxu0 0
        %2330 = vmatpush1.bf16.xpose.msra.mxu0 0
        %2331 = vmatprep.subr.bf16.mxu0 0
        %2332 = vmatpush1.bf16.xpose.msra.mxu0 0
        %2333 = vmatprep.subr.bf16.mxu0 0
        %2334 = vmatpush1.bf16.xpose.msra.mxu0 0
        %2335 = vmatprep.mubr.bf16.mxu0 0
        %2336 = vmatmul.mubr.bf16.gmra.mrb[0].mxu0 %v2255
        %v2337 = vpop.f32.mrb[0].mxu0
        %v2338 = vadd.f32 %v1275, %v2337
        %v2339 = vpop.f32.mrb[0].mxu0
        %v2340 = vpop.f32.mrb[0].mxu0
        %v2341 = vadd.f32 %v1276, %v2340
        %v2342 = vpop.f32.mrb[0].mxu0
        %2343 = vmatprep.mubr.bf16.mxu0 0
        %2344 = vmatmul.mubr.bf16.gmra.mrb[0].mxu0 %v2256
        %v2345 = vpop.f32.mrb[0].mxu0
        %v2346 = vadd.f32 %v1277, %v2345
        %v2347 = vpop.f32.mrb[0].mxu0
        %v2348 = vpop.f32.mrb[0].mxu0
        %v2349 = vadd.f32 %v1278, %v2348
        %v2350 = vpop.f32.mrb[0].mxu0
        %2351 = vmatprep.mubr.bf16.mxu0 0
        %2352 = vmatmul.mubr.bf16.gmra.mrb[0].mxu0 %v2257
        %v2353 = vpop.f32.mrb[0].mxu0
        %v2354 = vadd.f32 %v1279, %v2353
        %v2355 = vpop.f32.mrb[0].mxu0
        %v2356 = vpop.f32.mrb[0].mxu0
        %v2357 = vadd.f32 %v1280, %v2356
        %v2358 = vpop.f32.mrb[0].mxu0
        %2359 = vmatprep.mubr.bf16.mxu0 0
        %2360 = vmatmul.mubr.bf16.gmra.mrb[0].mxu0 %v2258
        %v2361 = vpop.f32.mrb[0].mxu0
        %v2362 = vadd.f32 %v1281, %v2361
        %v2363 = vpop.f32.mrb[0].mxu0
        %v2364 = vpop.f32.mrb[0].mxu0
        %v2365 = vadd.f32 %v1282, %v2364
        %v2366 = vpop.f32.mrb[0].mxu0
        %2367 = vmatprep.mubr.bf16.mxu0 0
        %2368 = vmatmul.mubr.bf16.gmra.mrb[0].mxu0 %v2259
        %v2369 = vpop.f32.mrb[0].mxu0
        %v2370 = vadd.f32 %v1283, %v2369
        %v2371 = vpop.f32.mrb[0].mxu0
        %v2372 = vpop.f32.mrb[0].mxu0
        %v2373 = vadd.f32 %v1284, %v2372
        %v2374 = vpop.f32.mrb[0].mxu0
        %2375 = vmatprep.mubr.bf16.mxu0 0
        %2376 = vmatmul.mubr.bf16.gmra.mrb[0].mxu0 %v2260
        %v2377 = vpop.f32.mrb[0].mxu0
        %v2378 = vadd.f32 %v1285, %v2377
        %v2379 = vpop.f32.mrb[0].mxu0
        %v2380 = vpop.f32.mrb[0].mxu0
        %v2381 = vadd.f32 %v1286, %v2380
        %v2382 = vpop.f32.mrb[0].mxu0
        %2383 = vmatprep.mubr.bf16.mxu0 0
        %2384 = vmatmul.mubr.bf16.gmra.mrb[0].mxu0 %v2261
        %v2385 = vpop.f32.mrb[0].mxu0
        %v2386 = vadd.f32 %v1287, %v2385
        %v2387 = vpop.f32.mrb[0].mxu0
        %v2388 = vpop.f32.mrb[0].mxu0
        %v2389 = vadd.f32 %v1288, %v2388
        %v2390 = vpop.f32.mrb[0].mxu0
        %2391 = vmatprep.mubr.bf16.mxu0 0
        %2392 = vmatmul.mubr.bf16.gmra.mrb[0].mxu0 %v2262
        %v2393 = vpop.f32.mrb[0].mxu0
        %v2394 = vadd.f32 %v1289, %v2393
        %v2395 = vpop.f32.mrb[0].mxu0
        %v2396 = vpop.f32.mrb[0].mxu0
        %v2397 = vadd.f32 %v1290, %v2396
        %v2398 = vpop.f32.mrb[0].mxu0
        %2399 = vdwg.mxu0
        %2400 = vmatprep.subr.bf16.mxu0 0
        %2401 = vmatpush1.bf16.xpose.msra.mxu0 %v2279
        %2402 = vmatprep.subr.bf16.mxu0 0
        %2403 = vmatpush1.bf16.xpose.msra.mxu0 %v2280
        %2404 = vmatprep.subr.bf16.mxu0 0
        %2405 = vmatpush1.bf16.xpose.msra.mxu0 %v2281
        %2406 = vmatprep.subr.bf16.mxu0 0
        %2407 = vmatpush1.bf16.xpose.msra.mxu0 %v2282
        %2408 = vmatprep.subr.bf16.mxu0 0
        %2409 = vmatpush1.bf16.xpose.msra.mxu0 %v2283
        %2410 = vmatprep.subr.bf16.mxu0 0
        %2411 = vmatpush1.bf16.xpose.msra.mxu0 %v2284
        %2412 = vmatprep.subr.bf16.mxu0 0
        %2413 = vmatpush1.bf16.xpose.msra.mxu0 %v2285
        %2414 = vmatprep.subr.bf16.mxu0 0
        %2415 = vmatpush1.bf16.xpose.msra.mxu0 %v2286
        %2416 = vmatprep.subr.bf16.mxu0 0
        %2417 = vmatpush1.bf16.xpose.msra.mxu0 0
        %2418 = vmatprep.subr.bf16.mxu0 0
        %2419 = vmatpush1.bf16.xpose.msra.mxu0 0
        %2420 = vmatprep.subr.bf16.mxu0 0
        %2421 = vmatpush1.bf16.xpose.msra.mxu0 0
        %2422 = vmatprep.subr.bf16.mxu0 0
        %2423 = vmatpush1.bf16.xpose.msra.mxu0 0
        %2424 = vmatprep.subr.bf16.mxu0 0
        %2425 = vmatpush1.bf16.xpose.msra.mxu0 0
        %2426 = vmatprep.subr.bf16.mxu0 0
        %2427 = vmatpush1.bf16.xpose.msra.mxu0 0
        %2428 = vmatprep.subr.bf16.mxu0 0
        %2429 = vmatpush1.bf16.xpose.msra.mxu0 0
        %2430 = vmatprep.subr.bf16.mxu0 0
        %2431 = vmatpush1.bf16.xpose.msra.mxu0 0
        %2432 = vmatprep.mubr.bf16.mxu0 0
        %2433 = vmatmul.mubr.bf16.gmra.mrb[0].mxu0 %v2263
        %v2434 = vpop.f32.mrb[0].mxu0
        %v2435 = vadd.f32 %v1291, %v2434
        %v2436 = vpop.f32.mrb[0].mxu0
        %v2437 = vpop.f32.mrb[0].mxu0
        %v2438 = vadd.f32 %v1292, %v2437
        %v2439 = vpop.f32.mrb[0].mxu0
        %2440 = vmatprep.mubr.bf16.mxu0 0
        %2441 = vmatmul.mubr.bf16.gmra.mrb[0].mxu0 %v2264
        %v2442 = vpop.f32.mrb[0].mxu0
        %v2443 = vadd.f32 %v1293, %v2442
        %v2444 = vpop.f32.mrb[0].mxu0
        %v2445 = vpop.f32.mrb[0].mxu0
        %v2446 = vadd.f32 %v1294, %v2445
        %v2447 = vpop.f32.mrb[0].mxu0
        %2448 = vmatprep.mubr.bf16.mxu0 0
        %2449 = vmatmul.mubr.bf16.gmra.mrb[0].mxu0 %v2265
        %v2450 = vpop.f32.mrb[0].mxu0
        %v2451 = vadd.f32 %v1295, %v2450
        %v2452 = vpop.f32.mrb[0].mxu0
        %v2453 = vpop.f32.mrb[0].mxu0
        %v2454 = vadd.f32 %v1296, %v2453
        %v2455 = vpop.f32.mrb[0].mxu0
        %2456 = vmatprep.mubr.bf16.mxu0 0
        %2457 = vmatmul.mubr.bf16.gmra.mrb[0].mxu0 %v2266
        %v2458 = vpop.f32.mrb[0].mxu0
        %v2459 = vadd.f32 %v1297, %v2458
        %v2460 = vpop.f32.mrb[0].mxu0
        %v2461 = vpop.f32.mrb[0].mxu0
        %v2462 = vadd.f32 %v1298, %v2461
        %v2463 = vpop.f32.mrb[0].mxu0
        %2464 = vmatprep.mubr.bf16.mxu0 0
        %2465 = vmatmul.mubr.bf16.gmra.mrb[0].mxu0 %v2267
        %v2466 = vpop.f32.mrb[0].mxu0
        %v2467 = vadd.f32 %v1299, %v2466
        %v2468 = vpop.f32.mrb[0].mxu0
        %v2469 = vpop.f32.mrb[0].mxu0
        %v2470 = vadd.f32 %v1300, %v2469
        %v2471 = vpop.f32.mrb[0].mxu0
        %2472 = vmatprep.mubr.bf16.mxu0 0
        %2473 = vmatmul.mubr.bf16.gmra.mrb[0].mxu0 %v2268
        %v2474 = vpop.f32.mrb[0].mxu0
        %v2475 = vadd.f32 %v1301, %v2474
        %v2476 = vpop.f32.mrb[0].mxu0
        %v2477 = vpop.f32.mrb[0].mxu0
        %v2478 = vadd.f32 %v1302, %v2477
        %v2479 = vpop.f32.mrb[0].mxu0
        %2480 = vmatprep.mubr.bf16.mxu0 0
        %2481 = vmatmul.mubr.bf16.gmra.mrb[0].mxu0 %v2269
        %v2482 = vpop.f32.mrb[0].mxu0
        %v2483 = vadd.f32 %v1303, %v2482
        %v2484 = vpop.f32.mrb[0].mxu0
        %v2485 = vpop.f32.mrb[0].mxu0
        %v2486 = vadd.f32 %v1304, %v2485
        %v2487 = vpop.f32.mrb[0].mxu0
        %2488 = vmatprep.mubr.bf16.mxu0 0
        %2489 = vmatmul.mubr.bf16.gmra.mrb[0].mxu0 %v2270
        %v2490 = vpop.f32.mrb[0].mxu0
        %v2491 = vadd.f32 %v1305, %v2490
        %v2492 = vpop.f32.mrb[0].mxu0
        %v2493 = vpop.f32.mrb[0].mxu0
        %v2494 = vadd.f32 %v1306, %v2493
        %v2495 = vpop.f32.mrb[0].mxu0
        %2496 = vdwg.mxu0
        %2497 = vmax.xlane.f32.xlu0 %v2338
        %v2498 = vpop.xlane.xlu0 %2497
        %2499 = vmax.xlane.f32.xlu0 %v2341
        %v2500 = vpop.xlane.xlu0 %2499
        %2501 = vmax.xlane.f32.xlu0 %v2346
        %v2502 = vpop.xlane.xlu0 %2501
        %2503 = vmax.xlane.f32.xlu0 %v2349
        %v2504 = vpop.xlane.xlu0 %2503
        %2505 = vmax.xlane.f32.xlu0 %v2354
        %v2506 = vpop.xlane.xlu0 %2505
        %2507 = vmax.xlane.f32.xlu0 %v2357
        %v2508 = vpop.xlane.xlu0 %2507
        %2509 = vmax.xlane.f32.xlu0 %v2362
        %v2510 = vpop.xlane.xlu0 %2509
        %2511 = vmax.xlane.f32.xlu0 %v2365
        %v2512 = vpop.xlane.xlu0 %2511
        %2513 = vmax.xlane.f32.xlu0 %v2370
        %v2514 = vpop.xlane.xlu0 %2513
        %2515 = vmax.xlane.f32.xlu0 %v2373
        %v2516 = vpop.xlane.xlu0 %2515
        %2517 = vmax.xlane.f32.xlu0 %v2378
        %v2518 = vpop.xlane.xlu0 %2517
        %2519 = vmax.xlane.f32.xlu0 %v2381
        %v2520 = vpop.xlane.xlu0 %2519
        %2521 = vmax.xlane.f32.xlu0 %v2386
        %v2522 = vpop.xlane.xlu0 %2521
        %2523 = vmax.xlane.f32.xlu0 %v2389
        %v2524 = vpop.xlane.xlu0 %2523
        %2525 = vmax.xlane.f32.xlu0 %v2394
        %v2526 = vpop.xlane.xlu0 %2525
        %2527 = vmax.xlane.f32.xlu0 %v2397
        %v2528 = vpop.xlane.xlu0 %2527
        %2529 = vmax.xlane.f32.xlu0 %v2435
        %v2530 = vpop.xlane.xlu0 %2529
        %2531 = vmax.xlane.f32.xlu0 %v2438
        %v2532 = vpop.xlane.xlu0 %2531
        %2533 = vmax.xlane.f32.xlu0 %v2443
        %v2534 = vpop.xlane.xlu0 %2533
        %2535 = vmax.xlane.f32.xlu0 %v2446
        %v2536 = vpop.xlane.xlu0 %2535
        %2537 = vmax.xlane.f32.xlu0 %v2451
        %v2538 = vpop.xlane.xlu0 %2537
        %2539 = vmax.xlane.f32.xlu0 %v2454
        %v2540 = vpop.xlane.xlu0 %2539
        %2541 = vmax.xlane.f32.xlu0 %v2459
        %v2542 = vpop.xlane.xlu0 %2541
        %2543 = vmax.xlane.f32.xlu0 %v2462
        %v2544 = vpop.xlane.xlu0 %2543
        %2545 = vmax.xlane.f32.xlu0 %v2467
        %v2546 = vpop.xlane.xlu0 %2545
        %2547 = vmax.xlane.f32.xlu0 %v2470
        %v2548 = vpop.xlane.xlu0 %2547
        %2549 = vmax.xlane.f32.xlu0 %v2475
        %v2550 = vpop.xlane.xlu0 %2549
        %2551 = vmax.xlane.f32.xlu0 %v2478
        %v2552 = vpop.xlane.xlu0 %2551
        %2553 = vmax.xlane.f32.xlu0 %v2483
        %v2554 = vpop.xlane.xlu0 %2553
        %2555 = vmax.xlane.f32.xlu0 %v2486
        %v2556 = vpop.xlane.xlu0 %2555
        %2557 = vmax.xlane.f32.xlu0 %v2491
        %v2558 = vpop.xlane.xlu0 %2557
        %2559 = vmax.xlane.f32.xlu0 %v2494
        %v2560 = vpop.xlane.xlu0 %2559
        %v2561 = vsub.f32 %v2338, %v2498
        %v2562 = vsub.f32 %v2341, %v2500
        %v2563 = vsub.f32 %v2346, %v2502
        %v2564 = vsub.f32 %v2349, %v2504
        %v2565 = vsub.f32 %v2354, %v2506
        %v2566 = vsub.f32 %v2357, %v2508
        %v2567 = vsub.f32 %v2362, %v2510
        %v2568 = vsub.f32 %v2365, %v2512
        %v2569 = vsub.f32 %v2370, %v2514
        %v2570 = vsub.f32 %v2373, %v2516
        %v2571 = vsub.f32 %v2378, %v2518
        %v2572 = vsub.f32 %v2381, %v2520
        %v2573 = vsub.f32 %v2386, %v2522
        %v2574 = vsub.f32 %v2389, %v2524
        %v2575 = vsub.f32 %v2394, %v2526
        %v2576 = vsub.f32 %v2397, %v2528
        %v2577 = vsub.f32 %v2435, %v2530
        %v2578 = vsub.f32 %v2438, %v2532
        %v2579 = vsub.f32 %v2443, %v2534
        %v2580 = vsub.f32 %v2446, %v2536
        %v2581 = vsub.f32 %v2451, %v2538
        %v2582 = vsub.f32 %v2454, %v2540
        %v2583 = vsub.f32 %v2459, %v2542
        %v2584 = vsub.f32 %v2462, %v2544
        %v2585 = vsub.f32 %v2467, %v2546
        %v2586 = vsub.f32 %v2470, %v2548
        %v2587 = vsub.f32 %v2475, %v2550
        %v2588 = vsub.f32 %v2478, %v2552
        %v2589 = vsub.f32 %v2483, %v2554
        %v2590 = vsub.f32 %v2486, %v2556
        %v2591 = vsub.f32 %v2491, %v2558
        %v2592 = vsub.f32 %v2494, %v2560
        %v2593 = vmul.f32 %v2561, 1.442695
        %v2594 = vpow.pop %v2593
        %v2595 = vmul.f32 %v2562, 1.442695
        %v2596 = vpow.pop %v2595
        %v2597 = vmul.f32 %v2563, 1.442695
        %v2598 = vpow.pop %v2597
        %v2599 = vmul.f32 %v2564, 1.442695
        %v2600 = vpow.pop %v2599
        %v2601 = vmul.f32 %v2565, 1.442695
        %v2602 = vpow.pop %v2601
        %v2603 = vmul.f32 %v2566, 1.442695
        %v2604 = vpow.pop %v2603
        %v2605 = vmul.f32 %v2567, 1.442695
        %v2606 = vpow.pop %v2605
        %v2607 = vmul.f32 %v2568, 1.442695
        %v2608 = vpow.pop %v2607
        %v2609 = vmul.f32 %v2569, 1.442695
        %v2610 = vpow.pop %v2609
        %v2611 = vmul.f32 %v2570, 1.442695
        %v2612 = vpow.pop %v2611
        %v2613 = vmul.f32 %v2571, 1.442695
        %v2614 = vpow.pop %v2613
        %v2615 = vmul.f32 %v2572, 1.442695
        %v2616 = vpow.pop %v2615
        %v2617 = vmul.f32 %v2573, 1.442695
        %v2618 = vpow.pop %v2617
        %v2619 = vmul.f32 %v2574, 1.442695
        %v2620 = vpow.pop %v2619
        %v2621 = vmul.f32 %v2575, 1.442695
        %v2622 = vpow.pop %v2621
        %v2623 = vmul.f32 %v2576, 1.442695
        %v2624 = vpow.pop %v2623
        %v2625 = vmul.f32 %v2577, 1.442695
        %v2626 = vpow.pop %v2625
        %v2627 = vmul.f32 %v2578, 1.442695
        %v2628 = vpow.pop %v2627
        %v2629 = vmul.f32 %v2579, 1.442695
        %v2630 = vpow.pop %v2629
        %v2631 = vmul.f32 %v2580, 1.442695
        %v2632 = vpow.pop %v2631
        %v2633 = vmul.f32 %v2581, 1.442695
        %v2634 = vpow.pop %v2633
        %v2635 = vmul.f32 %v2582, 1.442695
        %v2636 = vpow.pop %v2635
        %v2637 = vmul.f32 %v2583, 1.442695
        %v2638 = vpow.pop %v2637
        %v2639 = vmul.f32 %v2584, 1.442695
        %v2640 = vpow.pop %v2639
        %v2641 = vmul.f32 %v2585, 1.442695
        %v2642 = vpow.pop %v2641
        %v2643 = vmul.f32 %v2586, 1.442695
        %v2644 = vpow.pop %v2643
        %v2645 = vmul.f32 %v2587, 1.442695
        %v2646 = vpow.pop %v2645
        %v2647 = vmul.f32 %v2588, 1.442695
        %v2648 = vpow.pop %v2647
        %v2649 = vmul.f32 %v2589, 1.442695
        %v2650 = vpow.pop %v2649
        %v2651 = vmul.f32 %v2590, 1.442695
        %v2652 = vpow.pop %v2651
        %v2653 = vmul.f32 %v2591, 1.442695
        %v2654 = vpow.pop %v2653
        %v2655 = vmul.f32 %v2592, 1.442695
        %v2656 = vpow.pop %v2655
        %2657 = vadd.xlane.f32.xlu0 %v2594
        %v2658 = vpop.xlane.xlu0 %2657
        %2659 = vadd.xlane.f32.xlu0 %v2596
        %v2660 = vpop.xlane.xlu0 %2659
        %2661 = vadd.xlane.f32.xlu0 %v2598
        %v2662 = vpop.xlane.xlu0 %2661
        %2663 = vadd.xlane.f32.xlu0 %v2600
        %v2664 = vpop.xlane.xlu0 %2663
        %2665 = vadd.xlane.f32.xlu0 %v2602
        %v2666 = vpop.xlane.xlu0 %2665
        %2667 = vadd.xlane.f32.xlu0 %v2604
        %v2668 = vpop.xlane.xlu0 %2667
        %2669 = vadd.xlane.f32.xlu0 %v2606
        %v2670 = vpop.xlane.xlu0 %2669
        %2671 = vadd.xlane.f32.xlu0 %v2608
        %v2672 = vpop.xlane.xlu0 %2671
        %2673 = vadd.xlane.f32.xlu0 %v2610
        %v2674 = vpop.xlane.xlu0 %2673
        %2675 = vadd.xlane.f32.xlu0 %v2612
        %v2676 = vpop.xlane.xlu0 %2675
        %2677 = vadd.xlane.f32.xlu0 %v2614
        %v2678 = vpop.xlane.xlu0 %2677
        %2679 = vadd.xlane.f32.xlu0 %v2616
        %v2680 = vpop.xlane.xlu0 %2679
        %2681 = vadd.xlane.f32.xlu0 %v2618
        %v2682 = vpop.xlane.xlu0 %2681
        %2683 = vadd.xlane.f32.xlu0 %v2620
        %v2684 = vpop.xlane.xlu0 %2683
        %2685 = vadd.xlane.f32.xlu0 %v2622
        %v2686 = vpop.xlane.xlu0 %2685
        %2687 = vadd.xlane.f32.xlu0 %v2624
        %v2688 = vpop.xlane.xlu0 %2687
        %2689 = vadd.xlane.f32.xlu0 %v2626
        %v2690 = vpop.xlane.xlu0 %2689
        %2691 = vadd.xlane.f32.xlu0 %v2628
        %v2692 = vpop.xlane.xlu0 %2691
        %2693 = vadd.xlane.f32.xlu0 %v2630
        %v2694 = vpop.xlane.xlu0 %2693
        %2695 = vadd.xlane.f32.xlu0 %v2632
        %v2696 = vpop.xlane.xlu0 %2695
        %2697 = vadd.xlane.f32.xlu0 %v2634
        %v2698 = vpop.xlane.xlu0 %2697
        %2699 = vadd.xlane.f32.xlu0 %v2636
        %v2700 = vpop.xlane.xlu0 %2699
        %2701 = vadd.xlane.f32.xlu0 %v2638
        %v2702 = vpop.xlane.xlu0 %2701
        %2703 = vadd.xlane.f32.xlu0 %v2640
        %v2704 = vpop.xlane.xlu0 %2703
        %2705 = vadd.xlane.f32.xlu0 %v2642
        %v2706 = vpop.xlane.xlu0 %2705
        %2707 = vadd.xlane.f32.xlu0 %v2644
        %v2708 = vpop.xlane.xlu0 %2707
        %2709 = vadd.xlane.f32.xlu0 %v2646
        %v2710 = vpop.xlane.xlu0 %2709
        %2711 = vadd.xlane.f32.xlu0 %v2648
        %v2712 = vpop.xlane.xlu0 %2711
        %2713 = vadd.xlane.f32.xlu0 %v2650
        %v2714 = vpop.xlane.xlu0 %2713
        %2715 = vadd.xlane.f32.xlu0 %v2652
        %v2716 = vpop.xlane.xlu0 %2715
        %2717 = vadd.xlane.f32.xlu0 %v2654
        %v2718 = vpop.xlane.xlu0 %2717
        %2719 = vadd.xlane.f32.xlu0 %v2656
        %v2720 = vpop.xlane.xlu0 %2719
        %v2721 = vrcp.pop %v2658
        %v2722 = vrcp.pop %v2660
        %v2723 = vrcp.pop %v2662
        %v2724 = vrcp.pop %v2664
        %v2725 = vrcp.pop %v2666
        %v2726 = vrcp.pop %v2668
        %v2727 = vrcp.pop %v2670
        %v2728 = vrcp.pop %v2672
        %v2729 = vrcp.pop %v2674
        %v2730 = vrcp.pop %v2676
        %v2731 = vrcp.pop %v2678
        %v2732 = vrcp.pop %v2680
        %v2733 = vrcp.pop %v2682
        %v2734 = vrcp.pop %v2684
        %v2735 = vrcp.pop %v2686
        %v2736 = vrcp.pop %v2688
        %v2737 = vrcp.pop %v2690
        %v2738 = vrcp.pop %v2692
        %v2739 = vrcp.pop %v2694
        %v2740 = vrcp.pop %v2696
        %v2741 = vrcp.pop %v2698
        %v2742 = vrcp.pop %v2700
        %v2743 = vrcp.pop %v2702
        %v2744 = vrcp.pop %v2704
        %v2745 = vrcp.pop %v2706
        %v2746 = vrcp.pop %v2708
        %v2747 = vrcp.pop %v2710
        %v2748 = vrcp.pop %v2712
        %v2749 = vrcp.pop %v2714
        %v2750 = vrcp.pop %v2716
        %v2751 = vrcp.pop %v2718
        %v2752 = vrcp.pop %v2720
        %v2753 = vmul.f32 %v2594, %v2721
        %v2754 = vmul.f32 %v2596, %v2722
        %v2755 = vmul.f32 %v2598, %v2723
        %v2756 = vmul.f32 %v2600, %v2724
        %v2757 = vmul.f32 %v2602, %v2725
        %v2758 = vmul.f32 %v2604, %v2726
        %v2759 = vmul.f32 %v2606, %v2727
        %v2760 = vmul.f32 %v2608, %v2728
        %v2761 = vmul.f32 %v2610, %v2729
        %v2762 = vmul.f32 %v2612, %v2730
        %v2763 = vmul.f32 %v2614, %v2731
        %v2764 = vmul.f32 %v2616, %v2732
        %v2765 = vmul.f32 %v2618, %v2733
        %v2766 = vmul.f32 %v2620, %v2734
        %v2767 = vmul.f32 %v2622, %v2735
        %v2768 = vmul.f32 %v2624, %v2736
        %v2769 = vmul.f32 %v2626, %v2737
        %v2770 = vmul.f32 %v2628, %v2738
        %v2771 = vmul.f32 %v2630, %v2739
        %v2772 = vmul.f32 %v2632, %v2740
        %v2773 = vmul.f32 %v2634, %v2741
        %v2774 = vmul.f32 %v2636, %v2742
        %v2775 = vmul.f32 %v2638, %v2743
        %v2776 = vmul.f32 %v2640, %v2744
        %v2777 = vmul.f32 %v2642, %v2745
        %v2778 = vmul.f32 %v2644, %v2746
        %v2779 = vmul.f32 %v2646, %v2747
        %v2780 = vmul.f32 %v2648, %v2748
        %v2781 = vmul.f32 %v2650, %v2749
        %v2782 = vmul.f32 %v2652, %v2750
        %v2783 = vmul.f32 %v2654, %v2751
        %v2784 = vmul.f32 %v2656, %v2752
        %v2785 = vpack.c.bf16 %v2754, %v2753
        %v2786 = vpack.c.bf16 %v2756, %v2755
        %v2787 = vpack.c.bf16 %v2758, %v2757
        %v2788 = vpack.c.bf16 %v2760, %v2759
        %v2789 = vpack.c.bf16 %v2762, %v2761
        %v2790 = vpack.c.bf16 %v2764, %v2763
        %v2791 = vpack.c.bf16 %v2766, %v2765
        %v2792 = vpack.c.bf16 %v2768, %v2767
        %v2793 = vpack.c.bf16 %v2770, %v2769
        %v2794 = vpack.c.bf16 %v2772, %v2771
        %v2795 = vpack.c.bf16 %v2774, %v2773
        %v2796 = vpack.c.bf16 %v2776, %v2775
        %v2797 = vpack.c.bf16 %v2778, %v2777
        %v2798 = vpack.c.bf16 %v2780, %v2779
        %v2799 = vpack.c.bf16 %v2782, %v2781
        %v2800 = vpack.c.bf16 %v2784, %v2783
        %2801 = vmatprep.subr.bf16.mxu0 0
        %2802 = vmatpush1.bf16.msra.mxu0 %v2287
        %2803 = vmatprep.subr.bf16.mxu0 0
        %2804 = vmatpush1.bf16.msra.mxu0 %v2288
        %2805 = vmatprep.subr.bf16.mxu0 0
        %2806 = vmatpush1.bf16.msra.mxu0 %v2289
        %2807 = vmatprep.subr.bf16.mxu0 0
        %2808 = vmatpush1.bf16.msra.mxu0 %v2290
        %2809 = vmatprep.subr.bf16.mxu0 0
        %2810 = vmatpush1.bf16.msra.mxu0 %v2291
        %2811 = vmatprep.subr.bf16.mxu0 0
        %2812 = vmatpush1.bf16.msra.mxu0 %v2292
        %2813 = vmatprep.subr.bf16.mxu0 0
        %2814 = vmatpush1.bf16.msra.mxu0 %v2293
        %2815 = vmatprep.subr.bf16.mxu0 0
        %2816 = vmatpush1.bf16.msra.mxu0 %v2294
        %2817 = vmatprep.subr.bf16.mxu0 0
        %2818 = vmatpush1.bf16.msra.mxu0 0
        %2819 = vmatprep.subr.bf16.mxu0 0
        %2820 = vmatpush1.bf16.msra.mxu0 0
        %2821 = vmatprep.subr.bf16.mxu0 0
        %2822 = vmatpush1.bf16.msra.mxu0 0
        %2823 = vmatprep.subr.bf16.mxu0 0
        %2824 = vmatpush1.bf16.msra.mxu0 0
        %2825 = vmatprep.subr.bf16.mxu0 0
        %2826 = vmatpush1.bf16.msra.mxu0 0
        %2827 = vmatprep.subr.bf16.mxu0 0
        %2828 = vmatpush1.bf16.msra.mxu0 0
        %2829 = vmatprep.subr.bf16.mxu0 0
        %2830 = vmatpush1.bf16.msra.mxu0 0
        %2831 = vmatprep.subr.bf16.mxu0 0
        %2832 = vmatpush1.bf16.msra.mxu0 0
        %2833 = vmatprep.mubr.bf16.mxu0 0
        %2834 = vmatmul.mubr.bf16.gmra.mrb[0].mxu0 %v2785
        %v2835 = vpop.f32.mrb[0].mxu0
        %v2836 = vadd.f32 0.0, %v2835
        %v2837 = vpop.f32.mrb[0].mxu0
        %v2838 = vpop.f32.mrb[0].mxu0
        %v2839 = vadd.f32 0.0, %v2838
        %v2840 = vpop.f32.mrb[0].mxu0
        %2841 = vmatprep.mubr.bf16.mxu0 0
        %2842 = vmatmul.mubr.bf16.gmra.mrb[0].mxu0 %v2786
        %v2843 = vpop.f32.mrb[0].mxu0
        %v2844 = vadd.f32 0.0, %v2843
        %v2845 = vpop.f32.mrb[0].mxu0
        %v2846 = vpop.f32.mrb[0].mxu0
        %v2847 = vadd.f32 0.0, %v2846
        %v2848 = vpop.f32.mrb[0].mxu0
        %2849 = vmatprep.mubr.bf16.mxu0 0
        %2850 = vmatmul.mubr.bf16.gmra.mrb[0].mxu0 %v2787
        %v2851 = vpop.f32.mrb[0].mxu0
        %v2852 = vadd.f32 0.0, %v2851
        %v2853 = vpop.f32.mrb[0].mxu0
        %v2854 = vpop.f32.mrb[0].mxu0
        %v2855 = vadd.f32 0.0, %v2854
        %v2856 = vpop.f32.mrb[0].mxu0
        %2857 = vmatprep.mubr.bf16.mxu0 0
        %2858 = vmatmul.mubr.bf16.gmra.mrb[0].mxu0 %v2788
        %v2859 = vpop.f32.mrb[0].mxu0
        %v2860 = vadd.f32 0.0, %v2859
        %v2861 = vpop.f32.mrb[0].mxu0
        %v2862 = vpop.f32.mrb[0].mxu0
        %v2863 = vadd.f32 0.0, %v2862
        %v2864 = vpop.f32.mrb[0].mxu0
        %2865 = vmatprep.mubr.bf16.mxu0 0
        %2866 = vmatmul.mubr.bf16.gmra.mrb[0].mxu0 %v2789
        %v2867 = vpop.f32.mrb[0].mxu0
        %v2868 = vadd.f32 0.0, %v2867
        %v2869 = vpop.f32.mrb[0].mxu0
        %v2870 = vpop.f32.mrb[0].mxu0
        %v2871 = vadd.f32 0.0, %v2870
        %v2872 = vpop.f32.mrb[0].mxu0
        %2873 = vmatprep.mubr.bf16.mxu0 0
        %2874 = vmatmul.mubr.bf16.gmra.mrb[0].mxu0 %v2790
        %v2875 = vpop.f32.mrb[0].mxu0
        %v2876 = vadd.f32 0.0, %v2875
        %v2877 = vpop.f32.mrb[0].mxu0
        %v2878 = vpop.f32.mrb[0].mxu0
        %v2879 = vadd.f32 0.0, %v2878
        %v2880 = vpop.f32.mrb[0].mxu0
        %2881 = vmatprep.mubr.bf16.mxu0 0
        %2882 = vmatmul.mubr.bf16.gmra.mrb[0].mxu0 %v2791
        %v2883 = vpop.f32.mrb[0].mxu0
        %v2884 = vadd.f32 0.0, %v2883
        %v2885 = vpop.f32.mrb[0].mxu0
        %v2886 = vpop.f32.mrb[0].mxu0
        %v2887 = vadd.f32 0.0, %v2886
        %v2888 = vpop.f32.mrb[0].mxu0
        %2889 = vmatprep.mubr.bf16.mxu0 0
        %2890 = vmatmul.mubr.bf16.gmra.mrb[0].mxu0 %v2792
        %v2891 = vpop.f32.mrb[0].mxu0
        %v2892 = vadd.f32 0.0, %v2891
        %v2893 = vpop.f32.mrb[0].mxu0
        %v2894 = vpop.f32.mrb[0].mxu0
        %v2895 = vadd.f32 0.0, %v2894
        %v2896 = vpop.f32.mrb[0].mxu0
        %2897 = vdwg.mxu0
        %2898 = vmatprep.subr.bf16.mxu0 0
        %2899 = vmatpush1.bf16.msra.mxu0 %v2295
        %2900 = vmatprep.subr.bf16.mxu0 0
        %2901 = vmatpush1.bf16.msra.mxu0 %v2296
        %2902 = vmatprep.subr.bf16.mxu0 0
        %2903 = vmatpush1.bf16.msra.mxu0 %v2297
        %2904 = vmatprep.subr.bf16.mxu0 0
        %2905 = vmatpush1.bf16.msra.mxu0 %v2298
        %2906 = vmatprep.subr.bf16.mxu0 0
        %2907 = vmatpush1.bf16.msra.mxu0 %v2299
        %2908 = vmatprep.subr.bf16.mxu0 0
        %2909 = vmatpush1.bf16.msra.mxu0 %v2300
        %2910 = vmatprep.subr.bf16.mxu0 0
        %2911 = vmatpush1.bf16.msra.mxu0 %v2301
        %2912 = vmatprep.subr.bf16.mxu0 0
        %2913 = vmatpush1.bf16.msra.mxu0 %v2302
        %2914 = vmatprep.subr.bf16.mxu0 0
        %2915 = vmatpush1.bf16.msra.mxu0 0
        %2916 = vmatprep.subr.bf16.mxu0 0
        %2917 = vmatpush1.bf16.msra.mxu0 0
        %2918 = vmatprep.subr.bf16.mxu0 0
        %2919 = vmatpush1.bf16.msra.mxu0 0
        %2920 = vmatprep.subr.bf16.mxu0 0
        %2921 = vmatpush1.bf16.msra.mxu0 0
        %2922 = vmatprep.subr.bf16.mxu0 0
        %2923 = vmatpush1.bf16.msra.mxu0 0
        %2924 = vmatprep.subr.bf16.mxu0 0
        %2925 = vmatpush1.bf16.msra.mxu0 0
        %2926 = vmatprep.subr.bf16.mxu0 0
        %2927 = vmatpush1.bf16.msra.mxu0 0
        %2928 = vmatprep.subr.bf16.mxu0 0
        %2929 = vmatpush1.bf16.msra.mxu0 0
        %2930 = vmatprep.mubr.bf16.mxu0 0
        %2931 = vmatmul.mubr.bf16.gmra.mrb[0].mxu0 %v2793
        %v2932 = vpop.f32.mrb[0].mxu0
        %v2933 = vadd.f32 0.0, %v2932
        %v2934 = vpop.f32.mrb[0].mxu0
        %v2935 = vpop.f32.mrb[0].mxu0
        %v2936 = vadd.f32 0.0, %v2935
        %v2937 = vpop.f32.mrb[0].mxu0
        %2938 = vmatprep.mubr.bf16.mxu0 0
        %2939 = vmatmul.mubr.bf16.gmra.mrb[0].mxu0 %v2794
        %v2940 = vpop.f32.mrb[0].mxu0
        %v2941 = vadd.f32 0.0, %v2940
        %v2942 = vpop.f32.mrb[0].mxu0
        %v2943 = vpop.f32.mrb[0].mxu0
        %v2944 = vadd.f32 0.0, %v2943
        %v2945 = vpop.f32.mrb[0].mxu0
        %2946 = vmatprep.mubr.bf16.mxu0 0
        %2947 = vmatmul.mubr.bf16.gmra.mrb[0].mxu0 %v2795
        %v2948 = vpop.f32.mrb[0].mxu0
        %v2949 = vadd.f32 0.0, %v2948
        %v2950 = vpop.f32.mrb[0].mxu0
        %v2951 = vpop.f32.mrb[0].mxu0
        %v2952 = vadd.f32 0.0, %v2951
        %v2953 = vpop.f32.mrb[0].mxu0
        %2954 = vmatprep.mubr.bf16.mxu0 0
        %2955 = vmatmul.mubr.bf16.gmra.mrb[0].mxu0 %v2796
        %v2956 = vpop.f32.mrb[0].mxu0
        %v2957 = vadd.f32 0.0, %v2956
        %v2958 = vpop.f32.mrb[0].mxu0
        %v2959 = vpop.f32.mrb[0].mxu0
        %v2960 = vadd.f32 0.0, %v2959
        %v2961 = vpop.f32.mrb[0].mxu0
        %2962 = vmatprep.mubr.bf16.mxu0 0
        %2963 = vmatmul.mubr.bf16.gmra.mrb[0].mxu0 %v2797
        %v2964 = vpop.f32.mrb[0].mxu0
        %v2965 = vadd.f32 0.0, %v2964
        %v2966 = vpop.f32.mrb[0].mxu0
        %v2967 = vpop.f32.mrb[0].mxu0
        %v2968 = vadd.f32 0.0, %v2967
        %v2969 = vpop.f32.mrb[0].mxu0
        %2970 = vmatprep.mubr.bf16.mxu0 0
        %2971 = vmatmul.mubr.bf16.gmra.mrb[0].mxu0 %v2798
        %v2972 = vpop.f32.mrb[0].mxu0
        %v2973 = vadd.f32 0.0, %v2972
        %v2974 = vpop.f32.mrb[0].mxu0
        %v2975 = vpop.f32.mrb[0].mxu0
        %v2976 = vadd.f32 0.0, %v2975
        %v2977 = vpop.f32.mrb[0].mxu0
        %2978 = vmatprep.mubr.bf16.mxu0 0
        %2979 = vmatmul.mubr.bf16.gmra.mrb[0].mxu0 %v2799
        %v2980 = vpop.f32.mrb[0].mxu0
        %v2981 = vadd.f32 0.0, %v2980
        %v2982 = vpop.f32.mrb[0].mxu0
        %v2983 = vpop.f32.mrb[0].mxu0
        %v2984 = vadd.f32 0.0, %v2983
        %v2985 = vpop.f32.mrb[0].mxu0
        %2986 = vmatprep.mubr.bf16.mxu0 0
        %2987 = vmatmul.mubr.bf16.gmra.mrb[0].mxu0 %v2800
        %v2988 = vpop.f32.mrb[0].mxu0
        %v2989 = vadd.f32 0.0, %v2988
        %v2990 = vpop.f32.mrb[0].mxu0
        %v2991 = vpop.f32.mrb[0].mxu0
        %v2992 = vadd.f32 0.0, %v2991
        %v2993 = vpop.f32.mrb[0].mxu0
        %2994 = vdwg.mxu0
        %v2995 = vpack.c.bf16 %v1684, %v1680
        %v2996 = vpack.c.bf16 %v1694, %v1690
        %v2997 = vpack.c.bf16 %v1704, %v1700
        %v2998 = vpack.c.bf16 %v1714, %v1710
        %v2999 = vpack.c.bf16 %v1724, %v1720
        %v3000 = vpack.c.bf16 %v1734, %v1730
        %v3001 = vpack.c.bf16 %v1744, %v1740
        %v3002 = vpack.c.bf16 %v1754, %v1750
        %v3003 = vpack.c.bf16 %v1764, %v1760
        %v3004 = vpack.c.bf16 %v1774, %v1770
        %v3005 = vpack.c.bf16 %v1784, %v1780
        %v3006 = vpack.c.bf16 %v1794, %v1790
        %v3007 = vpack.c.bf16 %v1804, %v1800
        %v3008 = vpack.c.bf16 %v1814, %v1810
        %v3009 = vpack.c.bf16 %v1824, %v1820
        %v3010 = vpack.c.bf16 %v1834, %v1830
        %v3011 = vpack.c.bf16 %v1877, %v1873
        %v3012 = vpack.c.bf16 %v1887, %v1883
        %v3013 = vpack.c.bf16 %v1897, %v1893
        %v3014 = vpack.c.bf16 %v1907, %v1903
        %v3015 = vpack.c.bf16 %v1917, %v1913
        %v3016 = vpack.c.bf16 %v1927, %v1923
        %v3017 = vpack.c.bf16 %v1937, %v1933
        %v3018 = vpack.c.bf16 %v1947, %v1943
        %v3019 = vpack.c.bf16 %v1957, %v1953
        %v3020 = vpack.c.bf16 %v1967, %v1963
        %v3021 = vpack.c.bf16 %v1977, %v1973
        %v3022 = vpack.c.bf16 %v1987, %v1983
        %v3023 = vpack.c.bf16 %v1997, %v1993
        %v3024 = vpack.c.bf16 %v2007, %v2003
        %v3025 = vpack.c.bf16 %v2017, %v2013
        %v3026 = vpack.c.bf16 %v2027, %v2023
        %v3027 = vpack.c.bf16 %v2070, %v2066
        %v3028 = vpack.c.bf16 %v2080, %v2076
        %v3029 = vpack.c.bf16 %v2090, %v2086
        %v3030 = vpack.c.bf16 %v2100, %v2096
        %v3031 = vpack.c.bf16 %v2110, %v2106
        %v3032 = vpack.c.bf16 %v2120, %v2116
        %v3033 = vpack.c.bf16 %v2130, %v2126
        %v3034 = vpack.c.bf16 %v2140, %v2136
        %v3035 = vpack.c.bf16 %v2150, %v2146
        %v3036 = vpack.c.bf16 %v2160, %v2156
        %v3037 = vpack.c.bf16 %v2170, %v2166
        %v3038 = vpack.c.bf16 %v2180, %v2176
        %v3039 = vpack.c.bf16 %v2190, %v2186
        %v3040 = vpack.c.bf16 %v2200, %v2196
        %v3041 = vpack.c.bf16 %v2210, %v2206
        %v3042 = vpack.c.bf16 %v2220, %v2216
        %3043 = vmatprep.subr.bf16.mxu0 0
        %3044 = vmatpush1.bf16.xpose.msra.mxu0 %v3011
        %3045 = vmatprep.subr.bf16.mxu0 0
        %3046 = vmatpush1.bf16.xpose.msra.mxu0 %v3012
        %3047 = vmatprep.subr.bf16.mxu0 0
        %3048 = vmatpush1.bf16.xpose.msra.mxu0 %v3013
        %3049 = vmatprep.subr.bf16.mxu0 0
        %3050 = vmatpush1.bf16.xpose.msra.mxu0 %v3014
        %3051 = vmatprep.subr.bf16.mxu0 0
        %3052 = vmatpush1.bf16.xpose.msra.mxu0 %v3015
        %3053 = vmatprep.subr.bf16.mxu0 0
        %3054 = vmatpush1.bf16.xpose.msra.mxu0 %v3016
        %3055 = vmatprep.subr.bf16.mxu0 0
        %3056 = vmatpush1.bf16.xpose.msra.mxu0 %v3017
        %3057 = vmatprep.subr.bf16.mxu0 0
        %3058 = vmatpush1.bf16.xpose.msra.mxu0 %v3018
        %3059 = vmatprep.subr.bf16.mxu0 0
        %3060 = vmatpush1.bf16.xpose.msra.mxu0 0
        %3061 = vmatprep.subr.bf16.mxu0 0
        %3062 = vmatpush1.bf16.xpose.msra.mxu0 0
        %3063 = vmatprep.subr.bf16.mxu0 0
        %3064 = vmatpush1.bf16.xpose.msra.mxu0 0
        %3065 = vmatprep.subr.bf16.mxu0 0
        %3066 = vmatpush1.bf16.xpose.msra.mxu0 0
        %3067 = vmatprep.subr.bf16.mxu0 0
        %3068 = vmatpush1.bf16.xpose.msra.mxu0 0
        %3069 = vmatprep.subr.bf16.mxu0 0
        %3070 = vmatpush1.bf16.xpose.msra.mxu0 0
        %3071 = vmatprep.subr.bf16.mxu0 0
        %3072 = vmatpush1.bf16.xpose.msra.mxu0 0
        %3073 = vmatprep.subr.bf16.mxu0 0
        %3074 = vmatpush1.bf16.xpose.msra.mxu0 0
        %3075 = vmatprep.mubr.bf16.mxu0 0
        %3076 = vmatmul.mubr.bf16.gmra.mrb[0].mxu0 %v2995
        %v3077 = vpop.f32.mrb[0].mxu0
        %v3078 = vadd.f32 %v1275, %v3077
        %v3079 = vpop.f32.mrb[0].mxu0
        %v3080 = vpop.f32.mrb[0].mxu0
        %v3081 = vadd.f32 %v1276, %v3080
        %v3082 = vpop.f32.mrb[0].mxu0
        %3083 = vmatprep.mubr.bf16.mxu0 0
        %3084 = vmatmul.mubr.bf16.gmra.mrb[0].mxu0 %v2996
        %v3085 = vpop.f32.mrb[0].mxu0
        %v3086 = vadd.f32 %v1277, %v3085
        %v3087 = vpop.f32.mrb[0].mxu0
        %v3088 = vpop.f32.mrb[0].mxu0
        %v3089 = vadd.f32 %v1278, %v3088
        %v3090 = vpop.f32.mrb[0].mxu0
        %3091 = vmatprep.mubr.bf16.mxu0 0
        %3092 = vmatmul.mubr.bf16.gmra.mrb[0].mxu0 %v2997
        %v3093 = vpop.f32.mrb[0].mxu0
        %v3094 = vadd.f32 %v1279, %v3093
        %v3095 = vpop.f32.mrb[0].mxu0
        %v3096 = vpop.f32.mrb[0].mxu0
        %v3097 = vadd.f32 %v1280, %v3096
        %v3098 = vpop.f32.mrb[0].mxu0
        %3099 = vmatprep.mubr.bf16.mxu0 0
        %3100 = vmatmul.mubr.bf16.gmra.mrb[0].mxu0 %v2998
        %v3101 = vpop.f32.mrb[0].mxu0
        %v3102 = vadd.f32 %v1281, %v3101
        %v3103 = vpop.f32.mrb[0].mxu0
        %v3104 = vpop.f32.mrb[0].mxu0
        %v3105 = vadd.f32 %v1282, %v3104
        %v3106 = vpop.f32.mrb[0].mxu0
        %3107 = vmatprep.mubr.bf16.mxu0 0
        %3108 = vmatmul.mubr.bf16.gmra.mrb[0].mxu0 %v2999
        %v3109 = vpop.f32.mrb[0].mxu0
        %v3110 = vadd.f32 %v1283, %v3109
        %v3111 = vpop.f32.mrb[0].mxu0
        %v3112 = vpop.f32.mrb[0].mxu0
        %v3113 = vadd.f32 %v1284, %v3112
        %v3114 = vpop.f32.mrb[0].mxu0
        %3115 = vmatprep.mubr.bf16.mxu0 0
        %3116 = vmatmul.mubr.bf16.gmra.mrb[0].mxu0 %v3000
        %v3117 = vpop.f32.mrb[0].mxu0
        %v3118 = vadd.f32 %v1285, %v3117
        %v3119 = vpop.f32.mrb[0].mxu0
        %v3120 = vpop.f32.mrb[0].mxu0
        %v3121 = vadd.f32 %v1286, %v3120
        %v3122 = vpop.f32.mrb[0].mxu0
        %3123 = vmatprep.mubr.bf16.mxu0 0
        %3124 = vmatmul.mubr.bf16.gmra.mrb[0].mxu0 %v3001
        %v3125 = vpop.f32.mrb[0].mxu0
        %v3126 = vadd.f32 %v1287, %v3125
        %v3127 = vpop.f32.mrb[0].mxu0
        %v3128 = vpop.f32.mrb[0].mxu0
        %v3129 = vadd.f32 %v1288, %v3128
        %v3130 = vpop.f32.mrb[0].mxu0
        %3131 = vmatprep.mubr.bf16.mxu0 0
        %3132 = vmatmul.mubr.bf16.gmra.mrb[0].mxu0 %v3002
        %v3133 = vpop.f32.mrb[0].mxu0
        %v3134 = vadd.f32 %v1289, %v3133
        %v3135 = vpop.f32.mrb[0].mxu0
        %v3136 = vpop.f32.mrb[0].mxu0
        %v3137 = vadd.f32 %v1290, %v3136
        %v3138 = vpop.f32.mrb[0].mxu0
        %3139 = vdwg.mxu0
        %3140 = vmatprep.subr.bf16.mxu0 0
        %3141 = vmatpush1.bf16.xpose.msra.mxu0 %v3019
        %3142 = vmatprep.subr.bf16.mxu0 0
        %3143 = vmatpush1.bf16.xpose.msra.mxu0 %v3020
        %3144 = vmatprep.subr.bf16.mxu0 0
        %3145 = vmatpush1.bf16.xpose.msra.mxu0 %v3021
        %3146 = vmatprep.subr.bf16.mxu0 0
        %3147 = vmatpush1.bf16.xpose.msra.mxu0 %v3022
        %3148 = vmatprep.subr.bf16.mxu0 0
        %3149 = vmatpush1.bf16.xpose.msra.mxu0 %v3023
        %3150 = vmatprep.subr.bf16.mxu0 0
        %3151 = vmatpush1.bf16.xpose.msra.mxu0 %v3024
        %3152 = vmatprep.subr.bf16.mxu0 0
        %3153 = vmatpush1.bf16.xpose.msra.mxu0 %v3025
        %3154 = vmatprep.subr.bf16.mxu0 0
        %3155 = vmatpush1.bf16.xpose.msra.mxu0 %v3026
        %3156 = vmatprep.subr.bf16.mxu0 0
        %3157 = vmatpush1.bf16.xpose.msra.mxu0 0
        %3158 = vmatprep.subr.bf16.mxu0 0
        %3159 = vmatpush1.bf16.xpose.msra.mxu0 0
        %3160 = vmatprep.subr.bf16.mxu0 0
        %3161 = vmatpush1.bf16.xpose.msra.mxu0 0
        %3162 = vmatprep.subr.bf16.mxu0 0
        %3163 = vmatpush1.bf16.xpose.msra.mxu0 0
        %3164 = vmatprep.subr.bf16.mxu0 0
        %3165 = vmatpush1.bf16.xpose.msra.mxu0 0
        %3166 = vmatprep.subr.bf16.mxu0 0
        %3167 = vmatpush1.bf16.xpose.msra.mxu0 0
        %3168 = vmatprep.subr.bf16.mxu0 0
        %3169 = vmatpush1.bf16.xpose.msra.mxu0 0
        %3170 = vmatprep.subr.bf16.mxu0 0
        %3171 = vmatpush1.bf16.xpose.msra.mxu0 0
        %3172 = vmatprep.mubr.bf16.mxu0 0
        %3173 = vmatmul.mubr.bf16.gmra.mrb[0].mxu0 %v3003
        %v3174 = vpop.f32.mrb[0].mxu0
        %v3175 = vadd.f32 %v1291, %v3174
        %v3176 = vpop.f32.mrb[0].mxu0
        %v3177 = vpop.f32.mrb[0].mxu0
        %v3178 = vadd.f32 %v1292, %v3177
        %v3179 = vpop.f32.mrb[0].mxu0
        %3180 = vmatprep.mubr.bf16.mxu0 0
        %3181 = vmatmul.mubr.bf16.gmra.mrb[0].mxu0 %v3004
        %v3182 = vpop.f32.mrb[0].mxu0
        %v3183 = vadd.f32 %v1293, %v3182
        %v3184 = vpop.f32.mrb[0].mxu0
        %v3185 = vpop.f32.mrb[0].mxu0
        %v3186 = vadd.f32 %v1294, %v3185
        %v3187 = vpop.f32.mrb[0].mxu0
        %3188 = vmatprep.mubr.bf16.mxu0 0
        %3189 = vmatmul.mubr.bf16.gmra.mrb[0].mxu0 %v3005
        %v3190 = vpop.f32.mrb[0].mxu0
        %v3191 = vadd.f32 %v1295, %v3190
        %v3192 = vpop.f32.mrb[0].mxu0
        %v3193 = vpop.f32.mrb[0].mxu0
        %v3194 = vadd.f32 %v1296, %v3193
        %v3195 = vpop.f32.mrb[0].mxu0
        %3196 = vmatprep.mubr.bf16.mxu0 0
        %3197 = vmatmul.mubr.bf16.gmra.mrb[0].mxu0 %v3006
        %v3198 = vpop.f32.mrb[0].mxu0
        %v3199 = vadd.f32 %v1297, %v3198
        %v3200 = vpop.f32.mrb[0].mxu0
        %v3201 = vpop.f32.mrb[0].mxu0
        %v3202 = vadd.f32 %v1298, %v3201
        %v3203 = vpop.f32.mrb[0].mxu0
        %3204 = vmatprep.mubr.bf16.mxu0 0
        %3205 = vmatmul.mubr.bf16.gmra.mrb[0].mxu0 %v3007
        %v3206 = vpop.f32.mrb[0].mxu0
        %v3207 = vadd.f32 %v1299, %v3206
        %v3208 = vpop.f32.mrb[0].mxu0
        %v3209 = vpop.f32.mrb[0].mxu0
        %v3210 = vadd.f32 %v1300, %v3209
        %v3211 = vpop.f32.mrb[0].mxu0
        %3212 = vmatprep.mubr.bf16.mxu0 0
        %3213 = vmatmul.mubr.bf16.gmra.mrb[0].mxu0 %v3008
        %v3214 = vpop.f32.mrb[0].mxu0
        %v3215 = vadd.f32 %v1301, %v3214
        %v3216 = vpop.f32.mrb[0].mxu0
        %v3217 = vpop.f32.mrb[0].mxu0
        %v3218 = vadd.f32 %v1302, %v3217
        %v3219 = vpop.f32.mrb[0].mxu0
        %3220 = vmatprep.mubr.bf16.mxu0 0
        %3221 = vmatmul.mubr.bf16.gmra.mrb[0].mxu0 %v3009
        %v3222 = vpop.f32.mrb[0].mxu0
        %v3223 = vadd.f32 %v1303, %v3222
        %v3224 = vpop.f32.mrb[0].mxu0
        %v3225 = vpop.f32.mrb[0].mxu0
        %v3226 = vadd.f32 %v1304, %v3225
        %v3227 = vpop.f32.mrb[0].mxu0
        %3228 = vmatprep.mubr.bf16.mxu0 0
        %3229 = vmatmul.mubr.bf16.gmra.mrb[0].mxu0 %v3010
        %v3230 = vpop.f32.mrb[0].mxu0
        %v3231 = vadd.f32 %v1305, %v3230
        %v3232 = vpop.f32.mrb[0].mxu0
        %v3233 = vpop.f32.mrb[0].mxu0
        %v3234 = vadd.f32 %v1306, %v3233
        %v3235 = vpop.f32.mrb[0].mxu0
        %3236 = vdwg.mxu0
        %3237 = vmax.xlane.f32.xlu0 %v3078
        %v3238 = vpop.xlane.xlu0 %3237
        %3239 = vmax.xlane.f32.xlu0 %v3081
        %v3240 = vpop.xlane.xlu0 %3239
        %3241 = vmax.xlane.f32.xlu0 %v3086
        %v3242 = vpop.xlane.xlu0 %3241
        %3243 = vmax.xlane.f32.xlu0 %v3089
        %v3244 = vpop.xlane.xlu0 %3243
        %3245 = vmax.xlane.f32.xlu0 %v3094
        %v3246 = vpop.xlane.xlu0 %3245
        %3247 = vmax.xlane.f32.xlu0 %v3097
        %v3248 = vpop.xlane.xlu0 %3247
        %3249 = vmax.xlane.f32.xlu0 %v3102
        %v3250 = vpop.xlane.xlu0 %3249
        %3251 = vmax.xlane.f32.xlu0 %v3105
        %v3252 = vpop.xlane.xlu0 %3251
        %3253 = vmax.xlane.f32.xlu0 %v3110
        %v3254 = vpop.xlane.xlu0 %3253
        %3255 = vmax.xlane.f32.xlu0 %v3113
        %v3256 = vpop.xlane.xlu0 %3255
        %3257 = vmax.xlane.f32.xlu0 %v3118
        %v3258 = vpop.xlane.xlu0 %3257
        %3259 = vmax.xlane.f32.xlu0 %v3121
        %v3260 = vpop.xlane.xlu0 %3259
        %3261 = vmax.xlane.f32.xlu0 %v3126
        %v3262 = vpop.xlane.xlu0 %3261
        %3263 = vmax.xlane.f32.xlu0 %v3129
        %v3264 = vpop.xlane.xlu0 %3263
        %3265 = vmax.xlane.f32.xlu0 %v3134
        %v3266 = vpop.xlane.xlu0 %3265
        %3267 = vmax.xlane.f32.xlu0 %v3137
        %v3268 = vpop.xlane.xlu0 %3267
        %3269 = vmax.xlane.f32.xlu0 %v3175
        %v3270 = vpop.xlane.xlu0 %3269
        %3271 = vmax.xlane.f32.xlu0 %v3178
        %v3272 = vpop.xlane.xlu0 %3271
        %3273 = vmax.xlane.f32.xlu0 %v3183
        %v3274 = vpop.xlane.xlu0 %3273
        %3275 = vmax.xlane.f32.xlu0 %v3186
        %v3276 = vpop.xlane.xlu0 %3275
        %3277 = vmax.xlane.f32.xlu0 %v3191
        %v3278 = vpop.xlane.xlu0 %3277
        %3279 = vmax.xlane.f32.xlu0 %v3194
        %v3280 = vpop.xlane.xlu0 %3279
        %3281 = vmax.xlane.f32.xlu0 %v3199
        %v3282 = vpop.xlane.xlu0 %3281
        %3283 = vmax.xlane.f32.xlu0 %v3202
        %v3284 = vpop.xlane.xlu0 %3283
        %3285 = vmax.xlane.f32.xlu0 %v3207
        %v3286 = vpop.xlane.xlu0 %3285
        %3287 = vmax.xlane.f32.xlu0 %v3210
        %v3288 = vpop.xlane.xlu0 %3287
        %3289 = vmax.xlane.f32.xlu0 %v3215
        %v3290 = vpop.xlane.xlu0 %3289
        %3291 = vmax.xlane.f32.xlu0 %v3218
        %v3292 = vpop.xlane.xlu0 %3291
        %3293 = vmax.xlane.f32.xlu0 %v3223
        %v3294 = vpop.xlane.xlu0 %3293
        %3295 = vmax.xlane.f32.xlu0 %v3226
        %v3296 = vpop.xlane.xlu0 %3295
        %3297 = vmax.xlane.f32.xlu0 %v3231
        %v3298 = vpop.xlane.xlu0 %3297
        %3299 = vmax.xlane.f32.xlu0 %v3234
        %v3300 = vpop.xlane.xlu0 %3299
        %v3301 = vsub.f32 %v3078, %v3238
        %v3302 = vsub.f32 %v3081, %v3240
        %v3303 = vsub.f32 %v3086, %v3242
        %v3304 = vsub.f32 %v3089, %v3244
        %v3305 = vsub.f32 %v3094, %v3246
        %v3306 = vsub.f32 %v3097, %v3248
        %v3307 = vsub.f32 %v3102, %v3250
        %v3308 = vsub.f32 %v3105, %v3252
        %v3309 = vsub.f32 %v3110, %v3254
        %v3310 = vsub.f32 %v3113, %v3256
        %v3311 = vsub.f32 %v3118, %v3258
        %v3312 = vsub.f32 %v3121, %v3260
        %v3313 = vsub.f32 %v3126, %v3262
        %v3314 = vsub.f32 %v3129, %v3264
        %v3315 = vsub.f32 %v3134, %v3266
        %v3316 = vsub.f32 %v3137, %v3268
        %v3317 = vsub.f32 %v3175, %v3270
        %v3318 = vsub.f32 %v3178, %v3272
        %v3319 = vsub.f32 %v3183, %v3274
        %v3320 = vsub.f32 %v3186, %v3276
        %v3321 = vsub.f32 %v3191, %v3278
        %v3322 = vsub.f32 %v3194, %v3280
        %v3323 = vsub.f32 %v3199, %v3282
        %v3324 = vsub.f32 %v3202, %v3284
        %v3325 = vsub.f32 %v3207, %v3286
        %v3326 = vsub.f32 %v3210, %v3288
        %v3327 = vsub.f32 %v3215, %v3290
        %v3328 = vsub.f32 %v3218, %v3292
        %v3329 = vsub.f32 %v3223, %v3294
        %v3330 = vsub.f32 %v3226, %v3296
        %v3331 = vsub.f32 %v3231, %v3298
        %v3332 = vsub.f32 %v3234, %v3300
        %v3333 = vmul.f32 %v3301, 1.442695
        %v3334 = vpow.pop %v3333
        %v3335 = vmul.f32 %v3302, 1.442695
        %v3336 = vpow.pop %v3335
        %v3337 = vmul.f32 %v3303, 1.442695
        %v3338 = vpow.pop %v3337
        %v3339 = vmul.f32 %v3304, 1.442695
        %v3340 = vpow.pop %v3339
        %v3341 = vmul.f32 %v3305, 1.442695
        %v3342 = vpow.pop %v3341
        %v3343 = vmul.f32 %v3306, 1.442695
        %v3344 = vpow.pop %v3343
        %v3345 = vmul.f32 %v3307, 1.442695
        %v3346 = vpow.pop %v3345
        %v3347 = vmul.f32 %v3308, 1.442695
        %v3348 = vpow.pop %v3347
        %v3349 = vmul.f32 %v3309, 1.442695
        %v3350 = vpow.pop %v3349
        %v3351 = vmul.f32 %v3310, 1.442695
        %v3352 = vpow.pop %v3351
        %v3353 = vmul.f32 %v3311, 1.442695
        %v3354 = vpow.pop %v3353
        %v3355 = vmul.f32 %v3312, 1.442695
        %v3356 = vpow.pop %v3355
        %v3357 = vmul.f32 %v3313, 1.442695
        %v3358 = vpow.pop %v3357
        %v3359 = vmul.f32 %v3314, 1.442695
        %v3360 = vpow.pop %v3359
        %v3361 = vmul.f32 %v3315, 1.442695
        %v3362 = vpow.pop %v3361
        %v3363 = vmul.f32 %v3316, 1.442695
        %v3364 = vpow.pop %v3363
        %v3365 = vmul.f32 %v3317, 1.442695
        %v3366 = vpow.pop %v3365
        %v3367 = vmul.f32 %v3318, 1.442695
        %v3368 = vpow.pop %v3367
        %v3369 = vmul.f32 %v3319, 1.442695
        %v3370 = vpow.pop %v3369
        %v3371 = vmul.f32 %v3320, 1.442695
        %v3372 = vpow.pop %v3371
        %v3373 = vmul.f32 %v3321, 1.442695
        %v3374 = vpow.pop %v3373
        %v3375 = vmul.f32 %v3322, 1.442695
        %v3376 = vpow.pop %v3375
        %v3377 = vmul.f32 %v3323, 1.442695
        %v3378 = vpow.pop %v3377
        %v3379 = vmul.f32 %v3324, 1.442695
        %v3380 = vpow.pop %v3379
        %v3381 = vmul.f32 %v3325, 1.442695
        %v3382 = vpow.pop %v3381
        %v3383 = vmul.f32 %v3326, 1.442695
        %v3384 = vpow.pop %v3383
        %v3385 = vmul.f32 %v3327, 1.442695
        %v3386 = vpow.pop %v3385
        %v3387 = vmul.f32 %v3328, 1.442695
        %v3388 = vpow.pop %v3387
        %v3389 = vmul.f32 %v3329, 1.442695
        %v3390 = vpow.pop %v3389
        %v3391 = vmul.f32 %v3330, 1.442695
        %v3392 = vpow.pop %v3391
        %v3393 = vmul.f32 %v3331, 1.442695
        %v3394 = vpow.pop %v3393
        %v3395 = vmul.f32 %v3332, 1.442695
        %v3396 = vpow.pop %v3395
        %3397 = vadd.xlane.f32.xlu0 %v3334
        %v3398 = vpop.xlane.xlu0 %3397
        %3399 = vadd.xlane.f32.xlu0 %v3336
        %v3400 = vpop.xlane.xlu0 %3399
        %3401 = vadd.xlane.f32.xlu0 %v3338
        %v3402 = vpop.xlane.xlu0 %3401
        %3403 = vadd.xlane.f32.xlu0 %v3340
        %v3404 = vpop.xlane.xlu0 %3403
        %3405 = vadd.xlane.f32.xlu0 %v3342
        %v3406 = vpop.xlane.xlu0 %3405
        %3407 = vadd.xlane.f32.xlu0 %v3344
        %v3408 = vpop.xlane.xlu0 %3407
        %3409 = vadd.xlane.f32.xlu0 %v3346
        %v3410 = vpop.xlane.xlu0 %3409
        %3411 = vadd.xlane.f32.xlu0 %v3348
        %v3412 = vpop.xlane.xlu0 %3411
        %3413 = vadd.xlane.f32.xlu0 %v3350
        %v3414 = vpop.xlane.xlu0 %3413
        %3415 = vadd.xlane.f32.xlu0 %v3352
        %v3416 = vpop.xlane.xlu0 %3415
        %3417 = vadd.xlane.f32.xlu0 %v3354
        %v3418 = vpop.xlane.xlu0 %3417
        %3419 = vadd.xlane.f32.xlu0 %v3356
        %v3420 = vpop.xlane.xlu0 %3419
        %3421 = vadd.xlane.f32.xlu0 %v3358
        %v3422 = vpop.xlane.xlu0 %3421
        %3423 = vadd.xlane.f32.xlu0 %v3360
        %v3424 = vpop.xlane.xlu0 %3423
        %3425 = vadd.xlane.f32.xlu0 %v3362
        %v3426 = vpop.xlane.xlu0 %3425
        %3427 = vadd.xlane.f32.xlu0 %v3364
        %v3428 = vpop.xlane.xlu0 %3427
        %3429 = vadd.xlane.f32.xlu0 %v3366
        %v3430 = vpop.xlane.xlu0 %3429
        %3431 = vadd.xlane.f32.xlu0 %v3368
        %v3432 = vpop.xlane.xlu0 %3431
        %3433 = vadd.xlane.f32.xlu0 %v3370
        %v3434 = vpop.xlane.xlu0 %3433
        %3435 = vadd.xlane.f32.xlu0 %v3372
        %v3436 = vpop.xlane.xlu0 %3435
        %3437 = vadd.xlane.f32.xlu0 %v3374
        %v3438 = vpop.xlane.xlu0 %3437
        %3439 = vadd.xlane.f32.xlu0 %v3376
        %v3440 = vpop.xlane.xlu0 %3439
        %3441 = vadd.xlane.f32.xlu0 %v3378
        %v3442 = vpop.xlane.xlu0 %3441
        %3443 = vadd.xlane.f32.xlu0 %v3380
        %v3444 = vpop.xlane.xlu0 %3443
        %3445 = vadd.xlane.f32.xlu0 %v3382
        %v3446 = vpop.xlane.xlu0 %3445
        %3447 = vadd.xlane.f32.xlu0 %v3384
        %v3448 = vpop.xlane.xlu0 %3447
        %3449 = vadd.xlane.f32.xlu0 %v3386
        %v3450 = vpop.xlane.xlu0 %3449
        %3451 = vadd.xlane.f32.xlu0 %v3388
        %v3452 = vpop.xlane.xlu0 %3451
        %3453 = vadd.xlane.f32.xlu0 %v3390
        %v3454 = vpop.xlane.xlu0 %3453
        %3455 = vadd.xlane.f32.xlu0 %v3392
        %v3456 = vpop.xlane.xlu0 %3455
        %3457 = vadd.xlane.f32.xlu0 %v3394
        %v3458 = vpop.xlane.xlu0 %3457
        %3459 = vadd.xlane.f32.xlu0 %v3396
        %v3460 = vpop.xlane.xlu0 %3459
        %v3461 = vrcp.pop %v3398
        %v3462 = vrcp.pop %v3400
        %v3463 = vrcp.pop %v3402
        %v3464 = vrcp.pop %v3404
        %v3465 = vrcp.pop %v3406
        %v3466 = vrcp.pop %v3408
        %v3467 = vrcp.pop %v3410
        %v3468 = vrcp.pop %v3412
        %v3469 = vrcp.pop %v3414
        %v3470 = vrcp.pop %v3416
        %v3471 = vrcp.pop %v3418
        %v3472 = vrcp.pop %v3420
        %v3473 = vrcp.pop %v3422
        %v3474 = vrcp.pop %v3424
        %v3475 = vrcp.pop %v3426
        %v3476 = vrcp.pop %v3428
        %v3477 = vrcp.pop %v3430
        %v3478 = vrcp.pop %v3432
        %v3479 = vrcp.pop %v3434
        %v3480 = vrcp.pop %v3436
        %v3481 = vrcp.pop %v3438
        %v3482 = vrcp.pop %v3440
        %v3483 = vrcp.pop %v3442
        %v3484 = vrcp.pop %v3444
        %v3485 = vrcp.pop %v3446
        %v3486 = vrcp.pop %v3448
        %v3487 = vrcp.pop %v3450
        %v3488 = vrcp.pop %v3452
        %v3489 = vrcp.pop %v3454
        %v3490 = vrcp.pop %v3456
        %v3491 = vrcp.pop %v3458
        %v3492 = vrcp.pop %v3460
        %v3493 = vmul.f32 %v3334, %v3461
        %v3494 = vmul.f32 %v3336, %v3462
        %v3495 = vmul.f32 %v3338, %v3463
        %v3496 = vmul.f32 %v3340, %v3464
        %v3497 = vmul.f32 %v3342, %v3465
        %v3498 = vmul.f32 %v3344, %v3466
        %v3499 = vmul.f32 %v3346, %v3467
        %v3500 = vmul.f32 %v3348, %v3468
        %v3501 = vmul.f32 %v3350, %v3469
        %v3502 = vmul.f32 %v3352, %v3470
        %v3503 = vmul.f32 %v3354, %v3471
        %v3504 = vmul.f32 %v3356, %v3472
        %v3505 = vmul.f32 %v3358, %v3473
        %v3506 = vmul.f32 %v3360, %v3474
        %v3507 = vmul.f32 %v3362, %v3475
        %v3508 = vmul.f32 %v3364, %v3476
        %v3509 = vmul.f32 %v3366, %v3477
        %v3510 = vmul.f32 %v3368, %v3478
        %v3511 = vmul.f32 %v3370, %v3479
        %v3512 = vmul.f32 %v3372, %v3480
        %v3513 = vmul.f32 %v3374, %v3481
        %v3514 = vmul.f32 %v3376, %v3482
        %v3515 = vmul.f32 %v3378, %v3483
        %v3516 = vmul.f32 %v3380, %v3484
        %v3517 = vmul.f32 %v3382, %v3485
        %v3518 = vmul.f32 %v3384, %v3486
        %v3519 = vmul.f32 %v3386, %v3487
        %v3520 = vmul.f32 %v3388, %v3488
        %v3521 = vmul.f32 %v3390, %v3489
        %v3522 = vmul.f32 %v3392, %v3490
        %v3523 = vmul.f32 %v3394, %v3491
        %v3524 = vmul.f32 %v3396, %v3492
        %v3525 = vpack.c.bf16 %v3494, %v3493
        %v3526 = vpack.c.bf16 %v3496, %v3495
        %v3527 = vpack.c.bf16 %v3498, %v3497
        %v3528 = vpack.c.bf16 %v3500, %v3499
        %v3529 = vpack.c.bf16 %v3502, %v3501
        %v3530 = vpack.c.bf16 %v3504, %v3503
        %v3531 = vpack.c.bf16 %v3506, %v3505
        %v3532 = vpack.c.bf16 %v3508, %v3507
        %v3533 = vpack.c.bf16 %v3510, %v3509
        %v3534 = vpack.c.bf16 %v3512, %v3511
        %v3535 = vpack.c.bf16 %v3514, %v3513
        %v3536 = vpack.c.bf16 %v3516, %v3515
        %v3537 = vpack.c.bf16 %v3518, %v3517
        %v3538 = vpack.c.bf16 %v3520, %v3519
        %v3539 = vpack.c.bf16 %v3522, %v3521
        %v3540 = vpack.c.bf16 %v3524, %v3523
        %3541 = vmatprep.subr.bf16.mxu0 0
        %3542 = vmatpush1.bf16.msra.mxu0 %v3027
        %3543 = vmatprep.subr.bf16.mxu0 0
        %3544 = vmatpush1.bf16.msra.mxu0 %v3028
        %3545 = vmatprep.subr.bf16.mxu0 0
        %3546 = vmatpush1.bf16.msra.mxu0 %v3029
        %3547 = vmatprep.subr.bf16.mxu0 0
        %3548 = vmatpush1.bf16.msra.mxu0 %v3030
        %3549 = vmatprep.subr.bf16.mxu0 0
        %3550 = vmatpush1.bf16.msra.mxu0 %v3031
        %3551 = vmatprep.subr.bf16.mxu0 0
        %3552 = vmatpush1.bf16.msra.mxu0 %v3032
        %3553 = vmatprep.subr.bf16.mxu0 0
        %3554 = vmatpush1.bf16.msra.mxu0 %v3033
        %3555 = vmatprep.subr.bf16.mxu0 0
        %3556 = vmatpush1.bf16.msra.mxu0 %v3034
        %3557 = vmatprep.subr.bf16.mxu0 0
        %3558 = vmatpush1.bf16.msra.mxu0 0
        %3559 = vmatprep.subr.bf16.mxu0 0
        %3560 = vmatpush1.bf16.msra.mxu0 0
        %3561 = vmatprep.subr.bf16.mxu0 0
        %3562 = vmatpush1.bf16.msra.mxu0 0
        %3563 = vmatprep.subr.bf16.mxu0 0
        %3564 = vmatpush1.bf16.msra.mxu0 0
        %3565 = vmatprep.subr.bf16.mxu0 0
        %3566 = vmatpush1.bf16.msra.mxu0 0
        %3567 = vmatprep.subr.bf16.mxu0 0
        %3568 = vmatpush1.bf16.msra.mxu0 0
        %3569 = vmatprep.subr.bf16.mxu0 0
        %3570 = vmatpush1.bf16.msra.mxu0 0
        %3571 = vmatprep.subr.bf16.mxu0 0
        %3572 = vmatpush1.bf16.msra.mxu0 0
        %3573 = vmatprep.mubr.bf16.mxu0 0
        %3574 = vmatmul.mubr.bf16.gmra.mrb[0].mxu0 %v3525
        %v3575 = vpop.f32.mrb[0].mxu0
        %v3576 = vadd.f32 0.0, %v3575
        %v3577 = vpop.f32.mrb[0].mxu0
        %v3578 = vpop.f32.mrb[0].mxu0
        %v3579 = vadd.f32 0.0, %v3578
        %v3580 = vpop.f32.mrb[0].mxu0
        %3581 = vmatprep.mubr.bf16.mxu0 0
        %3582 = vmatmul.mubr.bf16.gmra.mrb[0].mxu0 %v3526
        %v3583 = vpop.f32.mrb[0].mxu0
        %v3584 = vadd.f32 0.0, %v3583
        %v3585 = vpop.f32.mrb[0].mxu0
        %v3586 = vpop.f32.mrb[0].mxu0
        %v3587 = vadd.f32 0.0, %v3586
        %v3588 = vpop.f32.mrb[0].mxu0
        %3589 = vmatprep.mubr.bf16.mxu0 0
        %3590 = vmatmul.mubr.bf16.gmra.mrb[0].mxu0 %v3527
        %v3591 = vpop.f32.mrb[0].mxu0
        %v3592 = vadd.f32 0.0, %v3591
        %v3593 = vpop.f32.mrb[0].mxu0
        %v3594 = vpop.f32.mrb[0].mxu0
        %v3595 = vadd.f32 0.0, %v3594
        %v3596 = vpop.f32.mrb[0].mxu0
        %3597 = vmatprep.mubr.bf16.mxu0 0
        %3598 = vmatmul.mubr.bf16.gmra.mrb[0].mxu0 %v3528
        %v3599 = vpop.f32.mrb[0].mxu0
        %v3600 = vadd.f32 0.0, %v3599
        %v3601 = vpop.f32.mrb[0].mxu0
        %v3602 = vpop.f32.mrb[0].mxu0
        %v3603 = vadd.f32 0.0, %v3602
        %v3604 = vpop.f32.mrb[0].mxu0
        %3605 = vmatprep.mubr.bf16.mxu0 0
        %3606 = vmatmul.mubr.bf16.gmra.mrb[0].mxu0 %v3529
        %v3607 = vpop.f32.mrb[0].mxu0
        %v3608 = vadd.f32 0.0, %v3607
        %v3609 = vpop.f32.mrb[0].mxu0
        %v3610 = vpop.f32.mrb[0].mxu0
        %v3611 = vadd.f32 0.0, %v3610
        %v3612 = vpop.f32.mrb[0].mxu0
        %3613 = vmatprep.mubr.bf16.mxu0 0
        %3614 = vmatmul.mubr.bf16.gmra.mrb[0].mxu0 %v3530
        %v3615 = vpop.f32.mrb[0].mxu0
        %v3616 = vadd.f32 0.0, %v3615
        %v3617 = vpop.f32.mrb[0].mxu0
        %v3618 = vpop.f32.mrb[0].mxu0
        %v3619 = vadd.f32 0.0, %v3618
        %v3620 = vpop.f32.mrb[0].mxu0
        %3621 = vmatprep.mubr.bf16.mxu0 0
        %3622 = vmatmul.mubr.bf16.gmra.mrb[0].mxu0 %v3531
        %v3623 = vpop.f32.mrb[0].mxu0
        %v3624 = vadd.f32 0.0, %v3623
        %v3625 = vpop.f32.mrb[0].mxu0
        %v3626 = vpop.f32.mrb[0].mxu0
        %v3627 = vadd.f32 0.0, %v3626
        %v3628 = vpop.f32.mrb[0].mxu0
        %3629 = vmatprep.mubr.bf16.mxu0 0
        %3630 = vmatmul.mubr.bf16.gmra.mrb[0].mxu0 %v3532
        %v3631 = vpop.f32.mrb[0].mxu0
        %v3632 = vadd.f32 0.0, %v3631
        %v3633 = vpop.f32.mrb[0].mxu0
        %v3634 = vpop.f32.mrb[0].mxu0
        %v3635 = vadd.f32 0.0, %v3634
        %v3636 = vpop.f32.mrb[0].mxu0
        %3637 = vdwg.mxu0
        %3638 = vmatprep.subr.bf16.mxu0 0
        %3639 = vmatpush1.bf16.msra.mxu0 %v3035
        %3640 = vmatprep.subr.bf16.mxu0 0
        %3641 = vmatpush1.bf16.msra.mxu0 %v3036
        %3642 = vmatprep.subr.bf16.mxu0 0
        %3643 = vmatpush1.bf16.msra.mxu0 %v3037
        %3644 = vmatprep.subr.bf16.mxu0 0
        %3645 = vmatpush1.bf16.msra.mxu0 %v3038
        %3646 = vmatprep.subr.bf16.mxu0 0
        %3647 = vmatpush1.bf16.msra.mxu0 %v3039
        %3648 = vmatprep.subr.bf16.mxu0 0
        %3649 = vmatpush1.bf16.msra.mxu0 %v3040
        %3650 = vmatprep.subr.bf16.mxu0 0
        %3651 = vmatpush1.bf16.msra.mxu0 %v3041
        %3652 = vmatprep.subr.bf16.mxu0 0
        %3653 = vmatpush1.bf16.msra.mxu0 %v3042
        %3654 = vmatprep.subr.bf16.mxu0 0
        %3655 = vmatpush1.bf16.msra.mxu0 0
        %3656 = vmatprep.subr.bf16.mxu0 0
        %3657 = vmatpush1.bf16.msra.mxu0 0
        %3658 = vmatprep.subr.bf16.mxu0 0
        %3659 = vmatpush1.bf16.msra.mxu0 0
        %3660 = vmatprep.subr.bf16.mxu0 0
        %3661 = vmatpush1.bf16.msra.mxu0 0
        %3662 = vmatprep.subr.bf16.mxu0 0
        %3663 = vmatpush1.bf16.msra.mxu0 0
        %3664 = vmatprep.subr.bf16.mxu0 0
        %3665 = vmatpush1.bf16.msra.mxu0 0
        %3666 = vmatprep.subr.bf16.mxu0 0
        %3667 = vmatpush1.bf16.msra.mxu0 0
        %3668 = vmatprep.subr.bf16.mxu0 0
        %3669 = vmatpush1.bf16.msra.mxu0 0
        %3670 = vmatprep.mubr.bf16.mxu0 0
        %3671 = vmatmul.mubr.bf16.gmra.mrb[0].mxu0 %v3533
        %v3672 = vpop.f32.mrb[0].mxu0
        %v3673 = vadd.f32 0.0, %v3672
        %v3674 = vpop.f32.mrb[0].mxu0
        %v3675 = vpop.f32.mrb[0].mxu0
        %v3676 = vadd.f32 0.0, %v3675
        %v3677 = vpop.f32.mrb[0].mxu0
        %3678 = vmatprep.mubr.bf16.mxu0 0
        %3679 = vmatmul.mubr.bf16.gmra.mrb[0].mxu0 %v3534
        %v3680 = vpop.f32.mrb[0].mxu0
        %v3681 = vadd.f32 0.0, %v3680
        %v3682 = vpop.f32.mrb[0].mxu0
        %v3683 = vpop.f32.mrb[0].mxu0
        %v3684 = vadd.f32 0.0, %v3683
        %v3685 = vpop.f32.mrb[0].mxu0
        %3686 = vmatprep.mubr.bf16.mxu0 0
        %3687 = vmatmul.mubr.bf16.gmra.mrb[0].mxu0 %v3535
        %v3688 = vpop.f32.mrb[0].mxu0
        %v3689 = vadd.f32 0.0, %v3688
        %v3690 = vpop.f32.mrb[0].mxu0
        %v3691 = vpop.f32.mrb[0].mxu0
        %v3692 = vadd.f32 0.0, %v3691
        %v3693 = vpop.f32.mrb[0].mxu0
        %3694 = vmatprep.mubr.bf16.mxu0 0
        %3695 = vmatmul.mubr.bf16.gmra.mrb[0].mxu0 %v3536
        %v3696 = vpop.f32.mrb[0].mxu0
        %v3697 = vadd.f32 0.0, %v3696
        %v3698 = vpop.f32.mrb[0].mxu0
        %v3699 = vpop.f32.mrb[0].mxu0
        %v3700 = vadd.f32 0.0, %v3699
        %v3701 = vpop.f32.mrb[0].mxu0
        %3702 = vmatprep.mubr.bf16.mxu0 0
        %3703 = vmatmul.mubr.bf16.gmra.mrb[0].mxu0 %v3537
        %v3704 = vpop.f32.mrb[0].mxu0
        %v3705 = vadd.f32 0.0, %v3704
        %v3706 = vpop.f32.mrb[0].mxu0
        %v3707 = vpop.f32.mrb[0].mxu0
        %v3708 = vadd.f32 0.0, %v3707
        %v3709 = vpop.f32.mrb[0].mxu0
        %3710 = vmatprep.mubr.bf16.mxu0 0
        %3711 = vmatmul.mubr.bf16.gmra.mrb[0].mxu0 %v3538
        %v3712 = vpop.f32.mrb[0].mxu0
        %v3713 = vadd.f32 0.0, %v3712
        %v3714 = vpop.f32.mrb[0].mxu0
        %v3715 = vpop.f32.mrb[0].mxu0
        %v3716 = vadd.f32 0.0, %v3715
        %v3717 = vpop.f32.mrb[0].mxu0
        %3718 = vmatprep.mubr.bf16.mxu0 0
        %3719 = vmatmul.mubr.bf16.gmra.mrb[0].mxu0 %v3539
        %v3720 = vpop.f32.mrb[0].mxu0
        %v3721 = vadd.f32 0.0, %v3720
        %v3722 = vpop.f32.mrb[0].mxu0
        %v3723 = vpop.f32.mrb[0].mxu0
        %v3724 = vadd.f32 0.0, %v3723
        %v3725 = vpop.f32.mrb[0].mxu0
        %3726 = vmatprep.mubr.bf16.mxu0 0
        %3727 = vmatmul.mubr.bf16.gmra.mrb[0].mxu0 %v3540
        %v3728 = vpop.f32.mrb[0].mxu0
        %v3729 = vadd.f32 0.0, %v3728
        %v3730 = vpop.f32.mrb[0].mxu0
        %v3731 = vpop.f32.mrb[0].mxu0
        %v3732 = vadd.f32 0.0, %v3731
        %v3733 = vpop.f32.mrb[0].mxu0
        %3734 = vdwg.mxu0
        %v3735 = vpack.c.bf16 %v2839, %v2836
        %v3736 = vpack.c.bf16 %v3579, %v3576
        %v3737 = vpack.c.bf16 %v2847, %v2844
        %v3738 = vpack.c.bf16 %v3587, %v3584
        %v3739 = vpack.c.bf16 %v2855, %v2852
        %v3740 = vpack.c.bf16 %v3595, %v3592
        %v3741 = vpack.c.bf16 %v2863, %v2860
        %v3742 = vpack.c.bf16 %v3603, %v3600
        %v3743 = vpack.c.bf16 %v2871, %v2868
        %v3744 = vpack.c.bf16 %v3611, %v3608
        %v3745 = vpack.c.bf16 %v2879, %v2876
        %v3746 = vpack.c.bf16 %v3619, %v3616
        %v3747 = vpack.c.bf16 %v2887, %v2884
        %v3748 = vpack.c.bf16 %v3627, %v3624
        %v3749 = vpack.c.bf16 %v2895, %v2892
        %v3750 = vpack.c.bf16 %v3635, %v3632
        %v3751 = vpack.c.bf16 %v2936, %v2933
        %v3752 = vpack.c.bf16 %v3676, %v3673
        %v3753 = vpack.c.bf16 %v2944, %v2941
        %v3754 = vpack.c.bf16 %v3684, %v3681
        %v3755 = vpack.c.bf16 %v2952, %v2949
        %v3756 = vpack.c.bf16 %v3692, %v3689
        %v3757 = vpack.c.bf16 %v2960, %v2957
        %v3758 = vpack.c.bf16 %v3700, %v3697
        %v3759 = vpack.c.bf16 %v2968, %v2965
        %v3760 = vpack.c.bf16 %v3708, %v3705
        %v3761 = vpack.c.bf16 %v2976, %v2973
        %v3762 = vpack.c.bf16 %v3716, %v3713
        %v3763 = vpack.c.bf16 %v2984, %v2981
        %v3764 = vpack.c.bf16 %v3724, %v3721
        %v3765 = vpack.c.bf16 %v2992, %v2989
        %v3766 = vpack.c.bf16 %v3732, %v3729
        %v3768 = vlaneseq
        %v3769 = vshrl.u32 %v3768, 7
        %v3770 = vsub.s32 0, %v3769
        %v3771 = vrot.slane %v2254, %v3770
        %v3805 = vunpack.c.l.b16 %v2222
        %v3806 = vunpack.c.l.b16 %v2223
        %v3807 = vunpack.c.l.b16 %v2224
        %v3808 = vunpack.c.l.b16 %v2225
        %v3809 = vunpack.c.l.b16 %v2226
        %v3810 = vunpack.c.l.b16 %v2227
        %v3811 = vunpack.c.l.b16 %v2228
        %v3812 = vunpack.c.l.b16 %v2229
        %v3813 = vunpack.c.l.b16 %v2230
        %v3814 = vunpack.c.l.b16 %v2231
        %v3815 = vunpack.c.l.b16 %v2232
        %v3816 = vunpack.c.l.b16 %v2233
        %v3817 = vunpack.c.l.b16 %v2234
        %v3818 = vunpack.c.l.b16 %v2235
        %v3819 = vunpack.c.l.b16 %v2236
        %v3820 = vunpack.c.l.b16 %v2237
        %v3821 = vunpack.c.l.b16 %v2238
        %v3822 = vunpack.c.l.b16 %v2239
        %v3823 = vunpack.c.l.b16 %v2240
        %v3824 = vunpack.c.l.b16 %v2241
        %v3825 = vunpack.c.l.b16 %v2242
        %v3826 = vunpack.c.l.b16 %v2243
        %v3827 = vunpack.c.l.b16 %v2244
        %v3828 = vunpack.c.l.b16 %v2245
        %v3829 = vunpack.c.l.b16 %v2246
        %v3830 = vunpack.c.l.b16 %v2247
        %v3831 = vunpack.c.l.b16 %v2248
        %v3832 = vunpack.c.l.b16 %v2249
        %v3833 = vunpack.c.l.b16 %v2250
        %v3834 = vunpack.c.l.b16 %v2251
        %v3835 = vunpack.c.l.b16 %v2252
        %v3836 = vunpack.c.l.b16 %v2253
        %v3837 = vpack.c.b16 %v3806, %v3805
        %v3838 = vpack.c.b16 %v3808, %v3807
        %v3839 = vpack.c.b16 %v3810, %v3809
        %v3840 = vpack.c.b16 %v3812, %v3811
        %v3841 = vpack.c.b16 %v3814, %v3813
        %v3842 = vpack.c.b16 %v3816, %v3815
        %v3843 = vpack.c.b16 %v3818, %v3817
        %v3844 = vpack.c.b16 %v3820, %v3819
        %v3845 = vpack.c.b16 %v3822, %v3821
        %v3846 = vpack.c.b16 %v3824, %v3823
        %v3847 = vpack.c.b16 %v3826, %v3825
        %v3848 = vpack.c.b16 %v3828, %v3827
        %v3849 = vpack.c.b16 %v3830, %v3829
        %v3850 = vpack.c.b16 %v3832, %v3831
        %v3851 = vpack.c.b16 %v3834, %v3833
        %v3852 = vpack.c.b16 %v3836, %v3835
        %3869 = vmatprep.subr.bf16.mxu0 0
        %3870 = vmatpush1.bf16.msra.mxu0 %v3837
        %3871 = vmatprep.subr.bf16.mxu0 0
        %3872 = vmatpush1.bf16.msra.mxu0 %v3838
        %3873 = vmatprep.subr.bf16.mxu0 0
        %3874 = vmatpush1.bf16.msra.mxu0 %v3839
        %3875 = vmatprep.subr.bf16.mxu0 0
        %3876 = vmatpush1.bf16.msra.mxu0 %v3840
        %3877 = vmatprep.subr.bf16.mxu0 0
        %3878 = vmatpush1.bf16.msra.mxu0 %v3841
        %3879 = vmatprep.subr.bf16.mxu0 0
        %3880 = vmatpush1.bf16.msra.mxu0 %v3842
        %3881 = vmatprep.subr.bf16.mxu0 0
        %3882 = vmatpush1.bf16.msra.mxu0 %v3843
        %3883 = vmatprep.subr.bf16.mxu0 0
        %3884 = vmatpush1.bf16.msra.mxu0 %v3844
        %3885 = vmatprep.subr.bf16.mxu0 0
        %3886 = vmatpush1.bf16.msra.mxu0 %v3845
        %3887 = vmatprep.subr.bf16.mxu0 0
        %3888 = vmatpush1.bf16.msra.mxu0 %v3846
        %3889 = vmatprep.subr.bf16.mxu0 0
        %3890 = vmatpush1.bf16.msra.mxu0 %v3847
        %3891 = vmatprep.subr.bf16.mxu0 0
        %3892 = vmatpush1.bf16.msra.mxu0 %v3848
        %3893 = vmatprep.subr.bf16.mxu0 0
        %3894 = vmatpush1.bf16.msra.mxu0 %v3849
        %3895 = vmatprep.subr.bf16.mxu0 0
        %3896 = vmatpush1.bf16.msra.mxu0 %v3850
        %3897 = vmatprep.subr.bf16.mxu0 0
        %3898 = vmatpush1.bf16.msra.mxu0 %v3851
        %3899 = vmatprep.subr.bf16.mxu0 0
        %3900 = vmatpush1.bf16.msra.mxu0 %v3852
        %3901 = vmatprep.mubr.bf16.mxu0 %v3736
        %3902 = vmatmul.mubr.bf16.gmra.mrb[0].mxu0 %v3735
        %v3903 = vpop.f32.mrb[0].mxu0
        %v3904 = vadd.f32 %v3771, %v3903
        %v3905 = vpop.f32.mrb[0].mxu0
        %v3906 = vpop.f32.mrb[0].mxu0
        %v3907 = vadd.f32 %v3771, %v3906
        %v3908 = vpop.f32.mrb[0].mxu0
        %3909 = vmatprep.mubr.bf16.mxu0 %v3738
        %3910 = vmatmul.mubr.bf16.gmra.mrb[0].mxu0 %v3737
        %v3911 = vpop.f32.mrb[0].mxu0
        %v3912 = vadd.f32 %v3771, %v3911
        %v3913 = vpop.f32.mrb[0].mxu0
        %v3914 = vpop.f32.mrb[0].mxu0
        %v3915 = vadd.f32 %v3771, %v3914
        %v3916 = vpop.f32.mrb[0].mxu0
        %3917 = vmatprep.mubr.bf16.mxu0 %v3740
        %3918 = vmatmul.mubr.bf16.gmra.mrb[0].mxu0 %v3739
        %v3919 = vpop.f32.mrb[0].mxu0
        %v3920 = vadd.f32 %v3771, %v3919
        %v3921 = vpop.f32.mrb[0].mxu0
        %v3922 = vpop.f32.mrb[0].mxu0
        %v3923 = vadd.f32 %v3771, %v3922
        %v3924 = vpop.f32.mrb[0].mxu0
        %3925 = vmatprep.mubr.bf16.mxu0 %v3742
        %3926 = vmatmul.mubr.bf16.gmra.mrb[0].mxu0 %v3741
        %v3927 = vpop.f32.mrb[0].mxu0
        %v3928 = vadd.f32 %v3771, %v3927
        %v3929 = vpop.f32.mrb[0].mxu0
        %v3930 = vpop.f32.mrb[0].mxu0
        %v3931 = vadd.f32 %v3771, %v3930
        %v3932 = vpop.f32.mrb[0].mxu0
        %3933 = vmatprep.mubr.bf16.mxu0 %v3744
        %3934 = vmatmul.mubr.bf16.gmra.mrb[0].mxu0 %v3743
        %v3935 = vpop.f32.mrb[0].mxu0
        %v3936 = vadd.f32 %v3771, %v3935
        %v3937 = vpop.f32.mrb[0].mxu0
        %v3938 = vpop.f32.mrb[0].mxu0
        %v3939 = vadd.f32 %v3771, %v3938
        %v3940 = vpop.f32.mrb[0].mxu0
        %3941 = vmatprep.mubr.bf16.mxu0 %v3746
        %3942 = vmatmul.mubr.bf16.gmra.mrb[0].mxu0 %v3745
        %v3943 = vpop.f32.mrb[0].mxu0
        %v3944 = vadd.f32 %v3771, %v3943
        %v3945 = vpop.f32.mrb[0].mxu0
        %v3946 = vpop.f32.mrb[0].mxu0
        %v3947 = vadd.f32 %v3771, %v3946
        %v3948 = vpop.f32.mrb[0].mxu0
        %3949 = vmatprep.mubr.bf16.mxu0 %v3748
        %3950 = vmatmul.mubr.bf16.gmra.mrb[0].mxu0 %v3747
        %v3951 = vpop.f32.mrb[0].mxu0
        %v3952 = vadd.f32 %v3771, %v3951
        %v3953 = vpop.f32.mrb[0].mxu0
        %v3954 = vpop.f32.mrb[0].mxu0
        %v3955 = vadd.f32 %v3771, %v3954
        %v3956 = vpop.f32.mrb[0].mxu0
        %3957 = vmatprep.mubr.bf16.mxu0 %v3750
        %3958 = vmatmul.mubr.bf16.gmra.mrb[0].mxu0 %v3749
        %v3959 = vpop.f32.mrb[0].mxu0
        %v3960 = vadd.f32 %v3771, %v3959
        %v3961 = vpop.f32.mrb[0].mxu0
        %v3962 = vpop.f32.mrb[0].mxu0
        %v3963 = vadd.f32 %v3771, %v3962
        %v3964 = vpop.f32.mrb[0].mxu0
        %3965 = vmatprep.mubr.bf16.mxu0 %v3752
        %3966 = vmatmul.mubr.bf16.gmra.mrb[0].mxu0 %v3751
        %v3967 = vpop.f32.mrb[0].mxu0
        %v3968 = vadd.f32 %v3771, %v3967
        %v3969 = vpop.f32.mrb[0].mxu0
        %v3970 = vpop.f32.mrb[0].mxu0
        %v3971 = vadd.f32 %v3771, %v3970
        %v3972 = vpop.f32.mrb[0].mxu0
        %3973 = vmatprep.mubr.bf16.mxu0 %v3754
        %3974 = vmatmul.mubr.bf16.gmra.mrb[0].mxu0 %v3753
        %v3975 = vpop.f32.mrb[0].mxu0
        %v3976 = vadd.f32 %v3771, %v3975
        %v3977 = vpop.f32.mrb[0].mxu0
        %v3978 = vpop.f32.mrb[0].mxu0
        %v3979 = vadd.f32 %v3771, %v3978
        %v3980 = vpop.f32.mrb[0].mxu0
        %3981 = vmatprep.mubr.bf16.mxu0 %v3756
        %3982 = vmatmul.mubr.bf16.gmra.mrb[0].mxu0 %v3755
        %v3983 = vpop.f32.mrb[0].mxu0
        %v3984 = vadd.f32 %v3771, %v3983
        %v3985 = vpop.f32.mrb[0].mxu0
        %v3986 = vpop.f32.mrb[0].mxu0
        %v3987 = vadd.f32 %v3771, %v3986
        %v3988 = vpop.f32.mrb[0].mxu0
        %3989 = vmatprep.mubr.bf16.mxu0 %v3758
        %3990 = vmatmul.mubr.bf16.gmra.mrb[0].mxu0 %v3757
        %v3991 = vpop.f32.mrb[0].mxu0
        %v3992 = vadd.f32 %v3771, %v3991
        %v3993 = vpop.f32.mrb[0].mxu0
        %v3994 = vpop.f32.mrb[0].mxu0
        %v3995 = vadd.f32 %v3771, %v3994
        %v3996 = vpop.f32.mrb[0].mxu0
        %3997 = vmatprep.mubr.bf16.mxu0 %v3760
        %3998 = vmatmul.mubr.bf16.gmra.mrb[0].mxu0 %v3759
        %v3999 = vpop.f32.mrb[0].mxu0
        %v4000 = vadd.f32 %v3771, %v3999
        %v4001 = vpop.f32.mrb[0].mxu0
        %v4002 = vpop.f32.mrb[0].mxu0
        %v4003 = vadd.f32 %v3771, %v4002
        %v4004 = vpop.f32.mrb[0].mxu0
        %4005 = vmatprep.mubr.bf16.mxu0 %v3762
        %4006 = vmatmul.mubr.bf16.gmra.mrb[0].mxu0 %v3761
        %v4007 = vpop.f32.mrb[0].mxu0
        %v4008 = vadd.f32 %v3771, %v4007
        %v4009 = vpop.f32.mrb[0].mxu0
        %v4010 = vpop.f32.mrb[0].mxu0
        %v4011 = vadd.f32 %v3771, %v4010
        %v4012 = vpop.f32.mrb[0].mxu0
        %4013 = vmatprep.mubr.bf16.mxu0 %v3764
        %4014 = vmatmul.mubr.bf16.gmra.mrb[0].mxu0 %v3763
        %v4015 = vpop.f32.mrb[0].mxu0
        %v4016 = vadd.f32 %v3771, %v4015
        %v4017 = vpop.f32.mrb[0].mxu0
        %v4018 = vpop.f32.mrb[0].mxu0
        %v4019 = vadd.f32 %v3771, %v4018
        %v4020 = vpop.f32.mrb[0].mxu0
        %4021 = vmatprep.mubr.bf16.mxu0 %v3766
        %4022 = vmatmul.mubr.bf16.gmra.mrb[0].mxu0 %v3765
        %v4023 = vpop.f32.mrb[0].mxu0
        %v4024 = vadd.f32 %v3771, %v4023
        %v4025 = vpop.f32.mrb[0].mxu0
        %v4026 = vpop.f32.mrb[0].mxu0
        %v4027 = vadd.f32 %v3771, %v4026
        %v4028 = vpop.f32.mrb[0].mxu0
        %4029 = vdwg.mxu0
        %v4030 = vadd.f32 %v3904, %v1209
        %v4031 = vadd.f32 %v3907, %v1210
        %v4032 = vadd.f32 %v3912, %v1211
        %v4033 = vadd.f32 %v3915, %v1212
        %v4034 = vadd.f32 %v3920, %v1213
        %v4035 = vadd.f32 %v3923, %v1214
        %v4036 = vadd.f32 %v3928, %v1215
        %v4037 = vadd.f32 %v3931, %v1216
        %v4038 = vadd.f32 %v3936, %v1217
        %v4039 = vadd.f32 %v3939, %v1218
        %v4040 = vadd.f32 %v3944, %v1219
        %v4041 = vadd.f32 %v3947, %v1220
        %v4042 = vadd.f32 %v3952, %v1221
        %v4043 = vadd.f32 %v3955, %v1222
        %v4044 = vadd.f32 %v3960, %v1223
        %v4045 = vadd.f32 %v3963, %v1224
        %v4046 = vadd.f32 %v3968, %v1225
        %v4047 = vadd.f32 %v3971, %v1226
        %v4048 = vadd.f32 %v3976, %v1227
        %v4049 = vadd.f32 %v3979, %v1228
        %v4050 = vadd.f32 %v3984, %v1229
        %v4051 = vadd.f32 %v3987, %v1230
        %v4052 = vadd.f32 %v3992, %v1231
        %v4053 = vadd.f32 %v3995, %v1232
        %v4054 = vadd.f32 %v4000, %v1233
        %v4055 = vadd.f32 %v4003, %v1234
        %v4056 = vadd.f32 %v4008, %v1235
        %v4057 = vadd.f32 %v4011, %v1236
        %v4058 = vadd.f32 %v4016, %v1237
        %v4059 = vadd.f32 %v4019, %v1238
        %v4060 = vadd.f32 %v4024, %v1239
        %v4061 = vadd.f32 %v4027, %v1240
        %4062 = vadd.xlane.f32.xlu0 %v4030
        %v4063 = vpop.xlane.xlu0 %4062
        %4064 = vadd.xlane.f32.xlu0 %v4031
        %v4065 = vpop.xlane.xlu0 %4064
        %4066 = vadd.xlane.f32.xlu0 %v4032
        %v4067 = vpop.xlane.xlu0 %4066
        %4068 = vadd.xlane.f32.xlu0 %v4033
        %v4069 = vpop.xlane.xlu0 %4068
        %4070 = vadd.xlane.f32.xlu0 %v4034
        %v4071 = vpop.xlane.xlu0 %4070
        %4072 = vadd.xlane.f32.xlu0 %v4035
        %v4073 = vpop.xlane.xlu0 %4072
        %4074 = vadd.xlane.f32.xlu0 %v4036
        %v4075 = vpop.xlane.xlu0 %4074
        %4076 = vadd.xlane.f32.xlu0 %v4037
        %v4077 = vpop.xlane.xlu0 %4076
        %4078 = vadd.xlane.f32.xlu0 %v4038
        %v4079 = vpop.xlane.xlu0 %4078
        %4080 = vadd.xlane.f32.xlu0 %v4039
        %v4081 = vpop.xlane.xlu0 %4080
        %4082 = vadd.xlane.f32.xlu0 %v4040
        %v4083 = vpop.xlane.xlu0 %4082
        %4084 = vadd.xlane.f32.xlu0 %v4041
        %v4085 = vpop.xlane.xlu0 %4084
        %4086 = vadd.xlane.f32.xlu0 %v4042
        %v4087 = vpop.xlane.xlu0 %4086
        %4088 = vadd.xlane.f32.xlu0 %v4043
        %v4089 = vpop.xlane.xlu0 %4088
        %4090 = vadd.xlane.f32.xlu0 %v4044
        %v4091 = vpop.xlane.xlu0 %4090
        %4092 = vadd.xlane.f32.xlu0 %v4045
        %v4093 = vpop.xlane.xlu0 %4092
        %4094 = vadd.xlane.f32.xlu0 %v4046
        %v4095 = vpop.xlane.xlu0 %4094
        %4096 = vadd.xlane.f32.xlu0 %v4047
        %v4097 = vpop.xlane.xlu0 %4096
        %4098 = vadd.xlane.f32.xlu0 %v4048
        %v4099 = vpop.xlane.xlu0 %4098
        %4100 = vadd.xlane.f32.xlu0 %v4049
        %v4101 = vpop.xlane.xlu0 %4100
        %4102 = vadd.xlane.f32.xlu0 %v4050
        %v4103 = vpop.xlane.xlu0 %4102
        %4104 = vadd.xlane.f32.xlu0 %v4051
        %v4105 = vpop.xlane.xlu0 %4104
        %4106 = vadd.xlane.f32.xlu0 %v4052
        %v4107 = vpop.xlane.xlu0 %4106
        %4108 = vadd.xlane.f32.xlu0 %v4053
        %v4109 = vpop.xlane.xlu0 %4108
        %4110 = vadd.xlane.f32.xlu0 %v4054
        %v4111 = vpop.xlane.xlu0 %4110
        %4112 = vadd.xlane.f32.xlu0 %v4055
        %v4113 = vpop.xlane.xlu0 %4112
        %4114 = vadd.xlane.f32.xlu0 %v4056
        %v4115 = vpop.xlane.xlu0 %4114
        %4116 = vadd.xlane.f32.xlu0 %v4057
        %v4117 = vpop.xlane.xlu0 %4116
        %4118 = vadd.xlane.f32.xlu0 %v4058
        %v4119 = vpop.xlane.xlu0 %4118
        %4120 = vadd.xlane.f32.xlu0 %v4059
        %v4121 = vpop.xlane.xlu0 %4120
        %4122 = vadd.xlane.f32.xlu0 %v4060
        %v4123 = vpop.xlane.xlu0 %4122
        %4124 = vadd.xlane.f32.xlu0 %v4061
        %v4125 = vpop.xlane.xlu0 %4124
        %v4126 = vrcp.pop 128.0
        %v4127 = vmul.f32 %v4063, %v4126
        %v4128 = vmul.f32 %v4065, %v4126
        %v4129 = vmul.f32 %v4067, %v4126
        %v4130 = vmul.f32 %v4069, %v4126
        %v4131 = vmul.f32 %v4071, %v4126
        %v4132 = vmul.f32 %v4073, %v4126
        %v4133 = vmul.f32 %v4075, %v4126
        %v4134 = vmul.f32 %v4077, %v4126
        %v4135 = vmul.f32 %v4079, %v4126
        %v4136 = vmul.f32 %v4081, %v4126
        %v4137 = vmul.f32 %v4083, %v4126
        %v4138 = vmul.f32 %v4085, %v4126
        %v4139 = vmul.f32 %v4087, %v4126
        %v4140 = vmul.f32 %v4089, %v4126
        %v4141 = vmul.f32 %v4091, %v4126
        %v4142 = vmul.f32 %v4093, %v4126
        %v4143 = vmul.f32 %v4095, %v4126
        %v4144 = vmul.f32 %v4097, %v4126
        %v4145 = vmul.f32 %v4099, %v4126
        %v4146 = vmul.f32 %v4101, %v4126
        %v4147 = vmul.f32 %v4103, %v4126
        %v4148 = vmul.f32 %v4105, %v4126
        %v4149 = vmul.f32 %v4107, %v4126
        %v4150 = vmul.f32 %v4109, %v4126
        %v4151 = vmul.f32 %v4111, %v4126
        %v4152 = vmul.f32 %v4113, %v4126
        %v4153 = vmul.f32 %v4115, %v4126
        %v4154 = vmul.f32 %v4117, %v4126
        %v4155 = vmul.f32 %v4119, %v4126
        %v4156 = vmul.f32 %v4121, %v4126
        %v4157 = vmul.f32 %v4123, %v4126
        %v4158 = vmul.f32 %v4125, %v4126
        %v4159 = vsub.f32 %v4030, %v4127
        %v4160 = vsub.f32 %v4031, %v4128
        %v4161 = vsub.f32 %v4032, %v4129
        %v4162 = vsub.f32 %v4033, %v4130
        %v4163 = vsub.f32 %v4034, %v4131
        %v4164 = vsub.f32 %v4035, %v4132
        %v4165 = vsub.f32 %v4036, %v4133
        %v4166 = vsub.f32 %v4037, %v4134
        %v4167 = vsub.f32 %v4038, %v4135
        %v4168 = vsub.f32 %v4039, %v4136
        %v4169 = vsub.f32 %v4040, %v4137
        %v4170 = vsub.f32 %v4041, %v4138
        %v4171 = vsub.f32 %v4042, %v4139
        %v4172 = vsub.f32 %v4043, %v4140
        %v4173 = vsub.f32 %v4044, %v4141
        %v4174 = vsub.f32 %v4045, %v4142
        %v4175 = vsub.f32 %v4046, %v4143
        %v4176 = vsub.f32 %v4047, %v4144
        %v4177 = vsub.f32 %v4048, %v4145
        %v4178 = vsub.f32 %v4049, %v4146
        %v4179 = vsub.f32 %v4050, %v4147
        %v4180 = vsub.f32 %v4051, %v4148
        %v4181 = vsub.f32 %v4052, %v4149
        %v4182 = vsub.f32 %v4053, %v4150
        %v4183 = vsub.f32 %v4054, %v4151
        %v4184 = vsub.f32 %v4055, %v4152
        %v4185 = vsub.f32 %v4056, %v4153
        %v4186 = vsub.f32 %v4057, %v4154
        %v4187 = vsub.f32 %v4058, %v4155
        %v4188 = vsub.f32 %v4059, %v4156
        %v4189 = vsub.f32 %v4060, %v4157
        %v4190 = vsub.f32 %v4061, %v4158
        %v4191 = vmul.f32 %v4159, %v4159
        %v4192 = vmul.f32 %v4160, %v4160
        %v4193 = vmul.f32 %v4161, %v4161
        %v4194 = vmul.f32 %v4162, %v4162
        %v4195 = vmul.f32 %v4163, %v4163
        %v4196 = vmul.f32 %v4164, %v4164
        %v4197 = vmul.f32 %v4165, %v4165
        %v4198 = vmul.f32 %v4166, %v4166
        %v4199 = vmul.f32 %v4167, %v4167
        %v4200 = vmul.f32 %v4168, %v4168
        %v4201 = vmul.f32 %v4169, %v4169
        %v4202 = vmul.f32 %v4170, %v4170
        %v4203 = vmul.f32 %v4171, %v4171
        %v4204 = vmul.f32 %v4172, %v4172
        %v4205 = vmul.f32 %v4173, %v4173
        %v4206 = vmul.f32 %v4174, %v4174
        %v4207 = vmul.f32 %v4175, %v4175
        %v4208 = vmul.f32 %v4176, %v4176
        %v4209 = vmul.f32 %v4177, %v4177
        %v4210 = vmul.f32 %v4178, %v4178
        %v4211 = vmul.f32 %v4179, %v4179
        %v4212 = vmul.f32 %v4180, %v4180
        %v4213 = vmul.f32 %v4181, %v4181
        %v4214 = vmul.f32 %v4182, %v4182
        %v4215 = vmul.f32 %v4183, %v4183
        %v4216 = vmul.f32 %v4184, %v4184
        %v4217 = vmul.f32 %v4185, %v4185
        %v4218 = vmul.f32 %v4186, %v4186
        %v4219 = vmul.f32 %v4187, %v4187
        %v4220 = vmul.f32 %v4188, %v4188
        %v4221 = vmul.f32 %v4189, %v4189
        %v4222 = vmul.f32 %v4190, %v4190
        %4223 = vadd.xlane.f32.xlu0 %v4191
        %v4224 = vpop.xlane.xlu0 %4223
        %4225 = vadd.xlane.f32.xlu0 %v4192
        %v4226 = vpop.xlane.xlu0 %4225
        %4227 = vadd.xlane.f32.xlu0 %v4193
        %v4228 = vpop.xlane.xlu0 %4227
        %4229 = vadd.xlane.f32.xlu0 %v4194
        %v4230 = vpop.xlane.xlu0 %4229
        %4231 = vadd.xlane.f32.xlu0 %v4195
        %v4232 = vpop.xlane.xlu0 %4231
        %4233 = vadd.xlane.f32.xlu0 %v4196
        %v4234 = vpop.xlane.xlu0 %4233
        %4235 = vadd.xlane.f32.xlu0 %v4197
        %v4236 = vpop.xlane.xlu0 %4235
        %4237 = vadd.xlane.f32.xlu0 %v4198
        %v4238 = vpop.xlane.xlu0 %4237
        %4239 = vadd.xlane.f32.xlu0 %v4199
        %v4240 = vpop.xlane.xlu0 %4239
        %4241 = vadd.xlane.f32.xlu0 %v4200
        %v4242 = vpop.xlane.xlu0 %4241
        %4243 = vadd.xlane.f32.xlu0 %v4201
        %v4244 = vpop.xlane.xlu0 %4243
        %4245 = vadd.xlane.f32.xlu0 %v4202
        %v4246 = vpop.xlane.xlu0 %4245
        %4247 = vadd.xlane.f32.xlu0 %v4203
        %v4248 = vpop.xlane.xlu0 %4247
        %4249 = vadd.xlane.f32.xlu0 %v4204
        %v4250 = vpop.xlane.xlu0 %4249
        %4251 = vadd.xlane.f32.xlu0 %v4205
        %v4252 = vpop.xlane.xlu0 %4251
        %4253 = vadd.xlane.f32.xlu0 %v4206
        %v4254 = vpop.xlane.xlu0 %4253
        %4255 = vadd.xlane.f32.xlu0 %v4207
        %v4256 = vpop.xlane.xlu0 %4255
        %4257 = vadd.xlane.f32.xlu0 %v4208
        %v4258 = vpop.xlane.xlu0 %4257
        %4259 = vadd.xlane.f32.xlu0 %v4209
        %v4260 = vpop.xlane.xlu0 %4259
        %4261 = vadd.xlane.f32.xlu0 %v4210
        %v4262 = vpop.xlane.xlu0 %4261
        %4263 = vadd.xlane.f32.xlu0 %v4211
        %v4264 = vpop.xlane.xlu0 %4263
        %4265 = vadd.xlane.f32.xlu0 %v4212
        %v4266 = vpop.xlane.xlu0 %4265
        %4267 = vadd.xlane.f32.xlu0 %v4213
        %v4268 = vpop.xlane.xlu0 %4267
        %4269 = vadd.xlane.f32.xlu0 %v4214
        %v4270 = vpop.xlane.xlu0 %4269
        %4271 = vadd.xlane.f32.xlu0 %v4215
        %v4272 = vpop.xlane.xlu0 %4271
        %4273 = vadd.xlane.f32.xlu0 %v4216
        %v4274 = vpop.xlane.xlu0 %4273
        %4275 = vadd.xlane.f32.xlu0 %v4217
        %v4276 = vpop.xlane.xlu0 %4275
        %4277 = vadd.xlane.f32.xlu0 %v4218
        %v4278 = vpop.xlane.xlu0 %4277
        %4279 = vadd.xlane.f32.xlu0 %v4219
        %v4280 = vpop.xlane.xlu0 %4279
        %4281 = vadd.xlane.f32.xlu0 %v4220
        %v4282 = vpop.xlane.xlu0 %4281
        %4283 = vadd.xlane.f32.xlu0 %v4221
        %v4284 = vpop.xlane.xlu0 %4283
        %4285 = vadd.xlane.f32.xlu0 %v4222
        %v4286 = vpop.xlane.xlu0 %4285
        %v4287 = vmul.f32 %v4224, %v4126
        %v4288 = vmul.f32 %v4226, %v4126
        %v4289 = vmul.f32 %v4228, %v4126
        %v4290 = vmul.f32 %v4230, %v4126
        %v4291 = vmul.f32 %v4232, %v4126
        %v4292 = vmul.f32 %v4234, %v4126
        %v4293 = vmul.f32 %v4236, %v4126
        %v4294 = vmul.f32 %v4238, %v4126
        %v4295 = vmul.f32 %v4240, %v4126
        %v4296 = vmul.f32 %v4242, %v4126
        %v4297 = vmul.f32 %v4244, %v4126
        %v4298 = vmul.f32 %v4246, %v4126
        %v4299 = vmul.f32 %v4248, %v4126
        %v4300 = vmul.f32 %v4250, %v4126
        %v4301 = vmul.f32 %v4252, %v4126
        %v4302 = vmul.f32 %v4254, %v4126
        %v4303 = vmul.f32 %v4256, %v4126
        %v4304 = vmul.f32 %v4258, %v4126
        %v4305 = vmul.f32 %v4260, %v4126
        %v4306 = vmul.f32 %v4262, %v4126
        %v4307 = vmul.f32 %v4264, %v4126
        %v4308 = vmul.f32 %v4266, %v4126
        %v4309 = vmul.f32 %v4268, %v4126
        %v4310 = vmul.f32 %v4270, %v4126
        %v4311 = vmul.f32 %v4272, %v4126
        %v4312 = vmul.f32 %v4274, %v4126
        %v4313 = vmul.f32 %v4276, %v4126
        %v4314 = vmul.f32 %v4278, %v4126
        %v4315 = vmul.f32 %v4280, %v4126
        %v4316 = vmul.f32 %v4282, %v4126
        %v4317 = vmul.f32 %v4284, %v4126
        %v4318 = vmul.f32 %v4286, %v4126
        %v4319 = vadd.f32 %v4287, 1e-05
        %v4320 = vadd.f32 %v4288, 1e-05
        %v4321 = vadd.f32 %v4289, 1e-05
        %v4322 = vadd.f32 %v4290, 1e-05
        %v4323 = vadd.f32 %v4291, 1e-05
        %v4324 = vadd.f32 %v4292, 1e-05
        %v4325 = vadd.f32 %v4293, 1e-05
        %v4326 = vadd.f32 %v4294, 1e-05
        %v4327 = vadd.f32 %v4295, 1e-05
        %v4328 = vadd.f32 %v4296, 1e-05
        %v4329 = vadd.f32 %v4297, 1e-05
        %v4330 = vadd.f32 %v4298, 1e-05
        %v4331 = vadd.f32 %v4299, 1e-05
        %v4332 = vadd.f32 %v4300, 1e-05
        %v4333 = vadd.f32 %v4301, 1e-05
        %v4334 = vadd.f32 %v4302, 1e-05
        %v4335 = vadd.f32 %v4303, 1e-05
        %v4336 = vadd.f32 %v4304, 1e-05
        %v4337 = vadd.f32 %v4305, 1e-05
        %v4338 = vadd.f32 %v4306, 1e-05
        %v4339 = vadd.f32 %v4307, 1e-05
        %v4340 = vadd.f32 %v4308, 1e-05
        %v4341 = vadd.f32 %v4309, 1e-05
        %v4342 = vadd.f32 %v4310, 1e-05
        %v4343 = vadd.f32 %v4311, 1e-05
        %v4344 = vadd.f32 %v4312, 1e-05
        %v4345 = vadd.f32 %v4313, 1e-05
        %v4346 = vadd.f32 %v4314, 1e-05
        %v4347 = vadd.f32 %v4315, 1e-05
        %v4348 = vadd.f32 %v4316, 1e-05
        %v4349 = vadd.f32 %v4317, 1e-05
        %v4350 = vadd.f32 %v4318, 1e-05
        %v4351 = vrsqrt.pop %v4319
        %v4352 = vrsqrt.pop %v4320
        %v4353 = vrsqrt.pop %v4321
        %v4354 = vrsqrt.pop %v4322
        %v4355 = vrsqrt.pop %v4323
        %v4356 = vrsqrt.pop %v4324
        %v4357 = vrsqrt.pop %v4325
        %v4358 = vrsqrt.pop %v4326
        %v4359 = vrsqrt.pop %v4327
        %v4360 = vrsqrt.pop %v4328
        %v4361 = vrsqrt.pop %v4329
        %v4362 = vrsqrt.pop %v4330
        %v4363 = vrsqrt.pop %v4331
        %v4364 = vrsqrt.pop %v4332
        %v4365 = vrsqrt.pop %v4333
        %v4366 = vrsqrt.pop %v4334
        %v4367 = vrsqrt.pop %v4335
        %v4368 = vrsqrt.pop %v4336
        %v4369 = vrsqrt.pop %v4337
        %v4370 = vrsqrt.pop %v4338
        %v4371 = vrsqrt.pop %v4339
        %v4372 = vrsqrt.pop %v4340
        %v4373 = vrsqrt.pop %v4341
        %v4374 = vrsqrt.pop %v4342
        %v4375 = vrsqrt.pop %v4343
        %v4376 = vrsqrt.pop %v4344
        %v4377 = vrsqrt.pop %v4345
        %v4378 = vrsqrt.pop %v4346
        %v4379 = vrsqrt.pop %v4347
        %v4380 = vrsqrt.pop %v4348
        %v4381 = vrsqrt.pop %v4349
        %v4382 = vrsqrt.pop %v4350
        %v4383 = vmul.f32 %v4159, %v4351
        %v4384 = vmul.f32 %v4160, %v4352
        %v4385 = vmul.f32 %v4161, %v4353
        %v4386 = vmul.f32 %v4162, %v4354
        %v4387 = vmul.f32 %v4163, %v4355
        %v4388 = vmul.f32 %v4164, %v4356
        %v4389 = vmul.f32 %v4165, %v4357
        %v4390 = vmul.f32 %v4166, %v4358
        %v4391 = vmul.f32 %v4167, %v4359
        %v4392 = vmul.f32 %v4168, %v4360
        %v4393 = vmul.f32 %v4169, %v4361
        %v4394 = vmul.f32 %v4170, %v4362
        %v4395 = vmul.f32 %v4171, %v4363
        %v4396 = vmul.f32 %v4172, %v4364
        %v4397 = vmul.f32 %v4173, %v4365
        %v4398 = vmul.f32 %v4174, %v4366
        %v4399 = vmul.f32 %v4175, %v4367
        %v4400 = vmul.f32 %v4176, %v4368
        %v4401 = vmul.f32 %v4177, %v4369
        %v4402 = vmul.f32 %v4178, %v4370
        %v4403 = vmul.f32 %v4179, %v4371
        %v4404 = vmul.f32 %v4180, %v4372
        %v4405 = vmul.f32 %v4181, %v4373
        %v4406 = vmul.f32 %v4182, %v4374
        %v4407 = vmul.f32 %v4183, %v4375
        %v4408 = vmul.f32 %v4184, %v4376
        %v4409 = vmul.f32 %v4185, %v4377
        %v4410 = vmul.f32 %v4186, %v4378
        %v4411 = vmul.f32 %v4187, %v4379
        %v4412 = vmul.f32 %v4188, %v4380
        %v4413 = vmul.f32 %v4189, %v4381
        %v4414 = vmul.f32 %v4190, %v4382
        %v4416 = vlaneseq
        %v4417 = vshrl.u32 %v4416, 7
        %v4418 = vsub.s32 0, %v4417
        %v4419 = vrot.slane %v1273, %v4418
        %v4421 = vmul.f32 %v4383, %v4419
        %v4422 = vmul.f32 %v4384, %v4419
        %v4423 = vmul.f32 %v4385, %v4419
        %v4424 = vmul.f32 %v4386, %v4419
        %v4425 = vmul.f32 %v4387, %v4419
        %v4426 = vmul.f32 %v4388, %v4419
        %v4427 = vmul.f32 %v4389, %v4419
        %v4428 = vmul.f32 %v4390, %v4419
        %v4429 = vmul.f32 %v4391, %v4419
        %v4430 = vmul.f32 %v4392, %v4419
        %v4431 = vmul.f32 %v4393, %v4419
        %v4432 = vmul.f32 %v4394, %v4419
        %v4433 = vmul.f32 %v4395, %v4419
        %v4434 = vmul.f32 %v4396, %v4419
        %v4435 = vmul.f32 %v4397, %v4419
        %v4436 = vmul.f32 %v4398, %v4419
        %v4437 = vmul.f32 %v4399, %v4419
        %v4438 = vmul.f32 %v4400, %v4419
        %v4439 = vmul.f32 %v4401, %v4419
        %v4440 = vmul.f32 %v4402, %v4419
        %v4441 = vmul.f32 %v4403, %v4419
        %v4442 = vmul.f32 %v4404, %v4419
        %v4443 = vmul.f32 %v4405, %v4419
        %v4444 = vmul.f32 %v4406, %v4419
        %v4445 = vmul.f32 %v4407, %v4419
        %v4446 = vmul.f32 %v4408, %v4419
        %v4447 = vmul.f32 %v4409, %v4419
        %v4448 = vmul.f32 %v4410, %v4419
        %v4449 = vmul.f32 %v4411, %v4419
        %v4450 = vmul.f32 %v4412, %v4419
        %v4451 = vmul.f32 %v4413, %v4419
        %v4452 = vmul.f32 %v4414, %v4419
        %v4454 = vlaneseq
        %v4455 = vshrl.u32 %v4454, 7
        %v4456 = vsub.s32 0, %v4455
        %v4457 = vrot.slane %v1274, %v4456
        %v4459 = vadd.f32 %v4421, %v4457
        %v4460 = vadd.f32 %v4422, %v4457
        %v4461 = vadd.f32 %v4423, %v4457
        %v4462 = vadd.f32 %v4424, %v4457
        %v4463 = vadd.f32 %v4425, %v4457
        %v4464 = vadd.f32 %v4426, %v4457
        %v4465 = vadd.f32 %v4427, %v4457
        %v4466 = vadd.f32 %v4428, %v4457
        %v4467 = vadd.f32 %v4429, %v4457
        %v4468 = vadd.f32 %v4430, %v4457
        %v4469 = vadd.f32 %v4431, %v4457
        %v4470 = vadd.f32 %v4432, %v4457
        %v4471 = vadd.f32 %v4433, %v4457
        %v4472 = vadd.f32 %v4434, %v4457
        %v4473 = vadd.f32 %v4435, %v4457
        %v4474 = vadd.f32 %v4436, %v4457
        %v4475 = vadd.f32 %v4437, %v4457
        %v4476 = vadd.f32 %v4438, %v4457
        %v4477 = vadd.f32 %v4439, %v4457
        %v4478 = vadd.f32 %v4440, %v4457
        %v4479 = vadd.f32 %v4441, %v4457
        %v4480 = vadd.f32 %v4442, %v4457
        %v4481 = vadd.f32 %v4443, %v4457
        %v4482 = vadd.f32 %v4444, %v4457
        %v4483 = vadd.f32 %v4445, %v4457
        %v4484 = vadd.f32 %v4446, %v4457
        %v4485 = vadd.f32 %v4447, %v4457
        %v4486 = vadd.f32 %v4448, %v4457
        %v4487 = vadd.f32 %v4449, %v4457
        %v4488 = vadd.f32 %v4450, %v4457
        %v4489 = vadd.f32 %v4451, %v4457
        %v4490 = vadd.f32 %v4452, %v4457
        %v4491 = vld [vmem:[%s849] sm:$0xff]
        %v4492 = vld [vmem:[%s849 + $0x8] sm:$0xff]
        %v4493 = vld [vmem:[%s849 + $0x10] sm:$0xff]
        %v4494 = vld [vmem:[%s849 + $0x18] sm:$0xff]
        %v4495 = vld [vmem:[%s849 + $0x20] sm:$0xff]
        %v4496 = vld [vmem:[%s849 + $0x28] sm:$0xff]
        %v4497 = vld [vmem:[%s849 + $0x30] sm:$0xff]
        %v4498 = vld [vmem:[%s849 + $0x38] sm:$0xff]
        %v4499 = vld [vmem:[%s849 + $0x40] sm:$0xff]
        %v4500 = vld [vmem:[%s849 + $0x48] sm:$0xff]
        %v4501 = vld [vmem:[%s849 + $0x50] sm:$0xff]
        %v4502 = vld [vmem:[%s849 + $0x58] sm:$0xff]
        %v4503 = vld [vmem:[%s849 + $0x60] sm:$0xff]
        %v4504 = vld [vmem:[%s849 + $0x68] sm:$0xff]
        %v4505 = vld [vmem:[%s849 + $0x70] sm:$0xff]
        %v4506 = vld [vmem:[%s849 + $0x78] sm:$0xff]
        %v4507 = vld [vmem:[%s1003] sm:$0x3]
        %v4508 = vpack.c.bf16 %v4460, %v4459
        %v4509 = vpack.c.bf16 %v4462, %v4461
        %v4510 = vpack.c.bf16 %v4464, %v4463
        %v4511 = vpack.c.bf16 %v4466, %v4465
        %v4512 = vpack.c.bf16 %v4468, %v4467
        %v4513 = vpack.c.bf16 %v4470, %v4469
        %v4514 = vpack.c.bf16 %v4472, %v4471
        %v4515 = vpack.c.bf16 %v4474, %v4473
        %v4516 = vpack.c.bf16 %v4476, %v4475
        %v4517 = vpack.c.bf16 %v4478, %v4477
        %v4518 = vpack.c.bf16 %v4480, %v4479
        %v4519 = vpack.c.bf16 %v4482, %v4481
        %v4520 = vpack.c.bf16 %v4484, %v4483
        %v4521 = vpack.c.bf16 %v4486, %v4485
        %v4522 = vpack.c.bf16 %v4488, %v4487
        %v4523 = vpack.c.bf16 %v4490, %v4489
        %v4525 = vlaneseq
        %v4526 = vshrl.u32 %v4525, 7
        %v4527 = vsub.s32 0, %v4526
        %v4528 = vrot.slane %v4507, %v4527
        %v4529 = vlaneseq
        %v4530 = vshrl.u32 %v4529, 7
        %v4531 = vsub.s32 1, %v4530
        %v4532 = vrot.slane %v4507, %v4531
        %v4551 = vunpack.c.l.b16 %v4491
        %v4552 = vunpack.c.h.b16 %v4491
        %v4553 = vunpack.c.l.b16 %v4492
        %v4554 = vunpack.c.h.b16 %v4492
        %v4555 = vunpack.c.l.b16 %v4493
        %v4556 = vunpack.c.h.b16 %v4493
        %v4557 = vunpack.c.l.b16 %v4494
        %v4558 = vunpack.c.h.b16 %v4494
        %v4559 = vunpack.c.l.b16 %v4495
        %v4560 = vunpack.c.h.b16 %v4495
        %v4561 = vunpack.c.l.b16 %v4496
        %v4562 = vunpack.c.h.b16 %v4496
        %v4563 = vunpack.c.l.b16 %v4497
        %v4564 = vunpack.c.h.b16 %v4497
        %v4565 = vunpack.c.l.b16 %v4498
        %v4566 = vunpack.c.h.b16 %v4498
        %v4567 = vunpack.c.l.b16 %v4499
        %v4568 = vunpack.c.h.b16 %v4499
        %v4569 = vunpack.c.l.b16 %v4500
        %v4570 = vunpack.c.h.b16 %v4500
        %v4571 = vunpack.c.l.b16 %v4501
        %v4572 = vunpack.c.h.b16 %v4501
        %v4573 = vunpack.c.l.b16 %v4502
        %v4574 = vunpack.c.h.b16 %v4502
        %v4575 = vunpack.c.l.b16 %v4503
        %v4576 = vunpack.c.h.b16 %v4503
        %v4577 = vunpack.c.l.b16 %v4504
        %v4578 = vunpack.c.h.b16 %v4504
        %v4579 = vunpack.c.l.b16 %v4505
        %v4580 = vunpack.c.h.b16 %v4505
        %v4581 = vunpack.c.l.b16 %v4506
        %v4582 = vunpack.c.h.b16 %v4506
        %v4583 = vpack.c.b16 %v4553, %v4551
        %v4584 = vpack.c.b16 %v4554, %v4552
        %v4585 = vpack.c.b16 %v4557, %v4555
        %v4586 = vpack.c.b16 %v4558, %v4556
        %v4587 = vpack.c.b16 %v4561, %v4559
        %v4588 = vpack.c.b16 %v4562, %v4560
        %v4589 = vpack.c.b16 %v4565, %v4563
        %v4590 = vpack.c.b16 %v4566, %v4564
        %v4591 = vpack.c.b16 %v4569, %v4567
        %v4592 = vpack.c.b16 %v4570, %v4568
        %v4593 = vpack.c.b16 %v4573, %v4571
        %v4594 = vpack.c.b16 %v4574, %v4572
        %v4595 = vpack.c.b16 %v4577, %v4575
        %v4596 = vpack.c.b16 %v4578, %v4576
        %v4597 = vpack.c.b16 %v4581, %v4579
        %v4598 = vpack.c.b16 %v4582, %v4580
        %4615 = vmatprep.subr.bf16.mxu0 %v4584
        %4616 = vmatpush1.bf16.msra.mxu0 %v4583
        %4617 = vmatprep.subr.bf16.mxu0 %v4586
        %4618 = vmatpush1.bf16.msra.mxu0 %v4585
        %4619 = vmatprep.subr.bf16.mxu0 %v4588
        %4620 = vmatpush1.bf16.msra.mxu0 %v4587
        %4621 = vmatprep.subr.bf16.mxu0 %v4590
        %4622 = vmatpush1.bf16.msra.mxu0 %v4589
        %4623 = vmatprep.subr.bf16.mxu0 %v4592
        %4624 = vmatpush1.bf16.msra.mxu0 %v4591
        %4625 = vmatprep.subr.bf16.mxu0 %v4594
        %4626 = vmatpush1.bf16.msra.mxu0 %v4593
        %4627 = vmatprep.subr.bf16.mxu0 %v4596
        %4628 = vmatpush1.bf16.msra.mxu0 %v4595
        %4629 = vmatprep.subr.bf16.mxu0 %v4598
        %4630 = vmatpush1.bf16.msra.mxu0 %v4597
        %4631 = vmatprep.subr.bf16.mxu0 0
        %4632 = vmatpush1.bf16.msra.mxu0 0
        %4633 = vmatprep.subr.bf16.mxu0 0
        %4634 = vmatpush1.bf16.msra.mxu0 0
        %4635 = vmatprep.subr.bf16.mxu0 0
        %4636 = vmatpush1.bf16.msra.mxu0 0
        %4637 = vmatprep.subr.bf16.mxu0 0
        %4638 = vmatpush1.bf16.msra.mxu0 0
        %4639 = vmatprep.subr.bf16.mxu0 0
        %4640 = vmatpush1.bf16.msra.mxu0 0
        %4641 = vmatprep.subr.bf16.mxu0 0
        %4642 = vmatpush1.bf16.msra.mxu0 0
        %4643 = vmatprep.subr.bf16.mxu0 0
        %4644 = vmatpush1.bf16.msra.mxu0 0
        %4645 = vmatprep.subr.bf16.mxu0 0
        %4646 = vmatpush1.bf16.msra.mxu0 0
        %4647 = vmatprep.mubr.bf16.mxu0 0
        %4648 = vmatmul.mubr.bf16.gmra.mrb[0].mxu0 %v4508
        %v4649 = vpop.f32.mrb[0].mxu0
        %v4650 = vadd.f32 %v4528, %v4649
        %v4651 = vpop.f32.mrb[0].mxu0
        %v4652 = vadd.f32 %v4532, %v4651
        %v4653 = vpop.f32.mrb[0].mxu0
        %v4654 = vadd.f32 %v4528, %v4653
        %v4655 = vpop.f32.mrb[0].mxu0
        %v4656 = vadd.f32 %v4532, %v4655
        %4657 = vmatprep.mubr.bf16.mxu0 0
        %4658 = vmatmul.mubr.bf16.gmra.mrb[0].mxu0 %v4509
        %v4659 = vpop.f32.mrb[0].mxu0
        %v4660 = vadd.f32 %v4528, %v4659
        %v4661 = vpop.f32.mrb[0].mxu0
        %v4662 = vadd.f32 %v4532, %v4661
        %v4663 = vpop.f32.mrb[0].mxu0
        %v4664 = vadd.f32 %v4528, %v4663
        %v4665 = vpop.f32.mrb[0].mxu0
        %v4666 = vadd.f32 %v4532, %v4665
        %4667 = vmatprep.mubr.bf16.mxu0 0
        %4668 = vmatmul.mubr.bf16.gmra.mrb[0].mxu0 %v4510
        %v4669 = vpop.f32.mrb[0].mxu0
        %v4670 = vadd.f32 %v4528, %v4669
        %v4671 = vpop.f32.mrb[0].mxu0
        %v4672 = vadd.f32 %v4532, %v4671
        %v4673 = vpop.f32.mrb[0].mxu0
        %v4674 = vadd.f32 %v4528, %v4673
        %v4675 = vpop.f32.mrb[0].mxu0
        %v4676 = vadd.f32 %v4532, %v4675
        %4677 = vmatprep.mubr.bf16.mxu0 0
        %4678 = vmatmul.mubr.bf16.gmra.mrb[0].mxu0 %v4511
        %v4679 = vpop.f32.mrb[0].mxu0
        %v4680 = vadd.f32 %v4528, %v4679
        %v4681 = vpop.f32.mrb[0].mxu0
        %v4682 = vadd.f32 %v4532, %v4681
        %v4683 = vpop.f32.mrb[0].mxu0
        %v4684 = vadd.f32 %v4528, %v4683
        %v4685 = vpop.f32.mrb[0].mxu0
        %v4686 = vadd.f32 %v4532, %v4685
        %4687 = vmatprep.mubr.bf16.mxu0 0
        %4688 = vmatmul.mubr.bf16.gmra.mrb[0].mxu0 %v4512
        %v4689 = vpop.f32.mrb[0].mxu0
        %v4690 = vadd.f32 %v4528, %v4689
        %v4691 = vpop.f32.mrb[0].mxu0
        %v4692 = vadd.f32 %v4532, %v4691
        %v4693 = vpop.f32.mrb[0].mxu0
        %v4694 = vadd.f32 %v4528, %v4693
        %v4695 = vpop.f32.mrb[0].mxu0
        %v4696 = vadd.f32 %v4532, %v4695
        %4697 = vmatprep.mubr.bf16.mxu0 0
        %4698 = vmatmul.mubr.bf16.gmra.mrb[0].mxu0 %v4513
        %v4699 = vpop.f32.mrb[0].mxu0
        %v4700 = vadd.f32 %v4528, %v4699
        %v4701 = vpop.f32.mrb[0].mxu0
        %v4702 = vadd.f32 %v4532, %v4701
        %v4703 = vpop.f32.mrb[0].mxu0
        %v4704 = vadd.f32 %v4528, %v4703
        %v4705 = vpop.f32.mrb[0].mxu0
        %v4706 = vadd.f32 %v4532, %v4705
        %4707 = vmatprep.mubr.bf16.mxu0 0
        %4708 = vmatmul.mubr.bf16.gmra.mrb[0].mxu0 %v4514
        %v4709 = vpop.f32.mrb[0].mxu0
        %v4710 = vadd.f32 %v4528, %v4709
        %v4711 = vpop.f32.mrb[0].mxu0
        %v4712 = vadd.f32 %v4532, %v4711
        %v4713 = vpop.f32.mrb[0].mxu0
        %v4714 = vadd.f32 %v4528, %v4713
        %v4715 = vpop.f32.mrb[0].mxu0
        %v4716 = vadd.f32 %v4532, %v4715
        %4717 = vmatprep.mubr.bf16.mxu0 0
        %4718 = vmatmul.mubr.bf16.gmra.mrb[0].mxu0 %v4515
        %v4719 = vpop.f32.mrb[0].mxu0
        %v4720 = vadd.f32 %v4528, %v4719
        %v4721 = vpop.f32.mrb[0].mxu0
        %v4722 = vadd.f32 %v4532, %v4721
        %v4723 = vpop.f32.mrb[0].mxu0
        %v4724 = vadd.f32 %v4528, %v4723
        %v4725 = vpop.f32.mrb[0].mxu0
        %v4726 = vadd.f32 %v4532, %v4725
        %4727 = vmatprep.mubr.bf16.mxu0 0
        %4728 = vmatmul.mubr.bf16.gmra.mrb[0].mxu0 %v4516
        %v4729 = vpop.f32.mrb[0].mxu0
        %v4730 = vadd.f32 %v4528, %v4729
        %v4731 = vpop.f32.mrb[0].mxu0
        %v4732 = vadd.f32 %v4532, %v4731
        %v4733 = vpop.f32.mrb[0].mxu0
        %v4734 = vadd.f32 %v4528, %v4733
        %v4735 = vpop.f32.mrb[0].mxu0
        %v4736 = vadd.f32 %v4532, %v4735
        %4737 = vmatprep.mubr.bf16.mxu0 0
        %4738 = vmatmul.mubr.bf16.gmra.mrb[0].mxu0 %v4517
        %v4739 = vpop.f32.mrb[0].mxu0
        %v4740 = vadd.f32 %v4528, %v4739
        %v4741 = vpop.f32.mrb[0].mxu0
        %v4742 = vadd.f32 %v4532, %v4741
        %v4743 = vpop.f32.mrb[0].mxu0
        %v4744 = vadd.f32 %v4528, %v4743
        %v4745 = vpop.f32.mrb[0].mxu0
        %v4746 = vadd.f32 %v4532, %v4745
        %4747 = vmatprep.mubr.bf16.mxu0 0
        %4748 = vmatmul.mubr.bf16.gmra.mrb[0].mxu0 %v4518
        %v4749 = vpop.f32.mrb[0].mxu0
        %v4750 = vadd.f32 %v4528, %v4749
        %v4751 = vpop.f32.mrb[0].mxu0
        %v4752 = vadd.f32 %v4532, %v4751
        %v4753 = vpop.f32.mrb[0].mxu0
        %v4754 = vadd.f32 %v4528, %v4753
        %v4755 = vpop.f32.mrb[0].mxu0
        %v4756 = vadd.f32 %v4532, %v4755
        %4757 = vmatprep.mubr.bf16.mxu0 0
        %4758 = vmatmul.mubr.bf16.gmra.mrb[0].mxu0 %v4519
        %v4759 = vpop.f32.mrb[0].mxu0
        %v4760 = vadd.f32 %v4528, %v4759
        %v4761 = vpop.f32.mrb[0].mxu0
        %v4762 = vadd.f32 %v4532, %v4761
        %v4763 = vpop.f32.mrb[0].mxu0
        %v4764 = vadd.f32 %v4528, %v4763
        %v4765 = vpop.f32.mrb[0].mxu0
        %v4766 = vadd.f32 %v4532, %v4765
        %4767 = vmatprep.mubr.bf16.mxu0 0
        %4768 = vmatmul.mubr.bf16.gmra.mrb[0].mxu0 %v4520
        %v4769 = vpop.f32.mrb[0].mxu0
        %v4770 = vadd.f32 %v4528, %v4769
        %v4771 = vpop.f32.mrb[0].mxu0
        %v4772 = vadd.f32 %v4532, %v4771
        %v4773 = vpop.f32.mrb[0].mxu0
        %v4774 = vadd.f32 %v4528, %v4773
        %v4775 = vpop.f32.mrb[0].mxu0
        %v4776 = vadd.f32 %v4532, %v4775
        %4777 = vmatprep.mubr.bf16.mxu0 0
        %4778 = vmatmul.mubr.bf16.gmra.mrb[0].mxu0 %v4521
        %v4779 = vpop.f32.mrb[0].mxu0
        %v4780 = vadd.f32 %v4528, %v4779
        %v4781 = vpop.f32.mrb[0].mxu0
        %v4782 = vadd.f32 %v4532, %v4781
        %v4783 = vpop.f32.mrb[0].mxu0
        %v4784 = vadd.f32 %v4528, %v4783
        %v4785 = vpop.f32.mrb[0].mxu0
        %v4786 = vadd.f32 %v4532, %v4785
        %4787 = vmatprep.mubr.bf16.mxu0 0
        %4788 = vmatmul.mubr.bf16.gmra.mrb[0].mxu0 %v4522
        %v4789 = vpop.f32.mrb[0].mxu0
        %v4790 = vadd.f32 %v4528, %v4789
        %v4791 = vpop.f32.mrb[0].mxu0
        %v4792 = vadd.f32 %v4532, %v4791
        %v4793 = vpop.f32.mrb[0].mxu0
        %v4794 = vadd.f32 %v4528, %v4793
        %v4795 = vpop.f32.mrb[0].mxu0
        %v4796 = vadd.f32 %v4532, %v4795
        %4797 = vmatprep.mubr.bf16.mxu0 0
        %4798 = vmatmul.mubr.bf16.gmra.mrb[0].mxu0 %v4523
        %v4799 = vpop.f32.mrb[0].mxu0
        %v4800 = vadd.f32 %v4528, %v4799
        %v4801 = vpop.f32.mrb[0].mxu0
        %v4802 = vadd.f32 %v4532, %v4801
        %v4803 = vpop.f32.mrb[0].mxu0
        %v4804 = vadd.f32 %v4528, %v4803
        %v4805 = vpop.f32.mrb[0].mxu0
        %v4806 = vadd.f32 %v4532, %v4805
        %4807 = vdwg.mxu0
        %v4808 = vld [vmem:[%s858] sm:$0xff]
        %v4809 = vld [vmem:[%s858 + $0x8] sm:$0xff]
        %v4810 = vld [vmem:[%s858 + $0x10] sm:$0xff]
        %v4811 = vld [vmem:[%s858 + $0x18] sm:$0xff]
        %v4812 = vld [vmem:[%s858 + $0x20] sm:$0xff]
        %v4813 = vld [vmem:[%s858 + $0x28] sm:$0xff]
        %v4814 = vld [vmem:[%s858 + $0x30] sm:$0xff]
        %v4815 = vld [vmem:[%s858 + $0x38] sm:$0xff]
        %v4816 = vld [vmem:[%s858 + $0x40] sm:$0xff]
        %v4817 = vld [vmem:[%s858 + $0x48] sm:$0xff]
        %v4818 = vld [vmem:[%s858 + $0x50] sm:$0xff]
        %v4819 = vld [vmem:[%s858 + $0x58] sm:$0xff]
        %v4820 = vld [vmem:[%s858 + $0x60] sm:$0xff]
        %v4821 = vld [vmem:[%s858 + $0x68] sm:$0xff]
        %v4822 = vld [vmem:[%s858 + $0x70] sm:$0xff]
        %v4823 = vld [vmem:[%s858 + $0x78] sm:$0xff]
        %v4824 = vld [vmem:[%s858 + $0x80] sm:$0xff]
        %v4825 = vld [vmem:[%s858 + $0x88] sm:$0xff]
        %v4826 = vld [vmem:[%s858 + $0x90] sm:$0xff]
        %v4827 = vld [vmem:[%s858 + $0x98] sm:$0xff]
        %v4828 = vld [vmem:[%s858 + $0xa0] sm:$0xff]
        %v4829 = vld [vmem:[%s858 + $0xa8] sm:$0xff]
        %v4830 = vld [vmem:[%s858 + $0xb0] sm:$0xff]
        %v4831 = vld [vmem:[%s858 + $0xb8] sm:$0xff]
        %v4832 = vld [vmem:[%s858 + $0xc0] sm:$0xff]
        %v4833 = vld [vmem:[%s858 + $0xc8] sm:$0xff]
        %v4834 = vld [vmem:[%s858 + $0xd0] sm:$0xff]
        %v4835 = vld [vmem:[%s858 + $0xd8] sm:$0xff]
        %v4836 = vld [vmem:[%s858 + $0xe0] sm:$0xff]
        %v4837 = vld [vmem:[%s858 + $0xe8] sm:$0xff]
        %v4838 = vld [vmem:[%s858 + $0xf0] sm:$0xff]
        %v4839 = vld [vmem:[%s858 + $0xf8] sm:$0xff]
        %v4840 = vld [vmem:[%s1007] sm:$0xf]
        %v4842 = vlaneseq
        %v4843 = vshrl.u32 %v4842, 7
        %v4844 = vsub.s32 0, %v4843
        %v4845 = vrot.slane %v4840, %v4844
        %v4846 = vlaneseq
        %v4847 = vshrl.u32 %v4846, 7
        %v4848 = vsub.s32 1, %v4847
        %v4849 = vrot.slane %v4840, %v4848
        %v4850 = vlaneseq
        %v4851 = vshrl.u32 %v4850, 7
        %v4852 = vsub.s32 2, %v4851
        %v4853 = vrot.slane %v4840, %v4852
        %v4854 = vlaneseq
        %v4855 = vshrl.u32 %v4854, 7
        %v4856 = vsub.s32 3, %v4855
        %v4857 = vrot.slane %v4840, %v4856
        %v4894 = vunpack.c.l.b16 %v1241
        %v4895 = vunpack.c.l.b16 %v1242
        %v4896 = vunpack.c.l.b16 %v1243
        %v4897 = vunpack.c.l.b16 %v1244
        %v4898 = vunpack.c.l.b16 %v1245
        %v4899 = vunpack.c.l.b16 %v1246
        %v4900 = vunpack.c.l.b16 %v1247
        %v4901 = vunpack.c.l.b16 %v1248
        %v4902 = vunpack.c.l.b16 %v1249
        %v4903 = vunpack.c.l.b16 %v1250
        %v4904 = vunpack.c.l.b16 %v1251
        %v4905 = vunpack.c.l.b16 %v1252
        %v4906 = vunpack.c.l.b16 %v1253
        %v4907 = vunpack.c.l.b16 %v1254
        %v4908 = vunpack.c.l.b16 %v1255
        %v4909 = vunpack.c.l.b16 %v1256
        %v4910 = vunpack.c.l.b16 %v1257
        %v4911 = vunpack.c.l.b16 %v1258
        %v4912 = vunpack.c.l.b16 %v1259
        %v4913 = vunpack.c.l.b16 %v1260
        %v4914 = vunpack.c.l.b16 %v1261
        %v4915 = vunpack.c.l.b16 %v1262
        %v4916 = vunpack.c.l.b16 %v1263
        %v4917 = vunpack.c.l.b16 %v1264
        %v4918 = vunpack.c.l.b16 %v1265
        %v4919 = vunpack.c.l.b16 %v1266
        %v4920 = vunpack.c.l.b16 %v1267
        %v4921 = vunpack.c.l.b16 %v1268
        %v4922 = vunpack.c.l.b16 %v1269
        %v4923 = vunpack.c.l.b16 %v1270
        %v4924 = vunpack.c.l.b16 %v1271
        %v4925 = vunpack.c.l.b16 %v1272
        %v4926 = vpack.c.b16 %v4895, %v4894
        %v4927 = vpack.c.b16 %v4897, %v4896
        %v4928 = vpack.c.b16 %v4899, %v4898
        %v4929 = vpack.c.b16 %v4901, %v4900
        %v4930 = vpack.c.b16 %v4903, %v4902
        %v4931 = vpack.c.b16 %v4905, %v4904
        %v4932 = vpack.c.b16 %v4907, %v4906
        %v4933 = vpack.c.b16 %v4909, %v4908
        %v4934 = vpack.c.b16 %v4911, %v4910
        %v4935 = vpack.c.b16 %v4913, %v4912
        %v4936 = vpack.c.b16 %v4915, %v4914
        %v4937 = vpack.c.b16 %v4917, %v4916
        %v4938 = vpack.c.b16 %v4919, %v4918
        %v4939 = vpack.c.b16 %v4921, %v4920
        %v4940 = vpack.c.b16 %v4923, %v4922
        %v4941 = vpack.c.b16 %v4925, %v4924
        %v4990 = vunpack.c.l.b16 %v4808
        %v4991 = vunpack.c.h.b16 %v4808
        %v4992 = vunpack.c.l.b16 %v4809
        %v4993 = vunpack.c.h.b16 %v4809
        %v4994 = vunpack.c.l.b16 %v4810
        %v4995 = vunpack.c.h.b16 %v4810
        %v4996 = vunpack.c.l.b16 %v4811
        %v4997 = vunpack.c.h.b16 %v4811
        %v4998 = vunpack.c.l.b16 %v4812
        %v4999 = vunpack.c.h.b16 %v4812
        %v5000 = vunpack.c.l.b16 %v4813
        %v5001 = vunpack.c.h.b16 %v4813
        %v5002 = vunpack.c.l.b16 %v4814
        %v5003 = vunpack.c.h.b16 %v4814
        %v5004 = vunpack.c.l.b16 %v4815
        %v5005 = vunpack.c.h.b16 %v4815
        %v5006 = vunpack.c.l.b16 %v4816
        %v5007 = vunpack.c.h.b16 %v4816
        %v5008 = vunpack.c.l.b16 %v4817
        %v5009 = vunpack.c.h.b16 %v4817
        %v5010 = vunpack.c.l.b16 %v4818
        %v5011 = vunpack.c.h.b16 %v4818
        %v5012 = vunpack.c.l.b16 %v4819
        %v5013 = vunpack.c.h.b16 %v4819
        %v5014 = vunpack.c.l.b16 %v4820
        %v5015 = vunpack.c.h.b16 %v4820
        %v5016 = vunpack.c.l.b16 %v4821
        %v5017 = vunpack.c.h.b16 %v4821
        %v5018 = vunpack.c.l.b16 %v4822
        %v5019 = vunpack.c.h.b16 %v4822
        %v5020 = vunpack.c.l.b16 %v4823
        %v5021 = vunpack.c.h.b16 %v4823
        %v5022 = vunpack.c.l.b16 %v4824
        %v5023 = vunpack.c.h.b16 %v4824
        %v5024 = vunpack.c.l.b16 %v4825
        %v5025 = vunpack.c.h.b16 %v4825
        %v5026 = vunpack.c.l.b16 %v4826
        %v5027 = vunpack.c.h.b16 %v4826
        %v5028 = vunpack.c.l.b16 %v4827
        %v5029 = vunpack.c.h.b16 %v4827
        %v5030 = vunpack.c.l.b16 %v4828
        %v5031 = vunpack.c.h.b16 %v4828
        %v5032 = vunpack.c.l.b16 %v4829
        %v5033 = vunpack.c.h.b16 %v4829
        %v5034 = vunpack.c.l.b16 %v4830
        %v5035 = vunpack.c.h.b16 %v4830
        %v5036 = vunpack.c.l.b16 %v4831
        %v5037 = vunpack.c.h.b16 %v4831
        %v5038 = vunpack.c.l.b16 %v4832
        %v5039 = vunpack.c.h.b16 %v4832
        %v5040 = vunpack.c.l.b16 %v4833
        %v5041 = vunpack.c.h.b16 %v4833
        %v5042 = vunpack.c.l.b16 %v4834
        %v5043 = vunpack.c.h.b16 %v4834
        %v5044 = vunpack.c.l.b16 %v4835
        %v5045 = vunpack.c.h.b16 %v4835
        %v5046 = vunpack.c.l.b16 %v4836
        %v5047 = vunpack.c.h.b16 %v4836
        %v5048 = vunpack.c.l.b16 %v4837
        %v5049 = vunpack.c.h.b16 %v4837
        %v5050 = vunpack.c.l.b16 %v4838
        %v5051 = vunpack.c.h.b16 %v4838
        %v5052 = vunpack.c.l.b16 %v4839
        %v5053 = vunpack.c.h.b16 %v4839
        %v5054 = vpack.c.b16 %v4994, %v4990
        %v5055 = vpack.c.b16 %v4995, %v4991
        %v5056 = vpack.c.b16 %v4996, %v4992
        %v5057 = vpack.c.b16 %v4997, %v4993
        %v5058 = vpack.c.b16 %v5002, %v4998
        %v5059 = vpack.c.b16 %v5003, %v4999
        %v5060 = vpack.c.b16 %v5004, %v5000
        %v5061 = vpack.c.b16 %v5005, %v5001
        %v5062 = vpack.c.b16 %v5010, %v5006
        %v5063 = vpack.c.b16 %v5011, %v5007
        %v5064 = vpack.c.b16 %v5012, %v5008
        %v5065 = vpack.c.b16 %v5013, %v5009
        %v5066 = vpack.c.b16 %v5018, %v5014
        %v5067 = vpack.c.b16 %v5019, %v5015
        %v5068 = vpack.c.b16 %v5020, %v5016
        %v5069 = vpack.c.b16 %v5021, %v5017
        %v5070 = vpack.c.b16 %v5026, %v5022
        %v5071 = vpack.c.b16 %v5027, %v5023
        %v5072 = vpack.c.b16 %v5028, %v5024
        %v5073 = vpack.c.b16 %v5029, %v5025
        %v5074 = vpack.c.b16 %v5034, %v5030
        %v5075 = vpack.c.b16 %v5035, %v5031
        %v5076 = vpack.c.b16 %v5036, %v5032
        %v5077 = vpack.c.b16 %v5037, %v5033
        %v5078 = vpack.c.b16 %v5042, %v5038
        %v5079 = vpack.c.b16 %v5043, %v5039
        %v5080 = vpack.c.b16 %v5044, %v5040
        %v5081 = vpack.c.b16 %v5045, %v5041
        %v5082 = vpack.c.b16 %v5050, %v5046
        %v5083 = vpack.c.b16 %v5051, %v5047
        %v5084 = vpack.c.b16 %v5052, %v5048
        %v5085 = vpack.c.b16 %v5053, %v5049
        %5118 = vmatprep.subr.bf16.mxu0 %v5055
        %5119 = vmatpush1.bf16.msra.mxu0 %v5054
        %5120 = vmatprep.subr.bf16.mxu0 %v5059
        %5121 = vmatpush1.bf16.msra.mxu0 %v5058
        %5122 = vmatprep.subr.bf16.mxu0 %v5063
        %5123 = vmatpush1.bf16.msra.mxu0 %v5062
        %5124 = vmatprep.subr.bf16.mxu0 %v5067
        %5125 = vmatpush1.bf16.msra.mxu0 %v5066
        %5126 = vmatprep.subr.bf16.mxu0 %v5071
        %5127 = vmatpush1.bf16.msra.mxu0 %v5070
        %5128 = vmatprep.subr.bf16.mxu0 %v5075
        %5129 = vmatpush1.bf16.msra.mxu0 %v5074
        %5130 = vmatprep.subr.bf16.mxu0 %v5079
        %5131 = vmatpush1.bf16.msra.mxu0 %v5078
        %5132 = vmatprep.subr.bf16.mxu0 %v5083
        %5133 = vmatpush1.bf16.msra.mxu0 %v5082
        %5134 = vmatprep.subr.bf16.mxu0 0
        %5135 = vmatpush1.bf16.msra.mxu0 0
        %5136 = vmatprep.subr.bf16.mxu0 0
        %5137 = vmatpush1.bf16.msra.mxu0 0
        %5138 = vmatprep.subr.bf16.mxu0 0
        %5139 = vmatpush1.bf16.msra.mxu0 0
        %5140 = vmatprep.subr.bf16.mxu0 0
        %5141 = vmatpush1.bf16.msra.mxu0 0
        %5142 = vmatprep.subr.bf16.mxu0 0
        %5143 = vmatpush1.bf16.msra.mxu0 0
        %5144 = vmatprep.subr.bf16.mxu0 0
        %5145 = vmatpush1.bf16.msra.mxu0 0
        %5146 = vmatprep.subr.bf16.mxu0 0
        %5147 = vmatpush1.bf16.msra.mxu0 0
        %5148 = vmatprep.subr.bf16.mxu0 0
        %5149 = vmatpush1.bf16.msra.mxu0 0
        %5150 = vmatprep.mubr.bf16.mxu0 0
        %5151 = vmatmul.mubr.bf16.gmra.mrb[0].mxu0 %v4926
        %v5152 = vpop.f32.mrb[0].mxu0
        %v5153 = vadd.f32 %v4845, %v5152
        %v5154 = vpop.f32.mrb[0].mxu0
        %v5155 = vadd.f32 %v4849, %v5154
        %v5156 = vpop.f32.mrb[0].mxu0
        %v5157 = vadd.f32 %v4845, %v5156
        %v5158 = vpop.f32.mrb[0].mxu0
        %v5159 = vadd.f32 %v4849, %v5158
        %5160 = vmatprep.mubr.bf16.mxu0 0
        %5161 = vmatmul.mubr.bf16.gmra.mrb[0].mxu0 %v4927
        %v5162 = vpop.f32.mrb[0].mxu0
        %v5163 = vadd.f32 %v4845, %v5162
        %v5164 = vpop.f32.mrb[0].mxu0
        %v5165 = vadd.f32 %v4849, %v5164
        %v5166 = vpop.f32.mrb[0].mxu0
        %v5167 = vadd.f32 %v4845, %v5166
        %v5168 = vpop.f32.mrb[0].mxu0
        %v5169 = vadd.f32 %v4849, %v5168
        %5170 = vmatprep.mubr.bf16.mxu0 0
        %5171 = vmatmul.mubr.bf16.gmra.mrb[0].mxu0 %v4928
        %v5172 = vpop.f32.mrb[0].mxu0
        %v5173 = vadd.f32 %v4845, %v5172
        %v5174 = vpop.f32.mrb[0].mxu0
        %v5175 = vadd.f32 %v4849, %v5174
        %v5176 = vpop.f32.mrb[0].mxu0
        %v5177 = vadd.f32 %v4845, %v5176
        %v5178 = vpop.f32.mrb[0].mxu0
        %v5179 = vadd.f32 %v4849, %v5178
        %5180 = vmatprep.mubr.bf16.mxu0 0
        %5181 = vmatmul.mubr.bf16.gmra.mrb[0].mxu0 %v4929
        %v5182 = vpop.f32.mrb[0].mxu0
        %v5183 = vadd.f32 %v4845, %v5182
        %v5184 = vpop.f32.mrb[0].mxu0
        %v5185 = vadd.f32 %v4849, %v5184
        %v5186 = vpop.f32.mrb[0].mxu0
        %v5187 = vadd.f32 %v4845, %v5186
        %v5188 = vpop.f32.mrb[0].mxu0
        %v5189 = vadd.f32 %v4849, %v5188
        %5190 = vmatprep.mubr.bf16.mxu0 0
        %5191 = vmatmul.mubr.bf16.gmra.mrb[0].mxu0 %v4930
        %v5192 = vpop.f32.mrb[0].mxu0
        %v5193 = vadd.f32 %v4845, %v5192
        %v5194 = vpop.f32.mrb[0].mxu0
        %v5195 = vadd.f32 %v4849, %v5194
        %v5196 = vpop.f32.mrb[0].mxu0
        %v5197 = vadd.f32 %v4845, %v5196
        %v5198 = vpop.f32.mrb[0].mxu0
        %v5199 = vadd.f32 %v4849, %v5198
        %5200 = vmatprep.mubr.bf16.mxu0 0
        %5201 = vmatmul.mubr.bf16.gmra.mrb[0].mxu0 %v4931
        %v5202 = vpop.f32.mrb[0].mxu0
        %v5203 = vadd.f32 %v4845, %v5202
        %v5204 = vpop.f32.mrb[0].mxu0
        %v5205 = vadd.f32 %v4849, %v5204
        %v5206 = vpop.f32.mrb[0].mxu0
        %v5207 = vadd.f32 %v4845, %v5206
        %v5208 = vpop.f32.mrb[0].mxu0
        %v5209 = vadd.f32 %v4849, %v5208
        %5210 = vmatprep.mubr.bf16.mxu0 0
        %5211 = vmatmul.mubr.bf16.gmra.mrb[0].mxu0 %v4932
        %v5212 = vpop.f32.mrb[0].mxu0
        %v5213 = vadd.f32 %v4845, %v5212
        %v5214 = vpop.f32.mrb[0].mxu0
        %v5215 = vadd.f32 %v4849, %v5214
        %v5216 = vpop.f32.mrb[0].mxu0
        %v5217 = vadd.f32 %v4845, %v5216
        %v5218 = vpop.f32.mrb[0].mxu0
        %v5219 = vadd.f32 %v4849, %v5218
        %5220 = vmatprep.mubr.bf16.mxu0 0
        %5221 = vmatmul.mubr.bf16.gmra.mrb[0].mxu0 %v4933
        %v5222 = vpop.f32.mrb[0].mxu0
        %v5223 = vadd.f32 %v4845, %v5222
        %v5224 = vpop.f32.mrb[0].mxu0
        %v5225 = vadd.f32 %v4849, %v5224
        %v5226 = vpop.f32.mrb[0].mxu0
        %v5227 = vadd.f32 %v4845, %v5226
        %v5228 = vpop.f32.mrb[0].mxu0
        %v5229 = vadd.f32 %v4849, %v5228
        %5230 = vmatprep.mubr.bf16.mxu0 0
        %5231 = vmatmul.mubr.bf16.gmra.mrb[0].mxu0 %v4934
        %v5232 = vpop.f32.mrb[0].mxu0
        %v5233 = vadd.f32 %v4845, %v5232
        %v5234 = vpop.f32.mrb[0].mxu0
        %v5235 = vadd.f32 %v4849, %v5234
        %v5236 = vpop.f32.mrb[0].mxu0
        %v5237 = vadd.f32 %v4845, %v5236
        %v5238 = vpop.f32.mrb[0].mxu0
        %v5239 = vadd.f32 %v4849, %v5238
        %5240 = vmatprep.mubr.bf16.mxu0 0
        %5241 = vmatmul.mubr.bf16.gmra.mrb[0].mxu0 %v4935
        %v5242 = vpop.f32.mrb[0].mxu0
        %v5243 = vadd.f32 %v4845, %v5242
        %v5244 = vpop.f32.mrb[0].mxu0
        %v5245 = vadd.f32 %v4849, %v5244
        %v5246 = vpop.f32.mrb[0].mxu0
        %v5247 = vadd.f32 %v4845, %v5246
        %v5248 = vpop.f32.mrb[0].mxu0
        %v5249 = vadd.f32 %v4849, %v5248
        %5250 = vmatprep.mubr.bf16.mxu0 0
        %5251 = vmatmul.mubr.bf16.gmra.mrb[0].mxu0 %v4936
        %v5252 = vpop.f32.mrb[0].mxu0
        %v5253 = vadd.f32 %v4845, %v5252
        %v5254 = vpop.f32.mrb[0].mxu0
        %v5255 = vadd.f32 %v4849, %v5254
        %v5256 = vpop.f32.mrb[0].mxu0
        %v5257 = vadd.f32 %v4845, %v5256
        %v5258 = vpop.f32.mrb[0].mxu0
        %v5259 = vadd.f32 %v4849, %v5258
        %5260 = vmatprep.mubr.bf16.mxu0 0
        %5261 = vmatmul.mubr.bf16.gmra.mrb[0].mxu0 %v4937
        %v5262 = vpop.f32.mrb[0].mxu0
        %v5263 = vadd.f32 %v4845, %v5262
        %v5264 = vpop.f32.mrb[0].mxu0
        %v5265 = vadd.f32 %v4849, %v5264
        %v5266 = vpop.f32.mrb[0].mxu0
        %v5267 = vadd.f32 %v4845, %v5266
        %v5268 = vpop.f32.mrb[0].mxu0
        %v5269 = vadd.f32 %v4849, %v5268
        %5270 = vmatprep.mubr.bf16.mxu0 0
        %5271 = vmatmul.mubr.bf16.gmra.mrb[0].mxu0 %v4938
        %v5272 = vpop.f32.mrb[0].mxu0
        %v5273 = vadd.f32 %v4845, %v5272
        %v5274 = vpop.f32.mrb[0].mxu0
        %v5275 = vadd.f32 %v4849, %v5274
        %v5276 = vpop.f32.mrb[0].mxu0
        %v5277 = vadd.f32 %v4845, %v5276
        %v5278 = vpop.f32.mrb[0].mxu0
        %v5279 = vadd.f32 %v4849, %v5278
        %5280 = vmatprep.mubr.bf16.mxu0 0
        %5281 = vmatmul.mubr.bf16.gmra.mrb[0].mxu0 %v4939
        %v5282 = vpop.f32.mrb[0].mxu0
        %v5283 = vadd.f32 %v4845, %v5282
        %v5284 = vpop.f32.mrb[0].mxu0
        %v5285 = vadd.f32 %v4849, %v5284
        %v5286 = vpop.f32.mrb[0].mxu0
        %v5287 = vadd.f32 %v4845, %v5286
        %v5288 = vpop.f32.mrb[0].mxu0
        %v5289 = vadd.f32 %v4849, %v5288
        %5290 = vmatprep.mubr.bf16.mxu0 0
        %5291 = vmatmul.mubr.bf16.gmra.mrb[0].mxu0 %v4940
        %v5292 = vpop.f32.mrb[0].mxu0
        %v5293 = vadd.f32 %v4845, %v5292
        %v5294 = vpop.f32.mrb[0].mxu0
        %v5295 = vadd.f32 %v4849, %v5294
        %v5296 = vpop.f32.mrb[0].mxu0
        %v5297 = vadd.f32 %v4845, %v5296
        %v5298 = vpop.f32.mrb[0].mxu0
        %v5299 = vadd.f32 %v4849, %v5298
        %5300 = vmatprep.mubr.bf16.mxu0 0
        %5301 = vmatmul.mubr.bf16.gmra.mrb[0].mxu0 %v4941
        %v5302 = vpop.f32.mrb[0].mxu0
        %v5303 = vadd.f32 %v4845, %v5302
        %v5304 = vpop.f32.mrb[0].mxu0
        %v5305 = vadd.f32 %v4849, %v5304
        %v5306 = vpop.f32.mrb[0].mxu0
        %v5307 = vadd.f32 %v4845, %v5306
        %v5308 = vpop.f32.mrb[0].mxu0
        %v5309 = vadd.f32 %v4849, %v5308
        %5310 = vdwg.mxu0
        %5311 = vmatprep.subr.bf16.mxu0 %v5057
        %5312 = vmatpush1.bf16.msra.mxu0 %v5056
        %5313 = vmatprep.subr.bf16.mxu0 %v5061
        %5314 = vmatpush1.bf16.msra.mxu0 %v5060
        %5315 = vmatprep.subr.bf16.mxu0 %v5065
        %5316 = vmatpush1.bf16.msra.mxu0 %v5064
        %5317 = vmatprep.subr.bf16.mxu0 %v5069
        %5318 = vmatpush1.bf16.msra.mxu0 %v5068
        %5319 = vmatprep.subr.bf16.mxu0 %v5073
        %5320 = vmatpush1.bf16.msra.mxu0 %v5072
        %5321 = vmatprep.subr.bf16.mxu0 %v5077
        %5322 = vmatpush1.bf16.msra.mxu0 %v5076
        %5323 = vmatprep.subr.bf16.mxu0 %v5081
        %5324 = vmatpush1.bf16.msra.mxu0 %v5080
        %5325 = vmatprep.subr.bf16.mxu0 %v5085
        %5326 = vmatpush1.bf16.msra.mxu0 %v5084
        %5327 = vmatprep.subr.bf16.mxu0 0
        %5328 = vmatpush1.bf16.msra.mxu0 0
        %5329 = vmatprep.subr.bf16.mxu0 0
        %5330 = vmatpush1.bf16.msra.mxu0 0
        %5331 = vmatprep.subr.bf16.mxu0 0
        %5332 = vmatpush1.bf16.msra.mxu0 0
        %5333 = vmatprep.subr.bf16.mxu0 0
        %5334 = vmatpush1.bf16.msra.mxu0 0
        %5335 = vmatprep.subr.bf16.mxu0 0
        %5336 = vmatpush1.bf16.msra.mxu0 0
        %5337 = vmatprep.subr.bf16.mxu0 0
        %5338 = vmatpush1.bf16.msra.mxu0 0
        %5339 = vmatprep.subr.bf16.mxu0 0
        %5340 = vmatpush1.bf16.msra.mxu0 0
        %5341 = vmatprep.subr.bf16.mxu0 0
        %5342 = vmatpush1.bf16.msra.mxu0 0
        %5343 = vmatprep.mubr.bf16.mxu0 0
        %5344 = vmatmul.mubr.bf16.gmra.mrb[0].mxu0 %v4926
        %v5345 = vpop.f32.mrb[0].mxu0
        %v5346 = vadd.f32 %v4853, %v5345
        %v5347 = vpop.f32.mrb[0].mxu0
        %v5348 = vadd.f32 %v4857, %v5347
        %v5349 = vpop.f32.mrb[0].mxu0
        %v5350 = vadd.f32 %v4853, %v5349
        %v5351 = vpop.f32.mrb[0].mxu0
        %v5352 = vadd.f32 %v4857, %v5351
        %5353 = vmatprep.mubr.bf16.mxu0 0
        %5354 = vmatmul.mubr.bf16.gmra.mrb[0].mxu0 %v4927
        %v5355 = vpop.f32.mrb[0].mxu0
        %v5356 = vadd.f32 %v4853, %v5355
        %v5357 = vpop.f32.mrb[0].mxu0
        %v5358 = vadd.f32 %v4857, %v5357
        %v5359 = vpop.f32.mrb[0].mxu0
        %v5360 = vadd.f32 %v4853, %v5359
        %v5361 = vpop.f32.mrb[0].mxu0
        %v5362 = vadd.f32 %v4857, %v5361
        %5363 = vmatprep.mubr.bf16.mxu0 0
        %5364 = vmatmul.mubr.bf16.gmra.mrb[0].mxu0 %v4928
        %v5365 = vpop.f32.mrb[0].mxu0
        %v5366 = vadd.f32 %v4853, %v5365
        %v5367 = vpop.f32.mrb[0].mxu0
        %v5368 = vadd.f32 %v4857, %v5367
        %v5369 = vpop.f32.mrb[0].mxu0
        %v5370 = vadd.f32 %v4853, %v5369
        %v5371 = vpop.f32.mrb[0].mxu0
        %v5372 = vadd.f32 %v4857, %v5371
        %5373 = vmatprep.mubr.bf16.mxu0 0
        %5374 = vmatmul.mubr.bf16.gmra.mrb[0].mxu0 %v4929
        %v5375 = vpop.f32.mrb[0].mxu0
        %v5376 = vadd.f32 %v4853, %v5375
        %v5377 = vpop.f32.mrb[0].mxu0
        %v5378 = vadd.f32 %v4857, %v5377
        %v5379 = vpop.f32.mrb[0].mxu0
        %v5380 = vadd.f32 %v4853, %v5379
        %v5381 = vpop.f32.mrb[0].mxu0
        %v5382 = vadd.f32 %v4857, %v5381
        %5383 = vmatprep.mubr.bf16.mxu0 0
        %5384 = vmatmul.mubr.bf16.gmra.mrb[0].mxu0 %v4930
        %v5385 = vpop.f32.mrb[0].mxu0
        %v5386 = vadd.f32 %v4853, %v5385
        %v5387 = vpop.f32.mrb[0].mxu0
        %v5388 = vadd.f32 %v4857, %v5387
        %v5389 = vpop.f32.mrb[0].mxu0
        %v5390 = vadd.f32 %v4853, %v5389
        %v5391 = vpop.f32.mrb[0].mxu0
        %v5392 = vadd.f32 %v4857, %v5391
        %5393 = vmatprep.mubr.bf16.mxu0 0
        %5394 = vmatmul.mubr.bf16.gmra.mrb[0].mxu0 %v4931
        %v5395 = vpop.f32.mrb[0].mxu0
        %v5396 = vadd.f32 %v4853, %v5395
        %v5397 = vpop.f32.mrb[0].mxu0
        %v5398 = vadd.f32 %v4857, %v5397
        %v5399 = vpop.f32.mrb[0].mxu0
        %v5400 = vadd.f32 %v4853, %v5399
        %v5401 = vpop.f32.mrb[0].mxu0
        %v5402 = vadd.f32 %v4857, %v5401
        %5403 = vmatprep.mubr.bf16.mxu0 0
        %5404 = vmatmul.mubr.bf16.gmra.mrb[0].mxu0 %v4932
        %v5405 = vpop.f32.mrb[0].mxu0
        %v5406 = vadd.f32 %v4853, %v5405
        %v5407 = vpop.f32.mrb[0].mxu0
        %v5408 = vadd.f32 %v4857, %v5407
        %v5409 = vpop.f32.mrb[0].mxu0
        %v5410 = vadd.f32 %v4853, %v5409
        %v5411 = vpop.f32.mrb[0].mxu0
        %v5412 = vadd.f32 %v4857, %v5411
        %5413 = vmatprep.mubr.bf16.mxu0 0
        %5414 = vmatmul.mubr.bf16.gmra.mrb[0].mxu0 %v4933
        %v5415 = vpop.f32.mrb[0].mxu0
        %v5416 = vadd.f32 %v4853, %v5415
        %v5417 = vpop.f32.mrb[0].mxu0
        %v5418 = vadd.f32 %v4857, %v5417
        %v5419 = vpop.f32.mrb[0].mxu0
        %v5420 = vadd.f32 %v4853, %v5419
        %v5421 = vpop.f32.mrb[0].mxu0
        %v5422 = vadd.f32 %v4857, %v5421
        %5423 = vmatprep.mubr.bf16.mxu0 0
        %5424 = vmatmul.mubr.bf16.gmra.mrb[0].mxu0 %v4934
        %v5425 = vpop.f32.mrb[0].mxu0
        %v5426 = vadd.f32 %v4853, %v5425
        %v5427 = vpop.f32.mrb[0].mxu0
        %v5428 = vadd.f32 %v4857, %v5427
        %v5429 = vpop.f32.mrb[0].mxu0
        %v5430 = vadd.f32 %v4853, %v5429
        %v5431 = vpop.f32.mrb[0].mxu0
        %v5432 = vadd.f32 %v4857, %v5431
        %5433 = vmatprep.mubr.bf16.mxu0 0
        %5434 = vmatmul.mubr.bf16.gmra.mrb[0].mxu0 %v4935
        %v5435 = vpop.f32.mrb[0].mxu0
        %v5436 = vadd.f32 %v4853, %v5435
        %v5437 = vpop.f32.mrb[0].mxu0
        %v5438 = vadd.f32 %v4857, %v5437
        %v5439 = vpop.f32.mrb[0].mxu0
        %v5440 = vadd.f32 %v4853, %v5439
        %v5441 = vpop.f32.mrb[0].mxu0
        %v5442 = vadd.f32 %v4857, %v5441
        %5443 = vmatprep.mubr.bf16.mxu0 0
        %5444 = vmatmul.mubr.bf16.gmra.mrb[0].mxu0 %v4936
        %v5445 = vpop.f32.mrb[0].mxu0
        %v5446 = vadd.f32 %v4853, %v5445
        %v5447 = vpop.f32.mrb[0].mxu0
        %v5448 = vadd.f32 %v4857, %v5447
        %v5449 = vpop.f32.mrb[0].mxu0
        %v5450 = vadd.f32 %v4853, %v5449
        %v5451 = vpop.f32.mrb[0].mxu0
        %v5452 = vadd.f32 %v4857, %v5451
        %5453 = vmatprep.mubr.bf16.mxu0 0
        %5454 = vmatmul.mubr.bf16.gmra.mrb[0].mxu0 %v4937
        %v5455 = vpop.f32.mrb[0].mxu0
        %v5456 = vadd.f32 %v4853, %v5455
        %v5457 = vpop.f32.mrb[0].mxu0
        %v5458 = vadd.f32 %v4857, %v5457
        %v5459 = vpop.f32.mrb[0].mxu0
        %v5460 = vadd.f32 %v4853, %v5459
        %v5461 = vpop.f32.mrb[0].mxu0
        %v5462 = vadd.f32 %v4857, %v5461
        %5463 = vmatprep.mubr.bf16.mxu0 0
        %5464 = vmatmul.mubr.bf16.gmra.mrb[0].mxu0 %v4938
        %v5465 = vpop.f32.mrb[0].mxu0
        %v5466 = vadd.f32 %v4853, %v5465
        %v5467 = vpop.f32.mrb[0].mxu0
        %v5468 = vadd.f32 %v4857, %v5467
        %v5469 = vpop.f32.mrb[0].mxu0
        %v5470 = vadd.f32 %v4853, %v5469
        %v5471 = vpop.f32.mrb[0].mxu0
        %v5472 = vadd.f32 %v4857, %v5471
        %5473 = vmatprep.mubr.bf16.mxu0 0
        %5474 = vmatmul.mubr.bf16.gmra.mrb[0].mxu0 %v4939
        %v5475 = vpop.f32.mrb[0].mxu0
        %v5476 = vadd.f32 %v4853, %v5475
        %v5477 = vpop.f32.mrb[0].mxu0
        %v5478 = vadd.f32 %v4857, %v5477
        %v5479 = vpop.f32.mrb[0].mxu0
        %v5480 = vadd.f32 %v4853, %v5479
        %v5481 = vpop.f32.mrb[0].mxu0
        %v5482 = vadd.f32 %v4857, %v5481
        %5483 = vmatprep.mubr.bf16.mxu0 0
        %5484 = vmatmul.mubr.bf16.gmra.mrb[0].mxu0 %v4940
        %v5485 = vpop.f32.mrb[0].mxu0
        %v5486 = vadd.f32 %v4853, %v5485
        %v5487 = vpop.f32.mrb[0].mxu0
        %v5488 = vadd.f32 %v4857, %v5487
        %v5489 = vpop.f32.mrb[0].mxu0
        %v5490 = vadd.f32 %v4853, %v5489
        %v5491 = vpop.f32.mrb[0].mxu0
        %v5492 = vadd.f32 %v4857, %v5491
        %5493 = vmatprep.mubr.bf16.mxu0 0
        %5494 = vmatmul.mubr.bf16.gmra.mrb[0].mxu0 %v4941
        %v5495 = vpop.f32.mrb[0].mxu0
        %v5496 = vadd.f32 %v4853, %v5495
        %v5497 = vpop.f32.mrb[0].mxu0
        %v5498 = vadd.f32 %v4857, %v5497
        %v5499 = vpop.f32.mrb[0].mxu0
        %v5500 = vadd.f32 %v4853, %v5499
        %v5501 = vpop.f32.mrb[0].mxu0
        %v5502 = vadd.f32 %v4857, %v5501
        %5503 = vdwg.mxu0
        %v5504 = vld [vmem:[%s867] sm:$0xf]
        %v5505 = vld [vmem:[%s867 + $0x4] sm:$0xf]
        %v5506 = vld [vmem:[%s867 + $0x8] sm:$0xf]
        %v5507 = vld [vmem:[%s867 + $0xc] sm:$0xf]
        %v5508 = vld [vmem:[%s867 + $0x10] sm:$0xf]
        %v5509 = vld [vmem:[%s867 + $0x14] sm:$0xf]
        %v5510 = vld [vmem:[%s867 + $0x18] sm:$0xf]
        %v5511 = vld [vmem:[%s867 + $0x1c] sm:$0xf]
        %v5512 = vld [vmem:[%s867 + $0x20] sm:$0xf]
        %v5513 = vld [vmem:[%s867 + $0x24] sm:$0xf]
        %v5514 = vld [vmem:[%s867 + $0x28] sm:$0xf]
        %v5515 = vld [vmem:[%s867 + $0x2c] sm:$0xf]
        %v5516 = vld [vmem:[%s867 + $0x30] sm:$0xf]
        %v5517 = vld [vmem:[%s867 + $0x34] sm:$0xf]
        %v5518 = vld [vmem:[%s867 + $0x38] sm:$0xf]
        %v5519 = vld [vmem:[%s867 + $0x3c] sm:$0xf]
        %v5520 = vld [vmem:[%s867 + $0x40] sm:$0xf]
        %v5521 = vld [vmem:[%s867 + $0x44] sm:$0xf]
        %v5522 = vld [vmem:[%s867 + $0x48] sm:$0xf]
        %v5523 = vld [vmem:[%s867 + $0x4c] sm:$0xf]
        %v5524 = vld [vmem:[%s867 + $0x50] sm:$0xf]
        %v5525 = vld [vmem:[%s867 + $0x54] sm:$0xf]
        %v5526 = vld [vmem:[%s867 + $0x58] sm:$0xf]
        %v5527 = vld [vmem:[%s867 + $0x5c] sm:$0xf]
        %v5528 = vld [vmem:[%s867 + $0x60] sm:$0xf]
        %v5529 = vld [vmem:[%s867 + $0x64] sm:$0xf]
        %v5530 = vld [vmem:[%s867 + $0x68] sm:$0xf]
        %v5531 = vld [vmem:[%s867 + $0x6c] sm:$0xf]
        %v5532 = vld [vmem:[%s867 + $0x70] sm:$0xf]
        %v5533 = vld [vmem:[%s867 + $0x74] sm:$0xf]
        %v5534 = vld [vmem:[%s867 + $0x78] sm:$0xf]
        %v5535 = vld [vmem:[%s867 + $0x7c] sm:$0xf]
        %v5536 = vld [vmem:[%s1010] sm:$0x1]
        %v5537 = vpack.c.bf16 %v4654, %v4650
        %v5538 = vpack.c.bf16 %v4664, %v4660
        %v5539 = vpack.c.bf16 %v4674, %v4670
        %v5540 = vpack.c.bf16 %v4684, %v4680
        %v5541 = vpack.c.bf16 %v4694, %v4690
        %v5542 = vpack.c.bf16 %v4704, %v4700
        %v5543 = vpack.c.bf16 %v4714, %v4710
        %v5544 = vpack.c.bf16 %v4724, %v4720
        %v5545 = vpack.c.bf16 %v4734, %v4730
        %v5546 = vpack.c.bf16 %v4744, %v4740
        %v5547 = vpack.c.bf16 %v4754, %v4750
        %v5548 = vpack.c.bf16 %v4764, %v4760
        %v5549 = vpack.c.bf16 %v4774, %v4770
        %v5550 = vpack.c.bf16 %v4784, %v4780
        %v5551 = vpack.c.bf16 %v4794, %v4790
        %v5552 = vpack.c.bf16 %v4804, %v4800
        %v5553 = vpack.c.bf16 %v5157, %v5153
        %v5554 = vpack.c.bf16 %v5167, %v5163
        %v5555 = vpack.c.bf16 %v5177, %v5173
        %v5556 = vpack.c.bf16 %v5187, %v5183
        %v5557 = vpack.c.bf16 %v5197, %v5193
        %v5558 = vpack.c.bf16 %v5207, %v5203
        %v5559 = vpack.c.bf16 %v5217, %v5213
        %v5560 = vpack.c.bf16 %v5227, %v5223
        %v5561 = vpack.c.bf16 %v5237, %v5233
        %v5562 = vpack.c.bf16 %v5247, %v5243
        %v5563 = vpack.c.bf16 %v5257, %v5253
        %v5564 = vpack.c.bf16 %v5267, %v5263
        %v5565 = vpack.c.bf16 %v5277, %v5273
        %v5566 = vpack.c.bf16 %v5287, %v5283
        %v5567 = vpack.c.bf16 %v5297, %v5293
        %v5568 = vpack.c.bf16 %v5307, %v5303
        %v5569 = vpack.c.bf16 %v5350, %v5346
        %v5570 = vpack.c.bf16 %v5360, %v5356
        %v5571 = vpack.c.bf16 %v5370, %v5366
        %v5572 = vpack.c.bf16 %v5380, %v5376
        %v5573 = vpack.c.bf16 %v5390, %v5386
        %v5574 = vpack.c.bf16 %v5400, %v5396
        %v5575 = vpack.c.bf16 %v5410, %v5406
        %v5576 = vpack.c.bf16 %v5420, %v5416
        %v5577 = vpack.c.bf16 %v5430, %v5426
        %v5578 = vpack.c.bf16 %v5440, %v5436
        %v5579 = vpack.c.bf16 %v5450, %v5446
        %v5580 = vpack.c.bf16 %v5460, %v5456
        %v5581 = vpack.c.bf16 %v5470, %v5466
        %v5582 = vpack.c.bf16 %v5480, %v5476
        %v5583 = vpack.c.bf16 %v5490, %v5486
        %v5584 = vpack.c.bf16 %v5500, %v5496
        %5585 = vmatprep.subr.bf16.mxu0 0
        %5586 = vmatpush1.bf16.xpose.msra.mxu0 %v5553
        %5587 = vmatprep.subr.bf16.mxu0 0
        %5588 = vmatpush1.bf16.xpose.msra.mxu0 %v5554
        %5589 = vmatprep.subr.bf16.mxu0 0
        %5590 = vmatpush1.bf16.xpose.msra.mxu0 %v5555
        %5591 = vmatprep.subr.bf16.mxu0 0
        %5592 = vmatpush1.bf16.xpose.msra.mxu0 %v5556
        %5593 = vmatprep.subr.bf16.mxu0 0
        %5594 = vmatpush1.bf16.xpose.msra.mxu0 %v5557
        %5595 = vmatprep.subr.bf16.mxu0 0
        %5596 = vmatpush1.bf16.xpose.msra.mxu0 %v5558
        %5597 = vmatprep.subr.bf16.mxu0 0
        %5598 = vmatpush1.bf16.xpose.msra.mxu0 %v5559
        %5599 = vmatprep.subr.bf16.mxu0 0
        %5600 = vmatpush1.bf16.xpose.msra.mxu0 %v5560
        %5601 = vmatprep.subr.bf16.mxu0 0
        %5602 = vmatpush1.bf16.xpose.msra.mxu0 0
        %5603 = vmatprep.subr.bf16.mxu0 0
        %5604 = vmatpush1.bf16.xpose.msra.mxu0 0
        %5605 = vmatprep.subr.bf16.mxu0 0
        %5606 = vmatpush1.bf16.xpose.msra.mxu0 0
        %5607 = vmatprep.subr.bf16.mxu0 0
        %5608 = vmatpush1.bf16.xpose.msra.mxu0 0
        %5609 = vmatprep.subr.bf16.mxu0 0
        %5610 = vmatpush1.bf16.xpose.msra.mxu0 0
        %5611 = vmatprep.subr.bf16.mxu0 0
        %5612 = vmatpush1.bf16.xpose.msra.mxu0 0
        %5613 = vmatprep.subr.bf16.mxu0 0
        %5614 = vmatpush1.bf16.xpose.msra.mxu0 0
        %5615 = vmatprep.subr.bf16.mxu0 0
        %5616 = vmatpush1.bf16.xpose.msra.mxu0 0
        %5617 = vmatprep.mubr.bf16.mxu0 0
        %5618 = vmatmul.mubr.bf16.gmra.mrb[0].mxu0 %v5537
        %v5619 = vpop.f32.mrb[0].mxu0
        %v5620 = vadd.f32 0.0, %v5619
        %v5621 = vpop.f32.mrb[0].mxu0
        %v5622 = vpop.f32.mrb[0].mxu0
        %v5623 = vadd.f32 0.0, %v5622
        %v5624 = vpop.f32.mrb[0].mxu0
        %5625 = vmatprep.mubr.bf16.mxu0 0
        %5626 = vmatmul.mubr.bf16.gmra.mrb[0].mxu0 %v5538
        %v5627 = vpop.f32.mrb[0].mxu0
        %v5628 = vadd.f32 0.0, %v5627
        %v5629 = vpop.f32.mrb[0].mxu0
        %v5630 = vpop.f32.mrb[0].mxu0
        %v5631 = vadd.f32 0.0, %v5630
        %v5632 = vpop.f32.mrb[0].mxu0
        %5633 = vmatprep.mubr.bf16.mxu0 0
        %5634 = vmatmul.mubr.bf16.gmra.mrb[0].mxu0 %v5539
        %v5635 = vpop.f32.mrb[0].mxu0
        %v5636 = vadd.f32 0.0, %v5635
        %v5637 = vpop.f32.mrb[0].mxu0
        %v5638 = vpop.f32.mrb[0].mxu0
        %v5639 = vadd.f32 0.0, %v5638
        %v5640 = vpop.f32.mrb[0].mxu0
        %5641 = vmatprep.mubr.bf16.mxu0 0
        %5642 = vmatmul.mubr.bf16.gmra.mrb[0].mxu0 %v5540
        %v5643 = vpop.f32.mrb[0].mxu0
        %v5644 = vadd.f32 0.0, %v5643
        %v5645 = vpop.f32.mrb[0].mxu0
        %v5646 = vpop.f32.mrb[0].mxu0
        %v5647 = vadd.f32 0.0, %v5646
        %v5648 = vpop.f32.mrb[0].mxu0
        %5649 = vmatprep.mubr.bf16.mxu0 0
        %5650 = vmatmul.mubr.bf16.gmra.mrb[0].mxu0 %v5541
        %v5651 = vpop.f32.mrb[0].mxu0
        %v5652 = vadd.f32 0.0, %v5651
        %v5653 = vpop.f32.mrb[0].mxu0
        %v5654 = vpop.f32.mrb[0].mxu0
        %v5655 = vadd.f32 0.0, %v5654
        %v5656 = vpop.f32.mrb[0].mxu0
        %5657 = vmatprep.mubr.bf16.mxu0 0
        %5658 = vmatmul.mubr.bf16.gmra.mrb[0].mxu0 %v5542
        %v5659 = vpop.f32.mrb[0].mxu0
        %v5660 = vadd.f32 0.0, %v5659
        %v5661 = vpop.f32.mrb[0].mxu0
        %v5662 = vpop.f32.mrb[0].mxu0
        %v5663 = vadd.f32 0.0, %v5662
        %v5664 = vpop.f32.mrb[0].mxu0
        %5665 = vmatprep.mubr.bf16.mxu0 0
        %5666 = vmatmul.mubr.bf16.gmra.mrb[0].mxu0 %v5543
        %v5667 = vpop.f32.mrb[0].mxu0
        %v5668 = vadd.f32 0.0, %v5667
        %v5669 = vpop.f32.mrb[0].mxu0
        %v5670 = vpop.f32.mrb[0].mxu0
        %v5671 = vadd.f32 0.0, %v5670
        %v5672 = vpop.f32.mrb[0].mxu0
        %5673 = vmatprep.mubr.bf16.mxu0 0
        %5674 = vmatmul.mubr.bf16.gmra.mrb[0].mxu0 %v5544
        %v5675 = vpop.f32.mrb[0].mxu0
        %v5676 = vadd.f32 0.0, %v5675
        %v5677 = vpop.f32.mrb[0].mxu0
        %v5678 = vpop.f32.mrb[0].mxu0
        %v5679 = vadd.f32 0.0, %v5678
        %v5680 = vpop.f32.mrb[0].mxu0
        %5681 = vdwg.mxu0
        %5682 = vmatprep.subr.bf16.mxu0 0
        %5683 = vmatpush1.bf16.xpose.msra.mxu0 %v5561
        %5684 = vmatprep.subr.bf16.mxu0 0
        %5685 = vmatpush1.bf16.xpose.msra.mxu0 %v5562
        %5686 = vmatprep.subr.bf16.mxu0 0
        %5687 = vmatpush1.bf16.xpose.msra.mxu0 %v5563
        %5688 = vmatprep.subr.bf16.mxu0 0
        %5689 = vmatpush1.bf16.xpose.msra.mxu0 %v5564
        %5690 = vmatprep.subr.bf16.mxu0 0
        %5691 = vmatpush1.bf16.xpose.msra.mxu0 %v5565
        %5692 = vmatprep.subr.bf16.mxu0 0
        %5693 = vmatpush1.bf16.xpose.msra.mxu0 %v5566
        %5694 = vmatprep.subr.bf16.mxu0 0
        %5695 = vmatpush1.bf16.xpose.msra.mxu0 %v5567
        %5696 = vmatprep.subr.bf16.mxu0 0
        %5697 = vmatpush1.bf16.xpose.msra.mxu0 %v5568
        %5698 = vmatprep.subr.bf16.mxu0 0
        %5699 = vmatpush1.bf16.xpose.msra.mxu0 0
        %5700 = vmatprep.subr.bf16.mxu0 0
        %5701 = vmatpush1.bf16.xpose.msra.mxu0 0
        %5702 = vmatprep.subr.bf16.mxu0 0
        %5703 = vmatpush1.bf16.xpose.msra.mxu0 0
        %5704 = vmatprep.subr.bf16.mxu0 0
        %5705 = vmatpush1.bf16.xpose.msra.mxu0 0
        %5706 = vmatprep.subr.bf16.mxu0 0
        %5707 = vmatpush1.bf16.xpose.msra.mxu0 0
        %5708 = vmatprep.subr.bf16.mxu0 0
        %5709 = vmatpush1.bf16.xpose.msra.mxu0 0
        %5710 = vmatprep.subr.bf16.mxu0 0
        %5711 = vmatpush1.bf16.xpose.msra.mxu0 0
        %5712 = vmatprep.subr.bf16.mxu0 0
        %5713 = vmatpush1.bf16.xpose.msra.mxu0 0
        %5714 = vmatprep.mubr.bf16.mxu0 0
        %5715 = vmatmul.mubr.bf16.gmra.mrb[0].mxu0 %v5545
        %v5716 = vpop.f32.mrb[0].mxu0
        %v5717 = vadd.f32 0.0, %v5716
        %v5718 = vpop.f32.mrb[0].mxu0
        %v5719 = vpop.f32.mrb[0].mxu0
        %v5720 = vadd.f32 0.0, %v5719
        %v5721 = vpop.f32.mrb[0].mxu0
        %5722 = vmatprep.mubr.bf16.mxu0 0
        %5723 = vmatmul.mubr.bf16.gmra.mrb[0].mxu0 %v5546
        %v5724 = vpop.f32.mrb[0].mxu0
        %v5725 = vadd.f32 0.0, %v5724
        %v5726 = vpop.f32.mrb[0].mxu0
        %v5727 = vpop.f32.mrb[0].mxu0
        %v5728 = vadd.f32 0.0, %v5727
        %v5729 = vpop.f32.mrb[0].mxu0
        %5730 = vmatprep.mubr.bf16.mxu0 0
        %5731 = vmatmul.mubr.bf16.gmra.mrb[0].mxu0 %v5547
        %v5732 = vpop.f32.mrb[0].mxu0
        %v5733 = vadd.f32 0.0, %v5732
        %v5734 = vpop.f32.mrb[0].mxu0
        %v5735 = vpop.f32.mrb[0].mxu0
        %v5736 = vadd.f32 0.0, %v5735
        %v5737 = vpop.f32.mrb[0].mxu0
        %5738 = vmatprep.mubr.bf16.mxu0 0
        %5739 = vmatmul.mubr.bf16.gmra.mrb[0].mxu0 %v5548
        %v5740 = vpop.f32.mrb[0].mxu0
        %v5741 = vadd.f32 0.0, %v5740
        %v5742 = vpop.f32.mrb[0].mxu0
        %v5743 = vpop.f32.mrb[0].mxu0
        %v5744 = vadd.f32 0.0, %v5743
        %v5745 = vpop.f32.mrb[0].mxu0
        %5746 = vmatprep.mubr.bf16.mxu0 0
        %5747 = vmatmul.mubr.bf16.gmra.mrb[0].mxu0 %v5549
        %v5748 = vpop.f32.mrb[0].mxu0
        %v5749 = vadd.f32 0.0, %v5748
        %v5750 = vpop.f32.mrb[0].mxu0
        %v5751 = vpop.f32.mrb[0].mxu0
        %v5752 = vadd.f32 0.0, %v5751
        %v5753 = vpop.f32.mrb[0].mxu0
        %5754 = vmatprep.mubr.bf16.mxu0 0
        %5755 = vmatmul.mubr.bf16.gmra.mrb[0].mxu0 %v5550
        %v5756 = vpop.f32.mrb[0].mxu0
        %v5757 = vadd.f32 0.0, %v5756
        %v5758 = vpop.f32.mrb[0].mxu0
        %v5759 = vpop.f32.mrb[0].mxu0
        %v5760 = vadd.f32 0.0, %v5759
        %v5761 = vpop.f32.mrb[0].mxu0
        %5762 = vmatprep.mubr.bf16.mxu0 0
        %5763 = vmatmul.mubr.bf16.gmra.mrb[0].mxu0 %v5551
        %v5764 = vpop.f32.mrb[0].mxu0
        %v5765 = vadd.f32 0.0, %v5764
        %v5766 = vpop.f32.mrb[0].mxu0
        %v5767 = vpop.f32.mrb[0].mxu0
        %v5768 = vadd.f32 0.0, %v5767
        %v5769 = vpop.f32.mrb[0].mxu0
        %5770 = vmatprep.mubr.bf16.mxu0 0
        %5771 = vmatmul.mubr.bf16.gmra.mrb[0].mxu0 %v5552
        %v5772 = vpop.f32.mrb[0].mxu0
        %v5773 = vadd.f32 0.0, %v5772
        %v5774 = vpop.f32.mrb[0].mxu0
        %v5775 = vpop.f32.mrb[0].mxu0
        %v5776 = vadd.f32 0.0, %v5775
        %v5777 = vpop.f32.mrb[0].mxu0
        %5778 = vdwg.mxu0
        %5779 = vmax.xlane.f32.xlu0 %v5620
        %v5780 = vpop.xlane.xlu0 %5779
        %5781 = vmax.xlane.f32.xlu0 %v5623
        %v5782 = vpop.xlane.xlu0 %5781
        %5783 = vmax.xlane.f32.xlu0 %v5628
        %v5784 = vpop.xlane.xlu0 %5783
        %5785 = vmax.xlane.f32.xlu0 %v5631
        %v5786 = vpop.xlane.xlu0 %5785
        %5787 = vmax.xlane.f32.xlu0 %v5636
        %v5788 = vpop.xlane.xlu0 %5787
        %5789 = vmax.xlane.f32.xlu0 %v5639
        %v5790 = vpop.xlane.xlu0 %5789
        %5791 = vmax.xlane.f32.xlu0 %v5644
        %v5792 = vpop.xlane.xlu0 %5791
        %5793 = vmax.xlane.f32.xlu0 %v5647
        %v5794 = vpop.xlane.xlu0 %5793
        %5795 = vmax.xlane.f32.xlu0 %v5652
        %v5796 = vpop.xlane.xlu0 %5795
        %5797 = vmax.xlane.f32.xlu0 %v5655
        %v5798 = vpop.xlane.xlu0 %5797
        %5799 = vmax.xlane.f32.xlu0 %v5660
        %v5800 = vpop.xlane.xlu0 %5799
        %5801 = vmax.xlane.f32.xlu0 %v5663
        %v5802 = vpop.xlane.xlu0 %5801
        %5803 = vmax.xlane.f32.xlu0 %v5668
        %v5804 = vpop.xlane.xlu0 %5803
        %5805 = vmax.xlane.f32.xlu0 %v5671
        %v5806 = vpop.xlane.xlu0 %5805
        %5807 = vmax.xlane.f32.xlu0 %v5676
        %v5808 = vpop.xlane.xlu0 %5807
        %5809 = vmax.xlane.f32.xlu0 %v5679
        %v5810 = vpop.xlane.xlu0 %5809
        %5811 = vmax.xlane.f32.xlu0 %v5717
        %v5812 = vpop.xlane.xlu0 %5811
        %5813 = vmax.xlane.f32.xlu0 %v5720
        %v5814 = vpop.xlane.xlu0 %5813
        %5815 = vmax.xlane.f32.xlu0 %v5725
        %v5816 = vpop.xlane.xlu0 %5815
        %5817 = vmax.xlane.f32.xlu0 %v5728
        %v5818 = vpop.xlane.xlu0 %5817
        %5819 = vmax.xlane.f32.xlu0 %v5733
        %v5820 = vpop.xlane.xlu0 %5819
        %5821 = vmax.xlane.f32.xlu0 %v5736
        %v5822 = vpop.xlane.xlu0 %5821
        %5823 = vmax.xlane.f32.xlu0 %v5741
        %v5824 = vpop.xlane.xlu0 %5823
        %5825 = vmax.xlane.f32.xlu0 %v5744
        %v5826 = vpop.xlane.xlu0 %5825
        %5827 = vmax.xlane.f32.xlu0 %v5749
        %v5828 = vpop.xlane.xlu0 %5827
        %5829 = vmax.xlane.f32.xlu0 %v5752
        %v5830 = vpop.xlane.xlu0 %5829
        %5831 = vmax.xlane.f32.xlu0 %v5757
        %v5832 = vpop.xlane.xlu0 %5831
        %5833 = vmax.xlane.f32.xlu0 %v5760
        %v5834 = vpop.xlane.xlu0 %5833
        %5835 = vmax.xlane.f32.xlu0 %v5765
        %v5836 = vpop.xlane.xlu0 %5835
        %5837 = vmax.xlane.f32.xlu0 %v5768
        %v5838 = vpop.xlane.xlu0 %5837
        %5839 = vmax.xlane.f32.xlu0 %v5773
        %v5840 = vpop.xlane.xlu0 %5839
        %5841 = vmax.xlane.f32.xlu0 %v5776
        %v5842 = vpop.xlane.xlu0 %5841
        %v5843 = vsub.f32 %v5620, %v5780
        %v5844 = vsub.f32 %v5623, %v5782
        %v5845 = vsub.f32 %v5628, %v5784
        %v5846 = vsub.f32 %v5631, %v5786
        %v5847 = vsub.f32 %v5636, %v5788
        %v5848 = vsub.f32 %v5639, %v5790
        %v5849 = vsub.f32 %v5644, %v5792
        %v5850 = vsub.f32 %v5647, %v5794
        %v5851 = vsub.f32 %v5652, %v5796
        %v5852 = vsub.f32 %v5655, %v5798
        %v5853 = vsub.f32 %v5660, %v5800
        %v5854 = vsub.f32 %v5663, %v5802
        %v5855 = vsub.f32 %v5668, %v5804
        %v5856 = vsub.f32 %v5671, %v5806
        %v5857 = vsub.f32 %v5676, %v5808
        %v5858 = vsub.f32 %v5679, %v5810
        %v5859 = vsub.f32 %v5717, %v5812
        %v5860 = vsub.f32 %v5720, %v5814
        %v5861 = vsub.f32 %v5725, %v5816
        %v5862 = vsub.f32 %v5728, %v5818
        %v5863 = vsub.f32 %v5733, %v5820
        %v5864 = vsub.f32 %v5736, %v5822
        %v5865 = vsub.f32 %v5741, %v5824
        %v5866 = vsub.f32 %v5744, %v5826
        %v5867 = vsub.f32 %v5749, %v5828
        %v5868 = vsub.f32 %v5752, %v5830
        %v5869 = vsub.f32 %v5757, %v5832
        %v5870 = vsub.f32 %v5760, %v5834
        %v5871 = vsub.f32 %v5765, %v5836
        %v5872 = vsub.f32 %v5768, %v5838
        %v5873 = vsub.f32 %v5773, %v5840
        %v5874 = vsub.f32 %v5776, %v5842
        %v5875 = vmul.f32 %v5843, 1.442695
        %v5876 = vpow.pop %v5875
        %v5877 = vmul.f32 %v5844, 1.442695
        %v5878 = vpow.pop %v5877
        %v5879 = vmul.f32 %v5845, 1.442695
        %v5880 = vpow.pop %v5879
        %v5881 = vmul.f32 %v5846, 1.442695
        %v5882 = vpow.pop %v5881
        %v5883 = vmul.f32 %v5847, 1.442695
        %v5884 = vpow.pop %v5883
        %v5885 = vmul.f32 %v5848, 1.442695
        %v5886 = vpow.pop %v5885
        %v5887 = vmul.f32 %v5849, 1.442695
        %v5888 = vpow.pop %v5887
        %v5889 = vmul.f32 %v5850, 1.442695
        %v5890 = vpow.pop %v5889
        %v5891 = vmul.f32 %v5851, 1.442695
        %v5892 = vpow.pop %v5891
        %v5893 = vmul.f32 %v5852, 1.442695
        %v5894 = vpow.pop %v5893
        %v5895 = vmul.f32 %v5853, 1.442695
        %v5896 = vpow.pop %v5895
        %v5897 = vmul.f32 %v5854, 1.442695
        %v5898 = vpow.pop %v5897
        %v5899 = vmul.f32 %v5855, 1.442695
        %v5900 = vpow.pop %v5899
        %v5901 = vmul.f32 %v5856, 1.442695
        %v5902 = vpow.pop %v5901
        %v5903 = vmul.f32 %v5857, 1.442695
        %v5904 = vpow.pop %v5903
        %v5905 = vmul.f32 %v5858, 1.442695
        %v5906 = vpow.pop %v5905
        %v5907 = vmul.f32 %v5859, 1.442695
        %v5908 = vpow.pop %v5907
        %v5909 = vmul.f32 %v5860, 1.442695
        %v5910 = vpow.pop %v5909
        %v5911 = vmul.f32 %v5861, 1.442695
        %v5912 = vpow.pop %v5911
        %v5913 = vmul.f32 %v5862, 1.442695
        %v5914 = vpow.pop %v5913
        %v5915 = vmul.f32 %v5863, 1.442695
        %v5916 = vpow.pop %v5915
        %v5917 = vmul.f32 %v5864, 1.442695
        %v5918 = vpow.pop %v5917
        %v5919 = vmul.f32 %v5865, 1.442695
        %v5920 = vpow.pop %v5919
        %v5921 = vmul.f32 %v5866, 1.442695
        %v5922 = vpow.pop %v5921
        %v5923 = vmul.f32 %v5867, 1.442695
        %v5924 = vpow.pop %v5923
        %v5925 = vmul.f32 %v5868, 1.442695
        %v5926 = vpow.pop %v5925
        %v5927 = vmul.f32 %v5869, 1.442695
        %v5928 = vpow.pop %v5927
        %v5929 = vmul.f32 %v5870, 1.442695
        %v5930 = vpow.pop %v5929
        %v5931 = vmul.f32 %v5871, 1.442695
        %v5932 = vpow.pop %v5931
        %v5933 = vmul.f32 %v5872, 1.442695
        %v5934 = vpow.pop %v5933
        %v5935 = vmul.f32 %v5873, 1.442695
        %v5936 = vpow.pop %v5935
        %v5937 = vmul.f32 %v5874, 1.442695
        %v5938 = vpow.pop %v5937
        %5939 = vadd.xlane.f32.xlu0 %v5876
        %v5940 = vpop.xlane.xlu0 %5939
        %5941 = vadd.xlane.f32.xlu0 %v5878
        %v5942 = vpop.xlane.xlu0 %5941
        %5943 = vadd.xlane.f32.xlu0 %v5880
        %v5944 = vpop.xlane.xlu0 %5943
        %5945 = vadd.xlane.f32.xlu0 %v5882
        %v5946 = vpop.xlane.xlu0 %5945
        %5947 = vadd.xlane.f32.xlu0 %v5884
        %v5948 = vpop.xlane.xlu0 %5947
        %5949 = vadd.xlane.f32.xlu0 %v5886
        %v5950 = vpop.xlane.xlu0 %5949
        %5951 = vadd.xlane.f32.xlu0 %v5888
        %v5952 = vpop.xlane.xlu0 %5951
        %5953 = vadd.xlane.f32.xlu0 %v5890
        %v5954 = vpop.xlane.xlu0 %5953
        %5955 = vadd.xlane.f32.xlu0 %v5892
        %v5956 = vpop.xlane.xlu0 %5955
        %5957 = vadd.xlane.f32.xlu0 %v5894
        %v5958 = vpop.xlane.xlu0 %5957
        %5959 = vadd.xlane.f32.xlu0 %v5896
        %v5960 = vpop.xlane.xlu0 %5959
        %5961 = vadd.xlane.f32.xlu0 %v5898
        %v5962 = vpop.xlane.xlu0 %5961
        %5963 = vadd.xlane.f32.xlu0 %v5900
        %v5964 = vpop.xlane.xlu0 %5963
        %5965 = vadd.xlane.f32.xlu0 %v5902
        %v5966 = vpop.xlane.xlu0 %5965
        %5967 = vadd.xlane.f32.xlu0 %v5904
        %v5968 = vpop.xlane.xlu0 %5967
        %5969 = vadd.xlane.f32.xlu0 %v5906
        %v5970 = vpop.xlane.xlu0 %5969
        %5971 = vadd.xlane.f32.xlu0 %v5908
        %v5972 = vpop.xlane.xlu0 %5971
        %5973 = vadd.xlane.f32.xlu0 %v5910
        %v5974 = vpop.xlane.xlu0 %5973
        %5975 = vadd.xlane.f32.xlu0 %v5912
        %v5976 = vpop.xlane.xlu0 %5975
        %5977 = vadd.xlane.f32.xlu0 %v5914
        %v5978 = vpop.xlane.xlu0 %5977
        %5979 = vadd.xlane.f32.xlu0 %v5916
        %v5980 = vpop.xlane.xlu0 %5979
        %5981 = vadd.xlane.f32.xlu0 %v5918
        %v5982 = vpop.xlane.xlu0 %5981
        %5983 = vadd.xlane.f32.xlu0 %v5920
        %v5984 = vpop.xlane.xlu0 %5983
        %5985 = vadd.xlane.f32.xlu0 %v5922
        %v5986 = vpop.xlane.xlu0 %5985
        %5987 = vadd.xlane.f32.xlu0 %v5924
        %v5988 = vpop.xlane.xlu0 %5987
        %5989 = vadd.xlane.f32.xlu0 %v5926
        %v5990 = vpop.xlane.xlu0 %5989
        %5991 = vadd.xlane.f32.xlu0 %v5928
        %v5992 = vpop.xlane.xlu0 %5991
        %5993 = vadd.xlane.f32.xlu0 %v5930
        %v5994 = vpop.xlane.xlu0 %5993
        %5995 = vadd.xlane.f32.xlu0 %v5932
        %v5996 = vpop.xlane.xlu0 %5995
        %5997 = vadd.xlane.f32.xlu0 %v5934
        %v5998 = vpop.xlane.xlu0 %5997
        %5999 = vadd.xlane.f32.xlu0 %v5936
        %v6000 = vpop.xlane.xlu0 %5999
        %6001 = vadd.xlane.f32.xlu0 %v5938
        %v6002 = vpop.xlane.xlu0 %6001
        %v6003 = vrcp.pop %v5940
        %v6004 = vrcp.pop %v5942
        %v6005 = vrcp.pop %v5944
        %v6006 = vrcp.pop %v5946
        %v6007 = vrcp.pop %v5948
        %v6008 = vrcp.pop %v5950
        %v6009 = vrcp.pop %v5952
        %v6010 = vrcp.pop %v5954
        %v6011 = vrcp.pop %v5956
        %v6012 = vrcp.pop %v5958
        %v6013 = vrcp.pop %v5960
        %v6014 = vrcp.pop %v5962
        %v6015 = vrcp.pop %v5964
        %v6016 = vrcp.pop %v5966
        %v6017 = vrcp.pop %v5968
        %v6018 = vrcp.pop %v5970
        %v6019 = vrcp.pop %v5972
        %v6020 = vrcp.pop %v5974
        %v6021 = vrcp.pop %v5976
        %v6022 = vrcp.pop %v5978
        %v6023 = vrcp.pop %v5980
        %v6024 = vrcp.pop %v5982
        %v6025 = vrcp.pop %v5984
        %v6026 = vrcp.pop %v5986
        %v6027 = vrcp.pop %v5988
        %v6028 = vrcp.pop %v5990
        %v6029 = vrcp.pop %v5992
        %v6030 = vrcp.pop %v5994
        %v6031 = vrcp.pop %v5996
        %v6032 = vrcp.pop %v5998
        %v6033 = vrcp.pop %v6000
        %v6034 = vrcp.pop %v6002
        %v6035 = vmul.f32 %v5876, %v6003
        %v6036 = vmul.f32 %v5878, %v6004
        %v6037 = vmul.f32 %v5880, %v6005
        %v6038 = vmul.f32 %v5882, %v6006
        %v6039 = vmul.f32 %v5884, %v6007
        %v6040 = vmul.f32 %v5886, %v6008
        %v6041 = vmul.f32 %v5888, %v6009
        %v6042 = vmul.f32 %v5890, %v6010
        %v6043 = vmul.f32 %v5892, %v6011
        %v6044 = vmul.f32 %v5894, %v6012
        %v6045 = vmul.f32 %v5896, %v6013
        %v6046 = vmul.f32 %v5898, %v6014
        %v6047 = vmul.f32 %v5900, %v6015
        %v6048 = vmul.f32 %v5902, %v6016
        %v6049 = vmul.f32 %v5904, %v6017
        %v6050 = vmul.f32 %v5906, %v6018
        %v6051 = vmul.f32 %v5908, %v6019
        %v6052 = vmul.f32 %v5910, %v6020
        %v6053 = vmul.f32 %v5912, %v6021
        %v6054 = vmul.f32 %v5914, %v6022
        %v6055 = vmul.f32 %v5916, %v6023
        %v6056 = vmul.f32 %v5918, %v6024
        %v6057 = vmul.f32 %v5920, %v6025
        %v6058 = vmul.f32 %v5922, %v6026
        %v6059 = vmul.f32 %v5924, %v6027
        %v6060 = vmul.f32 %v5926, %v6028
        %v6061 = vmul.f32 %v5928, %v6029
        %v6062 = vmul.f32 %v5930, %v6030
        %v6063 = vmul.f32 %v5932, %v6031
        %v6064 = vmul.f32 %v5934, %v6032
        %v6065 = vmul.f32 %v5936, %v6033
        %v6066 = vmul.f32 %v5938, %v6034
        %v6067 = vpack.c.bf16 %v6036, %v6035
        %v6068 = vpack.c.bf16 %v6038, %v6037
        %v6069 = vpack.c.bf16 %v6040, %v6039
        %v6070 = vpack.c.bf16 %v6042, %v6041
        %v6071 = vpack.c.bf16 %v6044, %v6043
        %v6072 = vpack.c.bf16 %v6046, %v6045
        %v6073 = vpack.c.bf16 %v6048, %v6047
        %v6074 = vpack.c.bf16 %v6050, %v6049
        %v6075 = vpack.c.bf16 %v6052, %v6051
        %v6076 = vpack.c.bf16 %v6054, %v6053
        %v6077 = vpack.c.bf16 %v6056, %v6055
        %v6078 = vpack.c.bf16 %v6058, %v6057
        %v6079 = vpack.c.bf16 %v6060, %v6059
        %v6080 = vpack.c.bf16 %v6062, %v6061
        %v6081 = vpack.c.bf16 %v6064, %v6063
        %v6082 = vpack.c.bf16 %v6066, %v6065
        %6083 = vmatprep.subr.bf16.mxu0 0
        %6084 = vmatpush1.bf16.msra.mxu0 %v5569
        %6085 = vmatprep.subr.bf16.mxu0 0
        %6086 = vmatpush1.bf16.msra.mxu0 %v5570
        %6087 = vmatprep.subr.bf16.mxu0 0
        %6088 = vmatpush1.bf16.msra.mxu0 %v5571
        %6089 = vmatprep.subr.bf16.mxu0 0
        %6090 = vmatpush1.bf16.msra.mxu0 %v5572
        %6091 = vmatprep.subr.bf16.mxu0 0
        %6092 = vmatpush1.bf16.msra.mxu0 %v5573
        %6093 = vmatprep.subr.bf16.mxu0 0
        %6094 = vmatpush1.bf16.msra.mxu0 %v5574
        %6095 = vmatprep.subr.bf16.mxu0 0
        %6096 = vmatpush1.bf16.msra.mxu0 %v5575
        %6097 = vmatprep.subr.bf16.mxu0 0
        %6098 = vmatpush1.bf16.msra.mxu0 %v5576
        %6099 = vmatprep.subr.bf16.mxu0 0
        %6100 = vmatpush1.bf16.msra.mxu0 0
        %6101 = vmatprep.subr.bf16.mxu0 0
        %6102 = vmatpush1.bf16.msra.mxu0 0
        %6103 = vmatprep.subr.bf16.mxu0 0
        %6104 = vmatpush1.bf16.msra.mxu0 0
        %6105 = vmatprep.subr.bf16.mxu0 0
        %6106 = vmatpush1.bf16.msra.mxu0 0
        %6107 = vmatprep.subr.bf16.mxu0 0
        %6108 = vmatpush1.bf16.msra.mxu0 0
        %6109 = vmatprep.subr.bf16.mxu0 0
        %6110 = vmatpush1.bf16.msra.mxu0 0
        %6111 = vmatprep.subr.bf16.mxu0 0
        %6112 = vmatpush1.bf16.msra.mxu0 0
        %6113 = vmatprep.subr.bf16.mxu0 0
        %6114 = vmatpush1.bf16.msra.mxu0 0
        %6115 = vmatprep.mubr.bf16.mxu0 0
        %6116 = vmatmul.mubr.bf16.gmra.mrb[0].mxu0 %v6067
        %v6117 = vpop.f32.mrb[0].mxu0
        %v6118 = vadd.f32 0.0, %v6117
        %v6119 = vpop.f32.mrb[0].mxu0
        %v6120 = vpop.f32.mrb[0].mxu0
        %v6121 = vadd.f32 0.0, %v6120
        %v6122 = vpop.f32.mrb[0].mxu0
        %6123 = vmatprep.mubr.bf16.mxu0 0
        %6124 = vmatmul.mubr.bf16.gmra.mrb[0].mxu0 %v6068
        %v6125 = vpop.f32.mrb[0].mxu0
        %v6126 = vadd.f32 0.0, %v6125
        %v6127 = vpop.f32.mrb[0].mxu0
        %v6128 = vpop.f32.mrb[0].mxu0
        %v6129 = vadd.f32 0.0, %v6128
        %v6130 = vpop.f32.mrb[0].mxu0
        %6131 = vmatprep.mubr.bf16.mxu0 0
        %6132 = vmatmul.mubr.bf16.gmra.mrb[0].mxu0 %v6069
        %v6133 = vpop.f32.mrb[0].mxu0
        %v6134 = vadd.f32 0.0, %v6133
        %v6135 = vpop.f32.mrb[0].mxu0
        %v6136 = vpop.f32.mrb[0].mxu0
        %v6137 = vadd.f32 0.0, %v6136
        %v6138 = vpop.f32.mrb[0].mxu0
        %6139 = vmatprep.mubr.bf16.mxu0 0
        %6140 = vmatmul.mubr.bf16.gmra.mrb[0].mxu0 %v6070
        %v6141 = vpop.f32.mrb[0].mxu0
        %v6142 = vadd.f32 0.0, %v6141
        %v6143 = vpop.f32.mrb[0].mxu0
        %v6144 = vpop.f32.mrb[0].mxu0
        %v6145 = vadd.f32 0.0, %v6144
        %v6146 = vpop.f32.mrb[0].mxu0
        %6147 = vmatprep.mubr.bf16.mxu0 0
        %6148 = vmatmul.mubr.bf16.gmra.mrb[0].mxu0 %v6071
        %v6149 = vpop.f32.mrb[0].mxu0
        %v6150 = vadd.f32 0.0, %v6149
        %v6151 = vpop.f32.mrb[0].mxu0
        %v6152 = vpop.f32.mrb[0].mxu0
        %v6153 = vadd.f32 0.0, %v6152
        %v6154 = vpop.f32.mrb[0].mxu0
        %6155 = vmatprep.mubr.bf16.mxu0 0
        %6156 = vmatmul.mubr.bf16.gmra.mrb[0].mxu0 %v6072
        %v6157 = vpop.f32.mrb[0].mxu0
        %v6158 = vadd.f32 0.0, %v6157
        %v6159 = vpop.f32.mrb[0].mxu0
        %v6160 = vpop.f32.mrb[0].mxu0
        %v6161 = vadd.f32 0.0, %v6160
        %v6162 = vpop.f32.mrb[0].mxu0
        %6163 = vmatprep.mubr.bf16.mxu0 0
        %6164 = vmatmul.mubr.bf16.gmra.mrb[0].mxu0 %v6073
        %v6165 = vpop.f32.mrb[0].mxu0
        %v6166 = vadd.f32 0.0, %v6165
        %v6167 = vpop.f32.mrb[0].mxu0
        %v6168 = vpop.f32.mrb[0].mxu0
        %v6169 = vadd.f32 0.0, %v6168
        %v6170 = vpop.f32.mrb[0].mxu0
        %6171 = vmatprep.mubr.bf16.mxu0 0
        %6172 = vmatmul.mubr.bf16.gmra.mrb[0].mxu0 %v6074
        %v6173 = vpop.f32.mrb[0].mxu0
        %v6174 = vadd.f32 0.0, %v6173
        %v6175 = vpop.f32.mrb[0].mxu0
        %v6176 = vpop.f32.mrb[0].mxu0
        %v6177 = vadd.f32 0.0, %v6176
        %v6178 = vpop.f32.mrb[0].mxu0
        %6179 = vdwg.mxu0
        %6180 = vmatprep.subr.bf16.mxu0 0
        %6181 = vmatpush1.bf16.msra.mxu0 %v5577
        %6182 = vmatprep.subr.bf16.mxu0 0
        %6183 = vmatpush1.bf16.msra.mxu0 %v5578
        %6184 = vmatprep.subr.bf16.mxu0 0
        %6185 = vmatpush1.bf16.msra.mxu0 %v5579
        %6186 = vmatprep.subr.bf16.mxu0 0
        %6187 = vmatpush1.bf16.msra.mxu0 %v5580
        %6188 = vmatprep.subr.bf16.mxu0 0
        %6189 = vmatpush1.bf16.msra.mxu0 %v5581
        %6190 = vmatprep.subr.bf16.mxu0 0
        %6191 = vmatpush1.bf16.msra.mxu0 %v5582
        %6192 = vmatprep.subr.bf16.mxu0 0
        %6193 = vmatpush1.bf16.msra.mxu0 %v5583
        %6194 = vmatprep.subr.bf16.mxu0 0
        %6195 = vmatpush1.bf16.msra.mxu0 %v5584
        %6196 = vmatprep.subr.bf16.mxu0 0
        %6197 = vmatpush1.bf16.msra.mxu0 0
        %6198 = vmatprep.subr.bf16.mxu0 0
        %6199 = vmatpush1.bf16.msra.mxu0 0
        %6200 = vmatprep.subr.bf16.mxu0 0
        %6201 = vmatpush1.bf16.msra.mxu0 0
        %6202 = vmatprep.subr.bf16.mxu0 0
        %6203 = vmatpush1.bf16.msra.mxu0 0
        %6204 = vmatprep.subr.bf16.mxu0 0
        %6205 = vmatpush1.bf16.msra.mxu0 0
        %6206 = vmatprep.subr.bf16.mxu0 0
        %6207 = vmatpush1.bf16.msra.mxu0 0
        %6208 = vmatprep.subr.bf16.mxu0 0
        %6209 = vmatpush1.bf16.msra.mxu0 0
        %6210 = vmatprep.subr.bf16.mxu0 0
        %6211 = vmatpush1.bf16.msra.mxu0 0
        %6212 = vmatprep.mubr.bf16.mxu0 0
        %6213 = vmatmul.mubr.bf16.gmra.mrb[0].mxu0 %v6075
        %v6214 = vpop.f32.mrb[0].mxu0
        %v6215 = vadd.f32 0.0, %v6214
        %v6216 = vpop.f32.mrb[0].mxu0
        %v6217 = vpop.f32.mrb[0].mxu0
        %v6218 = vadd.f32 0.0, %v6217
        %v6219 = vpop.f32.mrb[0].mxu0
        %6220 = vmatprep.mubr.bf16.mxu0 0
        %6221 = vmatmul.mubr.bf16.gmra.mrb[0].mxu0 %v6076
        %v6222 = vpop.f32.mrb[0].mxu0
        %v6223 = vadd.f32 0.0, %v6222
        %v6224 = vpop.f32.mrb[0].mxu0
        %v6225 = vpop.f32.mrb[0].mxu0
        %v6226 = vadd.f32 0.0, %v6225
        %v6227 = vpop.f32.mrb[0].mxu0
        %6228 = vmatprep.mubr.bf16.mxu0 0
        %6229 = vmatmul.mubr.bf16.gmra.mrb[0].mxu0 %v6077
        %v6230 = vpop.f32.mrb[0].mxu0
        %v6231 = vadd.f32 0.0, %v6230
        %v6232 = vpop.f32.mrb[0].mxu0
        %v6233 = vpop.f32.mrb[0].mxu0
        %v6234 = vadd.f32 0.0, %v6233
        %v6235 = vpop.f32.mrb[0].mxu0
        %6236 = vmatprep.mubr.bf16.mxu0 0
        %6237 = vmatmul.mubr.bf16.gmra.mrb[0].mxu0 %v6078
        %v6238 = vpop.f32.mrb[0].mxu0
        %v6239 = vadd.f32 0.0, %v6238
        %v6240 = vpop.f32.mrb[0].mxu0
        %v6241 = vpop.f32.mrb[0].mxu0
        %v6242 = vadd.f32 0.0, %v6241
        %v6243 = vpop.f32.mrb[0].mxu0
        %6244 = vmatprep.mubr.bf16.mxu0 0
        %6245 = vmatmul.mubr.bf16.gmra.mrb[0].mxu0 %v6079
        %v6246 = vpop.f32.mrb[0].mxu0
        %v6247 = vadd.f32 0.0, %v6246
        %v6248 = vpop.f32.mrb[0].mxu0
        %v6249 = vpop.f32.mrb[0].mxu0
        %v6250 = vadd.f32 0.0, %v6249
        %v6251 = vpop.f32.mrb[0].mxu0
        %6252 = vmatprep.mubr.bf16.mxu0 0
        %6253 = vmatmul.mubr.bf16.gmra.mrb[0].mxu0 %v6080
        %v6254 = vpop.f32.mrb[0].mxu0
        %v6255 = vadd.f32 0.0, %v6254
        %v6256 = vpop.f32.mrb[0].mxu0
        %v6257 = vpop.f32.mrb[0].mxu0
        %v6258 = vadd.f32 0.0, %v6257
        %v6259 = vpop.f32.mrb[0].mxu0
        %6260 = vmatprep.mubr.bf16.mxu0 0
        %6261 = vmatmul.mubr.bf16.gmra.mrb[0].mxu0 %v6081
        %v6262 = vpop.f32.mrb[0].mxu0
        %v6263 = vadd.f32 0.0, %v6262
        %v6264 = vpop.f32.mrb[0].mxu0
        %v6265 = vpop.f32.mrb[0].mxu0
        %v6266 = vadd.f32 0.0, %v6265
        %v6267 = vpop.f32.mrb[0].mxu0
        %6268 = vmatprep.mubr.bf16.mxu0 0
        %6269 = vmatmul.mubr.bf16.gmra.mrb[0].mxu0 %v6082
        %v6270 = vpop.f32.mrb[0].mxu0
        %v6271 = vadd.f32 0.0, %v6270
        %v6272 = vpop.f32.mrb[0].mxu0
        %v6273 = vpop.f32.mrb[0].mxu0
        %v6274 = vadd.f32 0.0, %v6273
        %v6275 = vpop.f32.mrb[0].mxu0
        %6276 = vdwg.mxu0
        %v6277 = vpack.c.bf16 %v4656, %v4652
        %v6278 = vpack.c.bf16 %v4666, %v4662
        %v6279 = vpack.c.bf16 %v4676, %v4672
        %v6280 = vpack.c.bf16 %v4686, %v4682
        %v6281 = vpack.c.bf16 %v4696, %v4692
        %v6282 = vpack.c.bf16 %v4706, %v4702
        %v6283 = vpack.c.bf16 %v4716, %v4712
        %v6284 = vpack.c.bf16 %v4726, %v4722
        %v6285 = vpack.c.bf16 %v4736, %v4732
        %v6286 = vpack.c.bf16 %v4746, %v4742
        %v6287 = vpack.c.bf16 %v4756, %v4752
        %v6288 = vpack.c.bf16 %v4766, %v4762
        %v6289 = vpack.c.bf16 %v4776, %v4772
        %v6290 = vpack.c.bf16 %v4786, %v4782
        %v6291 = vpack.c.bf16 %v4796, %v4792
        %v6292 = vpack.c.bf16 %v4806, %v4802
        %v6293 = vpack.c.bf16 %v5159, %v5155
        %v6294 = vpack.c.bf16 %v5169, %v5165
        %v6295 = vpack.c.bf16 %v5179, %v5175
        %v6296 = vpack.c.bf16 %v5189, %v5185
        %v6297 = vpack.c.bf16 %v5199, %v5195
        %v6298 = vpack.c.bf16 %v5209, %v5205
        %v6299 = vpack.c.bf16 %v5219, %v5215
        %v6300 = vpack.c.bf16 %v5229, %v5225
        %v6301 = vpack.c.bf16 %v5239, %v5235
        %v6302 = vpack.c.bf16 %v5249, %v5245
        %v6303 = vpack.c.bf16 %v5259, %v5255
        %v6304 = vpack.c.bf16 %v5269, %v5265
        %v6305 = vpack.c.bf16 %v5279, %v5275
        %v6306 = vpack.c.bf16 %v5289, %v5285
        %v6307 = vpack.c.bf16 %v5299, %v5295
        %v6308 = vpack.c.bf16 %v5309, %v5305
        %v6309 = vpack.c.bf16 %v5352, %v5348
        %v6310 = vpack.c.bf16 %v5362, %v5358
        %v6311 = vpack.c.bf16 %v5372, %v5368
        %v6312 = vpack.c.bf16 %v5382, %v5378
        %v6313 = vpack.c.bf16 %v5392, %v5388
        %v6314 = vpack.c.bf16 %v5402, %v5398
        %v6315 = vpack.c.bf16 %v5412, %v5408
        %v6316 = vpack.c.bf16 %v5422, %v5418
        %v6317 = vpack.c.bf16 %v5432, %v5428
        %v6318 = vpack.c.bf16 %v5442, %v5438
        %v6319 = vpack.c.bf16 %v5452, %v5448
        %v6320 = vpack.c.bf16 %v5462, %v5458
        %v6321 = vpack.c.bf16 %v5472, %v5468
        %v6322 = vpack.c.bf16 %v5482, %v5478
        %v6323 = vpack.c.bf16 %v5492, %v5488
        %v6324 = vpack.c.bf16 %v5502, %v5498
        %6325 = vmatprep.subr.bf16.mxu0 0
        %6326 = vmatpush1.bf16.xpose.msra.mxu0 %v6293
        %6327 = vmatprep.subr.bf16.mxu0 0
        %6328 = vmatpush1.bf16.xpose.msra.mxu0 %v6294
        %6329 = vmatprep.subr.bf16.mxu0 0
        %6330 = vmatpush1.bf16.xpose.msra.mxu0 %v6295
        %6331 = vmatprep.subr.bf16.mxu0 0
        %6332 = vmatpush1.bf16.xpose.msra.mxu0 %v6296
        %6333 = vmatprep.subr.bf16.mxu0 0
        %6334 = vmatpush1.bf16.xpose.msra.mxu0 %v6297
        %6335 = vmatprep.subr.bf16.mxu0 0
        %6336 = vmatpush1.bf16.xpose.msra.mxu0 %v6298
        %6337 = vmatprep.subr.bf16.mxu0 0
        %6338 = vmatpush1.bf16.xpose.msra.mxu0 %v6299
        %6339 = vmatprep.subr.bf16.mxu0 0
        %6340 = vmatpush1.bf16.xpose.msra.mxu0 %v6300
        %6341 = vmatprep.subr.bf16.mxu0 0
        %6342 = vmatpush1.bf16.xpose.msra.mxu0 0
        %6343 = vmatprep.subr.bf16.mxu0 0
        %6344 = vmatpush1.bf16.xpose.msra.mxu0 0
        %6345 = vmatprep.subr.bf16.mxu0 0
        %6346 = vmatpush1.bf16.xpose.msra.mxu0 0
        %6347 = vmatprep.subr.bf16.mxu0 0
        %6348 = vmatpush1.bf16.xpose.msra.mxu0 0
        %6349 = vmatprep.subr.bf16.mxu0 0
        %6350 = vmatpush1.bf16.xpose.msra.mxu0 0
        %6351 = vmatprep.subr.bf16.mxu0 0
        %6352 = vmatpush1.bf16.xpose.msra.mxu0 0
        %6353 = vmatprep.subr.bf16.mxu0 0
        %6354 = vmatpush1.bf16.xpose.msra.mxu0 0
        %6355 = vmatprep.subr.bf16.mxu0 0
        %6356 = vmatpush1.bf16.xpose.msra.mxu0 0
        %6357 = vmatprep.mubr.bf16.mxu0 0
        %6358 = vmatmul.mubr.bf16.gmra.mrb[0].mxu0 %v6277
        %v6359 = vpop.f32.mrb[0].mxu0
        %v6360 = vadd.f32 0.0, %v6359
        %v6361 = vpop.f32.mrb[0].mxu0
        %v6362 = vpop.f32.mrb[0].mxu0
        %v6363 = vadd.f32 0.0, %v6362
        %v6364 = vpop.f32.mrb[0].mxu0
        %6365 = vmatprep.mubr.bf16.mxu0 0
        %6366 = vmatmul.mubr.bf16.gmra.mrb[0].mxu0 %v6278
        %v6367 = vpop.f32.mrb[0].mxu0
        %v6368 = vadd.f32 0.0, %v6367
        %v6369 = vpop.f32.mrb[0].mxu0
        %v6370 = vpop.f32.mrb[0].mxu0
        %v6371 = vadd.f32 0.0, %v6370
        %v6372 = vpop.f32.mrb[0].mxu0
        %6373 = vmatprep.mubr.bf16.mxu0 0
        %6374 = vmatmul.mubr.bf16.gmra.mrb[0].mxu0 %v6279
        %v6375 = vpop.f32.mrb[0].mxu0
        %v6376 = vadd.f32 0.0, %v6375
        %v6377 = vpop.f32.mrb[0].mxu0
        %v6378 = vpop.f32.mrb[0].mxu0
        %v6379 = vadd.f32 0.0, %v6378
        %v6380 = vpop.f32.mrb[0].mxu0
        %6381 = vmatprep.mubr.bf16.mxu0 0
        %6382 = vmatmul.mubr.bf16.gmra.mrb[0].mxu0 %v6280
        %v6383 = vpop.f32.mrb[0].mxu0
        %v6384 = vadd.f32 0.0, %v6383
        %v6385 = vpop.f32.mrb[0].mxu0
        %v6386 = vpop.f32.mrb[0].mxu0
        %v6387 = vadd.f32 0.0, %v6386
        %v6388 = vpop.f32.mrb[0].mxu0
        %6389 = vmatprep.mubr.bf16.mxu0 0
        %6390 = vmatmul.mubr.bf16.gmra.mrb[0].mxu0 %v6281
        %v6391 = vpop.f32.mrb[0].mxu0
        %v6392 = vadd.f32 0.0, %v6391
        %v6393 = vpop.f32.mrb[0].mxu0
        %v6394 = vpop.f32.mrb[0].mxu0
        %v6395 = vadd.f32 0.0, %v6394
        %v6396 = vpop.f32.mrb[0].mxu0
        %6397 = vmatprep.mubr.bf16.mxu0 0
        %6398 = vmatmul.mubr.bf16.gmra.mrb[0].mxu0 %v6282
        %v6399 = vpop.f32.mrb[0].mxu0
        %v6400 = vadd.f32 0.0, %v6399
        %v6401 = vpop.f32.mrb[0].mxu0
        %v6402 = vpop.f32.mrb[0].mxu0
        %v6403 = vadd.f32 0.0, %v6402
        %v6404 = vpop.f32.mrb[0].mxu0
        %6405 = vmatprep.mubr.bf16.mxu0 0
        %6406 = vmatmul.mubr.bf16.gmra.mrb[0].mxu0 %v6283
        %v6407 = vpop.f32.mrb[0].mxu0
        %v6408 = vadd.f32 0.0, %v6407
        %v6409 = vpop.f32.mrb[0].mxu0
        %v6410 = vpop.f32.mrb[0].mxu0
        %v6411 = vadd.f32 0.0, %v6410
        %v6412 = vpop.f32.mrb[0].mxu0
        %6413 = vmatprep.mubr.bf16.mxu0 0
        %6414 = vmatmul.mubr.bf16.gmra.mrb[0].mxu0 %v6284
        %v6415 = vpop.f32.mrb[0].mxu0
        %v6416 = vadd.f32 0.0, %v6415
        %v6417 = vpop.f32.mrb[0].mxu0
        %v6418 = vpop.f32.mrb[0].mxu0
        %v6419 = vadd.f32 0.0, %v6418
        %v6420 = vpop.f32.mrb[0].mxu0
        %6421 = vdwg.mxu0
        %6422 = vmatprep.subr.bf16.mxu0 0
        %6423 = vmatpush1.bf16.xpose.msra.mxu0 %v6301
        %6424 = vmatprep.subr.bf16.mxu0 0
        %6425 = vmatpush1.bf16.xpose.msra.mxu0 %v6302
        %6426 = vmatprep.subr.bf16.mxu0 0
        %6427 = vmatpush1.bf16.xpose.msra.mxu0 %v6303
        %6428 = vmatprep.subr.bf16.mxu0 0
        %6429 = vmatpush1.bf16.xpose.msra.mxu0 %v6304
        %6430 = vmatprep.subr.bf16.mxu0 0
        %6431 = vmatpush1.bf16.xpose.msra.mxu0 %v6305
        %6432 = vmatprep.subr.bf16.mxu0 0
        %6433 = vmatpush1.bf16.xpose.msra.mxu0 %v6306
        %6434 = vmatprep.subr.bf16.mxu0 0
        %6435 = vmatpush1.bf16.xpose.msra.mxu0 %v6307
        %6436 = vmatprep.subr.bf16.mxu0 0
        %6437 = vmatpush1.bf16.xpose.msra.mxu0 %v6308
        %6438 = vmatprep.subr.bf16.mxu0 0
        %6439 = vmatpush1.bf16.xpose.msra.mxu0 0
        %6440 = vmatprep.subr.bf16.mxu0 0
        %6441 = vmatpush1.bf16.xpose.msra.mxu0 0
        %6442 = vmatprep.subr.bf16.mxu0 0
        %6443 = vmatpush1.bf16.xpose.msra.mxu0 0
        %6444 = vmatprep.subr.bf16.mxu0 0
        %6445 = vmatpush1.bf16.xpose.msra.mxu0 0
        %6446 = vmatprep.subr.bf16.mxu0 0
        %6447 = vmatpush1.bf16.xpose.msra.mxu0 0
        %6448 = vmatprep.subr.bf16.mxu0 0
        %6449 = vmatpush1.bf16.xpose.msra.mxu0 0
        %6450 = vmatprep.subr.bf16.mxu0 0
        %6451 = vmatpush1.bf16.xpose.msra.mxu0 0
        %6452 = vmatprep.subr.bf16.mxu0 0
        %6453 = vmatpush1.bf16.xpose.msra.mxu0 0
        %6454 = vmatprep.mubr.bf16.mxu0 0
        %6455 = vmatmul.mubr.bf16.gmra.mrb[0].mxu0 %v6285
        %v6456 = vpop.f32.mrb[0].mxu0
        %v6457 = vadd.f32 0.0, %v6456
        %v6458 = vpop.f32.mrb[0].mxu0
        %v6459 = vpop.f32.mrb[0].mxu0
        %v6460 = vadd.f32 0.0, %v6459
        %v6461 = vpop.f32.mrb[0].mxu0
        %6462 = vmatprep.mubr.bf16.mxu0 0
        %6463 = vmatmul.mubr.bf16.gmra.mrb[0].mxu0 %v6286
        %v6464 = vpop.f32.mrb[0].mxu0
        %v6465 = vadd.f32 0.0, %v6464
        %v6466 = vpop.f32.mrb[0].mxu0
        %v6467 = vpop.f32.mrb[0].mxu0
        %v6468 = vadd.f32 0.0, %v6467
        %v6469 = vpop.f32.mrb[0].mxu0
        %6470 = vmatprep.mubr.bf16.mxu0 0
        %6471 = vmatmul.mubr.bf16.gmra.mrb[0].mxu0 %v6287
        %v6472 = vpop.f32.mrb[0].mxu0
        %v6473 = vadd.f32 0.0, %v6472
        %v6474 = vpop.f32.mrb[0].mxu0
        %v6475 = vpop.f32.mrb[0].mxu0
        %v6476 = vadd.f32 0.0, %v6475
        %v6477 = vpop.f32.mrb[0].mxu0
        %6478 = vmatprep.mubr.bf16.mxu0 0
        %6479 = vmatmul.mubr.bf16.gmra.mrb[0].mxu0 %v6288
        %v6480 = vpop.f32.mrb[0].mxu0
        %v6481 = vadd.f32 0.0, %v6480
        %v6482 = vpop.f32.mrb[0].mxu0
        %v6483 = vpop.f32.mrb[0].mxu0
        %v6484 = vadd.f32 0.0, %v6483
        %v6485 = vpop.f32.mrb[0].mxu0
        %6486 = vmatprep.mubr.bf16.mxu0 0
        %6487 = vmatmul.mubr.bf16.gmra.mrb[0].mxu0 %v6289
        %v6488 = vpop.f32.mrb[0].mxu0
        %v6489 = vadd.f32 0.0, %v6488
        %v6490 = vpop.f32.mrb[0].mxu0
        %v6491 = vpop.f32.mrb[0].mxu0
        %v6492 = vadd.f32 0.0, %v6491
        %v6493 = vpop.f32.mrb[0].mxu0
        %6494 = vmatprep.mubr.bf16.mxu0 0
        %6495 = vmatmul.mubr.bf16.gmra.mrb[0].mxu0 %v6290
        %v6496 = vpop.f32.mrb[0].mxu0
        %v6497 = vadd.f32 0.0, %v6496
        %v6498 = vpop.f32.mrb[0].mxu0
        %v6499 = vpop.f32.mrb[0].mxu0
        %v6500 = vadd.f32 0.0, %v6499
        %v6501 = vpop.f32.mrb[0].mxu0
        %6502 = vmatprep.mubr.bf16.mxu0 0
        %6503 = vmatmul.mubr.bf16.gmra.mrb[0].mxu0 %v6291
        %v6504 = vpop.f32.mrb[0].mxu0
        %v6505 = vadd.f32 0.0, %v6504
        %v6506 = vpop.f32.mrb[0].mxu0
        %v6507 = vpop.f32.mrb[0].mxu0
        %v6508 = vadd.f32 0.0, %v6507
        %v6509 = vpop.f32.mrb[0].mxu0
        %6510 = vmatprep.mubr.bf16.mxu0 0
        %6511 = vmatmul.mubr.bf16.gmra.mrb[0].mxu0 %v6292
        %v6512 = vpop.f32.mrb[0].mxu0
        %v6513 = vadd.f32 0.0, %v6512
        %v6514 = vpop.f32.mrb[0].mxu0
        %v6515 = vpop.f32.mrb[0].mxu0
        %v6516 = vadd.f32 0.0, %v6515
        %v6517 = vpop.f32.mrb[0].mxu0
        %6518 = vdwg.mxu0
        %6519 = vmax.xlane.f32.xlu0 %v6360
        %v6520 = vpop.xlane.xlu0 %6519
        %6521 = vmax.xlane.f32.xlu0 %v6363
        %v6522 = vpop.xlane.xlu0 %6521
        %6523 = vmax.xlane.f32.xlu0 %v6368
        %v6524 = vpop.xlane.xlu0 %6523
        %6525 = vmax.xlane.f32.xlu0 %v6371
        %v6526 = vpop.xlane.xlu0 %6525
        %6527 = vmax.xlane.f32.xlu0 %v6376
        %v6528 = vpop.xlane.xlu0 %6527
        %6529 = vmax.xlane.f32.xlu0 %v6379
        %v6530 = vpop.xlane.xlu0 %6529
        %6531 = vmax.xlane.f32.xlu0 %v6384
        %v6532 = vpop.xlane.xlu0 %6531
        %6533 = vmax.xlane.f32.xlu0 %v6387
        %v6534 = vpop.xlane.xlu0 %6533
        %6535 = vmax.xlane.f32.xlu0 %v6392
        %v6536 = vpop.xlane.xlu0 %6535
        %6537 = vmax.xlane.f32.xlu0 %v6395
        %v6538 = vpop.xlane.xlu0 %6537
        %6539 = vmax.xlane.f32.xlu0 %v6400
        %v6540 = vpop.xlane.xlu0 %6539
        %6541 = vmax.xlane.f32.xlu0 %v6403
        %v6542 = vpop.xlane.xlu0 %6541
        %6543 = vmax.xlane.f32.xlu0 %v6408
        %v6544 = vpop.xlane.xlu0 %6543
        %6545 = vmax.xlane.f32.xlu0 %v6411
        %v6546 = vpop.xlane.xlu0 %6545
        %6547 = vmax.xlane.f32.xlu0 %v6416
        %v6548 = vpop.xlane.xlu0 %6547
        %6549 = vmax.xlane.f32.xlu0 %v6419
        %v6550 = vpop.xlane.xlu0 %6549
        %6551 = vmax.xlane.f32.xlu0 %v6457
        %v6552 = vpop.xlane.xlu0 %6551
        %6553 = vmax.xlane.f32.xlu0 %v6460
        %v6554 = vpop.xlane.xlu0 %6553
        %6555 = vmax.xlane.f32.xlu0 %v6465
        %v6556 = vpop.xlane.xlu0 %6555
        %6557 = vmax.xlane.f32.xlu0 %v6468
        %v6558 = vpop.xlane.xlu0 %6557
        %6559 = vmax.xlane.f32.xlu0 %v6473
        %v6560 = vpop.xlane.xlu0 %6559
        %6561 = vmax.xlane.f32.xlu0 %v6476
        %v6562 = vpop.xlane.xlu0 %6561
        %6563 = vmax.xlane.f32.xlu0 %v6481
        %v6564 = vpop.xlane.xlu0 %6563
        %6565 = vmax.xlane.f32.xlu0 %v6484
        %v6566 = vpop.xlane.xlu0 %6565
        %6567 = vmax.xlane.f32.xlu0 %v6489
        %v6568 = vpop.xlane.xlu0 %6567
        %6569 = vmax.xlane.f32.xlu0 %v6492
        %v6570 = vpop.xlane.xlu0 %6569
        %6571 = vmax.xlane.f32.xlu0 %v6497
        %v6572 = vpop.xlane.xlu0 %6571
        %6573 = vmax.xlane.f32.xlu0 %v6500
        %v6574 = vpop.xlane.xlu0 %6573
        %6575 = vmax.xlane.f32.xlu0 %v6505
        %v6576 = vpop.xlane.xlu0 %6575
        %6577 = vmax.xlane.f32.xlu0 %v6508
        %v6578 = vpop.xlane.xlu0 %6577
        %6579 = vmax.xlane.f32.xlu0 %v6513
        %v6580 = vpop.xlane.xlu0 %6579
        %6581 = vmax.xlane.f32.xlu0 %v6516
        %v6582 = vpop.xlane.xlu0 %6581
        %v6583 = vsub.f32 %v6360, %v6520
        %v6584 = vsub.f32 %v6363, %v6522
        %v6585 = vsub.f32 %v6368, %v6524
        %v6586 = vsub.f32 %v6371, %v6526
        %v6587 = vsub.f32 %v6376, %v6528
        %v6588 = vsub.f32 %v6379, %v6530
        %v6589 = vsub.f32 %v6384, %v6532
        %v6590 = vsub.f32 %v6387, %v6534
        %v6591 = vsub.f32 %v6392, %v6536
        %v6592 = vsub.f32 %v6395, %v6538
        %v6593 = vsub.f32 %v6400, %v6540
        %v6594 = vsub.f32 %v6403, %v6542
        %v6595 = vsub.f32 %v6408, %v6544
        %v6596 = vsub.f32 %v6411, %v6546
        %v6597 = vsub.f32 %v6416, %v6548
        %v6598 = vsub.f32 %v6419, %v6550
        %v6599 = vsub.f32 %v6457, %v6552
        %v6600 = vsub.f32 %v6460, %v6554
        %v6601 = vsub.f32 %v6465, %v6556
        %v6602 = vsub.f32 %v6468, %v6558
        %v6603 = vsub.f32 %v6473, %v6560
        %v6604 = vsub.f32 %v6476, %v6562
        %v6605 = vsub.f32 %v6481, %v6564
        %v6606 = vsub.f32 %v6484, %v6566
        %v6607 = vsub.f32 %v6489, %v6568
        %v6608 = vsub.f32 %v6492, %v6570
        %v6609 = vsub.f32 %v6497, %v6572
        %v6610 = vsub.f32 %v6500, %v6574
        %v6611 = vsub.f32 %v6505, %v6576
        %v6612 = vsub.f32 %v6508, %v6578
        %v6613 = vsub.f32 %v6513, %v6580
        %v6614 = vsub.f32 %v6516, %v6582
        %v6615 = vmul.f32 %v6583, 1.442695
        %v6616 = vpow.pop %v6615
        %v6617 = vmul.f32 %v6584, 1.442695
        %v6618 = vpow.pop %v6617
        %v6619 = vmul.f32 %v6585, 1.442695
        %v6620 = vpow.pop %v6619
        %v6621 = vmul.f32 %v6586, 1.442695
        %v6622 = vpow.pop %v6621
        %v6623 = vmul.f32 %v6587, 1.442695
        %v6624 = vpow.pop %v6623
        %v6625 = vmul.f32 %v6588, 1.442695
        %v6626 = vpow.pop %v6625
        %v6627 = vmul.f32 %v6589, 1.442695
        %v6628 = vpow.pop %v6627
        %v6629 = vmul.f32 %v6590, 1.442695
        %v6630 = vpow.pop %v6629
        %v6631 = vmul.f32 %v6591, 1.442695
        %v6632 = vpow.pop %v6631
        %v6633 = vmul.f32 %v6592, 1.442695
        %v6634 = vpow.pop %v6633
        %v6635 = vmul.f32 %v6593, 1.442695
        %v6636 = vpow.pop %v6635
        %v6637 = vmul.f32 %v6594, 1.442695
        %v6638 = vpow.pop %v6637
        %v6639 = vmul.f32 %v6595, 1.442695
        %v6640 = vpow.pop %v6639
        %v6641 = vmul.f32 %v6596, 1.442695
        %v6642 = vpow.pop %v6641
        %v6643 = vmul.f32 %v6597, 1.442695
        %v6644 = vpow.pop %v6643
        %v6645 = vmul.f32 %v6598, 1.442695
        %v6646 = vpow.pop %v6645
        %v6647 = vmul.f32 %v6599, 1.442695
        %v6648 = vpow.pop %v6647
        %v6649 = vmul.f32 %v6600, 1.442695
        %v6650 = vpow.pop %v6649
        %v6651 = vmul.f32 %v6601, 1.442695
        %v6652 = vpow.pop %v6651
        %v6653 = vmul.f32 %v6602, 1.442695
        %v6654 = vpow.pop %v6653
        %v6655 = vmul.f32 %v6603, 1.442695
        %v6656 = vpow.pop %v6655
        %v6657 = vmul.f32 %v6604, 1.442695
        %v6658 = vpow.pop %v6657
        %v6659 = vmul.f32 %v6605, 1.442695
        %v6660 = vpow.pop %v6659
        %v6661 = vmul.f32 %v6606, 1.442695
        %v6662 = vpow.pop %v6661
        %v6663 = vmul.f32 %v6607, 1.442695
        %v6664 = vpow.pop %v6663
        %v6665 = vmul.f32 %v6608, 1.442695
        %v6666 = vpow.pop %v6665
        %v6667 = vmul.f32 %v6609, 1.442695
        %v6668 = vpow.pop %v6667
        %v6669 = vmul.f32 %v6610, 1.442695
        %v6670 = vpow.pop %v6669
        %v6671 = vmul.f32 %v6611, 1.442695
        %v6672 = vpow.pop %v6671
        %v6673 = vmul.f32 %v6612, 1.442695
        %v6674 = vpow.pop %v6673
        %v6675 = vmul.f32 %v6613, 1.442695
        %v6676 = vpow.pop %v6675
        %v6677 = vmul.f32 %v6614, 1.442695
        %v6678 = vpow.pop %v6677
        %6679 = vadd.xlane.f32.xlu0 %v6616
        %v6680 = vpop.xlane.xlu0 %6679
        %6681 = vadd.xlane.f32.xlu0 %v6618
        %v6682 = vpop.xlane.xlu0 %6681
        %6683 = vadd.xlane.f32.xlu0 %v6620
        %v6684 = vpop.xlane.xlu0 %6683
        %6685 = vadd.xlane.f32.xlu0 %v6622
        %v6686 = vpop.xlane.xlu0 %6685
        %6687 = vadd.xlane.f32.xlu0 %v6624
        %v6688 = vpop.xlane.xlu0 %6687
        %6689 = vadd.xlane.f32.xlu0 %v6626
        %v6690 = vpop.xlane.xlu0 %6689
        %6691 = vadd.xlane.f32.xlu0 %v6628
        %v6692 = vpop.xlane.xlu0 %6691
        %6693 = vadd.xlane.f32.xlu0 %v6630
        %v6694 = vpop.xlane.xlu0 %6693
        %6695 = vadd.xlane.f32.xlu0 %v6632
        %v6696 = vpop.xlane.xlu0 %6695
        %6697 = vadd.xlane.f32.xlu0 %v6634
        %v6698 = vpop.xlane.xlu0 %6697
        %6699 = vadd.xlane.f32.xlu0 %v6636
        %v6700 = vpop.xlane.xlu0 %6699
        %6701 = vadd.xlane.f32.xlu0 %v6638
        %v6702 = vpop.xlane.xlu0 %6701
        %6703 = vadd.xlane.f32.xlu0 %v6640
        %v6704 = vpop.xlane.xlu0 %6703
        %6705 = vadd.xlane.f32.xlu0 %v6642
        %v6706 = vpop.xlane.xlu0 %6705
        %6707 = vadd.xlane.f32.xlu0 %v6644
        %v6708 = vpop.xlane.xlu0 %6707
        %6709 = vadd.xlane.f32.xlu0 %v6646
        %v6710 = vpop.xlane.xlu0 %6709
        %6711 = vadd.xlane.f32.xlu0 %v6648
        %v6712 = vpop.xlane.xlu0 %6711
        %6713 = vadd.xlane.f32.xlu0 %v6650
        %v6714 = vpop.xlane.xlu0 %6713
        %6715 = vadd.xlane.f32.xlu0 %v6652
        %v6716 = vpop.xlane.xlu0 %6715
        %6717 = vadd.xlane.f32.xlu0 %v6654
        %v6718 = vpop.xlane.xlu0 %6717
        %6719 = vadd.xlane.f32.xlu0 %v6656
        %v6720 = vpop.xlane.xlu0 %6719
        %6721 = vadd.xlane.f32.xlu0 %v6658
        %v6722 = vpop.xlane.xlu0 %6721
        %6723 = vadd.xlane.f32.xlu0 %v6660
        %v6724 = vpop.xlane.xlu0 %6723
        %6725 = vadd.xlane.f32.xlu0 %v6662
        %v6726 = vpop.xlane.xlu0 %6725
        %6727 = vadd.xlane.f32.xlu0 %v6664
        %v6728 = vpop.xlane.xlu0 %6727
        %6729 = vadd.xlane.f32.xlu0 %v6666
        %v6730 = vpop.xlane.xlu0 %6729
        %6731 = vadd.xlane.f32.xlu0 %v6668
        %v6732 = vpop.xlane.xlu0 %6731
        %6733 = vadd.xlane.f32.xlu0 %v6670
        %v6734 = vpop.xlane.xlu0 %6733
        %6735 = vadd.xlane.f32.xlu0 %v6672
        %v6736 = vpop.xlane.xlu0 %6735
        %6737 = vadd.xlane.f32.xlu0 %v6674
        %v6738 = vpop.xlane.xlu0 %6737
        %6739 = vadd.xlane.f32.xlu0 %v6676
        %v6740 = vpop.xlane.xlu0 %6739
        %6741 = vadd.xlane.f32.xlu0 %v6678
        %v6742 = vpop.xlane.xlu0 %6741
        %v6743 = vrcp.pop %v6680
        %v6744 = vrcp.pop %v6682
        %v6745 = vrcp.pop %v6684
        %v6746 = vrcp.pop %v6686
        %v6747 = vrcp.pop %v6688
        %v6748 = vrcp.pop %v6690
        %v6749 = vrcp.pop %v6692
        %v6750 = vrcp.pop %v6694
        %v6751 = vrcp.pop %v6696
        %v6752 = vrcp.pop %v6698
        %v6753 = vrcp.pop %v6700
        %v6754 = vrcp.pop %v6702
        %v6755 = vrcp.pop %v6704
        %v6756 = vrcp.pop %v6706
        %v6757 = vrcp.pop %v6708
        %v6758 = vrcp.pop %v6710
        %v6759 = vrcp.pop %v6712
        %v6760 = vrcp.pop %v6714
        %v6761 = vrcp.pop %v6716
        %v6762 = vrcp.pop %v6718
        %v6763 = vrcp.pop %v6720
        %v6764 = vrcp.pop %v6722
        %v6765 = vrcp.pop %v6724
        %v6766 = vrcp.pop %v6726
        %v6767 = vrcp.pop %v6728
        %v6768 = vrcp.pop %v6730
        %v6769 = vrcp.pop %v6732
        %v6770 = vrcp.pop %v6734
        %v6771 = vrcp.pop %v6736
        %v6772 = vrcp.pop %v6738
        %v6773 = vrcp.pop %v6740
        %v6774 = vrcp.pop %v6742
        %v6775 = vmul.f32 %v6616, %v6743
        %v6776 = vmul.f32 %v6618, %v6744
        %v6777 = vmul.f32 %v6620, %v6745
        %v6778 = vmul.f32 %v6622, %v6746
        %v6779 = vmul.f32 %v6624, %v6747
        %v6780 = vmul.f32 %v6626, %v6748
        %v6781 = vmul.f32 %v6628, %v6749
        %v6782 = vmul.f32 %v6630, %v6750
        %v6783 = vmul.f32 %v6632, %v6751
        %v6784 = vmul.f32 %v6634, %v6752
        %v6785 = vmul.f32 %v6636, %v6753
        %v6786 = vmul.f32 %v6638, %v6754
        %v6787 = vmul.f32 %v6640, %v6755
        %v6788 = vmul.f32 %v6642, %v6756
        %v6789 = vmul.f32 %v6644, %v6757
        %v6790 = vmul.f32 %v6646, %v6758
        %v6791 = vmul.f32 %v6648, %v6759
        %v6792 = vmul.f32 %v6650, %v6760
        %v6793 = vmul.f32 %v6652, %v6761
        %v6794 = vmul.f32 %v6654, %v6762
        %v6795 = vmul.f32 %v6656, %v6763
        %v6796 = vmul.f32 %v6658, %v6764
        %v6797 = vmul.f32 %v6660, %v6765
        %v6798 = vmul.f32 %v6662, %v6766
        %v6799 = vmul.f32 %v6664, %v6767
        %v6800 = vmul.f32 %v6666, %v6768
        %v6801 = vmul.f32 %v6668, %v6769
        %v6802 = vmul.f32 %v6670, %v6770
        %v6803 = vmul.f32 %v6672, %v6771
        %v6804 = vmul.f32 %v6674, %v6772
        %v6805 = vmul.f32 %v6676, %v6773
        %v6806 = vmul.f32 %v6678, %v6774
        %v6807 = vpack.c.bf16 %v6776, %v6775
        %v6808 = vpack.c.bf16 %v6778, %v6777
        %v6809 = vpack.c.bf16 %v6780, %v6779
        %v6810 = vpack.c.bf16 %v6782, %v6781
        %v6811 = vpack.c.bf16 %v6784, %v6783
        %v6812 = vpack.c.bf16 %v6786, %v6785
        %v6813 = vpack.c.bf16 %v6788, %v6787
        %v6814 = vpack.c.bf16 %v6790, %v6789
        %v6815 = vpack.c.bf16 %v6792, %v6791
        %v6816 = vpack.c.bf16 %v6794, %v6793
        %v6817 = vpack.c.bf16 %v6796, %v6795
        %v6818 = vpack.c.bf16 %v6798, %v6797
        %v6819 = vpack.c.bf16 %v6800, %v6799
        %v6820 = vpack.c.bf16 %v6802, %v6801
        %v6821 = vpack.c.bf16 %v6804, %v6803
        %v6822 = vpack.c.bf16 %v6806, %v6805
        %6823 = vmatprep.subr.bf16.mxu0 0
        %6824 = vmatpush1.bf16.msra.mxu0 %v6309
        %6825 = vmatprep.subr.bf16.mxu0 0
        %6826 = vmatpush1.bf16.msra.mxu0 %v6310
        %6827 = vmatprep.subr.bf16.mxu0 0
        %6828 = vmatpush1.bf16.msra.mxu0 %v6311
        %6829 = vmatprep.subr.bf16.mxu0 0
        %6830 = vmatpush1.bf16.msra.mxu0 %v6312
        %6831 = vmatprep.subr.bf16.mxu0 0
        %6832 = vmatpush1.bf16.msra.mxu0 %v6313
        %6833 = vmatprep.subr.bf16.mxu0 0
        %6834 = vmatpush1.bf16.msra.mxu0 %v6314
        %6835 = vmatprep.subr.bf16.mxu0 0
        %6836 = vmatpush1.bf16.msra.mxu0 %v6315
        %6837 = vmatprep.subr.bf16.mxu0 0
        %6838 = vmatpush1.bf16.msra.mxu0 %v6316
        %6839 = vmatprep.subr.bf16.mxu0 0
        %6840 = vmatpush1.bf16.msra.mxu0 0
        %6841 = vmatprep.subr.bf16.mxu0 0
        %6842 = vmatpush1.bf16.msra.mxu0 0
        %6843 = vmatprep.subr.bf16.mxu0 0
        %6844 = vmatpush1.bf16.msra.mxu0 0
        %6845 = vmatprep.subr.bf16.mxu0 0
        %6846 = vmatpush1.bf16.msra.mxu0 0
        %6847 = vmatprep.subr.bf16.mxu0 0
        %6848 = vmatpush1.bf16.msra.mxu0 0
        %6849 = vmatprep.subr.bf16.mxu0 0
        %6850 = vmatpush1.bf16.msra.mxu0 0
        %6851 = vmatprep.subr.bf16.mxu0 0
        %6852 = vmatpush1.bf16.msra.mxu0 0
        %6853 = vmatprep.subr.bf16.mxu0 0
        %6854 = vmatpush1.bf16.msra.mxu0 0
        %6855 = vmatprep.mubr.bf16.mxu0 0
        %6856 = vmatmul.mubr.bf16.gmra.mrb[0].mxu0 %v6807
        %v6857 = vpop.f32.mrb[0].mxu0
        %v6858 = vadd.f32 0.0, %v6857
        %v6859 = vpop.f32.mrb[0].mxu0
        %v6860 = vpop.f32.mrb[0].mxu0
        %v6861 = vadd.f32 0.0, %v6860
        %v6862 = vpop.f32.mrb[0].mxu0
        %6863 = vmatprep.mubr.bf16.mxu0 0
        %6864 = vmatmul.mubr.bf16.gmra.mrb[0].mxu0 %v6808
        %v6865 = vpop.f32.mrb[0].mxu0
        %v6866 = vadd.f32 0.0, %v6865
        %v6867 = vpop.f32.mrb[0].mxu0
        %v6868 = vpop.f32.mrb[0].mxu0
        %v6869 = vadd.f32 0.0, %v6868
        %v6870 = vpop.f32.mrb[0].mxu0
        %6871 = vmatprep.mubr.bf16.mxu0 0
        %6872 = vmatmul.mubr.bf16.gmra.mrb[0].mxu0 %v6809
        %v6873 = vpop.f32.mrb[0].mxu0
        %v6874 = vadd.f32 0.0, %v6873
        %v6875 = vpop.f32.mrb[0].mxu0
        %v6876 = vpop.f32.mrb[0].mxu0
        %v6877 = vadd.f32 0.0, %v6876
        %v6878 = vpop.f32.mrb[0].mxu0
        %6879 = vmatprep.mubr.bf16.mxu0 0
        %6880 = vmatmul.mubr.bf16.gmra.mrb[0].mxu0 %v6810
        %v6881 = vpop.f32.mrb[0].mxu0
        %v6882 = vadd.f32 0.0, %v6881
        %v6883 = vpop.f32.mrb[0].mxu0
        %v6884 = vpop.f32.mrb[0].mxu0
        %v6885 = vadd.f32 0.0, %v6884
        %v6886 = vpop.f32.mrb[0].mxu0
        %6887 = vmatprep.mubr.bf16.mxu0 0
        %6888 = vmatmul.mubr.bf16.gmra.mrb[0].mxu0 %v6811
        %v6889 = vpop.f32.mrb[0].mxu0
        %v6890 = vadd.f32 0.0, %v6889
        %v6891 = vpop.f32.mrb[0].mxu0
        %v6892 = vpop.f32.mrb[0].mxu0
        %v6893 = vadd.f32 0.0, %v6892
        %v6894 = vpop.f32.mrb[0].mxu0
        %6895 = vmatprep.mubr.bf16.mxu0 0
        %6896 = vmatmul.mubr.bf16.gmra.mrb[0].mxu0 %v6812
        %v6897 = vpop.f32.mrb[0].mxu0
        %v6898 = vadd.f32 0.0, %v6897
        %v6899 = vpop.f32.mrb[0].mxu0
        %v6900 = vpop.f32.mrb[0].mxu0
        %v6901 = vadd.f32 0.0, %v6900
        %v6902 = vpop.f32.mrb[0].mxu0
        %6903 = vmatprep.mubr.bf16.mxu0 0
        %6904 = vmatmul.mubr.bf16.gmra.mrb[0].mxu0 %v6813
        %v6905 = vpop.f32.mrb[0].mxu0
        %v6906 = vadd.f32 0.0, %v6905
        %v6907 = vpop.f32.mrb[0].mxu0
        %v6908 = vpop.f32.mrb[0].mxu0
        %v6909 = vadd.f32 0.0, %v6908
        %v6910 = vpop.f32.mrb[0].mxu0
        %6911 = vmatprep.mubr.bf16.mxu0 0
        %6912 = vmatmul.mubr.bf16.gmra.mrb[0].mxu0 %v6814
        %v6913 = vpop.f32.mrb[0].mxu0
        %v6914 = vadd.f32 0.0, %v6913
        %v6915 = vpop.f32.mrb[0].mxu0
        %v6916 = vpop.f32.mrb[0].mxu0
        %v6917 = vadd.f32 0.0, %v6916
        %v6918 = vpop.f32.mrb[0].mxu0
        %6919 = vdwg.mxu0
        %6920 = vmatprep.subr.bf16.mxu0 0
        %6921 = vmatpush1.bf16.msra.mxu0 %v6317
        %6922 = vmatprep.subr.bf16.mxu0 0
        %6923 = vmatpush1.bf16.msra.mxu0 %v6318
        %6924 = vmatprep.subr.bf16.mxu0 0
        %6925 = vmatpush1.bf16.msra.mxu0 %v6319
        %6926 = vmatprep.subr.bf16.mxu0 0
        %6927 = vmatpush1.bf16.msra.mxu0 %v6320
        %6928 = vmatprep.subr.bf16.mxu0 0
        %6929 = vmatpush1.bf16.msra.mxu0 %v6321
        %6930 = vmatprep.subr.bf16.mxu0 0
        %6931 = vmatpush1.bf16.msra.mxu0 %v6322
        %6932 = vmatprep.subr.bf16.mxu0 0
        %6933 = vmatpush1.bf16.msra.mxu0 %v6323
        %6934 = vmatprep.subr.bf16.mxu0 0
        %6935 = vmatpush1.bf16.msra.mxu0 %v6324
        %6936 = vmatprep.subr.bf16.mxu0 0
        %6937 = vmatpush1.bf16.msra.mxu0 0
        %6938 = vmatprep.subr.bf16.mxu0 0
        %6939 = vmatpush1.bf16.msra.mxu0 0
        %6940 = vmatprep.subr.bf16.mxu0 0
        %6941 = vmatpush1.bf16.msra.mxu0 0
        %6942 = vmatprep.subr.bf16.mxu0 0
        %6943 = vmatpush1.bf16.msra.mxu0 0
        %6944 = vmatprep.subr.bf16.mxu0 0
        %6945 = vmatpush1.bf16.msra.mxu0 0
        %6946 = vmatprep.subr.bf16.mxu0 0
        %6947 = vmatpush1.bf16.msra.mxu0 0
        %6948 = vmatprep.subr.bf16.mxu0 0
        %6949 = vmatpush1.bf16.msra.mxu0 0
        %6950 = vmatprep.subr.bf16.mxu0 0
        %6951 = vmatpush1.bf16.msra.mxu0 0
        %6952 = vmatprep.mubr.bf16.mxu0 0
        %6953 = vmatmul.mubr.bf16.gmra.mrb[0].mxu0 %v6815
        %v6954 = vpop.f32.mrb[0].mxu0
        %v6955 = vadd.f32 0.0, %v6954
        %v6956 = vpop.f32.mrb[0].mxu0
        %v6957 = vpop.f32.mrb[0].mxu0
        %v6958 = vadd.f32 0.0, %v6957
        %v6959 = vpop.f32.mrb[0].mxu0
        %6960 = vmatprep.mubr.bf16.mxu0 0
        %6961 = vmatmul.mubr.bf16.gmra.mrb[0].mxu0 %v6816
        %v6962 = vpop.f32.mrb[0].mxu0
        %v6963 = vadd.f32 0.0, %v6962
        %v6964 = vpop.f32.mrb[0].mxu0
        %v6965 = vpop.f32.mrb[0].mxu0
        %v6966 = vadd.f32 0.0, %v6965
        %v6967 = vpop.f32.mrb[0].mxu0
        %6968 = vmatprep.mubr.bf16.mxu0 0
        %6969 = vmatmul.mubr.bf16.gmra.mrb[0].mxu0 %v6817
        %v6970 = vpop.f32.mrb[0].mxu0
        %v6971 = vadd.f32 0.0, %v6970
        %v6972 = vpop.f32.mrb[0].mxu0
        %v6973 = vpop.f32.mrb[0].mxu0
        %v6974 = vadd.f32 0.0, %v6973
        %v6975 = vpop.f32.mrb[0].mxu0
        %6976 = vmatprep.mubr.bf16.mxu0 0
        %6977 = vmatmul.mubr.bf16.gmra.mrb[0].mxu0 %v6818
        %v6978 = vpop.f32.mrb[0].mxu0
        %v6979 = vadd.f32 0.0, %v6978
        %v6980 = vpop.f32.mrb[0].mxu0
        %v6981 = vpop.f32.mrb[0].mxu0
        %v6982 = vadd.f32 0.0, %v6981
        %v6983 = vpop.f32.mrb[0].mxu0
        %6984 = vmatprep.mubr.bf16.mxu0 0
        %6985 = vmatmul.mubr.bf16.gmra.mrb[0].mxu0 %v6819
        %v6986 = vpop.f32.mrb[0].mxu0
        %v6987 = vadd.f32 0.0, %v6986
        %v6988 = vpop.f32.mrb[0].mxu0
        %v6989 = vpop.f32.mrb[0].mxu0
        %v6990 = vadd.f32 0.0, %v6989
        %v6991 = vpop.f32.mrb[0].mxu0
        %6992 = vmatprep.mubr.bf16.mxu0 0
        %6993 = vmatmul.mubr.bf16.gmra.mrb[0].mxu0 %v6820
        %v6994 = vpop.f32.mrb[0].mxu0
        %v6995 = vadd.f32 0.0, %v6994
        %v6996 = vpop.f32.mrb[0].mxu0
        %v6997 = vpop.f32.mrb[0].mxu0
        %v6998 = vadd.f32 0.0, %v6997
        %v6999 = vpop.f32.mrb[0].mxu0
        %7000 = vmatprep.mubr.bf16.mxu0 0
        %7001 = vmatmul.mubr.bf16.gmra.mrb[0].mxu0 %v6821
        %v7002 = vpop.f32.mrb[0].mxu0
        %v7003 = vadd.f32 0.0, %v7002
        %v7004 = vpop.f32.mrb[0].mxu0
        %v7005 = vpop.f32.mrb[0].mxu0
        %v7006 = vadd.f32 0.0, %v7005
        %v7007 = vpop.f32.mrb[0].mxu0
        %7008 = vmatprep.mubr.bf16.mxu0 0
        %7009 = vmatmul.mubr.bf16.gmra.mrb[0].mxu0 %v6822
        %v7010 = vpop.f32.mrb[0].mxu0
        %v7011 = vadd.f32 0.0, %v7010
        %v7012 = vpop.f32.mrb[0].mxu0
        %v7013 = vpop.f32.mrb[0].mxu0
        %v7014 = vadd.f32 0.0, %v7013
        %v7015 = vpop.f32.mrb[0].mxu0
        %7016 = vdwg.mxu0
        %v7017 = vpack.c.bf16 %v6121, %v6118
        %v7018 = vpack.c.bf16 %v6861, %v6858
        %v7019 = vpack.c.bf16 %v6129, %v6126
        %v7020 = vpack.c.bf16 %v6869, %v6866
        %v7021 = vpack.c.bf16 %v6137, %v6134
        %v7022 = vpack.c.bf16 %v6877, %v6874
        %v7023 = vpack.c.bf16 %v6145, %v6142
        %v7024 = vpack.c.bf16 %v6885, %v6882
        %v7025 = vpack.c.bf16 %v6153, %v6150
        %v7026 = vpack.c.bf16 %v6893, %v6890
        %v7027 = vpack.c.bf16 %v6161, %v6158
        %v7028 = vpack.c.bf16 %v6901, %v6898
        %v7029 = vpack.c.bf16 %v6169, %v6166
        %v7030 = vpack.c.bf16 %v6909, %v6906
        %v7031 = vpack.c.bf16 %v6177, %v6174
        %v7032 = vpack.c.bf16 %v6917, %v6914
        %v7033 = vpack.c.bf16 %v6218, %v6215
        %v7034 = vpack.c.bf16 %v6958, %v6955
        %v7035 = vpack.c.bf16 %v6226, %v6223
        %v7036 = vpack.c.bf16 %v6966, %v6963
        %v7037 = vpack.c.bf16 %v6234, %v6231
        %v7038 = vpack.c.bf16 %v6974, %v6971
        %v7039 = vpack.c.bf16 %v6242, %v6239
        %v7040 = vpack.c.bf16 %v6982, %v6979
        %v7041 = vpack.c.bf16 %v6250, %v6247
        %v7042 = vpack.c.bf16 %v6990, %v6987
        %v7043 = vpack.c.bf16 %v6258, %v6255
        %v7044 = vpack.c.bf16 %v6998, %v6995
        %v7045 = vpack.c.bf16 %v6266, %v6263
        %v7046 = vpack.c.bf16 %v7006, %v7003
        %v7047 = vpack.c.bf16 %v6274, %v6271
        %v7048 = vpack.c.bf16 %v7014, %v7011
        %v7050 = vlaneseq
        %v7051 = vshrl.u32 %v7050, 7
        %v7052 = vsub.s32 0, %v7051
        %v7053 = vrot.slane %v5536, %v7052
        %v7087 = vunpack.c.l.b16 %v5504
        %v7088 = vunpack.c.l.b16 %v5505
        %v7089 = vunpack.c.l.b16 %v5506
        %v7090 = vunpack.c.l.b16 %v5507
        %v7091 = vunpack.c.l.b16 %v5508
        %v7092 = vunpack.c.l.b16 %v5509
        %v7093 = vunpack.c.l.b16 %v5510
        %v7094 = vunpack.c.l.b16 %v5511
        %v7095 = vunpack.c.l.b16 %v5512
        %v7096 = vunpack.c.l.b16 %v5513
        %v7097 = vunpack.c.l.b16 %v5514
        %v7098 = vunpack.c.l.b16 %v5515
        %v7099 = vunpack.c.l.b16 %v5516
        %v7100 = vunpack.c.l.b16 %v5517
        %v7101 = vunpack.c.l.b16 %v5518
        %v7102 = vunpack.c.l.b16 %v5519
        %v7103 = vunpack.c.l.b16 %v5520
        %v7104 = vunpack.c.l.b16 %v5521
        %v7105 = vunpack.c.l.b16 %v5522
        %v7106 = vunpack.c.l.b16 %v5523
        %v7107 = vunpack.c.l.b16 %v5524
        %v7108 = vunpack.c.l.b16 %v5525
        %v7109 = vunpack.c.l.b16 %v5526
        %v7110 = vunpack.c.l.b16 %v5527
        %v7111 = vunpack.c.l.b16 %v5528
        %v7112 = vunpack.c.l.b16 %v5529
        %v7113 = vunpack.c.l.b16 %v5530
        %v7114 = vunpack.c.l.b16 %v5531
        %v7115 = vunpack.c.l.b16 %v5532
        %v7116 = vunpack.c.l.b16 %v5533
        %v7117 = vunpack.c.l.b16 %v5534
        %v7118 = vunpack.c.l.b16 %v5535
        %v7119 = vpack.c.b16 %v7088, %v7087
        %v7120 = vpack.c.b16 %v7090, %v7089
        %v7121 = vpack.c.b16 %v7092, %v7091
        %v7122 = vpack.c.b16 %v7094, %v7093
        %v7123 = vpack.c.b16 %v7096, %v7095
        %v7124 = vpack.c.b16 %v7098, %v7097
        %v7125 = vpack.c.b16 %v7100, %v7099
        %v7126 = vpack.c.b16 %v7102, %v7101
        %v7127 = vpack.c.b16 %v7104, %v7103
        %v7128 = vpack.c.b16 %v7106, %v7105
        %v7129 = vpack.c.b16 %v7108, %v7107
        %v7130 = vpack.c.b16 %v7110, %v7109
        %v7131 = vpack.c.b16 %v7112, %v7111
        %v7132 = vpack.c.b16 %v7114, %v7113
        %v7133 = vpack.c.b16 %v7116, %v7115
        %v7134 = vpack.c.b16 %v7118, %v7117
        %7151 = vmatprep.subr.bf16.mxu0 0
        %7152 = vmatpush1.bf16.msra.mxu0 %v7119
        %7153 = vmatprep.subr.bf16.mxu0 0
        %7154 = vmatpush1.bf16.msra.mxu0 %v7120
        %7155 = vmatprep.subr.bf16.mxu0 0
        %7156 = vmatpush1.bf16.msra.mxu0 %v7121
        %7157 = vmatprep.subr.bf16.mxu0 0
        %7158 = vmatpush1.bf16.msra.mxu0 %v7122
        %7159 = vmatprep.subr.bf16.mxu0 0
        %7160 = vmatpush1.bf16.msra.mxu0 %v7123
        %7161 = vmatprep.subr.bf16.mxu0 0
        %7162 = vmatpush1.bf16.msra.mxu0 %v7124
        %7163 = vmatprep.subr.bf16.mxu0 0
        %7164 = vmatpush1.bf16.msra.mxu0 %v7125
        %7165 = vmatprep.subr.bf16.mxu0 0
        %7166 = vmatpush1.bf16.msra.mxu0 %v7126
        %7167 = vmatprep.subr.bf16.mxu0 0
        %7168 = vmatpush1.bf16.msra.mxu0 %v7127
        %7169 = vmatprep.subr.bf16.mxu0 0
        %7170 = vmatpush1.bf16.msra.mxu0 %v7128
        %7171 = vmatprep.subr.bf16.mxu0 0
        %7172 = vmatpush1.bf16.msra.mxu0 %v7129
        %7173 = vmatprep.subr.bf16.mxu0 0
        %7174 = vmatpush1.bf16.msra.mxu0 %v7130
        %7175 = vmatprep.subr.bf16.mxu0 0
        %7176 = vmatpush1.bf16.msra.mxu0 %v7131
        %7177 = vmatprep.subr.bf16.mxu0 0
        %7178 = vmatpush1.bf16.msra.mxu0 %v7132
        %7179 = vmatprep.subr.bf16.mxu0 0
        %7180 = vmatpush1.bf16.msra.mxu0 %v7133
        %7181 = vmatprep.subr.bf16.mxu0 0
        %7182 = vmatpush1.bf16.msra.mxu0 %v7134
        %7183 = vmatprep.mubr.bf16.mxu0 %v7018
        %7184 = vmatmul.mubr.bf16.gmra.mrb[0].mxu0 %v7017
        %v7185 = vpop.f32.mrb[0].mxu0
        %v7186 = vadd.f32 %v7053, %v7185
        %v7187 = vpop.f32.mrb[0].mxu0
        %v7188 = vpop.f32.mrb[0].mxu0
        %v7189 = vadd.f32 %v7053, %v7188
        %v7190 = vpop.f32.mrb[0].mxu0
        %7191 = vmatprep.mubr.bf16.mxu0 %v7020
        %7192 = vmatmul.mubr.bf16.gmra.mrb[0].mxu0 %v7019
        %v7193 = vpop.f32.mrb[0].mxu0
        %v7194 = vadd.f32 %v7053, %v7193
        %v7195 = vpop.f32.mrb[0].mxu0
        %v7196 = vpop.f32.mrb[0].mxu0
        %v7197 = vadd.f32 %v7053, %v7196
        %v7198 = vpop.f32.mrb[0].mxu0
        %7199 = vmatprep.mubr.bf16.mxu0 %v7022
        %7200 = vmatmul.mubr.bf16.gmra.mrb[0].mxu0 %v7021
        %v7201 = vpop.f32.mrb[0].mxu0
        %v7202 = vadd.f32 %v7053, %v7201
        %v7203 = vpop.f32.mrb[0].mxu0
        %v7204 = vpop.f32.mrb[0].mxu0
        %v7205 = vadd.f32 %v7053, %v7204
        %v7206 = vpop.f32.mrb[0].mxu0
        %7207 = vmatprep.mubr.bf16.mxu0 %v7024
        %7208 = vmatmul.mubr.bf16.gmra.mrb[0].mxu0 %v7023
        %v7209 = vpop.f32.mrb[0].mxu0
        %v7210 = vadd.f32 %v7053, %v7209
        %v7211 = vpop.f32.mrb[0].mxu0
        %v7212 = vpop.f32.mrb[0].mxu0
        %v7213 = vadd.f32 %v7053, %v7212
        %v7214 = vpop.f32.mrb[0].mxu0
        %7215 = vmatprep.mubr.bf16.mxu0 %v7026
        %7216 = vmatmul.mubr.bf16.gmra.mrb[0].mxu0 %v7025
        %v7217 = vpop.f32.mrb[0].mxu0
        %v7218 = vadd.f32 %v7053, %v7217
        %v7219 = vpop.f32.mrb[0].mxu0
        %v7220 = vpop.f32.mrb[0].mxu0
        %v7221 = vadd.f32 %v7053, %v7220
        %v7222 = vpop.f32.mrb[0].mxu0
        %7223 = vmatprep.mubr.bf16.mxu0 %v7028
        %7224 = vmatmul.mubr.bf16.gmra.mrb[0].mxu0 %v7027
        %v7225 = vpop.f32.mrb[0].mxu0
        %v7226 = vadd.f32 %v7053, %v7225
        %v7227 = vpop.f32.mrb[0].mxu0
        %v7228 = vpop.f32.mrb[0].mxu0
        %v7229 = vadd.f32 %v7053, %v7228
        %v7230 = vpop.f32.mrb[0].mxu0
        %7231 = vmatprep.mubr.bf16.mxu0 %v7030
        %7232 = vmatmul.mubr.bf16.gmra.mrb[0].mxu0 %v7029
        %v7233 = vpop.f32.mrb[0].mxu0
        %v7234 = vadd.f32 %v7053, %v7233
        %v7235 = vpop.f32.mrb[0].mxu0
        %v7236 = vpop.f32.mrb[0].mxu0
        %v7237 = vadd.f32 %v7053, %v7236
        %v7238 = vpop.f32.mrb[0].mxu0
        %7239 = vmatprep.mubr.bf16.mxu0 %v7032
        %7240 = vmatmul.mubr.bf16.gmra.mrb[0].mxu0 %v7031
        %v7241 = vpop.f32.mrb[0].mxu0
        %v7242 = vadd.f32 %v7053, %v7241
        %v7243 = vpop.f32.mrb[0].mxu0
        %v7244 = vpop.f32.mrb[0].mxu0
        %v7245 = vadd.f32 %v7053, %v7244
        %v7246 = vpop.f32.mrb[0].mxu0
        %7247 = vmatprep.mubr.bf16.mxu0 %v7034
        %7248 = vmatmul.mubr.bf16.gmra.mrb[0].mxu0 %v7033
        %v7249 = vpop.f32.mrb[0].mxu0
        %v7250 = vadd.f32 %v7053, %v7249
        %v7251 = vpop.f32.mrb[0].mxu0
        %v7252 = vpop.f32.mrb[0].mxu0
        %v7253 = vadd.f32 %v7053, %v7252
        %v7254 = vpop.f32.mrb[0].mxu0
        %7255 = vmatprep.mubr.bf16.mxu0 %v7036
        %7256 = vmatmul.mubr.bf16.gmra.mrb[0].mxu0 %v7035
        %v7257 = vpop.f32.mrb[0].mxu0
        %v7258 = vadd.f32 %v7053, %v7257
        %v7259 = vpop.f32.mrb[0].mxu0
        %v7260 = vpop.f32.mrb[0].mxu0
        %v7261 = vadd.f32 %v7053, %v7260
        %v7262 = vpop.f32.mrb[0].mxu0
        %7263 = vmatprep.mubr.bf16.mxu0 %v7038
        %7264 = vmatmul.mubr.bf16.gmra.mrb[0].mxu0 %v7037
        %v7265 = vpop.f32.mrb[0].mxu0
        %v7266 = vadd.f32 %v7053, %v7265
        %v7267 = vpop.f32.mrb[0].mxu0
        %v7268 = vpop.f32.mrb[0].mxu0
        %v7269 = vadd.f32 %v7053, %v7268
        %v7270 = vpop.f32.mrb[0].mxu0
        %7271 = vmatprep.mubr.bf16.mxu0 %v7040
        %7272 = vmatmul.mubr.bf16.gmra.mrb[0].mxu0 %v7039
        %v7273 = vpop.f32.mrb[0].mxu0
        %v7274 = vadd.f32 %v7053, %v7273
        %v7275 = vpop.f32.mrb[0].mxu0
        %v7276 = vpop.f32.mrb[0].mxu0
        %v7277 = vadd.f32 %v7053, %v7276
        %v7278 = vpop.f32.mrb[0].mxu0
        %7279 = vmatprep.mubr.bf16.mxu0 %v7042
        %7280 = vmatmul.mubr.bf16.gmra.mrb[0].mxu0 %v7041
        %v7281 = vpop.f32.mrb[0].mxu0
        %v7282 = vadd.f32 %v7053, %v7281
        %v7283 = vpop.f32.mrb[0].mxu0
        %v7284 = vpop.f32.mrb[0].mxu0
        %v7285 = vadd.f32 %v7053, %v7284
        %v7286 = vpop.f32.mrb[0].mxu0
        %7287 = vmatprep.mubr.bf16.mxu0 %v7044
        %7288 = vmatmul.mubr.bf16.gmra.mrb[0].mxu0 %v7043
        %v7289 = vpop.f32.mrb[0].mxu0
        %v7290 = vadd.f32 %v7053, %v7289
        %v7291 = vpop.f32.mrb[0].mxu0
        %v7292 = vpop.f32.mrb[0].mxu0
        %v7293 = vadd.f32 %v7053, %v7292
        %v7294 = vpop.f32.mrb[0].mxu0
        %7295 = vmatprep.mubr.bf16.mxu0 %v7046
        %7296 = vmatmul.mubr.bf16.gmra.mrb[0].mxu0 %v7045
        %v7297 = vpop.f32.mrb[0].mxu0
        %v7298 = vadd.f32 %v7053, %v7297
        %v7299 = vpop.f32.mrb[0].mxu0
        %v7300 = vpop.f32.mrb[0].mxu0
        %v7301 = vadd.f32 %v7053, %v7300
        %v7302 = vpop.f32.mrb[0].mxu0
        %7303 = vmatprep.mubr.bf16.mxu0 %v7048
        %7304 = vmatmul.mubr.bf16.gmra.mrb[0].mxu0 %v7047
        %v7305 = vpop.f32.mrb[0].mxu0
        %v7306 = vadd.f32 %v7053, %v7305
        %v7307 = vpop.f32.mrb[0].mxu0
        %v7308 = vpop.f32.mrb[0].mxu0
        %v7309 = vadd.f32 %v7053, %v7308
        %v7310 = vpop.f32.mrb[0].mxu0
        %7311 = vdwg.mxu0
        %v7312 = vadd.f32 %v7186, %v4459
        %v7313 = vadd.f32 %v7189, %v4460
        %v7314 = vadd.f32 %v7194, %v4461
        %v7315 = vadd.f32 %v7197, %v4462
        %v7316 = vadd.f32 %v7202, %v4463
        %v7317 = vadd.f32 %v7205, %v4464
        %v7318 = vadd.f32 %v7210, %v4465
        %v7319 = vadd.f32 %v7213, %v4466
        %v7320 = vadd.f32 %v7218, %v4467
        %v7321 = vadd.f32 %v7221, %v4468
        %v7322 = vadd.f32 %v7226, %v4469
        %v7323 = vadd.f32 %v7229, %v4470
        %v7324 = vadd.f32 %v7234, %v4471
        %v7325 = vadd.f32 %v7237, %v4472
        %v7326 = vadd.f32 %v7242, %v4473
        %v7327 = vadd.f32 %v7245, %v4474
        %v7328 = vadd.f32 %v7250, %v4475
        %v7329 = vadd.f32 %v7253, %v4476
        %v7330 = vadd.f32 %v7258, %v4477
        %v7331 = vadd.f32 %v7261, %v4478
        %v7332 = vadd.f32 %v7266, %v4479
        %v7333 = vadd.f32 %v7269, %v4480
        %v7334 = vadd.f32 %v7274, %v4481
        %v7335 = vadd.f32 %v7277, %v4482
        %v7336 = vadd.f32 %v7282, %v4483
        %v7337 = vadd.f32 %v7285, %v4484
        %v7338 = vadd.f32 %v7290, %v4485
        %v7339 = vadd.f32 %v7293, %v4486
        %v7340 = vadd.f32 %v7298, %v4487
        %v7341 = vadd.f32 %v7301, %v4488
        %v7342 = vadd.f32 %v7306, %v4489
        %v7343 = vadd.f32 %v7309, %v4490
        %7344 = vadd.xlane.f32.xlu0 %v7312
        %v7345 = vpop.xlane.xlu0 %7344
        %7346 = vadd.xlane.f32.xlu0 %v7313
        %v7347 = vpop.xlane.xlu0 %7346
        %7348 = vadd.xlane.f32.xlu0 %v7314
        %v7349 = vpop.xlane.xlu0 %7348
        %7350 = vadd.xlane.f32.xlu0 %v7315
        %v7351 = vpop.xlane.xlu0 %7350
        %7352 = vadd.xlane.f32.xlu0 %v7316
        %v7353 = vpop.xlane.xlu0 %7352
        %7354 = vadd.xlane.f32.xlu0 %v7317
        %v7355 = vpop.xlane.xlu0 %7354
        %7356 = vadd.xlane.f32.xlu0 %v7318
        %v7357 = vpop.xlane.xlu0 %7356
        %7358 = vadd.xlane.f32.xlu0 %v7319
        %v7359 = vpop.xlane.xlu0 %7358
        %7360 = vadd.xlane.f32.xlu0 %v7320
        %v7361 = vpop.xlane.xlu0 %7360
        %7362 = vadd.xlane.f32.xlu0 %v7321
        %v7363 = vpop.xlane.xlu0 %7362
        %7364 = vadd.xlane.f32.xlu0 %v7322
        %v7365 = vpop.xlane.xlu0 %7364
        %7366 = vadd.xlane.f32.xlu0 %v7323
        %v7367 = vpop.xlane.xlu0 %7366
        %7368 = vadd.xlane.f32.xlu0 %v7324
        %v7369 = vpop.xlane.xlu0 %7368
        %7370 = vadd.xlane.f32.xlu0 %v7325
        %v7371 = vpop.xlane.xlu0 %7370
        %7372 = vadd.xlane.f32.xlu0 %v7326
        %v7373 = vpop.xlane.xlu0 %7372
        %7374 = vadd.xlane.f32.xlu0 %v7327
        %v7375 = vpop.xlane.xlu0 %7374
        %7376 = vadd.xlane.f32.xlu0 %v7328
        %v7377 = vpop.xlane.xlu0 %7376
        %7378 = vadd.xlane.f32.xlu0 %v7329
        %v7379 = vpop.xlane.xlu0 %7378
        %7380 = vadd.xlane.f32.xlu0 %v7330
        %v7381 = vpop.xlane.xlu0 %7380
        %7382 = vadd.xlane.f32.xlu0 %v7331
        %v7383 = vpop.xlane.xlu0 %7382
        %7384 = vadd.xlane.f32.xlu0 %v7332
        %v7385 = vpop.xlane.xlu0 %7384
        %7386 = vadd.xlane.f32.xlu0 %v7333
        %v7387 = vpop.xlane.xlu0 %7386
        %7388 = vadd.xlane.f32.xlu0 %v7334
        %v7389 = vpop.xlane.xlu0 %7388
        %7390 = vadd.xlane.f32.xlu0 %v7335
        %v7391 = vpop.xlane.xlu0 %7390
        %7392 = vadd.xlane.f32.xlu0 %v7336
        %v7393 = vpop.xlane.xlu0 %7392
        %7394 = vadd.xlane.f32.xlu0 %v7337
        %v7395 = vpop.xlane.xlu0 %7394
        %7396 = vadd.xlane.f32.xlu0 %v7338
        %v7397 = vpop.xlane.xlu0 %7396
        %7398 = vadd.xlane.f32.xlu0 %v7339
        %v7399 = vpop.xlane.xlu0 %7398
        %7400 = vadd.xlane.f32.xlu0 %v7340
        %v7401 = vpop.xlane.xlu0 %7400
        %7402 = vadd.xlane.f32.xlu0 %v7341
        %v7403 = vpop.xlane.xlu0 %7402
        %7404 = vadd.xlane.f32.xlu0 %v7342
        %v7405 = vpop.xlane.xlu0 %7404
        %7406 = vadd.xlane.f32.xlu0 %v7343
        %v7407 = vpop.xlane.xlu0 %7406
        %v7408 = vmul.f32 %v7345, %v4126
        %v7409 = vmul.f32 %v7347, %v4126
        %v7410 = vmul.f32 %v7349, %v4126
        %v7411 = vmul.f32 %v7351, %v4126
        %v7412 = vmul.f32 %v7353, %v4126
        %v7413 = vmul.f32 %v7355, %v4126
        %v7414 = vmul.f32 %v7357, %v4126
        %v7415 = vmul.f32 %v7359, %v4126
        %v7416 = vmul.f32 %v7361, %v4126
        %v7417 = vmul.f32 %v7363, %v4126
        %v7418 = vmul.f32 %v7365, %v4126
        %v7419 = vmul.f32 %v7367, %v4126
        %v7420 = vmul.f32 %v7369, %v4126
        %v7421 = vmul.f32 %v7371, %v4126
        %v7422 = vmul.f32 %v7373, %v4126
        %v7423 = vmul.f32 %v7375, %v4126
        %v7424 = vmul.f32 %v7377, %v4126
        %v7425 = vmul.f32 %v7379, %v4126
        %v7426 = vmul.f32 %v7381, %v4126
        %v7427 = vmul.f32 %v7383, %v4126
        %v7428 = vmul.f32 %v7385, %v4126
        %v7429 = vmul.f32 %v7387, %v4126
        %v7430 = vmul.f32 %v7389, %v4126
        %v7431 = vmul.f32 %v7391, %v4126
        %v7432 = vmul.f32 %v7393, %v4126
        %v7433 = vmul.f32 %v7395, %v4126
        %v7434 = vmul.f32 %v7397, %v4126
        %v7435 = vmul.f32 %v7399, %v4126
        %v7436 = vmul.f32 %v7401, %v4126
        %v7437 = vmul.f32 %v7403, %v4126
        %v7438 = vmul.f32 %v7405, %v4126
        %v7439 = vmul.f32 %v7407, %v4126
        %v7440 = vsub.f32 %v7312, %v7408
        %v7441 = vsub.f32 %v7313, %v7409
        %v7442 = vsub.f32 %v7314, %v7410
        %v7443 = vsub.f32 %v7315, %v7411
        %v7444 = vsub.f32 %v7316, %v7412
        %v7445 = vsub.f32 %v7317, %v7413
        %v7446 = vsub.f32 %v7318, %v7414
        %v7447 = vsub.f32 %v7319, %v7415
        %v7448 = vsub.f32 %v7320, %v7416
        %v7449 = vsub.f32 %v7321, %v7417
        %v7450 = vsub.f32 %v7322, %v7418
        %v7451 = vsub.f32 %v7323, %v7419
        %v7452 = vsub.f32 %v7324, %v7420
        %v7453 = vsub.f32 %v7325, %v7421
        %v7454 = vsub.f32 %v7326, %v7422
        %v7455 = vsub.f32 %v7327, %v7423
        %v7456 = vsub.f32 %v7328, %v7424
        %v7457 = vsub.f32 %v7329, %v7425
        %v7458 = vsub.f32 %v7330, %v7426
        %v7459 = vsub.f32 %v7331, %v7427
        %v7460 = vsub.f32 %v7332, %v7428
        %v7461 = vsub.f32 %v7333, %v7429
        %v7462 = vsub.f32 %v7334, %v7430
        %v7463 = vsub.f32 %v7335, %v7431
        %v7464 = vsub.f32 %v7336, %v7432
        %v7465 = vsub.f32 %v7337, %v7433
        %v7466 = vsub.f32 %v7338, %v7434
        %v7467 = vsub.f32 %v7339, %v7435
        %v7468 = vsub.f32 %v7340, %v7436
        %v7469 = vsub.f32 %v7341, %v7437
        %v7470 = vsub.f32 %v7342, %v7438
        %v7471 = vsub.f32 %v7343, %v7439
        %v7472 = vmul.f32 %v7440, %v7440
        %v7473 = vmul.f32 %v7441, %v7441
        %v7474 = vmul.f32 %v7442, %v7442
        %v7475 = vmul.f32 %v7443, %v7443
        %v7476 = vmul.f32 %v7444, %v7444
        %v7477 = vmul.f32 %v7445, %v7445
        %v7478 = vmul.f32 %v7446, %v7446
        %v7479 = vmul.f32 %v7447, %v7447
        %v7480 = vmul.f32 %v7448, %v7448
        %v7481 = vmul.f32 %v7449, %v7449
        %v7482 = vmul.f32 %v7450, %v7450
        %v7483 = vmul.f32 %v7451, %v7451
        %v7484 = vmul.f32 %v7452, %v7452
        %v7485 = vmul.f32 %v7453, %v7453
        %v7486 = vmul.f32 %v7454, %v7454
        %v7487 = vmul.f32 %v7455, %v7455
        %v7488 = vmul.f32 %v7456, %v7456
        %v7489 = vmul.f32 %v7457, %v7457
        %v7490 = vmul.f32 %v7458, %v7458
        %v7491 = vmul.f32 %v7459, %v7459
        %v7492 = vmul.f32 %v7460, %v7460
        %v7493 = vmul.f32 %v7461, %v7461
        %v7494 = vmul.f32 %v7462, %v7462
        %v7495 = vmul.f32 %v7463, %v7463
        %v7496 = vmul.f32 %v7464, %v7464
        %v7497 = vmul.f32 %v7465, %v7465
        %v7498 = vmul.f32 %v7466, %v7466
        %v7499 = vmul.f32 %v7467, %v7467
        %v7500 = vmul.f32 %v7468, %v7468
        %v7501 = vmul.f32 %v7469, %v7469
        %v7502 = vmul.f32 %v7470, %v7470
        %v7503 = vmul.f32 %v7471, %v7471
        %7504 = vadd.xlane.f32.xlu0 %v7472
        %v7505 = vpop.xlane.xlu0 %7504
        %7506 = vadd.xlane.f32.xlu0 %v7473
        %v7507 = vpop.xlane.xlu0 %7506
        %7508 = vadd.xlane.f32.xlu0 %v7474
        %v7509 = vpop.xlane.xlu0 %7508
        %7510 = vadd.xlane.f32.xlu0 %v7475
        %v7511 = vpop.xlane.xlu0 %7510
        %7512 = vadd.xlane.f32.xlu0 %v7476
        %v7513 = vpop.xlane.xlu0 %7512
        %7514 = vadd.xlane.f32.xlu0 %v7477
        %v7515 = vpop.xlane.xlu0 %7514
        %7516 = vadd.xlane.f32.xlu0 %v7478
        %v7517 = vpop.xlane.xlu0 %7516
        %7518 = vadd.xlane.f32.xlu0 %v7479
        %v7519 = vpop.xlane.xlu0 %7518
        %7520 = vadd.xlane.f32.xlu0 %v7480
        %v7521 = vpop.xlane.xlu0 %7520
        %7522 = vadd.xlane.f32.xlu0 %v7481
        %v7523 = vpop.xlane.xlu0 %7522
        %7524 = vadd.xlane.f32.xlu0 %v7482
        %v7525 = vpop.xlane.xlu0 %7524
        %7526 = vadd.xlane.f32.xlu0 %v7483
        %v7527 = vpop.xlane.xlu0 %7526
        %7528 = vadd.xlane.f32.xlu0 %v7484
        %v7529 = vpop.xlane.xlu0 %7528
        %7530 = vadd.xlane.f32.xlu0 %v7485
        %v7531 = vpop.xlane.xlu0 %7530
        %7532 = vadd.xlane.f32.xlu0 %v7486
        %v7533 = vpop.xlane.xlu0 %7532
        %7534 = vadd.xlane.f32.xlu0 %v7487
        %v7535 = vpop.xlane.xlu0 %7534
        %7536 = vadd.xlane.f32.xlu0 %v7488
        %v7537 = vpop.xlane.xlu0 %7536
        %7538 = vadd.xlane.f32.xlu0 %v7489
        %v7539 = vpop.xlane.xlu0 %7538
        %7540 = vadd.xlane.f32.xlu0 %v7490
        %v7541 = vpop.xlane.xlu0 %7540
        %7542 = vadd.xlane.f32.xlu0 %v7491
        %v7543 = vpop.xlane.xlu0 %7542
        %7544 = vadd.xlane.f32.xlu0 %v7492
        %v7545 = vpop.xlane.xlu0 %7544
        %7546 = vadd.xlane.f32.xlu0 %v7493
        %v7547 = vpop.xlane.xlu0 %7546
        %7548 = vadd.xlane.f32.xlu0 %v7494
        %v7549 = vpop.xlane.xlu0 %7548
        %7550 = vadd.xlane.f32.xlu0 %v7495
        %v7551 = vpop.xlane.xlu0 %7550
        %7552 = vadd.xlane.f32.xlu0 %v7496
        %v7553 = vpop.xlane.xlu0 %7552
        %7554 = vadd.xlane.f32.xlu0 %v7497
        %v7555 = vpop.xlane.xlu0 %7554
        %7556 = vadd.xlane.f32.xlu0 %v7498
        %v7557 = vpop.xlane.xlu0 %7556
        %7558 = vadd.xlane.f32.xlu0 %v7499
        %v7559 = vpop.xlane.xlu0 %7558
        %7560 = vadd.xlane.f32.xlu0 %v7500
        %v7561 = vpop.xlane.xlu0 %7560
        %7562 = vadd.xlane.f32.xlu0 %v7501
        %v7563 = vpop.xlane.xlu0 %7562
        %7564 = vadd.xlane.f32.xlu0 %v7502
        %v7565 = vpop.xlane.xlu0 %7564
        %7566 = vadd.xlane.f32.xlu0 %v7503
        %v7567 = vpop.xlane.xlu0 %7566
        %v7568 = vmul.f32 %v7505, %v4126
        %v7569 = vmul.f32 %v7507, %v4126
        %v7570 = vmul.f32 %v7509, %v4126
        %v7571 = vmul.f32 %v7511, %v4126
        %v7572 = vmul.f32 %v7513, %v4126
        %v7573 = vmul.f32 %v7515, %v4126
        %v7574 = vmul.f32 %v7517, %v4126
        %v7575 = vmul.f32 %v7519, %v4126
        %v7576 = vmul.f32 %v7521, %v4126
        %v7577 = vmul.f32 %v7523, %v4126
        %v7578 = vmul.f32 %v7525, %v4126
        %v7579 = vmul.f32 %v7527, %v4126
        %v7580 = vmul.f32 %v7529, %v4126
        %v7581 = vmul.f32 %v7531, %v4126
        %v7582 = vmul.f32 %v7533, %v4126
        %v7583 = vmul.f32 %v7535, %v4126
        %v7584 = vmul.f32 %v7537, %v4126
        %v7585 = vmul.f32 %v7539, %v4126
        %v7586 = vmul.f32 %v7541, %v4126
        %v7587 = vmul.f32 %v7543, %v4126
        %v7588 = vmul.f32 %v7545, %v4126
        %v7589 = vmul.f32 %v7547, %v4126
        %v7590 = vmul.f32 %v7549, %v4126
        %v7591 = vmul.f32 %v7551, %v4126
        %v7592 = vmul.f32 %v7553, %v4126
        %v7593 = vmul.f32 %v7555, %v4126
        %v7594 = vmul.f32 %v7557, %v4126
        %v7595 = vmul.f32 %v7559, %v4126
        %v7596 = vmul.f32 %v7561, %v4126
        %v7597 = vmul.f32 %v7563, %v4126
        %v7598 = vmul.f32 %v7565, %v4126
        %v7599 = vmul.f32 %v7567, %v4126
        %v7600 = vadd.f32 %v7568, 1e-05
        %v7601 = vadd.f32 %v7569, 1e-05
        %v7602 = vadd.f32 %v7570, 1e-05
        %v7603 = vadd.f32 %v7571, 1e-05
        %v7604 = vadd.f32 %v7572, 1e-05
        %v7605 = vadd.f32 %v7573, 1e-05
        %v7606 = vadd.f32 %v7574, 1e-05
        %v7607 = vadd.f32 %v7575, 1e-05
        %v7608 = vadd.f32 %v7576, 1e-05
        %v7609 = vadd.f32 %v7577, 1e-05
        %v7610 = vadd.f32 %v7578, 1e-05
        %v7611 = vadd.f32 %v7579, 1e-05
        %v7612 = vadd.f32 %v7580, 1e-05
        %v7613 = vadd.f32 %v7581, 1e-05
        %v7614 = vadd.f32 %v7582, 1e-05
        %v7615 = vadd.f32 %v7583, 1e-05
        %v7616 = vadd.f32 %v7584, 1e-05
        %v7617 = vadd.f32 %v7585, 1e-05
        %v7618 = vadd.f32 %v7586, 1e-05
        %v7619 = vadd.f32 %v7587, 1e-05
        %v7620 = vadd.f32 %v7588, 1e-05
        %v7621 = vadd.f32 %v7589, 1e-05
        %v7622 = vadd.f32 %v7590, 1e-05
        %v7623 = vadd.f32 %v7591, 1e-05
        %v7624 = vadd.f32 %v7592, 1e-05
        %v7625 = vadd.f32 %v7593, 1e-05
        %v7626 = vadd.f32 %v7594, 1e-05
        %v7627 = vadd.f32 %v7595, 1e-05
        %v7628 = vadd.f32 %v7596, 1e-05
        %v7629 = vadd.f32 %v7597, 1e-05
        %v7630 = vadd.f32 %v7598, 1e-05
        %v7631 = vadd.f32 %v7599, 1e-05
        %v7632 = vrsqrt.pop %v7600
        %v7633 = vrsqrt.pop %v7601
        %v7634 = vrsqrt.pop %v7602
        %v7635 = vrsqrt.pop %v7603
        %v7636 = vrsqrt.pop %v7604
        %v7637 = vrsqrt.pop %v7605
        %v7638 = vrsqrt.pop %v7606
        %v7639 = vrsqrt.pop %v7607
        %v7640 = vrsqrt.pop %v7608
        %v7641 = vrsqrt.pop %v7609
        %v7642 = vrsqrt.pop %v7610
        %v7643 = vrsqrt.pop %v7611
        %v7644 = vrsqrt.pop %v7612
        %v7645 = vrsqrt.pop %v7613
        %v7646 = vrsqrt.pop %v7614
        %v7647 = vrsqrt.pop %v7615
        %v7648 = vrsqrt.pop %v7616
        %v7649 = vrsqrt.pop %v7617
        %v7650 = vrsqrt.pop %v7618
        %v7651 = vrsqrt.pop %v7619
        %v7652 = vrsqrt.pop %v7620
        %v7653 = vrsqrt.pop %v7621
        %v7654 = vrsqrt.pop %v7622
        %v7655 = vrsqrt.pop %v7623
        %v7656 = vrsqrt.pop %v7624
        %v7657 = vrsqrt.pop %v7625
        %v7658 = vrsqrt.pop %v7626
        %v7659 = vrsqrt.pop %v7627
        %v7660 = vrsqrt.pop %v7628
        %v7661 = vrsqrt.pop %v7629
        %v7662 = vrsqrt.pop %v7630
        %v7663 = vrsqrt.pop %v7631
        %v7664 = vmul.f32 %v7440, %v7632
        %v7665 = vmul.f32 %v7441, %v7633
        %v7666 = vmul.f32 %v7442, %v7634
        %v7667 = vmul.f32 %v7443, %v7635
        %v7668 = vmul.f32 %v7444, %v7636
        %v7669 = vmul.f32 %v7445, %v7637
        %v7670 = vmul.f32 %v7446, %v7638
        %v7671 = vmul.f32 %v7447, %v7639
        %v7672 = vmul.f32 %v7448, %v7640
        %v7673 = vmul.f32 %v7449, %v7641
        %v7674 = vmul.f32 %v7450, %v7642
        %v7675 = vmul.f32 %v7451, %v7643
        %v7676 = vmul.f32 %v7452, %v7644
        %v7677 = vmul.f32 %v7453, %v7645
        %v7678 = vmul.f32 %v7454, %v7646
        %v7679 = vmul.f32 %v7455, %v7647
        %v7680 = vmul.f32 %v7456, %v7648
        %v7681 = vmul.f32 %v7457, %v7649
        %v7682 = vmul.f32 %v7458, %v7650
        %v7683 = vmul.f32 %v7459, %v7651
        %v7684 = vmul.f32 %v7460, %v7652
        %v7685 = vmul.f32 %v7461, %v7653
        %v7686 = vmul.f32 %v7462, %v7654
        %v7687 = vmul.f32 %v7463, %v7655
        %v7688 = vmul.f32 %v7464, %v7656
        %v7689 = vmul.f32 %v7465, %v7657
        %v7690 = vmul.f32 %v7466, %v7658
        %v7691 = vmul.f32 %v7467, %v7659
        %v7692 = vmul.f32 %v7468, %v7660
        %v7693 = vmul.f32 %v7469, %v7661
        %v7694 = vmul.f32 %v7470, %v7662
        %v7695 = vmul.f32 %v7471, %v7663
        %v7696 = vmul.f32 %v7664, %v4419
        %v7697 = vmul.f32 %v7665, %v4419
        %v7698 = vmul.f32 %v7666, %v4419
        %v7699 = vmul.f32 %v7667, %v4419
        %v7700 = vmul.f32 %v7668, %v4419
        %v7701 = vmul.f32 %v7669, %v4419
        %v7702 = vmul.f32 %v7670, %v4419
        %v7703 = vmul.f32 %v7671, %v4419
        %v7704 = vmul.f32 %v7672, %v4419
        %v7705 = vmul.f32 %v7673, %v4419
        %v7706 = vmul.f32 %v7674, %v4419
        %v7707 = vmul.f32 %v7675, %v4419
        %v7708 = vmul.f32 %v7676, %v4419
        %v7709 = vmul.f32 %v7677, %v4419
        %v7710 = vmul.f32 %v7678, %v4419
        %v7711 = vmul.f32 %v7679, %v4419
        %v7712 = vmul.f32 %v7680, %v4419
        %v7713 = vmul.f32 %v7681, %v4419
        %v7714 = vmul.f32 %v7682, %v4419
        %v7715 = vmul.f32 %v7683, %v4419
        %v7716 = vmul.f32 %v7684, %v4419
        %v7717 = vmul.f32 %v7685, %v4419
        %v7718 = vmul.f32 %v7686, %v4419
        %v7719 = vmul.f32 %v7687, %v4419
        %v7720 = vmul.f32 %v7688, %v4419
        %v7721 = vmul.f32 %v7689, %v4419
        %v7722 = vmul.f32 %v7690, %v4419
        %v7723 = vmul.f32 %v7691, %v4419
        %v7724 = vmul.f32 %v7692, %v4419
        %v7725 = vmul.f32 %v7693, %v4419
        %v7726 = vmul.f32 %v7694, %v4419
        %v7727 = vmul.f32 %v7695, %v4419
        %v7728 = vadd.f32 %v7696, %v4457
        %v7729 = vadd.f32 %v7697, %v4457
        %v7730 = vadd.f32 %v7698, %v4457
        %v7731 = vadd.f32 %v7699, %v4457
        %v7732 = vadd.f32 %v7700, %v4457
        %v7733 = vadd.f32 %v7701, %v4457
        %v7734 = vadd.f32 %v7702, %v4457
        %v7735 = vadd.f32 %v7703, %v4457
        %v7736 = vadd.f32 %v7704, %v4457
        %v7737 = vadd.f32 %v7705, %v4457
        %v7738 = vadd.f32 %v7706, %v4457
        %v7739 = vadd.f32 %v7707, %v4457
        %v7740 = vadd.f32 %v7708, %v4457
        %v7741 = vadd.f32 %v7709, %v4457
        %v7742 = vadd.f32 %v7710, %v4457
        %v7743 = vadd.f32 %v7711, %v4457
        %v7744 = vadd.f32 %v7712, %v4457
        %v7745 = vadd.f32 %v7713, %v4457
        %v7746 = vadd.f32 %v7714, %v4457
        %v7747 = vadd.f32 %v7715, %v4457
        %v7748 = vadd.f32 %v7716, %v4457
        %v7749 = vadd.f32 %v7717, %v4457
        %v7750 = vadd.f32 %v7718, %v4457
        %v7751 = vadd.f32 %v7719, %v4457
        %v7752 = vadd.f32 %v7720, %v4457
        %v7753 = vadd.f32 %v7721, %v4457
        %v7754 = vadd.f32 %v7722, %v4457
        %v7755 = vadd.f32 %v7723, %v4457
        %v7756 = vadd.f32 %v7724, %v4457
        %v7757 = vadd.f32 %v7725, %v4457
        %v7758 = vadd.f32 %v7726, %v4457
        %v7759 = vadd.f32 %v7727, %v4457
        %v7760 = vld [vmem:[%s876] sm:$0xff]
        %v7761 = vld [vmem:[%s876 + $0x8] sm:$0xff]
        %v7762 = vld [vmem:[%s876 + $0x10] sm:$0xff]
        %v7763 = vld [vmem:[%s876 + $0x18] sm:$0xff]
        %v7764 = vld [vmem:[%s876 + $0x20] sm:$0xff]
        %v7765 = vld [vmem:[%s876 + $0x28] sm:$0xff]
        %v7766 = vld [vmem:[%s876 + $0x30] sm:$0xff]
        %v7767 = vld [vmem:[%s876 + $0x38] sm:$0xff]
        %v7768 = vld [vmem:[%s876 + $0x40] sm:$0xff]
        %v7769 = vld [vmem:[%s876 + $0x48] sm:$0xff]
        %v7770 = vld [vmem:[%s876 + $0x50] sm:$0xff]
        %v7771 = vld [vmem:[%s876 + $0x58] sm:$0xff]
        %v7772 = vld [vmem:[%s876 + $0x60] sm:$0xff]
        %v7773 = vld [vmem:[%s876 + $0x68] sm:$0xff]
        %v7774 = vld [vmem:[%s876 + $0x70] sm:$0xff]
        %v7775 = vld [vmem:[%s876 + $0x78] sm:$0xff]
        %v7776 = vld [vmem:[%s1014] sm:$0x3]
        %v7777 = vpack.c.bf16 %v7729, %v7728
        %v7778 = vpack.c.bf16 %v7731, %v7730
        %v7779 = vpack.c.bf16 %v7733, %v7732
        %v7780 = vpack.c.bf16 %v7735, %v7734
        %v7781 = vpack.c.bf16 %v7737, %v7736
        %v7782 = vpack.c.bf16 %v7739, %v7738
        %v7783 = vpack.c.bf16 %v7741, %v7740
        %v7784 = vpack.c.bf16 %v7743, %v7742
        %v7785 = vpack.c.bf16 %v7745, %v7744
        %v7786 = vpack.c.bf16 %v7747, %v7746
        %v7787 = vpack.c.bf16 %v7749, %v7748
        %v7788 = vpack.c.bf16 %v7751, %v7750
        %v7789 = vpack.c.bf16 %v7753, %v7752
        %v7790 = vpack.c.bf16 %v7755, %v7754
        %v7791 = vpack.c.bf16 %v7757, %v7756
        %v7792 = vpack.c.bf16 %v7759, %v7758
        %v7794 = vlaneseq
        %v7795 = vshrl.u32 %v7794, 7
        %v7796 = vsub.s32 0, %v7795
        %v7797 = vrot.slane %v7776, %v7796
        %v7798 = vlaneseq
        %v7799 = vshrl.u32 %v7798, 7
        %v7800 = vsub.s32 1, %v7799
        %v7801 = vrot.slane %v7776, %v7800
        %v7820 = vunpack.c.l.b16 %v7760
        %v7821 = vunpack.c.h.b16 %v7760
        %v7822 = vunpack.c.l.b16 %v7761
        %v7823 = vunpack.c.h.b16 %v7761
        %v7824 = vunpack.c.l.b16 %v7762
        %v7825 = vunpack.c.h.b16 %v7762
        %v7826 = vunpack.c.l.b16 %v7763
        %v7827 = vunpack.c.h.b16 %v7763
        %v7828 = vunpack.c.l.b16 %v7764
        %v7829 = vunpack.c.h.b16 %v7764
        %v7830 = vunpack.c.l.b16 %v7765
        %v7831 = vunpack.c.h.b16 %v7765
        %v7832 = vunpack.c.l.b16 %v7766
        %v7833 = vunpack.c.h.b16 %v7766
        %v7834 = vunpack.c.l.b16 %v7767
        %v7835 = vunpack.c.h.b16 %v7767
        %v7836 = vunpack.c.l.b16 %v7768
        %v7837 = vunpack.c.h.b16 %v7768
        %v7838 = vunpack.c.l.b16 %v7769
        %v7839 = vunpack.c.h.b16 %v7769
        %v7840 = vunpack.c.l.b16 %v7770
        %v7841 = vunpack.c.h.b16 %v7770
        %v7842 = vunpack.c.l.b16 %v7771
        %v7843 = vunpack.c.h.b16 %v7771
        %v7844 = vunpack.c.l.b16 %v7772
        %v7845 = vunpack.c.h.b16 %v7772
        %v7846 = vunpack.c.l.b16 %v7773
        %v7847 = vunpack.c.h.b16 %v7773
        %v7848 = vunpack.c.l.b16 %v7774
        %v7849 = vunpack.c.h.b16 %v7774
        %v7850 = vunpack.c.l.b16 %v7775
        %v7851 = vunpack.c.h.b16 %v7775
        %v7852 = vpack.c.b16 %v7822, %v7820
        %v7853 = vpack.c.b16 %v7823, %v7821
        %v7854 = vpack.c.b16 %v7826, %v7824
        %v7855 = vpack.c.b16 %v7827, %v7825
        %v7856 = vpack.c.b16 %v7830, %v7828
        %v7857 = vpack.c.b16 %v7831, %v7829
        %v7858 = vpack.c.b16 %v7834, %v7832
        %v7859 = vpack.c.b16 %v7835, %v7833
        %v7860 = vpack.c.b16 %v7838, %v7836
        %v7861 = vpack.c.b16 %v7839, %v7837
        %v7862 = vpack.c.b16 %v7842, %v7840
        %v7863 = vpack.c.b16 %v7843, %v7841
        %v7864 = vpack.c.b16 %v7846, %v7844
        %v7865 = vpack.c.b16 %v7847, %v7845
        %v7866 = vpack.c.b16 %v7850, %v7848
        %v7867 = vpack.c.b16 %v7851, %v7849
        %7884 = vmatprep.subr.bf16.mxu0 %v7853
        %7885 = vmatpush1.bf16.msra.mxu0 %v7852
        %7886 = vmatprep.subr.bf16.mxu0 %v7855
        %7887 = vmatpush1.bf16.msra.mxu0 %v7854
        %7888 = vmatprep.subr.bf16.mxu0 %v7857
        %7889 = vmatpush1.bf16.msra.mxu0 %v7856
        %7890 = vmatprep.subr.bf16.mxu0 %v7859
        %7891 = vmatpush1.bf16.msra.mxu0 %v7858
        %7892 = vmatprep.subr.bf16.mxu0 %v7861
        %7893 = vmatpush1.bf16.msra.mxu0 %v7860
        %7894 = vmatprep.subr.bf16.mxu0 %v7863
        %7895 = vmatpush1.bf16.msra.mxu0 %v7862
        %7896 = vmatprep.subr.bf16.mxu0 %v7865
        %7897 = vmatpush1.bf16.msra.mxu0 %v7864
        %7898 = vmatprep.subr.bf16.mxu0 %v7867
        %7899 = vmatpush1.bf16.msra.mxu0 %v7866
        %7900 = vmatprep.subr.bf16.mxu0 0
        %7901 = vmatpush1.bf16.msra.mxu0 0
        %7902 = vmatprep.subr.bf16.mxu0 0
        %7903 = vmatpush1.bf16.msra.mxu0 0
        %7904 = vmatprep.subr.bf16.mxu0 0
        %7905 = vmatpush1.bf16.msra.mxu0 0
        %7906 = vmatprep.subr.bf16.mxu0 0
        %7907 = vmatpush1.bf16.msra.mxu0 0
        %7908 = vmatprep.subr.bf16.mxu0 0
        %7909 = vmatpush1.bf16.msra.mxu0 0
        %7910 = vmatprep.subr.bf16.mxu0 0
        %7911 = vmatpush1.bf16.msra.mxu0 0
        %7912 = vmatprep.subr.bf16.mxu0 0
        %7913 = vmatpush1.bf16.msra.mxu0 0
        %7914 = vmatprep.subr.bf16.mxu0 0
        %7915 = vmatpush1.bf16.msra.mxu0 0
        %7916 = vmatprep.mubr.bf16.mxu0 0
        %7917 = vmatmul.mubr.bf16.gmra.mrb[0].mxu0 %v7777
        %v7918 = vpop.f32.mrb[0].mxu0
        %v7919 = vadd.f32 %v7797, %v7918
        %v7920 = vpop.f32.mrb[0].mxu0
        %v7921 = vadd.f32 %v7801, %v7920
        %v7922 = vpop.f32.mrb[0].mxu0
        %v7923 = vadd.f32 %v7797, %v7922
        %v7924 = vpop.f32.mrb[0].mxu0
        %v7925 = vadd.f32 %v7801, %v7924
        %7926 = vmatprep.mubr.bf16.mxu0 0
        %7927 = vmatmul.mubr.bf16.gmra.mrb[0].mxu0 %v7778
        %v7928 = vpop.f32.mrb[0].mxu0
        %v7929 = vadd.f32 %v7797, %v7928
        %v7930 = vpop.f32.mrb[0].mxu0
        %v7931 = vadd.f32 %v7801, %v7930
        %v7932 = vpop.f32.mrb[0].mxu0
        %v7933 = vadd.f32 %v7797, %v7932
        %v7934 = vpop.f32.mrb[0].mxu0
        %v7935 = vadd.f32 %v7801, %v7934
        %7936 = vmatprep.mubr.bf16.mxu0 0
        %7937 = vmatmul.mubr.bf16.gmra.mrb[0].mxu0 %v7779
        %v7938 = vpop.f32.mrb[0].mxu0
        %v7939 = vadd.f32 %v7797, %v7938
        %v7940 = vpop.f32.mrb[0].mxu0
        %v7941 = vadd.f32 %v7801, %v7940
        %v7942 = vpop.f32.mrb[0].mxu0
        %v7943 = vadd.f32 %v7797, %v7942
        %v7944 = vpop.f32.mrb[0].mxu0
        %v7945 = vadd.f32 %v7801, %v7944
        %7946 = vmatprep.mubr.bf16.mxu0 0
        %7947 = vmatmul.mubr.bf16.gmra.mrb[0].mxu0 %v7780
        %v7948 = vpop.f32.mrb[0].mxu0
        %v7949 = vadd.f32 %v7797, %v7948
        %v7950 = vpop.f32.mrb[0].mxu0
        %v7951 = vadd.f32 %v7801, %v7950
        %v7952 = vpop.f32.mrb[0].mxu0
        %v7953 = vadd.f32 %v7797, %v7952
        %v7954 = vpop.f32.mrb[0].mxu0
        %v7955 = vadd.f32 %v7801, %v7954
        %7956 = vmatprep.mubr.bf16.mxu0 0
        %7957 = vmatmul.mubr.bf16.gmra.mrb[0].mxu0 %v7781
        %v7958 = vpop.f32.mrb[0].mxu0
        %v7959 = vadd.f32 %v7797, %v7958
        %v7960 = vpop.f32.mrb[0].mxu0
        %v7961 = vadd.f32 %v7801, %v7960
        %v7962 = vpop.f32.mrb[0].mxu0
        %v7963 = vadd.f32 %v7797, %v7962
        %v7964 = vpop.f32.mrb[0].mxu0
        %v7965 = vadd.f32 %v7801, %v7964
        %7966 = vmatprep.mubr.bf16.mxu0 0
        %7967 = vmatmul.mubr.bf16.gmra.mrb[0].mxu0 %v7782
        %v7968 = vpop.f32.mrb[0].mxu0
        %v7969 = vadd.f32 %v7797, %v7968
        %v7970 = vpop.f32.mrb[0].mxu0
        %v7971 = vadd.f32 %v7801, %v7970
        %v7972 = vpop.f32.mrb[0].mxu0
        %v7973 = vadd.f32 %v7797, %v7972
        %v7974 = vpop.f32.mrb[0].mxu0
        %v7975 = vadd.f32 %v7801, %v7974
        %7976 = vmatprep.mubr.bf16.mxu0 0
        %7977 = vmatmul.mubr.bf16.gmra.mrb[0].mxu0 %v7783
        %v7978 = vpop.f32.mrb[0].mxu0
        %v7979 = vadd.f32 %v7797, %v7978
        %v7980 = vpop.f32.mrb[0].mxu0
        %v7981 = vadd.f32 %v7801, %v7980
        %v7982 = vpop.f32.mrb[0].mxu0
        %v7983 = vadd.f32 %v7797, %v7982
        %v7984 = vpop.f32.mrb[0].mxu0
        %v7985 = vadd.f32 %v7801, %v7984
        %7986 = vmatprep.mubr.bf16.mxu0 0
        %7987 = vmatmul.mubr.bf16.gmra.mrb[0].mxu0 %v7784
        %v7988 = vpop.f32.mrb[0].mxu0
        %v7989 = vadd.f32 %v7797, %v7988
        %v7990 = vpop.f32.mrb[0].mxu0
        %v7991 = vadd.f32 %v7801, %v7990
        %v7992 = vpop.f32.mrb[0].mxu0
        %v7993 = vadd.f32 %v7797, %v7992
        %v7994 = vpop.f32.mrb[0].mxu0
        %v7995 = vadd.f32 %v7801, %v7994
        %7996 = vmatprep.mubr.bf16.mxu0 0
        %7997 = vmatmul.mubr.bf16.gmra.mrb[0].mxu0 %v7785
        %v7998 = vpop.f32.mrb[0].mxu0
        %v7999 = vadd.f32 %v7797, %v7998
        %v8000 = vpop.f32.mrb[0].mxu0
        %v8001 = vadd.f32 %v7801, %v8000
        %v8002 = vpop.f32.mrb[0].mxu0
        %v8003 = vadd.f32 %v7797, %v8002
        %v8004 = vpop.f32.mrb[0].mxu0
        %v8005 = vadd.f32 %v7801, %v8004
        %8006 = vmatprep.mubr.bf16.mxu0 0
        %8007 = vmatmul.mubr.bf16.gmra.mrb[0].mxu0 %v7786
        %v8008 = vpop.f32.mrb[0].mxu0
        %v8009 = vadd.f32 %v7797, %v8008
        %v8010 = vpop.f32.mrb[0].mxu0
        %v8011 = vadd.f32 %v7801, %v8010
        %v8012 = vpop.f32.mrb[0].mxu0
        %v8013 = vadd.f32 %v7797, %v8012
        %v8014 = vpop.f32.mrb[0].mxu0
        %v8015 = vadd.f32 %v7801, %v8014
        %8016 = vmatprep.mubr.bf16.mxu0 0
        %8017 = vmatmul.mubr.bf16.gmra.mrb[0].mxu0 %v7787
        %v8018 = vpop.f32.mrb[0].mxu0
        %v8019 = vadd.f32 %v7797, %v8018
        %v8020 = vpop.f32.mrb[0].mxu0
        %v8021 = vadd.f32 %v7801, %v8020
        %v8022 = vpop.f32.mrb[0].mxu0
        %v8023 = vadd.f32 %v7797, %v8022
        %v8024 = vpop.f32.mrb[0].mxu0
        %v8025 = vadd.f32 %v7801, %v8024
        %8026 = vmatprep.mubr.bf16.mxu0 0
        %8027 = vmatmul.mubr.bf16.gmra.mrb[0].mxu0 %v7788
        %v8028 = vpop.f32.mrb[0].mxu0
        %v8029 = vadd.f32 %v7797, %v8028
        %v8030 = vpop.f32.mrb[0].mxu0
        %v8031 = vadd.f32 %v7801, %v8030
        %v8032 = vpop.f32.mrb[0].mxu0
        %v8033 = vadd.f32 %v7797, %v8032
        %v8034 = vpop.f32.mrb[0].mxu0
        %v8035 = vadd.f32 %v7801, %v8034
        %8036 = vmatprep.mubr.bf16.mxu0 0
        %8037 = vmatmul.mubr.bf16.gmra.mrb[0].mxu0 %v7789
        %v8038 = vpop.f32.mrb[0].mxu0
        %v8039 = vadd.f32 %v7797, %v8038
        %v8040 = vpop.f32.mrb[0].mxu0
        %v8041 = vadd.f32 %v7801, %v8040
        %v8042 = vpop.f32.mrb[0].mxu0
        %v8043 = vadd.f32 %v7797, %v8042
        %v8044 = vpop.f32.mrb[0].mxu0
        %v8045 = vadd.f32 %v7801, %v8044
        %8046 = vmatprep.mubr.bf16.mxu0 0
        %8047 = vmatmul.mubr.bf16.gmra.mrb[0].mxu0 %v7790
        %v8048 = vpop.f32.mrb[0].mxu0
        %v8049 = vadd.f32 %v7797, %v8048
        %v8050 = vpop.f32.mrb[0].mxu0
        %v8051 = vadd.f32 %v7801, %v8050
        %v8052 = vpop.f32.mrb[0].mxu0
        %v8053 = vadd.f32 %v7797, %v8052
        %v8054 = vpop.f32.mrb[0].mxu0
        %v8055 = vadd.f32 %v7801, %v8054
        %8056 = vmatprep.mubr.bf16.mxu0 0
        %8057 = vmatmul.mubr.bf16.gmra.mrb[0].mxu0 %v7791
        %v8058 = vpop.f32.mrb[0].mxu0
        %v8059 = vadd.f32 %v7797, %v8058
        %v8060 = vpop.f32.mrb[0].mxu0
        %v8061 = vadd.f32 %v7801, %v8060
        %v8062 = vpop.f32.mrb[0].mxu0
        %v8063 = vadd.f32 %v7797, %v8062
        %v8064 = vpop.f32.mrb[0].mxu0
        %v8065 = vadd.f32 %v7801, %v8064
        %8066 = vmatprep.mubr.bf16.mxu0 0
        %8067 = vmatmul.mubr.bf16.gmra.mrb[0].mxu0 %v7792
        %v8068 = vpop.f32.mrb[0].mxu0
        %v8069 = vadd.f32 %v7797, %v8068
        %v8070 = vpop.f32.mrb[0].mxu0
        %v8071 = vadd.f32 %v7801, %v8070
        %v8072 = vpop.f32.mrb[0].mxu0
        %v8073 = vadd.f32 %v7797, %v8072
        %v8074 = vpop.f32.mrb[0].mxu0
        %v8075 = vadd.f32 %v7801, %v8074
        %8076 = vdwg.mxu0
        %v8077 = vmax.f32 %v7919, 0.0
        %v8078 = vmax.f32 %v7921, 0.0
        %v8079 = vmax.f32 %v7923, 0.0
        %v8080 = vmax.f32 %v7925, 0.0
        %v8081 = vmax.f32 %v7929, 0.0
        %v8082 = vmax.f32 %v7931, 0.0
        %v8083 = vmax.f32 %v7933, 0.0
        %v8084 = vmax.f32 %v7935, 0.0
        %v8085 = vmax.f32 %v7939, 0.0
        %v8086 = vmax.f32 %v7941, 0.0
        %v8087 = vmax.f32 %v7943, 0.0
        %v8088 = vmax.f32 %v7945, 0.0
        %v8089 = vmax.f32 %v7949, 0.0
        %v8090 = vmax.f32 %v7951, 0.0
        %v8091 = vmax.f32 %v7953, 0.0
        %v8092 = vmax.f32 %v7955, 0.0
        %v8093 = vmax.f32 %v7959, 0.0
        %v8094 = vmax.f32 %v7961, 0.0
        %v8095 = vmax.f32 %v7963, 0.0
        %v8096 = vmax.f32 %v7965, 0.0
        %v8097 = vmax.f32 %v7969, 0.0
        %v8098 = vmax.f32 %v7971, 0.0
        %v8099 = vmax.f32 %v7973, 0.0
        %v8100 = vmax.f32 %v7975, 0.0
        %v8101 = vmax.f32 %v7979, 0.0
        %v8102 = vmax.f32 %v7981, 0.0
        %v8103 = vmax.f32 %v7983, 0.0
        %v8104 = vmax.f32 %v7985, 0.0
        %v8105 = vmax.f32 %v7989, 0.0
        %v8106 = vmax.f32 %v7991, 0.0
        %v8107 = vmax.f32 %v7993, 0.0
        %v8108 = vmax.f32 %v7995, 0.0
        %v8109 = vmax.f32 %v7999, 0.0
        %v8110 = vmax.f32 %v8001, 0.0
        %v8111 = vmax.f32 %v8003, 0.0
        %v8112 = vmax.f32 %v8005, 0.0
        %v8113 = vmax.f32 %v8009, 0.0
        %v8114 = vmax.f32 %v8011, 0.0
        %v8115 = vmax.f32 %v8013, 0.0
        %v8116 = vmax.f32 %v8015, 0.0
        %v8117 = vmax.f32 %v8019, 0.0
        %v8118 = vmax.f32 %v8021, 0.0
        %v8119 = vmax.f32 %v8023, 0.0
        %v8120 = vmax.f32 %v8025, 0.0
        %v8121 = vmax.f32 %v8029, 0.0
        %v8122 = vmax.f32 %v8031, 0.0
        %v8123 = vmax.f32 %v8033, 0.0
        %v8124 = vmax.f32 %v8035, 0.0
        %v8125 = vmax.f32 %v8039, 0.0
        %v8126 = vmax.f32 %v8041, 0.0
        %v8127 = vmax.f32 %v8043, 0.0
        %v8128 = vmax.f32 %v8045, 0.0
        %v8129 = vmax.f32 %v8049, 0.0
        %v8130 = vmax.f32 %v8051, 0.0
        %v8131 = vmax.f32 %v8053, 0.0
        %v8132 = vmax.f32 %v8055, 0.0
        %v8133 = vmax.f32 %v8059, 0.0
        %v8134 = vmax.f32 %v8061, 0.0
        %v8135 = vmax.f32 %v8063, 0.0
        %v8136 = vmax.f32 %v8065, 0.0
        %v8137 = vmax.f32 %v8069, 0.0
        %v8138 = vmax.f32 %v8071, 0.0
        %v8139 = vmax.f32 %v8073, 0.0
        %v8140 = vmax.f32 %v8075, 0.0
        %v8141 = vld [vmem:[%s885] sm:$0xf]
        %v8142 = vld [vmem:[%s885 + $0x4] sm:$0xf]
        %v8143 = vld [vmem:[%s885 + $0x8] sm:$0xf]
        %v8144 = vld [vmem:[%s885 + $0xc] sm:$0xf]
        %v8145 = vld [vmem:[%s885 + $0x10] sm:$0xf]
        %v8146 = vld [vmem:[%s885 + $0x14] sm:$0xf]
        %v8147 = vld [vmem:[%s885 + $0x18] sm:$0xf]
        %v8148 = vld [vmem:[%s885 + $0x1c] sm:$0xf]
        %v8149 = vld [vmem:[%s885 + $0x20] sm:$0xf]
        %v8150 = vld [vmem:[%s885 + $0x24] sm:$0xf]
        %v8151 = vld [vmem:[%s885 + $0x28] sm:$0xf]
        %v8152 = vld [vmem:[%s885 + $0x2c] sm:$0xf]
        %v8153 = vld [vmem:[%s885 + $0x30] sm:$0xf]
        %v8154 = vld [vmem:[%s885 + $0x34] sm:$0xf]
        %v8155 = vld [vmem:[%s885 + $0x38] sm:$0xf]
        %v8156 = vld [vmem:[%s885 + $0x3c] sm:$0xf]
        %v8157 = vld [vmem:[%s885 + $0x40] sm:$0xf]
        %v8158 = vld [vmem:[%s885 + $0x44] sm:$0xf]
        %v8159 = vld [vmem:[%s885 + $0x48] sm:$0xf]
        %v8160 = vld [vmem:[%s885 + $0x4c] sm:$0xf]
        %v8161 = vld [vmem:[%s885 + $0x50] sm:$0xf]
        %v8162 = vld [vmem:[%s885 + $0x54] sm:$0xf]
        %v8163 = vld [vmem:[%s885 + $0x58] sm:$0xf]
        %v8164 = vld [vmem:[%s885 + $0x5c] sm:$0xf]
        %v8165 = vld [vmem:[%s885 + $0x60] sm:$0xf]
        %v8166 = vld [vmem:[%s885 + $0x64] sm:$0xf]
        %v8167 = vld [vmem:[%s885 + $0x68] sm:$0xf]
        %v8168 = vld [vmem:[%s885 + $0x6c] sm:$0xf]
        %v8169 = vld [vmem:[%s885 + $0x70] sm:$0xf]
        %v8170 = vld [vmem:[%s885 + $0x74] sm:$0xf]
        %v8171 = vld [vmem:[%s885 + $0x78] sm:$0xf]
        %v8172 = vld [vmem:[%s885 + $0x7c] sm:$0xf]
        %v8173 = vld [vmem:[%s1017] sm:$0x1]
        %v8174 = vpack.c.bf16 %v8079, %v8077
        %v8175 = vpack.c.bf16 %v8080, %v8078
        %v8176 = vpack.c.bf16 %v8083, %v8081
        %v8177 = vpack.c.bf16 %v8084, %v8082
        %v8178 = vpack.c.bf16 %v8087, %v8085
        %v8179 = vpack.c.bf16 %v8088, %v8086
        %v8180 = vpack.c.bf16 %v8091, %v8089
        %v8181 = vpack.c.bf16 %v8092, %v8090
        %v8182 = vpack.c.bf16 %v8095, %v8093
        %v8183 = vpack.c.bf16 %v8096, %v8094
        %v8184 = vpack.c.bf16 %v8099, %v8097
        %v8185 = vpack.c.bf16 %v8100, %v8098
        %v8186 = vpack.c.bf16 %v8103, %v8101
        %v8187 = vpack.c.bf16 %v8104, %v8102
        %v8188 = vpack.c.bf16 %v8107, %v8105
        %v8189 = vpack.c.bf16 %v8108, %v8106
        %v8190 = vpack.c.bf16 %v8111, %v8109
        %v8191 = vpack.c.bf16 %v8112, %v8110
        %v8192 = vpack.c.bf16 %v8115, %v8113
        %v8193 = vpack.c.bf16 %v8116, %v8114
        %v8194 = vpack.c.bf16 %v8119, %v8117
        %v8195 = vpack.c.bf16 %v8120, %v8118
        %v8196 = vpack.c.bf16 %v8123, %v8121
        %v8197 = vpack.c.bf16 %v8124, %v8122
        %v8198 = vpack.c.bf16 %v8127, %v8125
        %v8199 = vpack.c.bf16 %v8128, %v8126
        %v8200 = vpack.c.bf16 %v8131, %v8129
        %v8201 = vpack.c.bf16 %v8132, %v8130
        %v8202 = vpack.c.bf16 %v8135, %v8133
        %v8203 = vpack.c.bf16 %v8136, %v8134
        %v8204 = vpack.c.bf16 %v8139, %v8137
        %v8205 = vpack.c.bf16 %v8140, %v8138
        %v8207 = vlaneseq
        %v8208 = vshrl.u32 %v8207, 7
        %v8209 = vsub.s32 0, %v8208
        %v8210 = vrot.slane %v8173, %v8209
        %v8244 = vunpack.c.l.b16 %v8141
        %v8245 = vunpack.c.l.b16 %v8142
        %v8246 = vunpack.c.l.b16 %v8143
        %v8247 = vunpack.c.l.b16 %v8144
        %v8248 = vunpack.c.l.b16 %v8145
        %v8249 = vunpack.c.l.b16 %v8146
        %v8250 = vunpack.c.l.b16 %v8147
        %v8251 = vunpack.c.l.b16 %v8148
        %v8252 = vunpack.c.l.b16 %v8149
        %v8253 = vunpack.c.l.b16 %v8150
        %v8254 = vunpack.c.l.b16 %v8151
        %v8255 = vunpack.c.l.b16 %v8152
        %v8256 = vunpack.c.l.b16 %v8153
        %v8257 = vunpack.c.l.b16 %v8154
        %v8258 = vunpack.c.l.b16 %v8155
        %v8259 = vunpack.c.l.b16 %v8156
        %v8260 = vunpack.c.l.b16 %v8157
        %v8261 = vunpack.c.l.b16 %v8158
        %v8262 = vunpack.c.l.b16 %v8159
        %v8263 = vunpack.c.l.b16 %v8160
        %v8264 = vunpack.c.l.b16 %v8161
        %v8265 = vunpack.c.l.b16 %v8162
        %v8266 = vunpack.c.l.b16 %v8163
        %v8267 = vunpack.c.l.b16 %v8164
        %v8268 = vunpack.c.l.b16 %v8165
        %v8269 = vunpack.c.l.b16 %v8166
        %v8270 = vunpack.c.l.b16 %v8167
        %v8271 = vunpack.c.l.b16 %v8168
        %v8272 = vunpack.c.l.b16 %v8169
        %v8273 = vunpack.c.l.b16 %v8170
        %v8274 = vunpack.c.l.b16 %v8171
        %v8275 = vunpack.c.l.b16 %v8172
        %v8276 = vpack.c.b16 %v8245, %v8244
        %v8277 = vpack.c.b16 %v8247, %v8246
        %v8278 = vpack.c.b16 %v8249, %v8248
        %v8279 = vpack.c.b16 %v8251, %v8250
        %v8280 = vpack.c.b16 %v8253, %v8252
        %v8281 = vpack.c.b16 %v8255, %v8254
        %v8282 = vpack.c.b16 %v8257, %v8256
        %v8283 = vpack.c.b16 %v8259, %v8258
        %v8284 = vpack.c.b16 %v8261, %v8260
        %v8285 = vpack.c.b16 %v8263, %v8262
        %v8286 = vpack.c.b16 %v8265, %v8264
        %v8287 = vpack.c.b16 %v8267, %v8266
        %v8288 = vpack.c.b16 %v8269, %v8268
        %v8289 = vpack.c.b16 %v8271, %v8270
        %v8290 = vpack.c.b16 %v8273, %v8272
        %v8291 = vpack.c.b16 %v8275, %v8274
        %8308 = vmatprep.subr.bf16.mxu0 0
        %8309 = vmatpush1.bf16.msra.mxu0 %v8276
        %8310 = vmatprep.subr.bf16.mxu0 0
        %8311 = vmatpush1.bf16.msra.mxu0 %v8277
        %8312 = vmatprep.subr.bf16.mxu0 0
        %8313 = vmatpush1.bf16.msra.mxu0 %v8278
        %8314 = vmatprep.subr.bf16.mxu0 0
        %8315 = vmatpush1.bf16.msra.mxu0 %v8279
        %8316 = vmatprep.subr.bf16.mxu0 0
        %8317 = vmatpush1.bf16.msra.mxu0 %v8280
        %8318 = vmatprep.subr.bf16.mxu0 0
        %8319 = vmatpush1.bf16.msra.mxu0 %v8281
        %8320 = vmatprep.subr.bf16.mxu0 0
        %8321 = vmatpush1.bf16.msra.mxu0 %v8282
        %8322 = vmatprep.subr.bf16.mxu0 0
        %8323 = vmatpush1.bf16.msra.mxu0 %v8283
        %8324 = vmatprep.subr.bf16.mxu0 0
        %8325 = vmatpush1.bf16.msra.mxu0 %v8284
        %8326 = vmatprep.subr.bf16.mxu0 0
        %8327 = vmatpush1.bf16.msra.mxu0 %v8285
        %8328 = vmatprep.subr.bf16.mxu0 0
        %8329 = vmatpush1.bf16.msra.mxu0 %v8286
        %8330 = vmatprep.subr.bf16.mxu0 0
        %8331 = vmatpush1.bf16.msra.mxu0 %v8287
        %8332 = vmatprep.subr.bf16.mxu0 0
        %8333 = vmatpush1.bf16.msra.mxu0 %v8288
        %8334 = vmatprep.subr.bf16.mxu0 0
        %8335 = vmatpush1.bf16.msra.mxu0 %v8289
        %8336 = vmatprep.subr.bf16.mxu0 0
        %8337 = vmatpush1.bf16.msra.mxu0 %v8290
        %8338 = vmatprep.subr.bf16.mxu0 0
        %8339 = vmatpush1.bf16.msra.mxu0 %v8291
        %8340 = vmatprep.mubr.bf16.mxu0 %v8175
        %8341 = vmatmul.mubr.bf16.gmra.mrb[0].mxu0 %v8174
        %v8342 = vpop.f32.mrb[0].mxu0
        %v8343 = vadd.f32 %v8210, %v8342
        %v8344 = vpop.f32.mrb[0].mxu0
        %v8345 = vpop.f32.mrb[0].mxu0
        %v8346 = vadd.f32 %v8210, %v8345
        %v8347 = vpop.f32.mrb[0].mxu0
        %8348 = vmatprep.mubr.bf16.mxu0 %v8177
        %8349 = vmatmul.mubr.bf16.gmra.mrb[0].mxu0 %v8176
        %v8350 = vpop.f32.mrb[0].mxu0
        %v8351 = vadd.f32 %v8210, %v8350
        %v8352 = vpop.f32.mrb[0].mxu0
        %v8353 = vpop.f32.mrb[0].mxu0
        %v8354 = vadd.f32 %v8210, %v8353
        %v8355 = vpop.f32.mrb[0].mxu0
        %8356 = vmatprep.mubr.bf16.mxu0 %v8179
        %8357 = vmatmul.mubr.bf16.gmra.mrb[0].mxu0 %v8178
        %v8358 = vpop.f32.mrb[0].mxu0
        %v8359 = vadd.f32 %v8210, %v8358
        %v8360 = vpop.f32.mrb[0].mxu0
        %v8361 = vpop.f32.mrb[0].mxu0
        %v8362 = vadd.f32 %v8210, %v8361
        %v8363 = vpop.f32.mrb[0].mxu0
        %8364 = vmatprep.mubr.bf16.mxu0 %v8181
        %8365 = vmatmul.mubr.bf16.gmra.mrb[0].mxu0 %v8180
        %v8366 = vpop.f32.mrb[0].mxu0
        %v8367 = vadd.f32 %v8210, %v8366
        %v8368 = vpop.f32.mrb[0].mxu0
        %v8369 = vpop.f32.mrb[0].mxu0
        %v8370 = vadd.f32 %v8210, %v8369
        %v8371 = vpop.f32.mrb[0].mxu0
        %8372 = vmatprep.mubr.bf16.mxu0 %v8183
        %8373 = vmatmul.mubr.bf16.gmra.mrb[0].mxu0 %v8182
        %v8374 = vpop.f32.mrb[0].mxu0
        %v8375 = vadd.f32 %v8210, %v8374
        %v8376 = vpop.f32.mrb[0].mxu0
        %v8377 = vpop.f32.mrb[0].mxu0
        %v8378 = vadd.f32 %v8210, %v8377
        %v8379 = vpop.f32.mrb[0].mxu0
        %8380 = vmatprep.mubr.bf16.mxu0 %v8185
        %8381 = vmatmul.mubr.bf16.gmra.mrb[0].mxu0 %v8184
        %v8382 = vpop.f32.mrb[0].mxu0
        %v8383 = vadd.f32 %v8210, %v8382
        %v8384 = vpop.f32.mrb[0].mxu0
        %v8385 = vpop.f32.mrb[0].mxu0
        %v8386 = vadd.f32 %v8210, %v8385
        %v8387 = vpop.f32.mrb[0].mxu0
        %8388 = vmatprep.mubr.bf16.mxu0 %v8187
        %8389 = vmatmul.mubr.bf16.gmra.mrb[0].mxu0 %v8186
        %v8390 = vpop.f32.mrb[0].mxu0
        %v8391 = vadd.f32 %v8210, %v8390
        %v8392 = vpop.f32.mrb[0].mxu0
        %v8393 = vpop.f32.mrb[0].mxu0
        %v8394 = vadd.f32 %v8210, %v8393
        %v8395 = vpop.f32.mrb[0].mxu0
        %8396 = vmatprep.mubr.bf16.mxu0 %v8189
        %8397 = vmatmul.mubr.bf16.gmra.mrb[0].mxu0 %v8188
        %v8398 = vpop.f32.mrb[0].mxu0
        %v8399 = vadd.f32 %v8210, %v8398
        %v8400 = vpop.f32.mrb[0].mxu0
        %v8401 = vpop.f32.mrb[0].mxu0
        %v8402 = vadd.f32 %v8210, %v8401
        %v8403 = vpop.f32.mrb[0].mxu0
        %8404 = vmatprep.mubr.bf16.mxu0 %v8191
        %8405 = vmatmul.mubr.bf16.gmra.mrb[0].mxu0 %v8190
        %v8406 = vpop.f32.mrb[0].mxu0
        %v8407 = vadd.f32 %v8210, %v8406
        %v8408 = vpop.f32.mrb[0].mxu0
        %v8409 = vpop.f32.mrb[0].mxu0
        %v8410 = vadd.f32 %v8210, %v8409
        %v8411 = vpop.f32.mrb[0].mxu0
        %8412 = vmatprep.mubr.bf16.mxu0 %v8193
        %8413 = vmatmul.mubr.bf16.gmra.mrb[0].mxu0 %v8192
        %v8414 = vpop.f32.mrb[0].mxu0
        %v8415 = vadd.f32 %v8210, %v8414
        %v8416 = vpop.f32.mrb[0].mxu0
        %v8417 = vpop.f32.mrb[0].mxu0
        %v8418 = vadd.f32 %v8210, %v8417
        %v8419 = vpop.f32.mrb[0].mxu0
        %8420 = vmatprep.mubr.bf16.mxu0 %v8195
        %8421 = vmatmul.mubr.bf16.gmra.mrb[0].mxu0 %v8194
        %v8422 = vpop.f32.mrb[0].mxu0
        %v8423 = vadd.f32 %v8210, %v8422
        %v8424 = vpop.f32.mrb[0].mxu0
        %v8425 = vpop.f32.mrb[0].mxu0
        %v8426 = vadd.f32 %v8210, %v8425
        %v8427 = vpop.f32.mrb[0].mxu0
        %8428 = vmatprep.mubr.bf16.mxu0 %v8197
        %8429 = vmatmul.mubr.bf16.gmra.mrb[0].mxu0 %v8196
        %v8430 = vpop.f32.mrb[0].mxu0
        %v8431 = vadd.f32 %v8210, %v8430
        %v8432 = vpop.f32.mrb[0].mxu0
        %v8433 = vpop.f32.mrb[0].mxu0
        %v8434 = vadd.f32 %v8210, %v8433
        %v8435 = vpop.f32.mrb[0].mxu0
        %8436 = vmatprep.mubr.bf16.mxu0 %v8199
        %8437 = vmatmul.mubr.bf16.gmra.mrb[0].mxu0 %v8198
        %v8438 = vpop.f32.mrb[0].mxu0
        %v8439 = vadd.f32 %v8210, %v8438
        %v8440 = vpop.f32.mrb[0].mxu0
        %v8441 = vpop.f32.mrb[0].mxu0
        %v8442 = vadd.f32 %v8210, %v8441
        %v8443 = vpop.f32.mrb[0].mxu0
        %8444 = vmatprep.mubr.bf16.mxu0 %v8201
        %8445 = vmatmul.mubr.bf16.gmra.mrb[0].mxu0 %v8200
        %v8446 = vpop.f32.mrb[0].mxu0
        %v8447 = vadd.f32 %v8210, %v8446
        %v8448 = vpop.f32.mrb[0].mxu0
        %v8449 = vpop.f32.mrb[0].mxu0
        %v8450 = vadd.f32 %v8210, %v8449
        %v8451 = vpop.f32.mrb[0].mxu0
        %8452 = vmatprep.mubr.bf16.mxu0 %v8203
        %8453 = vmatmul.mubr.bf16.gmra.mrb[0].mxu0 %v8202
        %v8454 = vpop.f32.mrb[0].mxu0
        %v8455 = vadd.f32 %v8210, %v8454
        %v8456 = vpop.f32.mrb[0].mxu0
        %v8457 = vpop.f32.mrb[0].mxu0
        %v8458 = vadd.f32 %v8210, %v8457
        %v8459 = vpop.f32.mrb[0].mxu0
        %8460 = vmatprep.mubr.bf16.mxu0 %v8205
        %8461 = vmatmul.mubr.bf16.gmra.mrb[0].mxu0 %v8204
        %v8462 = vpop.f32.mrb[0].mxu0
        %v8463 = vadd.f32 %v8210, %v8462
        %v8464 = vpop.f32.mrb[0].mxu0
        %v8465 = vpop.f32.mrb[0].mxu0
        %v8466 = vadd.f32 %v8210, %v8465
        %v8467 = vpop.f32.mrb[0].mxu0
        %8468 = vdwg.mxu0
        %v8469 = vadd.f32 %v8343, %v7728
        %v8470 = vadd.f32 %v8346, %v7729
        %v8471 = vadd.f32 %v8351, %v7730
        %v8472 = vadd.f32 %v8354, %v7731
        %v8473 = vadd.f32 %v8359, %v7732
        %v8474 = vadd.f32 %v8362, %v7733
        %v8475 = vadd.f32 %v8367, %v7734
        %v8476 = vadd.f32 %v8370, %v7735
        %v8477 = vadd.f32 %v8375, %v7736
        %v8478 = vadd.f32 %v8378, %v7737
        %v8479 = vadd.f32 %v8383, %v7738
        %v8480 = vadd.f32 %v8386, %v7739
        %v8481 = vadd.f32 %v8391, %v7740
        %v8482 = vadd.f32 %v8394, %v7741
        %v8483 = vadd.f32 %v8399, %v7742
        %v8484 = vadd.f32 %v8402, %v7743
        %v8485 = vadd.f32 %v8407, %v7744
        %v8486 = vadd.f32 %v8410, %v7745
        %v8487 = vadd.f32 %v8415, %v7746
        %v8488 = vadd.f32 %v8418, %v7747
        %v8489 = vadd.f32 %v8423, %v7748
        %v8490 = vadd.f32 %v8426, %v7749
        %v8491 = vadd.f32 %v8431, %v7750
        %v8492 = vadd.f32 %v8434, %v7751
        %v8493 = vadd.f32 %v8439, %v7752
        %v8494 = vadd.f32 %v8442, %v7753
        %v8495 = vadd.f32 %v8447, %v7754
        %v8496 = vadd.f32 %v8450, %v7755
        %v8497 = vadd.f32 %v8455, %v7756
        %v8498 = vadd.f32 %v8458, %v7757
        %v8499 = vadd.f32 %v8463, %v7758
        %v8500 = vadd.f32 %v8466, %v7759
        %8501 = vadd.xlane.f32.xlu0 %v8469
        %v8502 = vpop.xlane.xlu0 %8501
        %8503 = vadd.xlane.f32.xlu0 %v8470
        %v8504 = vpop.xlane.xlu0 %8503
        %8505 = vadd.xlane.f32.xlu0 %v8471
        %v8506 = vpop.xlane.xlu0 %8505
        %8507 = vadd.xlane.f32.xlu0 %v8472
        %v8508 = vpop.xlane.xlu0 %8507
        %8509 = vadd.xlane.f32.xlu0 %v8473
        %v8510 = vpop.xlane.xlu0 %8509
        %8511 = vadd.xlane.f32.xlu0 %v8474
        %v8512 = vpop.xlane.xlu0 %8511
        %8513 = vadd.xlane.f32.xlu0 %v8475
        %v8514 = vpop.xlane.xlu0 %8513
        %8515 = vadd.xlane.f32.xlu0 %v8476
        %v8516 = vpop.xlane.xlu0 %8515
        %8517 = vadd.xlane.f32.xlu0 %v8477
        %v8518 = vpop.xlane.xlu0 %8517
        %8519 = vadd.xlane.f32.xlu0 %v8478
        %v8520 = vpop.xlane.xlu0 %8519
        %8521 = vadd.xlane.f32.xlu0 %v8479
        %v8522 = vpop.xlane.xlu0 %8521
        %8523 = vadd.xlane.f32.xlu0 %v8480
        %v8524 = vpop.xlane.xlu0 %8523
        %8525 = vadd.xlane.f32.xlu0 %v8481
        %v8526 = vpop.xlane.xlu0 %8525
        %8527 = vadd.xlane.f32.xlu0 %v8482
        %v8528 = vpop.xlane.xlu0 %8527
        %8529 = vadd.xlane.f32.xlu0 %v8483
        %v8530 = vpop.xlane.xlu0 %8529
        %8531 = vadd.xlane.f32.xlu0 %v8484
        %v8532 = vpop.xlane.xlu0 %8531
        %8533 = vadd.xlane.f32.xlu0 %v8485
        %v8534 = vpop.xlane.xlu0 %8533
        %8535 = vadd.xlane.f32.xlu0 %v8486
        %v8536 = vpop.xlane.xlu0 %8535
        %8537 = vadd.xlane.f32.xlu0 %v8487
        %v8538 = vpop.xlane.xlu0 %8537
        %8539 = vadd.xlane.f32.xlu0 %v8488
        %v8540 = vpop.xlane.xlu0 %8539
        %8541 = vadd.xlane.f32.xlu0 %v8489
        %v8542 = vpop.xlane.xlu0 %8541
        %8543 = vadd.xlane.f32.xlu0 %v8490
        %v8544 = vpop.xlane.xlu0 %8543
        %8545 = vadd.xlane.f32.xlu0 %v8491
        %v8546 = vpop.xlane.xlu0 %8545
        %8547 = vadd.xlane.f32.xlu0 %v8492
        %v8548 = vpop.xlane.xlu0 %8547
        %8549 = vadd.xlane.f32.xlu0 %v8493
        %v8550 = vpop.xlane.xlu0 %8549
        %8551 = vadd.xlane.f32.xlu0 %v8494
        %v8552 = vpop.xlane.xlu0 %8551
        %8553 = vadd.xlane.f32.xlu0 %v8495
        %v8554 = vpop.xlane.xlu0 %8553
        %8555 = vadd.xlane.f32.xlu0 %v8496
        %v8556 = vpop.xlane.xlu0 %8555
        %8557 = vadd.xlane.f32.xlu0 %v8497
        %v8558 = vpop.xlane.xlu0 %8557
        %8559 = vadd.xlane.f32.xlu0 %v8498
        %v8560 = vpop.xlane.xlu0 %8559
        %8561 = vadd.xlane.f32.xlu0 %v8499
        %v8562 = vpop.xlane.xlu0 %8561
        %8563 = vadd.xlane.f32.xlu0 %v8500
        %v8564 = vpop.xlane.xlu0 %8563
        %v8565 = vmul.f32 %v8502, %v4126
        %v8566 = vmul.f32 %v8504, %v4126
        %v8567 = vmul.f32 %v8506, %v4126
        %v8568 = vmul.f32 %v8508, %v4126
        %v8569 = vmul.f32 %v8510, %v4126
        %v8570 = vmul.f32 %v8512, %v4126
        %v8571 = vmul.f32 %v8514, %v4126
        %v8572 = vmul.f32 %v8516, %v4126
        %v8573 = vmul.f32 %v8518, %v4126
        %v8574 = vmul.f32 %v8520, %v4126
        %v8575 = vmul.f32 %v8522, %v4126
        %v8576 = vmul.f32 %v8524, %v4126
        %v8577 = vmul.f32 %v8526, %v4126
        %v8578 = vmul.f32 %v8528, %v4126
        %v8579 = vmul.f32 %v8530, %v4126
        %v8580 = vmul.f32 %v8532, %v4126
        %v8581 = vmul.f32 %v8534, %v4126
        %v8582 = vmul.f32 %v8536, %v4126
        %v8583 = vmul.f32 %v8538, %v4126
        %v8584 = vmul.f32 %v8540, %v4126
        %v8585 = vmul.f32 %v8542, %v4126
        %v8586 = vmul.f32 %v8544, %v4126
        %v8587 = vmul.f32 %v8546, %v4126
        %v8588 = vmul.f32 %v8548, %v4126
        %v8589 = vmul.f32 %v8550, %v4126
        %v8590 = vmul.f32 %v8552, %v4126
        %v8591 = vmul.f32 %v8554, %v4126
        %v8592 = vmul.f32 %v8556, %v4126
        %v8593 = vmul.f32 %v8558, %v4126
        %v8594 = vmul.f32 %v8560, %v4126
        %v8595 = vmul.f32 %v8562, %v4126
        %v8596 = vmul.f32 %v8564, %v4126
        %v8597 = vsub.f32 %v8469, %v8565
        %v8598 = vsub.f32 %v8470, %v8566
        %v8599 = vsub.f32 %v8471, %v8567
        %v8600 = vsub.f32 %v8472, %v8568
        %v8601 = vsub.f32 %v8473, %v8569
        %v8602 = vsub.f32 %v8474, %v8570
        %v8603 = vsub.f32 %v8475, %v8571
        %v8604 = vsub.f32 %v8476, %v8572
        %v8605 = vsub.f32 %v8477, %v8573
        %v8606 = vsub.f32 %v8478, %v8574
        %v8607 = vsub.f32 %v8479, %v8575
        %v8608 = vsub.f32 %v8480, %v8576
        %v8609 = vsub.f32 %v8481, %v8577
        %v8610 = vsub.f32 %v8482, %v8578
        %v8611 = vsub.f32 %v8483, %v8579
        %v8612 = vsub.f32 %v8484, %v8580
        %v8613 = vsub.f32 %v8485, %v8581
        %v8614 = vsub.f32 %v8486, %v8582
        %v8615 = vsub.f32 %v8487, %v8583
        %v8616 = vsub.f32 %v8488, %v8584
        %v8617 = vsub.f32 %v8489, %v8585
        %v8618 = vsub.f32 %v8490, %v8586
        %v8619 = vsub.f32 %v8491, %v8587
        %v8620 = vsub.f32 %v8492, %v8588
        %v8621 = vsub.f32 %v8493, %v8589
        %v8622 = vsub.f32 %v8494, %v8590
        %v8623 = vsub.f32 %v8495, %v8591
        %v8624 = vsub.f32 %v8496, %v8592
        %v8625 = vsub.f32 %v8497, %v8593
        %v8626 = vsub.f32 %v8498, %v8594
        %v8627 = vsub.f32 %v8499, %v8595
        %v8628 = vsub.f32 %v8500, %v8596
        %v8629 = vmul.f32 %v8597, %v8597
        %v8630 = vmul.f32 %v8598, %v8598
        %v8631 = vmul.f32 %v8599, %v8599
        %v8632 = vmul.f32 %v8600, %v8600
        %v8633 = vmul.f32 %v8601, %v8601
        %v8634 = vmul.f32 %v8602, %v8602
        %v8635 = vmul.f32 %v8603, %v8603
        %v8636 = vmul.f32 %v8604, %v8604
        %v8637 = vmul.f32 %v8605, %v8605
        %v8638 = vmul.f32 %v8606, %v8606
        %v8639 = vmul.f32 %v8607, %v8607
        %v8640 = vmul.f32 %v8608, %v8608
        %v8641 = vmul.f32 %v8609, %v8609
        %v8642 = vmul.f32 %v8610, %v8610
        %v8643 = vmul.f32 %v8611, %v8611
        %v8644 = vmul.f32 %v8612, %v8612
        %v8645 = vmul.f32 %v8613, %v8613
        %v8646 = vmul.f32 %v8614, %v8614
        %v8647 = vmul.f32 %v8615, %v8615
        %v8648 = vmul.f32 %v8616, %v8616
        %v8649 = vmul.f32 %v8617, %v8617
        %v8650 = vmul.f32 %v8618, %v8618
        %v8651 = vmul.f32 %v8619, %v8619
        %v8652 = vmul.f32 %v8620, %v8620
        %v8653 = vmul.f32 %v8621, %v8621
        %v8654 = vmul.f32 %v8622, %v8622
        %v8655 = vmul.f32 %v8623, %v8623
        %v8656 = vmul.f32 %v8624, %v8624
        %v8657 = vmul.f32 %v8625, %v8625
        %v8658 = vmul.f32 %v8626, %v8626
        %v8659 = vmul.f32 %v8627, %v8627
        %v8660 = vmul.f32 %v8628, %v8628
        %8661 = vadd.xlane.f32.xlu0 %v8629
        %v8662 = vpop.xlane.xlu0 %8661
        %8663 = vadd.xlane.f32.xlu0 %v8630
        %v8664 = vpop.xlane.xlu0 %8663
        %8665 = vadd.xlane.f32.xlu0 %v8631
        %v8666 = vpop.xlane.xlu0 %8665
        %8667 = vadd.xlane.f32.xlu0 %v8632
        %v8668 = vpop.xlane.xlu0 %8667
        %8669 = vadd.xlane.f32.xlu0 %v8633
        %v8670 = vpop.xlane.xlu0 %8669
        %8671 = vadd.xlane.f32.xlu0 %v8634
        %v8672 = vpop.xlane.xlu0 %8671
        %8673 = vadd.xlane.f32.xlu0 %v8635
        %v8674 = vpop.xlane.xlu0 %8673
        %8675 = vadd.xlane.f32.xlu0 %v8636
        %v8676 = vpop.xlane.xlu0 %8675
        %8677 = vadd.xlane.f32.xlu0 %v8637
        %v8678 = vpop.xlane.xlu0 %8677
        %8679 = vadd.xlane.f32.xlu0 %v8638
        %v8680 = vpop.xlane.xlu0 %8679
        %8681 = vadd.xlane.f32.xlu0 %v8639
        %v8682 = vpop.xlane.xlu0 %8681
        %8683 = vadd.xlane.f32.xlu0 %v8640
        %v8684 = vpop.xlane.xlu0 %8683
        %8685 = vadd.xlane.f32.xlu0 %v8641
        %v8686 = vpop.xlane.xlu0 %8685
        %8687 = vadd.xlane.f32.xlu0 %v8642
        %v8688 = vpop.xlane.xlu0 %8687
        %8689 = vadd.xlane.f32.xlu0 %v8643
        %v8690 = vpop.xlane.xlu0 %8689
        %8691 = vadd.xlane.f32.xlu0 %v8644
        %v8692 = vpop.xlane.xlu0 %8691
        %8693 = vadd.xlane.f32.xlu0 %v8645
        %v8694 = vpop.xlane.xlu0 %8693
        %8695 = vadd.xlane.f32.xlu0 %v8646
        %v8696 = vpop.xlane.xlu0 %8695
        %8697 = vadd.xlane.f32.xlu0 %v8647
        %v8698 = vpop.xlane.xlu0 %8697
        %8699 = vadd.xlane.f32.xlu0 %v8648
        %v8700 = vpop.xlane.xlu0 %8699
        %8701 = vadd.xlane.f32.xlu0 %v8649
        %v8702 = vpop.xlane.xlu0 %8701
        %8703 = vadd.xlane.f32.xlu0 %v8650
        %v8704 = vpop.xlane.xlu0 %8703
        %8705 = vadd.xlane.f32.xlu0 %v8651
        %v8706 = vpop.xlane.xlu0 %8705
        %8707 = vadd.xlane.f32.xlu0 %v8652
        %v8708 = vpop.xlane.xlu0 %8707
        %8709 = vadd.xlane.f32.xlu0 %v8653
        %v8710 = vpop.xlane.xlu0 %8709
        %8711 = vadd.xlane.f32.xlu0 %v8654
        %v8712 = vpop.xlane.xlu0 %8711
        %8713 = vadd.xlane.f32.xlu0 %v8655
        %v8714 = vpop.xlane.xlu0 %8713
        %8715 = vadd.xlane.f32.xlu0 %v8656
        %v8716 = vpop.xlane.xlu0 %8715
        %8717 = vadd.xlane.f32.xlu0 %v8657
        %v8718 = vpop.xlane.xlu0 %8717
        %8719 = vadd.xlane.f32.xlu0 %v8658
        %v8720 = vpop.xlane.xlu0 %8719
        %8721 = vadd.xlane.f32.xlu0 %v8659
        %v8722 = vpop.xlane.xlu0 %8721
        %8723 = vadd.xlane.f32.xlu0 %v8660
        %v8724 = vpop.xlane.xlu0 %8723
        %v8725 = vmul.f32 %v8662, %v4126
        %v8726 = vmul.f32 %v8664, %v4126
        %v8727 = vmul.f32 %v8666, %v4126
        %v8728 = vmul.f32 %v8668, %v4126
        %v8729 = vmul.f32 %v8670, %v4126
        %v8730 = vmul.f32 %v8672, %v4126
        %v8731 = vmul.f32 %v8674, %v4126
        %v8732 = vmul.f32 %v8676, %v4126
        %v8733 = vmul.f32 %v8678, %v4126
        %v8734 = vmul.f32 %v8680, %v4126
        %v8735 = vmul.f32 %v8682, %v4126
        %v8736 = vmul.f32 %v8684, %v4126
        %v8737 = vmul.f32 %v8686, %v4126
        %v8738 = vmul.f32 %v8688, %v4126
        %v8739 = vmul.f32 %v8690, %v4126
        %v8740 = vmul.f32 %v8692, %v4126
        %v8741 = vmul.f32 %v8694, %v4126
        %v8742 = vmul.f32 %v8696, %v4126
        %v8743 = vmul.f32 %v8698, %v4126
        %v8744 = vmul.f32 %v8700, %v4126
        %v8745 = vmul.f32 %v8702, %v4126
        %v8746 = vmul.f32 %v8704, %v4126
        %v8747 = vmul.f32 %v8706, %v4126
        %v8748 = vmul.f32 %v8708, %v4126
        %v8749 = vmul.f32 %v8710, %v4126
        %v8750 = vmul.f32 %v8712, %v4126
        %v8751 = vmul.f32 %v8714, %v4126
        %v8752 = vmul.f32 %v8716, %v4126
        %v8753 = vmul.f32 %v8718, %v4126
        %v8754 = vmul.f32 %v8720, %v4126
        %v8755 = vmul.f32 %v8722, %v4126
        %v8756 = vmul.f32 %v8724, %v4126
        %v8757 = vadd.f32 %v8725, 1e-05
        %v8758 = vadd.f32 %v8726, 1e-05
        %v8759 = vadd.f32 %v8727, 1e-05
        %v8760 = vadd.f32 %v8728, 1e-05
        %v8761 = vadd.f32 %v8729, 1e-05
        %v8762 = vadd.f32 %v8730, 1e-05
        %v8763 = vadd.f32 %v8731, 1e-05
        %v8764 = vadd.f32 %v8732, 1e-05
        %v8765 = vadd.f32 %v8733, 1e-05
        %v8766 = vadd.f32 %v8734, 1e-05
        %v8767 = vadd.f32 %v8735, 1e-05
        %v8768 = vadd.f32 %v8736, 1e-05
        %v8769 = vadd.f32 %v8737, 1e-05
        %v8770 = vadd.f32 %v8738, 1e-05
        %v8771 = vadd.f32 %v8739, 1e-05
        %v8772 = vadd.f32 %v8740, 1e-05
        %v8773 = vadd.f32 %v8741, 1e-05
        %v8774 = vadd.f32 %v8742, 1e-05
        %v8775 = vadd.f32 %v8743, 1e-05
        %v8776 = vadd.f32 %v8744, 1e-05
        %v8777 = vadd.f32 %v8745, 1e-05
        %v8778 = vadd.f32 %v8746, 1e-05
        %v8779 = vadd.f32 %v8747, 1e-05
        %v8780 = vadd.f32 %v8748, 1e-05
        %v8781 = vadd.f32 %v8749, 1e-05
        %v8782 = vadd.f32 %v8750, 1e-05
        %v8783 = vadd.f32 %v8751, 1e-05
        %v8784 = vadd.f32 %v8752, 1e-05
        %v8785 = vadd.f32 %v8753, 1e-05
        %v8786 = vadd.f32 %v8754, 1e-05
        %v8787 = vadd.f32 %v8755, 1e-05
        %v8788 = vadd.f32 %v8756, 1e-05
        %v8789 = vrsqrt.pop %v8757
        %v8790 = vrsqrt.pop %v8758
        %v8791 = vrsqrt.pop %v8759
        %v8792 = vrsqrt.pop %v8760
        %v8793 = vrsqrt.pop %v8761
        %v8794 = vrsqrt.pop %v8762
        %v8795 = vrsqrt.pop %v8763
        %v8796 = vrsqrt.pop %v8764
        %v8797 = vrsqrt.pop %v8765
        %v8798 = vrsqrt.pop %v8766
        %v8799 = vrsqrt.pop %v8767
        %v8800 = vrsqrt.pop %v8768
        %v8801 = vrsqrt.pop %v8769
        %v8802 = vrsqrt.pop %v8770
        %v8803 = vrsqrt.pop %v8771
        %v8804 = vrsqrt.pop %v8772
        %v8805 = vrsqrt.pop %v8773
        %v8806 = vrsqrt.pop %v8774
        %v8807 = vrsqrt.pop %v8775
        %v8808 = vrsqrt.pop %v8776
        %v8809 = vrsqrt.pop %v8777
        %v8810 = vrsqrt.pop %v8778
        %v8811 = vrsqrt.pop %v8779
        %v8812 = vrsqrt.pop %v8780
        %v8813 = vrsqrt.pop %v8781
        %v8814 = vrsqrt.pop %v8782
        %v8815 = vrsqrt.pop %v8783
        %v8816 = vrsqrt.pop %v8784
        %v8817 = vrsqrt.pop %v8785
        %v8818 = vrsqrt.pop %v8786
        %v8819 = vrsqrt.pop %v8787
        %v8820 = vrsqrt.pop %v8788
        %v8821 = vmul.f32 %v8597, %v8789
        %v8822 = vmul.f32 %v8598, %v8790
        %v8823 = vmul.f32 %v8599, %v8791
        %v8824 = vmul.f32 %v8600, %v8792
        %v8825 = vmul.f32 %v8601, %v8793
        %v8826 = vmul.f32 %v8602, %v8794
        %v8827 = vmul.f32 %v8603, %v8795
        %v8828 = vmul.f32 %v8604, %v8796
        %v8829 = vmul.f32 %v8605, %v8797
        %v8830 = vmul.f32 %v8606, %v8798
        %v8831 = vmul.f32 %v8607, %v8799
        %v8832 = vmul.f32 %v8608, %v8800
        %v8833 = vmul.f32 %v8609, %v8801
        %v8834 = vmul.f32 %v8610, %v8802
        %v8835 = vmul.f32 %v8611, %v8803
        %v8836 = vmul.f32 %v8612, %v8804
        %v8837 = vmul.f32 %v8613, %v8805
        %v8838 = vmul.f32 %v8614, %v8806
        %v8839 = vmul.f32 %v8615, %v8807
        %v8840 = vmul.f32 %v8616, %v8808
        %v8841 = vmul.f32 %v8617, %v8809
        %v8842 = vmul.f32 %v8618, %v8810
        %v8843 = vmul.f32 %v8619, %v8811
        %v8844 = vmul.f32 %v8620, %v8812
        %v8845 = vmul.f32 %v8621, %v8813
        %v8846 = vmul.f32 %v8622, %v8814
        %v8847 = vmul.f32 %v8623, %v8815
        %v8848 = vmul.f32 %v8624, %v8816
        %v8849 = vmul.f32 %v8625, %v8817
        %v8850 = vmul.f32 %v8626, %v8818
        %v8851 = vmul.f32 %v8627, %v8819
        %v8852 = vmul.f32 %v8628, %v8820
        %v8853 = vmul.f32 %v8821, %v4419
        %v8854 = vmul.f32 %v8822, %v4419
        %v8855 = vmul.f32 %v8823, %v4419
        %v8856 = vmul.f32 %v8824, %v4419
        %v8857 = vmul.f32 %v8825, %v4419
        %v8858 = vmul.f32 %v8826, %v4419
        %v8859 = vmul.f32 %v8827, %v4419
        %v8860 = vmul.f32 %v8828, %v4419
        %v8861 = vmul.f32 %v8829, %v4419
        %v8862 = vmul.f32 %v8830, %v4419
        %v8863 = vmul.f32 %v8831, %v4419
        %v8864 = vmul.f32 %v8832, %v4419
        %v8865 = vmul.f32 %v8833, %v4419
        %v8866 = vmul.f32 %v8834, %v4419
        %v8867 = vmul.f32 %v8835, %v4419
        %v8868 = vmul.f32 %v8836, %v4419
        %v8869 = vmul.f32 %v8837, %v4419
        %v8870 = vmul.f32 %v8838, %v4419
        %v8871 = vmul.f32 %v8839, %v4419
        %v8872 = vmul.f32 %v8840, %v4419
        %v8873 = vmul.f32 %v8841, %v4419
        %v8874 = vmul.f32 %v8842, %v4419
        %v8875 = vmul.f32 %v8843, %v4419
        %v8876 = vmul.f32 %v8844, %v4419
        %v8877 = vmul.f32 %v8845, %v4419
        %v8878 = vmul.f32 %v8846, %v4419
        %v8879 = vmul.f32 %v8847, %v4419
        %v8880 = vmul.f32 %v8848, %v4419
        %v8881 = vmul.f32 %v8849, %v4419
        %v8882 = vmul.f32 %v8850, %v4419
        %v8883 = vmul.f32 %v8851, %v4419
        %v8884 = vmul.f32 %v8852, %v4419
        %v8885 = vadd.f32 %v8853, %v4457
        %v8886 = vadd.f32 %v8854, %v4457
        %v8887 = vadd.f32 %v8855, %v4457
        %v8888 = vadd.f32 %v8856, %v4457
        %v8889 = vadd.f32 %v8857, %v4457
        %v8890 = vadd.f32 %v8858, %v4457
        %v8891 = vadd.f32 %v8859, %v4457
        %v8892 = vadd.f32 %v8860, %v4457
        %v8893 = vadd.f32 %v8861, %v4457
        %v8894 = vadd.f32 %v8862, %v4457
        %v8895 = vadd.f32 %v8863, %v4457
        %v8896 = vadd.f32 %v8864, %v4457
        %v8897 = vadd.f32 %v8865, %v4457
        %v8898 = vadd.f32 %v8866, %v4457
        %v8899 = vadd.f32 %v8867, %v4457
        %v8900 = vadd.f32 %v8868, %v4457
        %v8901 = vadd.f32 %v8869, %v4457
        %v8902 = vadd.f32 %v8870, %v4457
        %v8903 = vadd.f32 %v8871, %v4457
        %v8904 = vadd.f32 %v8872, %v4457
        %v8905 = vadd.f32 %v8873, %v4457
        %v8906 = vadd.f32 %v8874, %v4457
        %v8907 = vadd.f32 %v8875, %v4457
        %v8908 = vadd.f32 %v8876, %v4457
        %v8909 = vadd.f32 %v8877, %v4457
        %v8910 = vadd.f32 %v8878, %v4457
        %v8911 = vadd.f32 %v8879, %v4457
        %v8912 = vadd.f32 %v8880, %v4457
        %v8913 = vadd.f32 %v8881, %v4457
        %v8914 = vadd.f32 %v8882, %v4457
        %v8915 = vadd.f32 %v8883, %v4457
        %v8916 = vadd.f32 %v8884, %v4457
        %8917 = vst [vmem:[#allocation16] sm:$0xff] %v8885
        %8918 = vst [vmem:[#allocation16 + $0x8] sm:$0xff] %v8886
        %8919 = vst [vmem:[#allocation16 + $0x10] sm:$0xff] %v8887
        %8920 = vst [vmem:[#allocation16 + $0x18] sm:$0xff] %v8888
        %8921 = vst [vmem:[#allocation16 + $0x20] sm:$0xff] %v8889
        %8922 = vst [vmem:[#allocation16 + $0x28] sm:$0xff] %v8890
        %8923 = vst [vmem:[#allocation16 + $0x30] sm:$0xff] %v8891
        %8924 = vst [vmem:[#allocation16 + $0x38] sm:$0xff] %v8892
        %8925 = vst [vmem:[#allocation16 + $0x40] sm:$0xff] %v8893
        %8926 = vst [vmem:[#allocation16 + $0x48] sm:$0xff] %v8894
        %8927 = vst [vmem:[#allocation16 + $0x50] sm:$0xff] %v8895
        %8928 = vst [vmem:[#allocation16 + $0x58] sm:$0xff] %v8896
        %8929 = vst [vmem:[#allocation16 + $0x60] sm:$0xff] %v8897
        %8930 = vst [vmem:[#allocation16 + $0x68] sm:$0xff] %v8898
        %8931 = vst [vmem:[#allocation16 + $0x70] sm:$0xff] %v8899
        %8932 = vst [vmem:[#allocation16 + $0x78] sm:$0xff] %v8900
        %8933 = vst [vmem:[#allocation16 + $0x80] sm:$0xff] %v8901
        %8934 = vst [vmem:[#allocation16 + $0x88] sm:$0xff] %v8902
        %8935 = vst [vmem:[#allocation16 + $0x90] sm:$0xff] %v8903
        %8936 = vst [vmem:[#allocation16 + $0x98] sm:$0xff] %v8904
        %8937 = vst [vmem:[#allocation16 + $0xa0] sm:$0xff] %v8905
        %8938 = vst [vmem:[#allocation16 + $0xa8] sm:$0xff] %v8906
        %8939 = vst [vmem:[#allocation16 + $0xb0] sm:$0xff] %v8907
        %8940 = vst [vmem:[#allocation16 + $0xb8] sm:$0xff] %v8908
        %8941 = vst [vmem:[#allocation16 + $0xc0] sm:$0xff] %v8909
        %8942 = vst [vmem:[#allocation16 + $0xc8] sm:$0xff] %v8910
        %8943 = vst [vmem:[#allocation16 + $0xd0] sm:$0xff] %v8911
        %8944 = vst [vmem:[#allocation16 + $0xd8] sm:$0xff] %v8912
        %8945 = vst [vmem:[#allocation16 + $0xe0] sm:$0xff] %v8913
        %8946 = vst [vmem:[#allocation16 + $0xe8] sm:$0xff] %v8914
        %8947 = vst [vmem:[#allocation16 + $0xf0] sm:$0xff] %v8915
        %8948 = vst [vmem:[#allocation16 + $0xf8] sm:$0xff] %v8916
        // Predicated region
        $region137: #{tpu_custom_call.1} parent=91 // pred_check
          %p8949 = pneg %p530
        $region138: #{tpu_custom_call.1} parent=91 // pred_check_branch
          %8951 = sbr.rel (%p8949) target = $region140
        $region139: #{tpu_custom_call.1} parent=91 // pred_region
          %s8952 = smul.u32 2, %s36
          %s8954 = ssub.s32 4096, 4096
          %8955 = vsyncadd [#allocation5], %s8954
          %s8956 = smul.addr %s8952, 16
          %s8957 = smul.addr %s8956, 128
          %s8958 = scalar_lea.hbm %s18, %s8957
          %s8959 = sshll.u32 [#allocation16], 4
          %s8960 = int_to_ptr.vmem [resolvable:$true] %s8959
          %8965 = dma.vmem_to_hbm [thread:$0]  %s8960, 4096, %s8958, [#allocation5], 128, 128, 8
        $region140: #{tpu_custom_call.1} parent=91 // pred_fallthru
          _
        // Predicated region
        $region141: #{tpu_custom_call.1} parent=91 // pred_check
          %p8966 = pneg %p530
        $region142: #{tpu_custom_call.1} parent=91 // pred_check_branch
          %8968 = sbr.rel (%p8966) target = $region144
        $region143: #{tpu_custom_call.1} parent=91 // pred_region
          %8969 = dma.done [#allocation5], 4096
        $region144: #{tpu_custom_call.1} parent=91 // pred_fallthru
          _
      $region92: #{tpu_custom_call.1} parent=5 // pred_fallthru
        _
      %p8970 = scmp.le.s32.totalorder 2, %s27
      // Predicated region
      $region145: #{tpu_custom_call.1} parent=5 // pred_check
        %p8971 = pneg %p8970
      $region146: #{tpu_custom_call.1} parent=5 // pred_check_branch
        %8973 = sbr.rel (%p8971) target = $region148
      $region147: #{tpu_custom_call.1} parent=5 // pred_region
        %s8974 = ssub.s32 %s27, 2
      $region148: #{tpu_custom_call.1} parent=5 // pred_fallthru
        _
    $region6: #{tpu_custom_call.1} parent=1 // loop_footer
      %s31 = sadd.s32 1, %s27
    $region7: #{tpu_custom_call.1} parent=1 // loop_footer_branch
      %26 = sbr.rel target = $region3
    $region8: #{tpu_custom_call.1} parent=1 // loop_exit
      _
    %8975 = vsyncpa [#allocation4], 1
    %s8976 = scalar_lea.sflag [#allocation4], 1
    %8977 = vsyncpa %s8976, 1
    %8978 = vsyncpa [#allocation7], 1
    %8979 = vsyncpa [#allocation5], 1
    %s8980 = scalar_lea.sflag [#allocation5], 1
    %8981 = vsyncpa %s8980, 1

</llo_original>
